<compile_context>
chip_gen: v7x
topology: tpu7x:2x2x1
jax: 0.10.0
libtpu: 0.0.40
codegen_flags: <defaults>
</compile_context>

<pallas_src>
import math

import jax
import jax.numpy as jnp
from jax.experimental import pallas as pl
from jax.experimental.pallas import tpu as pltpu

EPS = 1e-5          # nn.BatchNorm1d default eps
FEATURES = 16       # init_features


# ----------------------------- in-kernel helpers -----------------------------
def _stage(buf, n, x, L, C):
    """Stage x (L, C) into padded rows [1, L+1) of buf[n]; zero the two boundary rows."""
    zrow = jnp.zeros((1, C), jnp.float32)
    buf[n, 0:1, 0:C] = zrow
    buf[n, L + 1:L + 2, 0:C] = zrow
    buf[n, 1:L + 1, 0:C] = x


def _stage_pool2(buf, n, x, L, C):
    """MaxPool1d(k=2, s=2) of x (L, C), fused into the staging of the next conv's input."""
    Lh = L // 2
    zrow = jnp.zeros((1, C), jnp.float32)
    buf[n, 0:1, 0:C] = zrow
    buf[n, Lh + 1:Lh + 2, 0:C] = zrow
    for l in range(Lh):
        buf[n, l + 1:l + 2, 0:C] = jnp.maximum(x[2 * l:2 * l + 1, :], x[2 * l + 1:2 * l + 2, :])


def _stage_interleave(buf, n, even, odd, L, C):
    """ConvTranspose1d(k=2,s=2) phase interleave: even/odd (L, C) -> padded rows (2L) of buf[n]."""
    zrow = jnp.zeros((1, C), jnp.float32)
    buf[n, 0:1, 0:C] = zrow
    buf[n, 2 * L + 1:2 * L + 2, 0:C] = zrow
    for l in range(L):
        buf[n, 2 * l + 1:2 * l + 2, 0:C] = even[l:l + 1, :]
        buf[n, 2 * l + 2:2 * l + 3, 0:C] = odd[l:l + 1, :]


def _conv3_taps(buf, n, L, Ci, w_ref, y=None):
    """'same' Conv1d(k=3, bias=False) reading the padded staging buffer for sample n.
    buf[n] rows [0, L+2) x cols [0, Ci) hold the zero-padded input; w_ref: (3, Ci, Co).
    Accumulates into y (for split skip weights) if given.  Returns (L, Co) f32."""
    Co = w_ref.shape[2]
    xs = buf[n]                                    # (Lmax+2, Cmax) f32
    if y is None:
        y = jnp.zeros((L, Co), jnp.float32)
    for k in range(3):                             # static unroll over the 3 taps
        a = xs[k:k + L, 0:Ci]                      # (L, Ci)  == x[l + k - 1]
        w = w_ref[k]                               # (Ci, Co)
        if Ci == 1:
            y = y + a * w                          # (L,1)*(1,Co) broadcast (avoid K=1 matmul)
        else:
            y = y + jnp.dot(a, w, preferred_element_type=jnp.float32)
    return y


def _bn_tanh(ys, g_ref, b_ref):
    """Training-mode BatchNorm1d (stats over (N, L)) + Tanh, single-pass statistics.
    ys: list of per-sample (L, Co) conv outputs."""
    cnt = float(sum(y.shape[0] for y in ys))
    s = sum(jnp.sum(y, axis=0, keepdims=True) for y in ys)            # (1, Co)
    ss = sum(jnp.sum(y * y, axis=0, keepdims=True) for y in ys)       # (1, Co)
    mean = s / cnt
    var = ss / cnt - mean * mean                                      # biased variance
    scale = g_ref[...] * jax.lax.rsqrt(var + EPS)
    shift = b_ref[...] - mean * scale
    return [jnp.tanh(y * scale + shift) for y in ys]


def _conv_bn_tanh(buf, N, L, stagers, tap_specs, g_ref, b_ref):
    """One fused (conv3 -> BN -> tanh) layer.  `stagers[p](n)` stages input piece p of sample n
    into the padded buffer; `tap_specs[p] = (Ci, w_ref)` is the matching (split) weight."""
    ys = []
    for n in range(N):
        y = None
        for stage_fn, (Ci, w_ref) in zip(stagers, tap_specs):
            stage_fn(n)
            y = _conv3_taps(buf, n, L, Ci, w_ref, y)
        ys.append(y)
    return _bn_tanh(ys, g_ref, b_ref)


# --------------------------------- the kernel ---------------------------------
def unet1d_kernel(
    x_ref,
    e1w1, e1g1, e1b1, e1w2, e1g2, e1b2,
    e2w1, e2g1, e2b1, e2w2, e2g2, e2b2,
    btw1, btg1, btb1, btw2, btg2, btb2,
    u2w, u2b,
    d2w1d, d2w1e, d2g1, d2b1, d2w2, d2g2, d2b2,
    u1w, u1b,
    d1w1d, d1w1e, d1g1, d1b1, d1w2, d1g2, d1b2,
    fw, fb,
    o_ref, buf,
):
    N, L, Cin = x_ref.shape
    F = e1w1.shape[2]
    L2, L4 = L // 2, L // 4

    # ---------------- encoder 1: (L, Cin) -> (L, F) ----------------
    h = _conv_bn_tanh(buf, N, L, [lambda n: _stage(buf, n, x_ref[n], L, Cin)],
                      [(Cin, e1w1)], e1g1, e1b1)
    enc1 = _conv_bn_tanh(buf, N, L, [lambda n: _stage(buf, n, h[n], L, F)],
                         [(F, e1w2)], e1g2, e1b2)

    # ---------------- encoder 2: pool -> (L/2, 2F) ----------------
    h = _conv_bn_tanh(buf, N, L2, [lambda n: _stage_pool2(buf, n, enc1[n], L, F)],
                      [(F, e2w1)], e2g1, e2b1)
    enc2 = _conv_bn_tanh(buf, N, L2, [lambda n: _stage(buf, n, h[n], L2, 2 * F)],
                         [(2 * F, e2w2)], e2g2, e2b2)

    # ---------------- bottleneck: pool -> (L/4, 4F) ----------------
    h = _conv_bn_tanh(buf, N, L4, [lambda n: _stage_pool2(buf, n, enc2[n], L2, 2 * F)],
                      [(2 * F, btw1)], btg1, btb1)
    bott = _conv_bn_tanh(buf, N, L4, [lambda n: _stage(buf, n, h[n], L4, 4 * F)],
                         [(4 * F, btw2)], btg2, btb2)

    # ------- decoder 2: upconv (4F -> 2F, len x2) + skip(enc2) via split weights -------
    u2bias = u2b[...]
    u2w0, u2w1 = u2w[0], u2w[1]
    up2_even = [jnp.dot(bott[n], u2w0, preferred_element_type=jnp.float32) + u2bias
                for n in range(N)]
    up2_odd = [jnp.dot(bott[n], u2w1, preferred_element_type=jnp.float32) + u2bias
               for n in range(N)]
    h = _conv_bn_tanh(
        buf, N, L2,
        [lambda n: _stage_interleave(buf, n, up2_even[n], up2_odd[n], L4, 2 * F),
         lambda n: _stage(buf, n, enc2[n], L2, 2 * F)],
        [(2 * F, d2w1d), (2 * F, d2w1e)], d2g1, d2b1)
    dec2 = _conv_bn_tanh(buf, N, L2, [lambda n: _stage(buf, n, h[n], L2, 2 * F)],
                         [(2 * F, d2w2)], d2g2, d2b2)

    # ------- decoder 1: upconv (2F -> F, len x2) + skip(enc1) via split weights -------
    u1bias = u1b[...]
    u1w0, u1w1 = u1w[0], u1w[1]
    up1_even = [jnp.dot(dec2[n], u1w0, preferred_element_type=jnp.float32) + u1bias
                for n in range(N)]
    up1_odd = [jnp.dot(dec2[n], u1w1, preferred_element_type=jnp.float32) + u1bias
               for n in range(N)]
    h = _conv_bn_tanh(
        buf, N, L,
        [lambda n: _stage_interleave(buf, n, up1_even[n], up1_odd[n], L2, F),
         lambda n: _stage(buf, n, enc1[n], L, F)],
        [(F, d1w1d), (F, d1w1e)], d1g1, d1b1)
    dec1 = _conv_bn_tanh(buf, N, L, [lambda n: _stage(buf, n, h[n], L, F)],
                         [(F, d1w2)], d1g2, d1b2)

    # ---------------- final Conv1d(kernel=1) with bias ----------------
    wf = fw[...]
    bf = fb[...]
    for n in range(N):
        o_ref[n] = jnp.dot(dec1[n], wf, preferred_element_type=jnp.float32) + bf


# --------------------------- pallas_call plumbing ---------------------------
def _full_spec(a):
    nd = a.ndim
    return pl.BlockSpec(a.shape, lambda i, _nd=nd: (0,) * _nd)


def unet1d_forward(x_ncl, P):
    """x_ncl: (N, Cin, L) like PyTorch; returns (N, 3, L).  One fused pallas_call."""
    N, Cin, L = x_ncl.shape
    F = FEATURES
    x_nlc = jnp.transpose(x_ncl, (0, 2, 1))                 # glue: NCL -> NLC

    def wk(w):                                              # (Co, Ci, 3) -> (3, Ci, Co)
        return jnp.transpose(w, (2, 1, 0))

    def wt(w):                                              # (Ci, Co, 2) -> (2, Ci, Co)
        return jnp.transpose(w, (2, 0, 1))

    def gb(v):
        return v.reshape(1, -1)

    # split decoder first-conv weights; torch.cat((dec, enc), dim=1) => dec channels first
    d2w1 = wk(P["dec2"]["w1"])                              # (3, 4F, 2F)
    d1w1 = wk(P["dec1"]["w1"])                              # (3, 2F, F)

    args = [
        x_nlc,
        wk(P["enc1"]["w1"]), gb(P["enc1"]["g1"]), gb(P["enc1"]["b1"]),
        wk(P["enc1"]["w2"]), gb(P["enc1"]["g2"]), gb(P["enc1"]["b2"]),
        wk(P["enc2"]["w1"]), gb(P["enc2"]["g1"]), gb(P["enc2"]["b1"]),
        wk(P["enc2"]["w2"]), gb(P["enc2"]["g2"]), gb(P["enc2"]["b2"]),
        wk(P["bottleneck"]["w1"]), gb(P["bottleneck"]["g1"]), gb(P["bottleneck"]["b1"]),
        wk(P["bottleneck"]["w2"]), gb(P["bottleneck"]["g2"]), gb(P["bottleneck"]["b2"]),
        wt(P["upconv2_w"]), gb(P["upconv2_b"]),
        d2w1[:, :2 * F, :], d2w1[:, 2 * F:, :],
        gb(P["dec2"]["g1"]), gb(P["dec2"]["b1"]),
        wk(P["dec2"]["w2"]), gb(P["dec2"]["g2"]), gb(P["dec2"]["b2"]),
        wt(P["upconv1_w"]), gb(P["upconv1_b"]),
        d1w1[:, :F, :], d1w1[:, F:, :],
        gb(P["dec1"]["g1"]), gb(P["dec1"]["b1"]),
        wk(P["dec1"]["w2"]), gb(P["dec1"]["g2"]), gb(P["dec1"]["b2"]),
        jnp.transpose(P["conv_w"][:, :, 0], (1, 0)), gb(P["conv_b"]),
    ]

    out = pl.pallas_call(
        unet1d_kernel,
        out_shape=jax.ShapeDtypeStruct((N, L, 3), jnp.float32),
        grid=(1,),
        in_specs=[_full_spec(a) for a in args],
        out_specs=pl.BlockSpec((N, L, 3), lambda i: (0, 0, 0)),
        scratch_shapes=[pltpu.VMEM((N, L + 2, 4 * F), jnp.float32)],   # padded staging buffer
        compiler_params=pltpu.CompilerParams(dimension_semantics=("arbitrary",)),
    )(*args)
    return jnp.transpose(out, (0, 2, 1))                    # NLC -> NCL (matches PyTorch output)


# ------------------------- pure-JAX reference (NCL) -------------------------
def _ref_conv1d(x, w):
    return jax.lax.conv_general_dilated(
        x, w, window_strides=(1,), padding=[(1, 1)],
        dimension_numbers=("NCH", "OIH", "NCH"),
        precision=jax.lax.Precision.HIGHEST)


def _ref_bn_tanh(x, g, b):
    mean = jnp.mean(x, axis=(0, 2), keepdims=True)
    var = jnp.mean(jnp.square(x - mean), axis=(0, 2), keepdims=True)
    xn = (x - mean) / jnp.sqrt(var + EPS)
    return jnp.tanh(xn * g.reshape(1, -1, 1) + b.reshape(1, -1, 1))


def _ref_block(x, p):
    x = _ref_bn_tanh(_ref_conv1d(x, p["w1"]), p["g1"], p["b1"])
    return _ref_bn_tanh(_ref_conv1d(x, p["w2"]), p["g2"], p["b2"])


def _ref_pool(x):
    N, C, L = x.shape
    return x.reshape(N, C, L // 2, 2).max(axis=-1)


def _ref_upconv(x, w, b):
    y = jnp.einsum("ncl,cok->nolk", x, w, precision=jax.lax.Precision.HIGHEST)
    N, Co, L, K = y.shape
    return y.reshape(N, Co, L * K) + b.reshape(1, -1, 1)


def unet1d_reference(x, P):
    enc1 = _ref_block(x, P["enc1"])
    enc2 = _ref_block(_ref_pool(enc1), P["enc2"])
    bott = _ref_block(_ref_pool(enc2), P["bottleneck"])
    dec2 = _ref_upconv(bott, P["upconv2_w"], P["upconv2_b"])
    dec2 = _ref_block(jnp.concatenate([dec2, enc2], axis=1), P["dec2"])
    dec1 = _ref_upconv(dec2, P["upconv1_w"], P["upconv1_b"])
    dec1 = _ref_block(jnp.concatenate([dec1, enc1], axis=1), P["dec1"])
    out = jnp.einsum("ncl,oc->nol", dec1, P["conv_w"][:, :, 0],
                     precision=jax.lax.Precision.HIGHEST)
    return out + P["conv_b"].reshape(1, -1, 1)


# ------------------------------ parameter init ------------------------------
def init_params(seed=0):
    keys = iter(jax.random.split(jax.random.PRNGKey(seed), 64))

    def conv_w(co, ci, k):
        return (1.0 / math.sqrt(ci * k)) * jax.random.normal(next(keys), (co, ci, k), jnp.float32)

    def bn(c):
        g = 1.0 + 0.1 * jax.random.normal(next(keys), (c,), jnp.float32)
        b = 0.1 * jax.random.normal(next(keys), (c,), jnp.float32)
        return g, b

    def block(ci, co):
        w1 = conv_w(co, ci, 3); g1, b1 = bn(co)
        w2 = conv_w(co, co, 3); g2, b2 = bn(co)
        return dict(w1=w1, g1=g1, b1=b1, w2=w2, g2=g2, b2=b2)

    F = FEATURES
    P = {}
    P["enc1"] = block(1, F)
    P["enc2"] = block(F, 2 * F)
    P["bottleneck"] = block(2 * F, 4 * F)
    P["upconv2_w"] = (1.0 / math.sqrt(4 * F * 2)) * jax.random.normal(next(keys), (4 * F, 2 * F, 2), jnp.float32)
    P["upconv2_b"] = 0.1 * jax.random.normal(next(keys), (2 * F,), jnp.float32)
    P["dec2"] = block(4 * F, 2 * F)
    P["upconv1_w"] = (1.0 / math.sqrt(2 * F * 2)) * jax.random.normal(next(keys), (2 * F, F, 2), jnp.float32)
    P["upconv1_b"] = 0.1 * jax.random.normal(next(keys), (F,), jnp.float32)
    P["dec1"] = block(2 * F, F)
    P["conv_w"] = (1.0 / math.sqrt(F)) * jax.random.normal(next(keys), (3, F, 1), jnp.float32)
    P["conv_b"] = 0.1 * jax.random.normal(next(keys), (3,), jnp.float32)
    return P


# ------------------------------------ main ------------------------------------
if __name__ == "__main__":
    # TODO(synk): BatchNorm running_mean/running_var buffer updates (training side effect)
    # are not reproduced; they do not affect the forward output.
    N, Cin, L = 2, 1, 16      # L must be divisible by 4 (two 2x pools)
    x = jax.random.normal(jax.random.PRNGKey(0), (N, Cin, L), jnp.float32)   # NCL, like PyTorch
    params = init_params(0)

    out = jax.block_until_ready(jax.jit(unet1d_forward)(x, params))
    ref = jax.block_until_ready(unet1d_reference(x, params))

    assert out.shape == (N, 3, L), out.shape
    err = float(jnp.max(jnp.abs(out - ref)))
    assert err < 2e-2, f"kernel/reference mismatch: max abs err = {err}"
    print("KERNEL_OK")
</pallas_src>

<mosaic_0001>
module attributes {stable_mosaic.version = 11 : i64} {
  func.func @unet1d_kernel(%arg0: i32, %arg1: memref<2x16x1xf32, #tpu.memory_space<vmem>>, %arg2: memref<3x1x16xf32, #tpu.memory_space<vmem>>, %arg3: memref<1x16xf32, #tpu.memory_space<vmem>>, %arg4: memref<1x16xf32, #tpu.memory_space<vmem>>, %arg5: memref<3x16x16xf32, #tpu.memory_space<vmem>>, %arg6: memref<1x16xf32, #tpu.memory_space<vmem>>, %arg7: memref<1x16xf32, #tpu.memory_space<vmem>>, %arg8: memref<3x16x32xf32, #tpu.memory_space<vmem>>, %arg9: memref<1x32xf32, #tpu.memory_space<vmem>>, %arg10: memref<1x32xf32, #tpu.memory_space<vmem>>, %arg11: memref<3x32x32xf32, #tpu.memory_space<vmem>>, %arg12: memref<1x32xf32, #tpu.memory_space<vmem>>, %arg13: memref<1x32xf32, #tpu.memory_space<vmem>>, %arg14: memref<3x32x64xf32, #tpu.memory_space<vmem>>, %arg15: memref<1x64xf32, #tpu.memory_space<vmem>>, %arg16: memref<1x64xf32, #tpu.memory_space<vmem>>, %arg17: memref<3x64x64xf32, #tpu.memory_space<vmem>>, %arg18: memref<1x64xf32, #tpu.memory_space<vmem>>, %arg19: memref<1x64xf32, #tpu.memory_space<vmem>>, %arg20: memref<2x64x32xf32, #tpu.memory_space<vmem>>, %arg21: memref<1x32xf32, #tpu.memory_space<vmem>>, %arg22: memref<3x32x32xf32, #tpu.memory_space<vmem>>, %arg23: memref<3x32x32xf32, #tpu.memory_space<vmem>>, %arg24: memref<1x32xf32, #tpu.memory_space<vmem>>, %arg25: memref<1x32xf32, #tpu.memory_space<vmem>>, %arg26: memref<3x32x32xf32, #tpu.memory_space<vmem>>, %arg27: memref<1x32xf32, #tpu.memory_space<vmem>>, %arg28: memref<1x32xf32, #tpu.memory_space<vmem>>, %arg29: memref<2x32x16xf32, #tpu.memory_space<vmem>>, %arg30: memref<1x16xf32, #tpu.memory_space<vmem>>, %arg31: memref<3x16x16xf32, #tpu.memory_space<vmem>>, %arg32: memref<3x16x16xf32, #tpu.memory_space<vmem>>, %arg33: memref<1x16xf32, #tpu.memory_space<vmem>>, %arg34: memref<1x16xf32, #tpu.memory_space<vmem>>, %arg35: memref<3x16x16xf32, #tpu.memory_space<vmem>>, %arg36: memref<1x16xf32, #tpu.memory_space<vmem>>, %arg37: memref<1x16xf32, #tpu.memory_space<vmem>>, %arg38: memref<16x3xf32, #tpu.memory_space<vmem>>, %arg39: memref<1x3xf32, #tpu.memory_space<vmem>>, %arg40: memref<2x16x3xf32, #tpu.memory_space<vmem>>, %arg41: memref<2x18x64xf32, #tpu.memory_space<vmem>>) attributes {dimension_semantics = [#tpu.dimension_semantics<arbitrary>], iteration_bounds = array<i64: 1>, scalar_prefetch = 0 : i64, scratch_operands = 1 : i64, tpu.core_type = #tpu.core_type<tc>, window_params = [{pipeline_mode = #tpu.pipeline_mode<synchronous>, transform_indices = @transform_0, window_bounds = array<i64: 2, 16, 1>}, {pipeline_mode = #tpu.pipeline_mode<synchronous>, transform_indices = @transform_1, window_bounds = array<i64: 3, 1, 16>}, {pipeline_mode = #tpu.pipeline_mode<synchronous>, transform_indices = @transform_2, window_bounds = array<i64: 1, 16>}, {pipeline_mode = #tpu.pipeline_mode<synchronous>, transform_indices = @transform_3, window_bounds = array<i64: 1, 16>}, {pipeline_mode = #tpu.pipeline_mode<synchronous>, transform_indices = @transform_4, window_bounds = array<i64: 3, 16, 16>}, {pipeline_mode = #tpu.pipeline_mode<synchronous>, transform_indices = @transform_5, window_bounds = array<i64: 1, 16>}, {pipeline_mode = #tpu.pipeline_mode<synchronous>, transform_indices = @transform_6, window_bounds = array<i64: 1, 16>}, {pipeline_mode = #tpu.pipeline_mode<synchronous>, transform_indices = @transform_7, window_bounds = array<i64: 3, 16, 32>}, {pipeline_mode = #tpu.pipeline_mode<synchronous>, transform_indices = @transform_8, window_bounds = array<i64: 1, 32>}, {pipeline_mode = #tpu.pipeline_mode<synchronous>, transform_indices = @transform_9, window_bounds = array<i64: 1, 32>}, {pipeline_mode = #tpu.pipeline_mode<synchronous>, transform_indices = @transform_10, window_bounds = array<i64: 3, 32, 32>}, {pipeline_mode = #tpu.pipeline_mode<synchronous>, transform_indices = @transform_11, window_bounds = array<i64: 1, 32>}, {pipeline_mode = #tpu.pipeline_mode<synchronous>, transform_indices = @transform_12, window_bounds = array<i64: 1, 32>}, {pipeline_mode = #tpu.pipeline_mode<synchronous>, transform_indices = @transform_13, window_bounds = array<i64: 3, 32, 64>}, {pipeline_mode = #tpu.pipeline_mode<synchronous>, transform_indices = @transform_14, window_bounds = array<i64: 1, 64>}, {pipeline_mode = #tpu.pipeline_mode<synchronous>, transform_indices = @transform_15, window_bounds = array<i64: 1, 64>}, {pipeline_mode = #tpu.pipeline_mode<synchronous>, transform_indices = @transform_16, window_bounds = array<i64: 3, 64, 64>}, {pipeline_mode = #tpu.pipeline_mode<synchronous>, transform_indices = @transform_17, window_bounds = array<i64: 1, 64>}, {pipeline_mode = #tpu.pipeline_mode<synchronous>, transform_indices = @transform_18, window_bounds = array<i64: 1, 64>}, {pipeline_mode = #tpu.pipeline_mode<synchronous>, transform_indices = @transform_19, window_bounds = array<i64: 2, 64, 32>}, {pipeline_mode = #tpu.pipeline_mode<synchronous>, transform_indices = @transform_20, window_bounds = array<i64: 1, 32>}, {pipeline_mode = #tpu.pipeline_mode<synchronous>, transform_indices = @transform_21, window_bounds = array<i64: 3, 32, 32>}, {pipeline_mode = #tpu.pipeline_mode<synchronous>, transform_indices = @transform_22, window_bounds = array<i64: 3, 32, 32>}, {pipeline_mode = #tpu.pipeline_mode<synchronous>, transform_indices = @transform_23, window_bounds = array<i64: 1, 32>}, {pipeline_mode = #tpu.pipeline_mode<synchronous>, transform_indices = @transform_24, window_bounds = array<i64: 1, 32>}, {pipeline_mode = #tpu.pipeline_mode<synchronous>, transform_indices = @transform_25, window_bounds = array<i64: 3, 32, 32>}, {pipeline_mode = #tpu.pipeline_mode<synchronous>, transform_indices = @transform_26, window_bounds = array<i64: 1, 32>}, {pipeline_mode = #tpu.pipeline_mode<synchronous>, transform_indices = @transform_27, window_bounds = array<i64: 1, 32>}, {pipeline_mode = #tpu.pipeline_mode<synchronous>, transform_indices = @transform_28, window_bounds = array<i64: 2, 32, 16>}, {pipeline_mode = #tpu.pipeline_mode<synchronous>, transform_indices = @transform_29, window_bounds = array<i64: 1, 16>}, {pipeline_mode = #tpu.pipeline_mode<synchronous>, transform_indices = @transform_30, window_bounds = array<i64: 3, 16, 16>}, {pipeline_mode = #tpu.pipeline_mode<synchronous>, transform_indices = @transform_31, window_bounds = array<i64: 3, 16, 16>}, {pipeline_mode = #tpu.pipeline_mode<synchronous>, transform_indices = @transform_32, window_bounds = array<i64: 1, 16>}, {pipeline_mode = #tpu.pipeline_mode<synchronous>, transform_indices = @transform_33, window_bounds = array<i64: 1, 16>}, {pipeline_mode = #tpu.pipeline_mode<synchronous>, transform_indices = @transform_34, window_bounds = array<i64: 3, 16, 16>}, {pipeline_mode = #tpu.pipeline_mode<synchronous>, transform_indices = @transform_35, window_bounds = array<i64: 1, 16>}, {pipeline_mode = #tpu.pipeline_mode<synchronous>, transform_indices = @transform_36, window_bounds = array<i64: 1, 16>}, {pipeline_mode = #tpu.pipeline_mode<synchronous>, transform_indices = @transform_37, window_bounds = array<i64: 16, 3>}, {pipeline_mode = #tpu.pipeline_mode<synchronous>, transform_indices = @transform_38, window_bounds = array<i64: 1, 3>}, {pipeline_mode = #tpu.pipeline_mode<synchronous>, transform_indices = @transform_39, window_bounds = array<i64: 2, 16, 3>}]} {
    %c0 = arith.constant 0 : index
    %c0_0 = arith.constant 0 : index
    %c0_1 = arith.constant 0 : index
    %0 = vector.load %arg1[%c0, %c0_0, %c0_1] : memref<2x16x1xf32, #tpu.memory_space<vmem>>, vector<1x16x1xf32>
    %1 = vector.shape_cast %0 : vector<1x16x1xf32> to vector<16x1xf32>
    %cst = arith.constant 0.000000e+00 : f32
    %2 = vector.broadcast %cst : f32 to vector<1x1xf32>
    %c0_2 = arith.constant 0 : index
    %c0_3 = arith.constant 0 : index
    %c0_4 = arith.constant 0 : index
    %3 = vector.load %arg41[%c0_2, %c0_3, %c0_4] : memref<2x18x64xf32, #tpu.memory_space<vmem>>, vector<1x1x1xf32>
    %4 = vector.shape_cast %3 : vector<1x1x1xf32> to vector<1x1xf32>
    %5 = vector.shape_cast %2 : vector<1x1xf32> to vector<1x1x1xf32>
    tpu.vector_store %arg41[%c0_2, %c0_3, %c0_4], %5 {strides = array<i32>} : memref<2x18x64xf32, #tpu.memory_space<vmem>>, vector<1x1x1xf32>,
    %c0_5 = arith.constant 0 : index
    %c17 = arith.constant 17 : index
    %c0_6 = arith.constant 0 : index
    %6 = vector.load %arg41[%c0_5, %c17, %c0_6] : memref<2x18x64xf32, #tpu.memory_space<vmem>>, vector<1x1x1xf32>
    %7 = vector.shape_cast %6 : vector<1x1x1xf32> to vector<1x1xf32>
    %8 = vector.shape_cast %2 : vector<1x1xf32> to vector<1x1x1xf32>
    tpu.vector_store %arg41[%c0_5, %c17, %c0_6], %8 {strides = array<i32>} : memref<2x18x64xf32, #tpu.memory_space<vmem>>, vector<1x1x1xf32>,
    %c0_7 = arith.constant 0 : index
    %c1 = arith.constant 1 : index
    %c0_8 = arith.constant 0 : index
    %9 = vector.load %arg41[%c0_7, %c1, %c0_8] : memref<2x18x64xf32, #tpu.memory_space<vmem>>, vector<1x16x1xf32>
    %10 = vector.shape_cast %9 : vector<1x16x1xf32> to vector<16x1xf32>
    %11 = vector.shape_cast %1 : vector<16x1xf32> to vector<1x16x1xf32>
    tpu.vector_store %arg41[%c0_7, %c1, %c0_8], %11 {strides = array<i32>} : memref<2x18x64xf32, #tpu.memory_space<vmem>>, vector<1x16x1xf32>,
    %c0_9 = arith.constant 0 : index
    %c0_10 = arith.constant 0 : index
    %c0_11 = arith.constant 0 : index
    %12 = vector.load %arg41[%c0_9, %c0_10, %c0_11] : memref<2x18x64xf32, #tpu.memory_space<vmem>>, vector<1x18x64xf32>
    %13 = vector.shape_cast %12 : vector<1x18x64xf32> to vector<18x64xf32>
    %cst_12 = arith.constant 0.000000e+00 : f32
    %14 = vector.broadcast %cst_12 : f32 to vector<16x16xf32>
    %15 = vector.extract_strided_slice %13 {offsets = [0, 0], sizes = [16, 1], strides = [1, 1]} : vector<18x64xf32> to vector<16x1xf32>
    %c0_13 = arith.constant 0 : index
    %c0_14 = arith.constant 0 : index
    %c0_15 = arith.constant 0 : index
    %16 = vector.load %arg2[%c0_13, %c0_14, %c0_15] : memref<3x1x16xf32, #tpu.memory_space<vmem>>, vector<1x1x16xf32>
    %17 = vector.shape_cast %16 : vector<1x1x16xf32> to vector<1x16xf32>
    %18 = vector.broadcast %15 : vector<16x1xf32> to vector<16x16xf32>
    %19 = vector.broadcast %17 : vector<1x16xf32> to vector<16x16xf32>
    %20 = arith.mulf %18, %19 : vector<16x16xf32>
    %21 = arith.addf %14, %20 : vector<16x16xf32>
    %22 = vector.extract_strided_slice %13 {offsets = [1, 0], sizes = [16, 1], strides = [1, 1]} : vector<18x64xf32> to vector<16x1xf32>
    %c1_16 = arith.constant 1 : index
    %c0_17 = arith.constant 0 : index
    %c0_18 = arith.constant 0 : index
    %23 = vector.load %arg2[%c1_16, %c0_17, %c0_18] : memref<3x1x16xf32, #tpu.memory_space<vmem>>, vector<1x1x16xf32>
    %24 = vector.shape_cast %23 : vector<1x1x16xf32> to vector<1x16xf32>
    %25 = vector.broadcast %22 : vector<16x1xf32> to vector<16x16xf32>
    %26 = vector.broadcast %24 : vector<1x16xf32> to vector<16x16xf32>
    %27 = arith.mulf %25, %26 : vector<16x16xf32>
    %28 = arith.addf %21, %27 : vector<16x16xf32>
    %29 = vector.extract_strided_slice %13 {offsets = [2, 0], sizes = [16, 1], strides = [1, 1]} : vector<18x64xf32> to vector<16x1xf32>
    %c2 = arith.constant 2 : index
    %c0_19 = arith.constant 0 : index
    %c0_20 = arith.constant 0 : index
    %30 = vector.load %arg2[%c2, %c0_19, %c0_20] : memref<3x1x16xf32, #tpu.memory_space<vmem>>, vector<1x1x16xf32>
    %31 = vector.shape_cast %30 : vector<1x1x16xf32> to vector<1x16xf32>
    %32 = vector.broadcast %29 : vector<16x1xf32> to vector<16x16xf32>
    %33 = vector.broadcast %31 : vector<1x16xf32> to vector<16x16xf32>
    %34 = arith.mulf %32, %33 : vector<16x16xf32>
    %35 = arith.addf %28, %34 : vector<16x16xf32>
    %c1_21 = arith.constant 1 : index
    %c0_22 = arith.constant 0 : index
    %c0_23 = arith.constant 0 : index
    %36 = vector.load %arg1[%c1_21, %c0_22, %c0_23] : memref<2x16x1xf32, #tpu.memory_space<vmem>>, vector<1x16x1xf32>
    %37 = vector.shape_cast %36 : vector<1x16x1xf32> to vector<16x1xf32>
    %cst_24 = arith.constant 0.000000e+00 : f32
    %38 = vector.broadcast %cst_24 : f32 to vector<1x1xf32>
    %c1_25 = arith.constant 1 : index
    %c0_26 = arith.constant 0 : index
    %c0_27 = arith.constant 0 : index
    %39 = vector.load %arg41[%c1_25, %c0_26, %c0_27] : memref<2x18x64xf32, #tpu.memory_space<vmem>>, vector<1x1x1xf32>
    %40 = vector.shape_cast %39 : vector<1x1x1xf32> to vector<1x1xf32>
    %41 = vector.shape_cast %38 : vector<1x1xf32> to vector<1x1x1xf32>
    tpu.vector_store %arg41[%c1_25, %c0_26, %c0_27], %41 {strides = array<i32>} : memref<2x18x64xf32, #tpu.memory_space<vmem>>, vector<1x1x1xf32>,
    %c1_28 = arith.constant 1 : index
    %c17_29 = arith.constant 17 : index
    %c0_30 = arith.constant 0 : index
    %42 = vector.load %arg41[%c1_28, %c17_29, %c0_30] : memref<2x18x64xf32, #tpu.memory_space<vmem>>, vector<1x1x1xf32>
    %43 = vector.shape_cast %42 : vector<1x1x1xf32> to vector<1x1xf32>
    %44 = vector.shape_cast %38 : vector<1x1xf32> to vector<1x1x1xf32>
    tpu.vector_store %arg41[%c1_28, %c17_29, %c0_30], %44 {strides = array<i32>} : memref<2x18x64xf32, #tpu.memory_space<vmem>>, vector<1x1x1xf32>,
    %c1_31 = arith.constant 1 : index
    %c1_32 = arith.constant 1 : index
    %c0_33 = arith.constant 0 : index
    %45 = vector.load %arg41[%c1_31, %c1_32, %c0_33] : memref<2x18x64xf32, #tpu.memory_space<vmem>>, vector<1x16x1xf32>
    %46 = vector.shape_cast %45 : vector<1x16x1xf32> to vector<16x1xf32>
    %47 = vector.shape_cast %37 : vector<16x1xf32> to vector<1x16x1xf32>
    tpu.vector_store %arg41[%c1_31, %c1_32, %c0_33], %47 {strides = array<i32>} : memref<2x18x64xf32, #tpu.memory_space<vmem>>, vector<1x16x1xf32>,
    %c1_34 = arith.constant 1 : index
    %c0_35 = arith.constant 0 : index
    %c0_36 = arith.constant 0 : index
    %48 = vector.load %arg41[%c1_34, %c0_35, %c0_36] : memref<2x18x64xf32, #tpu.memory_space<vmem>>, vector<1x18x64xf32>
    %49 = vector.shape_cast %48 : vector<1x18x64xf32> to vector<18x64xf32>
    %cst_37 = arith.constant 0.000000e+00 : f32
    %50 = vector.broadcast %cst_37 : f32 to vector<16x16xf32>
    %51 = vector.extract_strided_slice %49 {offsets = [0, 0], sizes = [16, 1], strides = [1, 1]} : vector<18x64xf32> to vector<16x1xf32>
    %c0_38 = arith.constant 0 : index
    %c0_39 = arith.constant 0 : index
    %c0_40 = arith.constant 0 : index
    %52 = vector.load %arg2[%c0_38, %c0_39, %c0_40] : memref<3x1x16xf32, #tpu.memory_space<vmem>>, vector<1x1x16xf32>
    %53 = vector.shape_cast %52 : vector<1x1x16xf32> to vector<1x16xf32>
    %54 = vector.broadcast %51 : vector<16x1xf32> to vector<16x16xf32>
    %55 = vector.broadcast %53 : vector<1x16xf32> to vector<16x16xf32>
    %56 = arith.mulf %54, %55 : vector<16x16xf32>
    %57 = arith.addf %50, %56 : vector<16x16xf32>
    %58 = vector.extract_strided_slice %49 {offsets = [1, 0], sizes = [16, 1], strides = [1, 1]} : vector<18x64xf32> to vector<16x1xf32>
    %c1_41 = arith.constant 1 : index
    %c0_42 = arith.constant 0 : index
    %c0_43 = arith.constant 0 : index
    %59 = vector.load %arg2[%c1_41, %c0_42, %c0_43] : memref<3x1x16xf32, #tpu.memory_space<vmem>>, vector<1x1x16xf32>
    %60 = vector.shape_cast %59 : vector<1x1x16xf32> to vector<1x16xf32>
    %61 = vector.broadcast %58 : vector<16x1xf32> to vector<16x16xf32>
    %62 = vector.broadcast %60 : vector<1x16xf32> to vector<16x16xf32>
    %63 = arith.mulf %61, %62 : vector<16x16xf32>
    %64 = arith.addf %57, %63 : vector<16x16xf32>
    %65 = vector.extract_strided_slice %49 {offsets = [2, 0], sizes = [16, 1], strides = [1, 1]} : vector<18x64xf32> to vector<16x1xf32>
    %c2_44 = arith.constant 2 : index
    %c0_45 = arith.constant 0 : index
    %c0_46 = arith.constant 0 : index
    %66 = vector.load %arg2[%c2_44, %c0_45, %c0_46] : memref<3x1x16xf32, #tpu.memory_space<vmem>>, vector<1x1x16xf32>
    %67 = vector.shape_cast %66 : vector<1x1x16xf32> to vector<1x16xf32>
    %68 = vector.broadcast %65 : vector<16x1xf32> to vector<16x16xf32>
    %69 = vector.broadcast %67 : vector<1x16xf32> to vector<16x16xf32>
    %70 = arith.mulf %68, %69 : vector<16x16xf32>
    %71 = arith.addf %64, %70 : vector<16x16xf32>
    %cst_47 = arith.constant dense<0.000000e+00> : vector<16xf32>
    %72 = vector.multi_reduction <add>, %35, %cst_47 [0] : vector<16x16xf32> to vector<16xf32>
    %73 = vector.shape_cast %72 : vector<16xf32> to vector<1x16xf32>
    %cst_48 = arith.constant 0.000000e+00 : f32
    %74 = vector.broadcast %cst_48 : f32 to vector<1x16xf32>
    %75 = arith.addf %74, %73 : vector<1x16xf32>
    %cst_49 = arith.constant dense<0.000000e+00> : vector<16xf32>
    %76 = vector.multi_reduction <add>, %71, %cst_49 [0] : vector<16x16xf32> to vector<16xf32>
    %77 = vector.shape_cast %76 : vector<16xf32> to vector<1x16xf32>
    %78 = arith.addf %75, %77 : vector<1x16xf32>
    %79 = arith.mulf %35, %35 : vector<16x16xf32>
    %cst_50 = arith.constant dense<0.000000e+00> : vector<16xf32>
    %80 = vector.multi_reduction <add>, %79, %cst_50 [0] : vector<16x16xf32> to vector<16xf32>
    %81 = vector.shape_cast %80 : vector<16xf32> to vector<1x16xf32>
    %cst_51 = arith.constant 0.000000e+00 : f32
    %82 = vector.broadcast %cst_51 : f32 to vector<1x16xf32>
    %83 = arith.addf %82, %81 : vector<1x16xf32>
    %84 = arith.mulf %71, %71 : vector<16x16xf32>
    %cst_52 = arith.constant dense<0.000000e+00> : vector<16xf32>
    %85 = vector.multi_reduction <add>, %84, %cst_52 [0] : vector<16x16xf32> to vector<16xf32>
    %86 = vector.shape_cast %85 : vector<16xf32> to vector<1x16xf32>
    %87 = arith.addf %83, %86 : vector<1x16xf32>
    %cst_53 = arith.constant 3.200000e+01 : f32
    %88 = vector.broadcast %cst_53 : f32 to vector<1x16xf32>
    %89 = arith.divf %78, %88 : vector<1x16xf32>
    %cst_54 = arith.constant 3.200000e+01 : f32
    %90 = vector.broadcast %cst_54 : f32 to vector<1x16xf32>
    %91 = arith.divf %87, %90 : vector<1x16xf32>
    %92 = arith.mulf %89, %89 : vector<1x16xf32>
    %93 = arith.subf %91, %92 : vector<1x16xf32>
    %c0_55 = arith.constant 0 : index
    %c0_56 = arith.constant 0 : index
    %94 = vector.load %arg3[%c0_55, %c0_56] : memref<1x16xf32, #tpu.memory_space<vmem>>, vector<1x16xf32>
    %cst_57 = arith.constant 9.99999974E-6 : f32
    %95 = vector.broadcast %cst_57 : f32 to vector<1x16xf32>
    %96 = arith.addf %93, %95 : vector<1x16xf32>
    %97 = math.rsqrt %96 : vector<1x16xf32>
    %98 = arith.mulf %94, %97 : vector<1x16xf32>
    %c0_58 = arith.constant 0 : index
    %c0_59 = arith.constant 0 : index
    %99 = vector.load %arg4[%c0_58, %c0_59] : memref<1x16xf32, #tpu.memory_space<vmem>>, vector<1x16xf32>
    %100 = arith.mulf %89, %98 : vector<1x16xf32>
    %101 = arith.subf %99, %100 : vector<1x16xf32>
    %102 = vector.broadcast %98 : vector<1x16xf32> to vector<16x16xf32>
    %103 = arith.mulf %35, %102 : vector<16x16xf32>
    %104 = vector.broadcast %101 : vector<1x16xf32> to vector<16x16xf32>
    %105 = arith.addf %103, %104 : vector<16x16xf32>
    %106 = math.tanh %105 : vector<16x16xf32>
    %107 = vector.broadcast %98 : vector<1x16xf32> to vector<16x16xf32>
    %108 = arith.mulf %71, %107 : vector<16x16xf32>
    %109 = vector.broadcast %101 : vector<1x16xf32> to vector<16x16xf32>
    %110 = arith.addf %108, %109 : vector<16x16xf32>
    %111 = math.tanh %110 : vector<16x16xf32>
    %cst_60 = arith.constant 0.000000e+00 : f32
    %112 = vector.broadcast %cst_60 : f32 to vector<1x16xf32>
    %c0_61 = arith.constant 0 : index
    %c0_62 = arith.constant 0 : index
    %c0_63 = arith.constant 0 : index
    %113 = vector.load %arg41[%c0_61, %c0_62, %c0_63] : memref<2x18x64xf32, #tpu.memory_space<vmem>>, vector<1x1x16xf32>
    %114 = vector.shape_cast %113 : vector<1x1x16xf32> to vector<1x16xf32>
    %115 = vector.shape_cast %112 : vector<1x16xf32> to vector<1x1x16xf32>
    tpu.vector_store %arg41[%c0_61, %c0_62, %c0_63], %115 {strides = array<i32>} : memref<2x18x64xf32, #tpu.memory_space<vmem>>, vector<1x1x16xf32>,
    %c0_64 = arith.constant 0 : index
    %c17_65 = arith.constant 17 : index
    %c0_66 = arith.constant 0 : index
    %116 = vector.load %arg41[%c0_64, %c17_65, %c0_66] : memref<2x18x64xf32, #tpu.memory_space<vmem>>, vector<1x1x16xf32>
    %117 = vector.shape_cast %116 : vector<1x1x16xf32> to vector<1x16xf32>
    %118 = vector.shape_cast %112 : vector<1x16xf32> to vector<1x1x16xf32>
    tpu.vector_store %arg41[%c0_64, %c17_65, %c0_66], %118 {strides = array<i32>} : memref<2x18x64xf32, #tpu.memory_space<vmem>>, vector<1x1x16xf32>,
    %c0_67 = arith.constant 0 : index
    %c1_68 = arith.constant 1 : index
    %c0_69 = arith.constant 0 : index
    %119 = vector.load %arg41[%c0_67, %c1_68, %c0_69] : memref<2x18x64xf32, #tpu.memory_space<vmem>>, vector<1x16x16xf32>
    %120 = vector.shape_cast %119 : vector<1x16x16xf32> to vector<16x16xf32>
    %121 = vector.shape_cast %106 : vector<16x16xf32> to vector<1x16x16xf32>
    tpu.vector_store %arg41[%c0_67, %c1_68, %c0_69], %121 {strides = array<i32>} : memref<2x18x64xf32, #tpu.memory_space<vmem>>, vector<1x16x16xf32>,
    %c0_70 = arith.constant 0 : index
    %c0_71 = arith.constant 0 : index
    %c0_72 = arith.constant 0 : index
    %122 = vector.load %arg41[%c0_70, %c0_71, %c0_72] : memref<2x18x64xf32, #tpu.memory_space<vmem>>, vector<1x18x64xf32>
    %123 = vector.shape_cast %122 : vector<1x18x64xf32> to vector<18x64xf32>
    %cst_73 = arith.constant 0.000000e+00 : f32
    %124 = vector.broadcast %cst_73 : f32 to vector<16x16xf32>
    %125 = vector.extract_strided_slice %123 {offsets = [0, 0], sizes = [16, 16], strides = [1, 1]} : vector<18x64xf32> to vector<16x16xf32>
    %c0_74 = arith.constant 0 : index
    %c0_75 = arith.constant 0 : index
    %c0_76 = arith.constant 0 : index
    %126 = vector.load %arg5[%c0_74, %c0_75, %c0_76] : memref<3x16x16xf32, #tpu.memory_space<vmem>>, vector<1x16x16xf32>
    %127 = vector.shape_cast %126 : vector<1x16x16xf32> to vector<16x16xf32>
    %cst_77 = arith.constant dense<0.000000e+00> : vector<16x16xf32>
    %128 = tpu.matmul %125, %127, %cst_77 {dimension_numbers = #tpu.dot_dimension_numbers<[1], [0], [0], [1], [0, 0, 1, 1], [], []>} : vector<16x16xf32>, vector<16x16xf32>, vector<16x16xf32> -> vector<16x16xf32>
    %129 = arith.addf %124, %128 : vector<16x16xf32>
    %130 = vector.extract_strided_slice %123 {offsets = [1, 0], sizes = [16, 16], strides = [1, 1]} : vector<18x64xf32> to vector<16x16xf32>
    %c1_78 = arith.constant 1 : index
    %c0_79 = arith.constant 0 : index
    %c0_80 = arith.constant 0 : index
    %131 = vector.load %arg5[%c1_78, %c0_79, %c0_80] : memref<3x16x16xf32, #tpu.memory_space<vmem>>, vector<1x16x16xf32>
    %132 = vector.shape_cast %131 : vector<1x16x16xf32> to vector<16x16xf32>
    %cst_81 = arith.constant dense<0.000000e+00> : vector<16x16xf32>
    %133 = tpu.matmul %130, %132, %cst_81 {dimension_numbers = #tpu.dot_dimension_numbers<[1], [0], [0], [1], [0, 0, 1, 1], [], []>} : vector<16x16xf32>, vector<16x16xf32>, vector<16x16xf32> -> vector<16x16xf32>
    %134 = arith.addf %129, %133 : vector<16x16xf32>
    %135 = vector.extract_strided_slice %123 {offsets = [2, 0], sizes = [16, 16], strides = [1, 1]} : vector<18x64xf32> to vector<16x16xf32>
    %c2_82 = arith.constant 2 : index
    %c0_83 = arith.constant 0 : index
    %c0_84 = arith.constant 0 : index
    %136 = vector.load %arg5[%c2_82, %c0_83, %c0_84] : memref<3x16x16xf32, #tpu.memory_space<vmem>>, vector<1x16x16xf32>
    %137 = vector.shape_cast %136 : vector<1x16x16xf32> to vector<16x16xf32>
    %cst_85 = arith.constant dense<0.000000e+00> : vector<16x16xf32>
    %138 = tpu.matmul %135, %137, %cst_85 {dimension_numbers = #tpu.dot_dimension_numbers<[1], [0], [0], [1], [0, 0, 1, 1], [], []>} : vector<16x16xf32>, vector<16x16xf32>, vector<16x16xf32> -> vector<16x16xf32>
    %139 = arith.addf %134, %138 : vector<16x16xf32>
    %cst_86 = arith.constant 0.000000e+00 : f32
    %140 = vector.broadcast %cst_86 : f32 to vector<1x16xf32>
    %c1_87 = arith.constant 1 : index
    %c0_88 = arith.constant 0 : index
    %c0_89 = arith.constant 0 : index
    %141 = vector.load %arg41[%c1_87, %c0_88, %c0_89] : memref<2x18x64xf32, #tpu.memory_space<vmem>>, vector<1x1x16xf32>
    %142 = vector.shape_cast %141 : vector<1x1x16xf32> to vector<1x16xf32>
    %143 = vector.shape_cast %140 : vector<1x16xf32> to vector<1x1x16xf32>
    tpu.vector_store %arg41[%c1_87, %c0_88, %c0_89], %143 {strides = array<i32>} : memref<2x18x64xf32, #tpu.memory_space<vmem>>, vector<1x1x16xf32>,
    %c1_90 = arith.constant 1 : index
    %c17_91 = arith.constant 17 : index
    %c0_92 = arith.constant 0 : index
    %144 = vector.load %arg41[%c1_90, %c17_91, %c0_92] : memref<2x18x64xf32, #tpu.memory_space<vmem>>, vector<1x1x16xf32>
    %145 = vector.shape_cast %144 : vector<1x1x16xf32> to vector<1x16xf32>
    %146 = vector.shape_cast %140 : vector<1x16xf32> to vector<1x1x16xf32>
    tpu.vector_store %arg41[%c1_90, %c17_91, %c0_92], %146 {strides = array<i32>} : memref<2x18x64xf32, #tpu.memory_space<vmem>>, vector<1x1x16xf32>,
    %c1_93 = arith.constant 1 : index
    %c1_94 = arith.constant 1 : index
    %c0_95 = arith.constant 0 : index
    %147 = vector.load %arg41[%c1_93, %c1_94, %c0_95] : memref<2x18x64xf32, #tpu.memory_space<vmem>>, vector<1x16x16xf32>
    %148 = vector.shape_cast %147 : vector<1x16x16xf32> to vector<16x16xf32>
    %149 = vector.shape_cast %111 : vector<16x16xf32> to vector<1x16x16xf32>
    tpu.vector_store %arg41[%c1_93, %c1_94, %c0_95], %149 {strides = array<i32>} : memref<2x18x64xf32, #tpu.memory_space<vmem>>, vector<1x16x16xf32>,
    %c1_96 = arith.constant 1 : index
    %c0_97 = arith.constant 0 : index
    %c0_98 = arith.constant 0 : index
    %150 = vector.load %arg41[%c1_96, %c0_97, %c0_98] : memref<2x18x64xf32, #tpu.memory_space<vmem>>, vector<1x18x64xf32>
    %151 = vector.shape_cast %150 : vector<1x18x64xf32> to vector<18x64xf32>
    %cst_99 = arith.constant 0.000000e+00 : f32
    %152 = vector.broadcast %cst_99 : f32 to vector<16x16xf32>
    %153 = vector.extract_strided_slice %151 {offsets = [0, 0], sizes = [16, 16], strides = [1, 1]} : vector<18x64xf32> to vector<16x16xf32>
    %c0_100 = arith.constant 0 : index
    %c0_101 = arith.constant 0 : index
    %c0_102 = arith.constant 0 : index
    %154 = vector.load %arg5[%c0_100, %c0_101, %c0_102] : memref<3x16x16xf32, #tpu.memory_space<vmem>>, vector<1x16x16xf32>
    %155 = vector.shape_cast %154 : vector<1x16x16xf32> to vector<16x16xf32>
    %cst_103 = arith.constant dense<0.000000e+00> : vector<16x16xf32>
    %156 = tpu.matmul %153, %155, %cst_103 {dimension_numbers = #tpu.dot_dimension_numbers<[1], [0], [0], [1], [0, 0, 1, 1], [], []>} : vector<16x16xf32>, vector<16x16xf32>, vector<16x16xf32> -> vector<16x16xf32>
    %157 = arith.addf %152, %156 : vector<16x16xf32>
    %158 = vector.extract_strided_slice %151 {offsets = [1, 0], sizes = [16, 16], strides = [1, 1]} : vector<18x64xf32> to vector<16x16xf32>
    %c1_104 = arith.constant 1 : index
    %c0_105 = arith.constant 0 : index
    %c0_106 = arith.constant 0 : index
    %159 = vector.load %arg5[%c1_104, %c0_105, %c0_106] : memref<3x16x16xf32, #tpu.memory_space<vmem>>, vector<1x16x16xf32>
    %160 = vector.shape_cast %159 : vector<1x16x16xf32> to vector<16x16xf32>
    %cst_107 = arith.constant dense<0.000000e+00> : vector<16x16xf32>
    %161 = tpu.matmul %158, %160, %cst_107 {dimension_numbers = #tpu.dot_dimension_numbers<[1], [0], [0], [1], [0, 0, 1, 1], [], []>} : vector<16x16xf32>, vector<16x16xf32>, vector<16x16xf32> -> vector<16x16xf32>
    %162 = arith.addf %157, %161 : vector<16x16xf32>
    %163 = vector.extract_strided_slice %151 {offsets = [2, 0], sizes = [16, 16], strides = [1, 1]} : vector<18x64xf32> to vector<16x16xf32>
    %c2_108 = arith.constant 2 : index
    %c0_109 = arith.constant 0 : index
    %c0_110 = arith.constant 0 : index
    %164 = vector.load %arg5[%c2_108, %c0_109, %c0_110] : memref<3x16x16xf32, #tpu.memory_space<vmem>>, vector<1x16x16xf32>
    %165 = vector.shape_cast %164 : vector<1x16x16xf32> to vector<16x16xf32>
    %cst_111 = arith.constant dense<0.000000e+00> : vector<16x16xf32>
    %166 = tpu.matmul %163, %165, %cst_111 {dimension_numbers = #tpu.dot_dimension_numbers<[1], [0], [0], [1], [0, 0, 1, 1], [], []>} : vector<16x16xf32>, vector<16x16xf32>, vector<16x16xf32> -> vector<16x16xf32>
    %167 = arith.addf %162, %166 : vector<16x16xf32>
    %cst_112 = arith.constant dense<0.000000e+00> : vector<16xf32>
    %168 = vector.multi_reduction <add>, %139, %cst_112 [0] : vector<16x16xf32> to vector<16xf32>
    %169 = vector.shape_cast %168 : vector<16xf32> to vector<1x16xf32>
    %cst_113 = arith.constant 0.000000e+00 : f32
    %170 = vector.broadcast %cst_113 : f32 to vector<1x16xf32>
    %171 = arith.addf %170, %169 : vector<1x16xf32>
    %cst_114 = arith.constant dense<0.000000e+00> : vector<16xf32>
    %172 = vector.multi_reduction <add>, %167, %cst_114 [0] : vector<16x16xf32> to vector<16xf32>
    %173 = vector.shape_cast %172 : vector<16xf32> to vector<1x16xf32>
    %174 = arith.addf %171, %173 : vector<1x16xf32>
    %175 = arith.mulf %139, %139 : vector<16x16xf32>
    %cst_115 = arith.constant dense<0.000000e+00> : vector<16xf32>
    %176 = vector.multi_reduction <add>, %175, %cst_115 [0] : vector<16x16xf32> to vector<16xf32>
    %177 = vector.shape_cast %176 : vector<16xf32> to vector<1x16xf32>
    %cst_116 = arith.constant 0.000000e+00 : f32
    %178 = vector.broadcast %cst_116 : f32 to vector<1x16xf32>
    %179 = arith.addf %178, %177 : vector<1x16xf32>
    %180 = arith.mulf %167, %167 : vector<16x16xf32>
    %cst_117 = arith.constant dense<0.000000e+00> : vector<16xf32>
    %181 = vector.multi_reduction <add>, %180, %cst_117 [0] : vector<16x16xf32> to vector<16xf32>
    %182 = vector.shape_cast %181 : vector<16xf32> to vector<1x16xf32>
    %183 = arith.addf %179, %182 : vector<1x16xf32>
    %cst_118 = arith.constant 3.200000e+01 : f32
    %184 = vector.broadcast %cst_118 : f32 to vector<1x16xf32>
    %185 = arith.divf %174, %184 : vector<1x16xf32>
    %cst_119 = arith.constant 3.200000e+01 : f32
    %186 = vector.broadcast %cst_119 : f32 to vector<1x16xf32>
    %187 = arith.divf %183, %186 : vector<1x16xf32>
    %188 = arith.mulf %185, %185 : vector<1x16xf32>
    %189 = arith.subf %187, %188 : vector<1x16xf32>
    %c0_120 = arith.constant 0 : index
    %c0_121 = arith.constant 0 : index
    %190 = vector.load %arg6[%c0_120, %c0_121] : memref<1x16xf32, #tpu.memory_space<vmem>>, vector<1x16xf32>
    %cst_122 = arith.constant 9.99999974E-6 : f32
    %191 = vector.broadcast %cst_122 : f32 to vector<1x16xf32>
    %192 = arith.addf %189, %191 : vector<1x16xf32>
    %193 = math.rsqrt %192 : vector<1x16xf32>
    %194 = arith.mulf %190, %193 : vector<1x16xf32>
    %c0_123 = arith.constant 0 : index
    %c0_124 = arith.constant 0 : index
    %195 = vector.load %arg7[%c0_123, %c0_124] : memref<1x16xf32, #tpu.memory_space<vmem>>, vector<1x16xf32>
    %196 = arith.mulf %185, %194 : vector<1x16xf32>
    %197 = arith.subf %195, %196 : vector<1x16xf32>
    %198 = vector.broadcast %194 : vector<1x16xf32> to vector<16x16xf32>
    %199 = arith.mulf %139, %198 : vector<16x16xf32>
    %200 = vector.broadcast %197 : vector<1x16xf32> to vector<16x16xf32>
    %201 = arith.addf %199, %200 : vector<16x16xf32>
    %202 = math.tanh %201 : vector<16x16xf32>
    %203 = vector.broadcast %194 : vector<1x16xf32> to vector<16x16xf32>
    %204 = arith.mulf %167, %203 : vector<16x16xf32>
    %205 = vector.broadcast %197 : vector<1x16xf32> to vector<16x16xf32>
    %206 = arith.addf %204, %205 : vector<16x16xf32>
    %207 = math.tanh %206 : vector<16x16xf32>
    %cst_125 = arith.constant 0.000000e+00 : f32
    %208 = vector.broadcast %cst_125 : f32 to vector<1x16xf32>
    %c0_126 = arith.constant 0 : index
    %c0_127 = arith.constant 0 : index
    %c0_128 = arith.constant 0 : index
    %209 = vector.load %arg41[%c0_126, %c0_127, %c0_128] : memref<2x18x64xf32, #tpu.memory_space<vmem>>, vector<1x1x16xf32>
    %210 = vector.shape_cast %209 : vector<1x1x16xf32> to vector<1x16xf32>
    %211 = vector.shape_cast %208 : vector<1x16xf32> to vector<1x1x16xf32>
    tpu.vector_store %arg41[%c0_126, %c0_127, %c0_128], %211 {strides = array<i32>} : memref<2x18x64xf32, #tpu.memory_space<vmem>>, vector<1x1x16xf32>,
    %c0_129 = arith.constant 0 : index
    %c9 = arith.constant 9 : index
    %c0_130 = arith.constant 0 : index
    %212 = vector.load %arg41[%c0_129, %c9, %c0_130] : memref<2x18x64xf32, #tpu.memory_space<vmem>>, vector<1x1x16xf32>
    %213 = vector.shape_cast %212 : vector<1x1x16xf32> to vector<1x16xf32>
    %214 = vector.shape_cast %208 : vector<1x16xf32> to vector<1x1x16xf32>
    tpu.vector_store %arg41[%c0_129, %c9, %c0_130], %214 {strides = array<i32>} : memref<2x18x64xf32, #tpu.memory_space<vmem>>, vector<1x1x16xf32>,
    %215 = vector.extract_strided_slice %202 {offsets = [0, 0], sizes = [1, 16], strides = [1, 1]} : vector<16x16xf32> to vector<1x16xf32>
    %216 = vector.extract_strided_slice %202 {offsets = [1, 0], sizes = [1, 16], strides = [1, 1]} : vector<16x16xf32> to vector<1x16xf32>
    %217 = arith.maximumf %215, %216 : vector<1x16xf32>
    %c0_131 = arith.constant 0 : index
    %c1_132 = arith.constant 1 : index
    %c0_133 = arith.constant 0 : index
    %218 = vector.load %arg41[%c0_131, %c1_132, %c0_133] : memref<2x18x64xf32, #tpu.memory_space<vmem>>, vector<1x1x16xf32>
    %219 = vector.shape_cast %218 : vector<1x1x16xf32> to vector<1x16xf32>
    %220 = vector.shape_cast %217 : vector<1x16xf32> to vector<1x1x16xf32>
    tpu.vector_store %arg41[%c0_131, %c1_132, %c0_133], %220 {strides = array<i32>} : memref<2x18x64xf32, #tpu.memory_space<vmem>>, vector<1x1x16xf32>,
    %221 = vector.extract_strided_slice %202 {offsets = [2, 0], sizes = [1, 16], strides = [1, 1]} : vector<16x16xf32> to vector<1x16xf32>
    %222 = vector.extract_strided_slice %202 {offsets = [3, 0], sizes = [1, 16], strides = [1, 1]} : vector<16x16xf32> to vector<1x16xf32>
    %223 = arith.maximumf %221, %222 : vector<1x16xf32>
    %c0_134 = arith.constant 0 : index
    %c2_135 = arith.constant 2 : index
    %c0_136 = arith.constant 0 : index
    %224 = vector.load %arg41[%c0_134, %c2_135, %c0_136] : memref<2x18x64xf32, #tpu.memory_space<vmem>>, vector<1x1x16xf32>
    %225 = vector.shape_cast %224 : vector<1x1x16xf32> to vector<1x16xf32>
    %226 = vector.shape_cast %223 : vector<1x16xf32> to vector<1x1x16xf32>
    tpu.vector_store %arg41[%c0_134, %c2_135, %c0_136], %226 {strides = array<i32>} : memref<2x18x64xf32, #tpu.memory_space<vmem>>, vector<1x1x16xf32>,
    %227 = vector.extract_strided_slice %202 {offsets = [4, 0], sizes = [1, 16], strides = [1, 1]} : vector<16x16xf32> to vector<1x16xf32>
    %228 = vector.extract_strided_slice %202 {offsets = [5, 0], sizes = [1, 16], strides = [1, 1]} : vector<16x16xf32> to vector<1x16xf32>
    %229 = arith.maximumf %227, %228 : vector<1x16xf32>
    %c0_137 = arith.constant 0 : index
    %c3 = arith.constant 3 : index
    %c0_138 = arith.constant 0 : index
    %230 = vector.load %arg41[%c0_137, %c3, %c0_138] : memref<2x18x64xf32, #tpu.memory_space<vmem>>, vector<1x1x16xf32>
    %231 = vector.shape_cast %230 : vector<1x1x16xf32> to vector<1x16xf32>
    %232 = vector.shape_cast %229 : vector<1x16xf32> to vector<1x1x16xf32>
    tpu.vector_store %arg41[%c0_137, %c3, %c0_138], %232 {strides = array<i32>} : memref<2x18x64xf32, #tpu.memory_space<vmem>>, vector<1x1x16xf32>,
    %233 = vector.extract_strided_slice %202 {offsets = [6, 0], sizes = [1, 16], strides = [1, 1]} : vector<16x16xf32> to vector<1x16xf32>
    %234 = vector.extract_strided_slice %202 {offsets = [7, 0], sizes = [1, 16], strides = [1, 1]} : vector<16x16xf32> to vector<1x16xf32>
    %235 = arith.maximumf %233, %234 : vector<1x16xf32>
    %c0_139 = arith.constant 0 : index
    %c4 = arith.constant 4 : index
    %c0_140 = arith.constant 0 : index
    %236 = vector.load %arg41[%c0_139, %c4, %c0_140] : memref<2x18x64xf32, #tpu.memory_space<vmem>>, vector<1x1x16xf32>
    %237 = vector.shape_cast %236 : vector<1x1x16xf32> to vector<1x16xf32>
    %238 = vector.shape_cast %235 : vector<1x16xf32> to vector<1x1x16xf32>
    tpu.vector_store %arg41[%c0_139, %c4, %c0_140], %238 {strides = array<i32>} : memref<2x18x64xf32, #tpu.memory_space<vmem>>, vector<1x1x16xf32>,
    %239 = vector.extract_strided_slice %202 {offsets = [8, 0], sizes = [1, 16], strides = [1, 1]} : vector<16x16xf32> to vector<1x16xf32>
    %240 = vector.extract_strided_slice %202 {offsets = [9, 0], sizes = [1, 16], strides = [1, 1]} : vector<16x16xf32> to vector<1x16xf32>
    %241 = arith.maximumf %239, %240 : vector<1x16xf32>
    %c0_141 = arith.constant 0 : index
    %c5 = arith.constant 5 : index
    %c0_142 = arith.constant 0 : index
    %242 = vector.load %arg41[%c0_141, %c5, %c0_142] : memref<2x18x64xf32, #tpu.memory_space<vmem>>, vector<1x1x16xf32>
    %243 = vector.shape_cast %242 : vector<1x1x16xf32> to vector<1x16xf32>
    %244 = vector.shape_cast %241 : vector<1x16xf32> to vector<1x1x16xf32>
    tpu.vector_store %arg41[%c0_141, %c5, %c0_142], %244 {strides = array<i32>} : memref<2x18x64xf32, #tpu.memory_space<vmem>>, vector<1x1x16xf32>,
    %245 = vector.extract_strided_slice %202 {offsets = [10, 0], sizes = [1, 16], strides = [1, 1]} : vector<16x16xf32> to vector<1x16xf32>
    %246 = vector.extract_strided_slice %202 {offsets = [11, 0], sizes = [1, 16], strides = [1, 1]} : vector<16x16xf32> to vector<1x16xf32>
    %247 = arith.maximumf %245, %246 : vector<1x16xf32>
    %c0_143 = arith.constant 0 : index
    %c6 = arith.constant 6 : index
    %c0_144 = arith.constant 0 : index
    %248 = vector.load %arg41[%c0_143, %c6, %c0_144] : memref<2x18x64xf32, #tpu.memory_space<vmem>>, vector<1x1x16xf32>
    %249 = vector.shape_cast %248 : vector<1x1x16xf32> to vector<1x16xf32>
    %250 = vector.shape_cast %247 : vector<1x16xf32> to vector<1x1x16xf32>
    tpu.vector_store %arg41[%c0_143, %c6, %c0_144], %250 {strides = array<i32>} : memref<2x18x64xf32, #tpu.memory_space<vmem>>, vector<1x1x16xf32>,
    %251 = vector.extract_strided_slice %202 {offsets = [12, 0], sizes = [1, 16], strides = [1, 1]} : vector<16x16xf32> to vector<1x16xf32>
    %252 = vector.extract_strided_slice %202 {offsets = [13, 0], sizes = [1, 16], strides = [1, 1]} : vector<16x16xf32> to vector<1x16xf32>
    %253 = arith.maximumf %251, %252 : vector<1x16xf32>
    %c0_145 = arith.constant 0 : index
    %c7 = arith.constant 7 : index
    %c0_146 = arith.constant 0 : index
    %254 = vector.load %arg41[%c0_145, %c7, %c0_146] : memref<2x18x64xf32, #tpu.memory_space<vmem>>, vector<1x1x16xf32>
    %255 = vector.shape_cast %254 : vector<1x1x16xf32> to vector<1x16xf32>
    %256 = vector.shape_cast %253 : vector<1x16xf32> to vector<1x1x16xf32>
    tpu.vector_store %arg41[%c0_145, %c7, %c0_146], %256 {strides = array<i32>} : memref<2x18x64xf32, #tpu.memory_space<vmem>>, vector<1x1x16xf32>,
    %257 = vector.extract_strided_slice %202 {offsets = [14, 0], sizes = [1, 16], strides = [1, 1]} : vector<16x16xf32> to vector<1x16xf32>
    %258 = vector.extract_strided_slice %202 {offsets = [15, 0], sizes = [1, 16], strides = [1, 1]} : vector<16x16xf32> to vector<1x16xf32>
    %259 = arith.maximumf %257, %258 : vector<1x16xf32>
    %c0_147 = arith.constant 0 : index
    %c8 = arith.constant 8 : index
    %c0_148 = arith.constant 0 : index
    %260 = vector.load %arg41[%c0_147, %c8, %c0_148] : memref<2x18x64xf32, #tpu.memory_space<vmem>>, vector<1x1x16xf32>
    %261 = vector.shape_cast %260 : vector<1x1x16xf32> to vector<1x16xf32>
    %262 = vector.shape_cast %259 : vector<1x16xf32> to vector<1x1x16xf32>
    tpu.vector_store %arg41[%c0_147, %c8, %c0_148], %262 {strides = array<i32>} : memref<2x18x64xf32, #tpu.memory_space<vmem>>, vector<1x1x16xf32>,
    %c0_149 = arith.constant 0 : index
    %c0_150 = arith.constant 0 : index
    %c0_151 = arith.constant 0 : index
    %263 = vector.load %arg41[%c0_149, %c0_150, %c0_151] : memref<2x18x64xf32, #tpu.memory_space<vmem>>, vector<1x18x64xf32>
    %264 = vector.shape_cast %263 : vector<1x18x64xf32> to vector<18x64xf32>
    %cst_152 = arith.constant 0.000000e+00 : f32
    %265 = vector.broadcast %cst_152 : f32 to vector<8x32xf32>
    %266 = vector.extract_strided_slice %264 {offsets = [0, 0], sizes = [8, 16], strides = [1, 1]} : vector<18x64xf32> to vector<8x16xf32>
    %c0_153 = arith.constant 0 : index
    %c0_154 = arith.constant 0 : index
    %c0_155 = arith.constant 0 : index
    %267 = vector.load %arg8[%c0_153, %c0_154, %c0_155] : memref<3x16x32xf32, #tpu.memory_space<vmem>>, vector<1x16x32xf32>
    %268 = vector.shape_cast %267 : vector<1x16x32xf32> to vector<16x32xf32>
    %cst_156 = arith.constant dense<0.000000e+00> : vector<8x32xf32>
    %269 = tpu.matmul %266, %268, %cst_156 {dimension_numbers = #tpu.dot_dimension_numbers<[1], [0], [0], [1], [0, 0, 1, 1], [], []>} : vector<8x16xf32>, vector<16x32xf32>, vector<8x32xf32> -> vector<8x32xf32>
    %270 = arith.addf %265, %269 : vector<8x32xf32>
    %271 = vector.extract_strided_slice %264 {offsets = [1, 0], sizes = [8, 16], strides = [1, 1]} : vector<18x64xf32> to vector<8x16xf32>
    %c1_157 = arith.constant 1 : index
    %c0_158 = arith.constant 0 : index
    %c0_159 = arith.constant 0 : index
    %272 = vector.load %arg8[%c1_157, %c0_158, %c0_159] : memref<3x16x32xf32, #tpu.memory_space<vmem>>, vector<1x16x32xf32>
    %273 = vector.shape_cast %272 : vector<1x16x32xf32> to vector<16x32xf32>
    %cst_160 = arith.constant dense<0.000000e+00> : vector<8x32xf32>
    %274 = tpu.matmul %271, %273, %cst_160 {dimension_numbers = #tpu.dot_dimension_numbers<[1], [0], [0], [1], [0, 0, 1, 1], [], []>} : vector<8x16xf32>, vector<16x32xf32>, vector<8x32xf32> -> vector<8x32xf32>
    %275 = arith.addf %270, %274 : vector<8x32xf32>
    %276 = vector.extract_strided_slice %264 {offsets = [2, 0], sizes = [8, 16], strides = [1, 1]} : vector<18x64xf32> to vector<8x16xf32>
    %c2_161 = arith.constant 2 : index
    %c0_162 = arith.constant 0 : index
    %c0_163 = arith.constant 0 : index
    %277 = vector.load %arg8[%c2_161, %c0_162, %c0_163] : memref<3x16x32xf32, #tpu.memory_space<vmem>>, vector<1x16x32xf32>
    %278 = vector.shape_cast %277 : vector<1x16x32xf32> to vector<16x32xf32>
    %cst_164 = arith.constant dense<0.000000e+00> : vector<8x32xf32>
    %279 = tpu.matmul %276, %278, %cst_164 {dimension_numbers = #tpu.dot_dimension_numbers<[1], [0], [0], [1], [0, 0, 1, 1], [], []>} : vector<8x16xf32>, vector<16x32xf32>, vector<8x32xf32> -> vector<8x32xf32>
    %280 = arith.addf %275, %279 : vector<8x32xf32>
    %cst_165 = arith.constant 0.000000e+00 : f32
    %281 = vector.broadcast %cst_165 : f32 to vector<1x16xf32>
    %c1_166 = arith.constant 1 : index
    %c0_167 = arith.constant 0 : index
    %c0_168 = arith.constant 0 : index
    %282 = vector.load %arg41[%c1_166, %c0_167, %c0_168] : memref<2x18x64xf32, #tpu.memory_space<vmem>>, vector<1x1x16xf32>
    %283 = vector.shape_cast %282 : vector<1x1x16xf32> to vector<1x16xf32>
    %284 = vector.shape_cast %281 : vector<1x16xf32> to vector<1x1x16xf32>
    tpu.vector_store %arg41[%c1_166, %c0_167, %c0_168], %284 {strides = array<i32>} : memref<2x18x64xf32, #tpu.memory_space<vmem>>, vector<1x1x16xf32>,
    %c1_169 = arith.constant 1 : index
    %c9_170 = arith.constant 9 : index
    %c0_171 = arith.constant 0 : index
    %285 = vector.load %arg41[%c1_169, %c9_170, %c0_171] : memref<2x18x64xf32, #tpu.memory_space<vmem>>, vector<1x1x16xf32>
    %286 = vector.shape_cast %285 : vector<1x1x16xf32> to vector<1x16xf32>
    %287 = vector.shape_cast %281 : vector<1x16xf32> to vector<1x1x16xf32>
    tpu.vector_store %arg41[%c1_169, %c9_170, %c0_171], %287 {strides = array<i32>} : memref<2x18x64xf32, #tpu.memory_space<vmem>>, vector<1x1x16xf32>,
    %288 = vector.extract_strided_slice %207 {offsets = [0, 0], sizes = [1, 16], strides = [1, 1]} : vector<16x16xf32> to vector<1x16xf32>
    %289 = vector.extract_strided_slice %207 {offsets = [1, 0], sizes = [1, 16], strides = [1, 1]} : vector<16x16xf32> to vector<1x16xf32>
    %290 = arith.maximumf %288, %289 : vector<1x16xf32>
    %c1_172 = arith.constant 1 : index
    %c1_173 = arith.constant 1 : index
    %c0_174 = arith.constant 0 : index
    %291 = vector.load %arg41[%c1_172, %c1_173, %c0_174] : memref<2x18x64xf32, #tpu.memory_space<vmem>>, vector<1x1x16xf32>
    %292 = vector.shape_cast %291 : vector<1x1x16xf32> to vector<1x16xf32>
    %293 = vector.shape_cast %290 : vector<1x16xf32> to vector<1x1x16xf32>
    tpu.vector_store %arg41[%c1_172, %c1_173, %c0_174], %293 {strides = array<i32>} : memref<2x18x64xf32, #tpu.memory_space<vmem>>, vector<1x1x16xf32>,
    %294 = vector.extract_strided_slice %207 {offsets = [2, 0], sizes = [1, 16], strides = [1, 1]} : vector<16x16xf32> to vector<1x16xf32>
    %295 = vector.extract_strided_slice %207 {offsets = [3, 0], sizes = [1, 16], strides = [1, 1]} : vector<16x16xf32> to vector<1x16xf32>
    %296 = arith.maximumf %294, %295 : vector<1x16xf32>
    %c1_175 = arith.constant 1 : index
    %c2_176 = arith.constant 2 : index
    %c0_177 = arith.constant 0 : index
    %297 = vector.load %arg41[%c1_175, %c2_176, %c0_177] : memref<2x18x64xf32, #tpu.memory_space<vmem>>, vector<1x1x16xf32>
    %298 = vector.shape_cast %297 : vector<1x1x16xf32> to vector<1x16xf32>
    %299 = vector.shape_cast %296 : vector<1x16xf32> to vector<1x1x16xf32>
    tpu.vector_store %arg41[%c1_175, %c2_176, %c0_177], %299 {strides = array<i32>} : memref<2x18x64xf32, #tpu.memory_space<vmem>>, vector<1x1x16xf32>,
    %300 = vector.extract_strided_slice %207 {offsets = [4, 0], sizes = [1, 16], strides = [1, 1]} : vector<16x16xf32> to vector<1x16xf32>
    %301 = vector.extract_strided_slice %207 {offsets = [5, 0], sizes = [1, 16], strides = [1, 1]} : vector<16x16xf32> to vector<1x16xf32>
    %302 = arith.maximumf %300, %301 : vector<1x16xf32>
    %c1_178 = arith.constant 1 : index
    %c3_179 = arith.constant 3 : index
    %c0_180 = arith.constant 0 : index
    %303 = vector.load %arg41[%c1_178, %c3_179, %c0_180] : memref<2x18x64xf32, #tpu.memory_space<vmem>>, vector<1x1x16xf32>
    %304 = vector.shape_cast %303 : vector<1x1x16xf32> to vector<1x16xf32>
    %305 = vector.shape_cast %302 : vector<1x16xf32> to vector<1x1x16xf32>
    tpu.vector_store %arg41[%c1_178, %c3_179, %c0_180], %305 {strides = array<i32>} : memref<2x18x64xf32, #tpu.memory_space<vmem>>, vector<1x1x16xf32>,
    %306 = vector.extract_strided_slice %207 {offsets = [6, 0], sizes = [1, 16], strides = [1, 1]} : vector<16x16xf32> to vector<1x16xf32>
    %307 = vector.extract_strided_slice %207 {offsets = [7, 0], sizes = [1, 16], strides = [1, 1]} : vector<16x16xf32> to vector<1x16xf32>
    %308 = arith.maximumf %306, %307 : vector<1x16xf32>
    %c1_181 = arith.constant 1 : index
    %c4_182 = arith.constant 4 : index
    %c0_183 = arith.constant 0 : index
    %309 = vector.load %arg41[%c1_181, %c4_182, %c0_183] : memref<2x18x64xf32, #tpu.memory_space<vmem>>, vector<1x1x16xf32>
    %310 = vector.shape_cast %309 : vector<1x1x16xf32> to vector<1x16xf32>
    %311 = vector.shape_cast %308 : vector<1x16xf32> to vector<1x1x16xf32>
    tpu.vector_store %arg41[%c1_181, %c4_182, %c0_183], %311 {strides = array<i32>} : memref<2x18x64xf32, #tpu.memory_space<vmem>>, vector<1x1x16xf32>,
    %312 = vector.extract_strided_slice %207 {offsets = [8, 0], sizes = [1, 16], strides = [1, 1]} : vector<16x16xf32> to vector<1x16xf32>
    %313 = vector.extract_strided_slice %207 {offsets = [9, 0], sizes = [1, 16], strides = [1, 1]} : vector<16x16xf32> to vector<1x16xf32>
    %314 = arith.maximumf %312, %313 : vector<1x16xf32>
    %c1_184 = arith.constant 1 : index
    %c5_185 = arith.constant 5 : index
    %c0_186 = arith.constant 0 : index
    %315 = vector.load %arg41[%c1_184, %c5_185, %c0_186] : memref<2x18x64xf32, #tpu.memory_space<vmem>>, vector<1x1x16xf32>
    %316 = vector.shape_cast %315 : vector<1x1x16xf32> to vector<1x16xf32>
    %317 = vector.shape_cast %314 : vector<1x16xf32> to vector<1x1x16xf32>
    tpu.vector_store %arg41[%c1_184, %c5_185, %c0_186], %317 {strides = array<i32>} : memref<2x18x64xf32, #tpu.memory_space<vmem>>, vector<1x1x16xf32>,
    %318 = vector.extract_strided_slice %207 {offsets = [10, 0], sizes = [1, 16], strides = [1, 1]} : vector<16x16xf32> to vector<1x16xf32>
    %319 = vector.extract_strided_slice %207 {offsets = [11, 0], sizes = [1, 16], strides = [1, 1]} : vector<16x16xf32> to vector<1x16xf32>
    %320 = arith.maximumf %318, %319 : vector<1x16xf32>
    %c1_187 = arith.constant 1 : index
    %c6_188 = arith.constant 6 : index
    %c0_189 = arith.constant 0 : index
    %321 = vector.load %arg41[%c1_187, %c6_188, %c0_189] : memref<2x18x64xf32, #tpu.memory_space<vmem>>, vector<1x1x16xf32>
    %322 = vector.shape_cast %321 : vector<1x1x16xf32> to vector<1x16xf32>
    %323 = vector.shape_cast %320 : vector<1x16xf32> to vector<1x1x16xf32>
    tpu.vector_store %arg41[%c1_187, %c6_188, %c0_189], %323 {strides = array<i32>} : memref<2x18x64xf32, #tpu.memory_space<vmem>>, vector<1x1x16xf32>,
    %324 = vector.extract_strided_slice %207 {offsets = [12, 0], sizes = [1, 16], strides = [1, 1]} : vector<16x16xf32> to vector<1x16xf32>
    %325 = vector.extract_strided_slice %207 {offsets = [13, 0], sizes = [1, 16], strides = [1, 1]} : vector<16x16xf32> to vector<1x16xf32>
    %326 = arith.maximumf %324, %325 : vector<1x16xf32>
    %c1_190 = arith.constant 1 : index
    %c7_191 = arith.constant 7 : index
    %c0_192 = arith.constant 0 : index
    %327 = vector.load %arg41[%c1_190, %c7_191, %c0_192] : memref<2x18x64xf32, #tpu.memory_space<vmem>>, vector<1x1x16xf32>
    %328 = vector.shape_cast %327 : vector<1x1x16xf32> to vector<1x16xf32>
    %329 = vector.shape_cast %326 : vector<1x16xf32> to vector<1x1x16xf32>
    tpu.vector_store %arg41[%c1_190, %c7_191, %c0_192], %329 {strides = array<i32>} : memref<2x18x64xf32, #tpu.memory_space<vmem>>, vector<1x1x16xf32>,
    %330 = vector.extract_strided_slice %207 {offsets = [14, 0], sizes = [1, 16], strides = [1, 1]} : vector<16x16xf32> to vector<1x16xf32>
    %331 = vector.extract_strided_slice %207 {offsets = [15, 0], sizes = [1, 16], strides = [1, 1]} : vector<16x16xf32> to vector<1x16xf32>
    %332 = arith.maximumf %330, %331 : vector<1x16xf32>
    %c1_193 = arith.constant 1 : index
    %c8_194 = arith.constant 8 : index
    %c0_195 = arith.constant 0 : index
    %333 = vector.load %arg41[%c1_193, %c8_194, %c0_195] : memref<2x18x64xf32, #tpu.memory_space<vmem>>, vector<1x1x16xf32>
    %334 = vector.shape_cast %333 : vector<1x1x16xf32> to vector<1x16xf32>
    %335 = vector.shape_cast %332 : vector<1x16xf32> to vector<1x1x16xf32>
    tpu.vector_store %arg41[%c1_193, %c8_194, %c0_195], %335 {strides = array<i32>} : memref<2x18x64xf32, #tpu.memory_space<vmem>>, vector<1x1x16xf32>,
    %c1_196 = arith.constant 1 : index
    %c0_197 = arith.constant 0 : index
    %c0_198 = arith.constant 0 : index
    %336 = vector.load %arg41[%c1_196, %c0_197, %c0_198] : memref<2x18x64xf32, #tpu.memory_space<vmem>>, vector<1x18x64xf32>
    %337 = vector.shape_cast %336 : vector<1x18x64xf32> to vector<18x64xf32>
    %cst_199 = arith.constant 0.000000e+00 : f32
    %338 = vector.broadcast %cst_199 : f32 to vector<8x32xf32>
    %339 = vector.extract_strided_slice %337 {offsets = [0, 0], sizes = [8, 16], strides = [1, 1]} : vector<18x64xf32> to vector<8x16xf32>
    %c0_200 = arith.constant 0 : index
    %c0_201 = arith.constant 0 : index
    %c0_202 = arith.constant 0 : index
    %340 = vector.load %arg8[%c0_200, %c0_201, %c0_202] : memref<3x16x32xf32, #tpu.memory_space<vmem>>, vector<1x16x32xf32>
    %341 = vector.shape_cast %340 : vector<1x16x32xf32> to vector<16x32xf32>
    %cst_203 = arith.constant dense<0.000000e+00> : vector<8x32xf32>
    %342 = tpu.matmul %339, %341, %cst_203 {dimension_numbers = #tpu.dot_dimension_numbers<[1], [0], [0], [1], [0, 0, 1, 1], [], []>} : vector<8x16xf32>, vector<16x32xf32>, vector<8x32xf32> -> vector<8x32xf32>
    %343 = arith.addf %338, %342 : vector<8x32xf32>
    %344 = vector.extract_strided_slice %337 {offsets = [1, 0], sizes = [8, 16], strides = [1, 1]} : vector<18x64xf32> to vector<8x16xf32>
    %c1_204 = arith.constant 1 : index
    %c0_205 = arith.constant 0 : index
    %c0_206 = arith.constant 0 : index
    %345 = vector.load %arg8[%c1_204, %c0_205, %c0_206] : memref<3x16x32xf32, #tpu.memory_space<vmem>>, vector<1x16x32xf32>
    %346 = vector.shape_cast %345 : vector<1x16x32xf32> to vector<16x32xf32>
    %cst_207 = arith.constant dense<0.000000e+00> : vector<8x32xf32>
    %347 = tpu.matmul %344, %346, %cst_207 {dimension_numbers = #tpu.dot_dimension_numbers<[1], [0], [0], [1], [0, 0, 1, 1], [], []>} : vector<8x16xf32>, vector<16x32xf32>, vector<8x32xf32> -> vector<8x32xf32>
    %348 = arith.addf %343, %347 : vector<8x32xf32>
    %349 = vector.extract_strided_slice %337 {offsets = [2, 0], sizes = [8, 16], strides = [1, 1]} : vector<18x64xf32> to vector<8x16xf32>
    %c2_208 = arith.constant 2 : index
    %c0_209 = arith.constant 0 : index
    %c0_210 = arith.constant 0 : index
    %350 = vector.load %arg8[%c2_208, %c0_209, %c0_210] : memref<3x16x32xf32, #tpu.memory_space<vmem>>, vector<1x16x32xf32>
    %351 = vector.shape_cast %350 : vector<1x16x32xf32> to vector<16x32xf32>
    %cst_211 = arith.constant dense<0.000000e+00> : vector<8x32xf32>
    %352 = tpu.matmul %349, %351, %cst_211 {dimension_numbers = #tpu.dot_dimension_numbers<[1], [0], [0], [1], [0, 0, 1, 1], [], []>} : vector<8x16xf32>, vector<16x32xf32>, vector<8x32xf32> -> vector<8x32xf32>
    %353 = arith.addf %348, %352 : vector<8x32xf32>
    %cst_212 = arith.constant dense<0.000000e+00> : vector<32xf32>
    %354 = vector.multi_reduction <add>, %280, %cst_212 [0] : vector<8x32xf32> to vector<32xf32>
    %355 = vector.shape_cast %354 : vector<32xf32> to vector<1x32xf32>
    %cst_213 = arith.constant 0.000000e+00 : f32
    %356 = vector.broadcast %cst_213 : f32 to vector<1x32xf32>
    %357 = arith.addf %356, %355 : vector<1x32xf32>
    %cst_214 = arith.constant dense<0.000000e+00> : vector<32xf32>
    %358 = vector.multi_reduction <add>, %353, %cst_214 [0] : vector<8x32xf32> to vector<32xf32>
    %359 = vector.shape_cast %358 : vector<32xf32> to vector<1x32xf32>
    %360 = arith.addf %357, %359 : vector<1x32xf32>
    %361 = arith.mulf %280, %280 : vector<8x32xf32>
    %cst_215 = arith.constant dense<0.000000e+00> : vector<32xf32>
    %362 = vector.multi_reduction <add>, %361, %cst_215 [0] : vector<8x32xf32> to vector<32xf32>
    %363 = vector.shape_cast %362 : vector<32xf32> to vector<1x32xf32>
    %cst_216 = arith.constant 0.000000e+00 : f32
    %364 = vector.broadcast %cst_216 : f32 to vector<1x32xf32>
    %365 = arith.addf %364, %363 : vector<1x32xf32>
    %366 = arith.mulf %353, %353 : vector<8x32xf32>
    %cst_217 = arith.constant dense<0.000000e+00> : vector<32xf32>
    %367 = vector.multi_reduction <add>, %366, %cst_217 [0] : vector<8x32xf32> to vector<32xf32>
    %368 = vector.shape_cast %367 : vector<32xf32> to vector<1x32xf32>
    %369 = arith.addf %365, %368 : vector<1x32xf32>
    %cst_218 = arith.constant 1.600000e+01 : f32
    %370 = vector.broadcast %cst_218 : f32 to vector<1x32xf32>
    %371 = arith.divf %360, %370 : vector<1x32xf32>
    %cst_219 = arith.constant 1.600000e+01 : f32
    %372 = vector.broadcast %cst_219 : f32 to vector<1x32xf32>
    %373 = arith.divf %369, %372 : vector<1x32xf32>
    %374 = arith.mulf %371, %371 : vector<1x32xf32>
    %375 = arith.subf %373, %374 : vector<1x32xf32>
    %c0_220 = arith.constant 0 : index
    %c0_221 = arith.constant 0 : index
    %376 = vector.load %arg9[%c0_220, %c0_221] : memref<1x32xf32, #tpu.memory_space<vmem>>, vector<1x32xf32>
    %cst_222 = arith.constant 9.99999974E-6 : f32
    %377 = vector.broadcast %cst_222 : f32 to vector<1x32xf32>
    %378 = arith.addf %375, %377 : vector<1x32xf32>
    %379 = math.rsqrt %378 : vector<1x32xf32>
    %380 = arith.mulf %376, %379 : vector<1x32xf32>
    %c0_223 = arith.constant 0 : index
    %c0_224 = arith.constant 0 : index
    %381 = vector.load %arg10[%c0_223, %c0_224] : memref<1x32xf32, #tpu.memory_space<vmem>>, vector<1x32xf32>
    %382 = arith.mulf %371, %380 : vector<1x32xf32>
    %383 = arith.subf %381, %382 : vector<1x32xf32>
    %384 = vector.broadcast %380 : vector<1x32xf32> to vector<8x32xf32>
    %385 = arith.mulf %280, %384 : vector<8x32xf32>
    %386 = vector.broadcast %383 : vector<1x32xf32> to vector<8x32xf32>
    %387 = arith.addf %385, %386 : vector<8x32xf32>
    %388 = math.tanh %387 : vector<8x32xf32>
    %389 = vector.broadcast %380 : vector<1x32xf32> to vector<8x32xf32>
    %390 = arith.mulf %353, %389 : vector<8x32xf32>
    %391 = vector.broadcast %383 : vector<1x32xf32> to vector<8x32xf32>
    %392 = arith.addf %390, %391 : vector<8x32xf32>
    %393 = math.tanh %392 : vector<8x32xf32>
    %cst_225 = arith.constant 0.000000e+00 : f32
    %394 = vector.broadcast %cst_225 : f32 to vector<1x32xf32>
    %c0_226 = arith.constant 0 : index
    %c0_227 = arith.constant 0 : index
    %c0_228 = arith.constant 0 : index
    %395 = vector.load %arg41[%c0_226, %c0_227, %c0_228] : memref<2x18x64xf32, #tpu.memory_space<vmem>>, vector<1x1x32xf32>
    %396 = vector.shape_cast %395 : vector<1x1x32xf32> to vector<1x32xf32>
    %397 = vector.shape_cast %394 : vector<1x32xf32> to vector<1x1x32xf32>
    tpu.vector_store %arg41[%c0_226, %c0_227, %c0_228], %397 {strides = array<i32>} : memref<2x18x64xf32, #tpu.memory_space<vmem>>, vector<1x1x32xf32>,
    %c0_229 = arith.constant 0 : index
    %c9_230 = arith.constant 9 : index
    %c0_231 = arith.constant 0 : index
    %398 = vector.load %arg41[%c0_229, %c9_230, %c0_231] : memref<2x18x64xf32, #tpu.memory_space<vmem>>, vector<1x1x32xf32>
    %399 = vector.shape_cast %398 : vector<1x1x32xf32> to vector<1x32xf32>
    %400 = vector.shape_cast %394 : vector<1x32xf32> to vector<1x1x32xf32>
    tpu.vector_store %arg41[%c0_229, %c9_230, %c0_231], %400 {strides = array<i32>} : memref<2x18x64xf32, #tpu.memory_space<vmem>>, vector<1x1x32xf32>,
    %c0_232 = arith.constant 0 : index
    %c1_233 = arith.constant 1 : index
    %c0_234 = arith.constant 0 : index
    %401 = vector.load %arg41[%c0_232, %c1_233, %c0_234] : memref<2x18x64xf32, #tpu.memory_space<vmem>>, vector<1x8x32xf32>
    %402 = vector.shape_cast %401 : vector<1x8x32xf32> to vector<8x32xf32>
    %403 = vector.shape_cast %388 : vector<8x32xf32> to vector<1x8x32xf32>
    tpu.vector_store %arg41[%c0_232, %c1_233, %c0_234], %403 {strides = array<i32>} : memref<2x18x64xf32, #tpu.memory_space<vmem>>, vector<1x8x32xf32>,
    %c0_235 = arith.constant 0 : index
    %c0_236 = arith.constant 0 : index
    %c0_237 = arith.constant 0 : index
    %404 = vector.load %arg41[%c0_235, %c0_236, %c0_237] : memref<2x18x64xf32, #tpu.memory_space<vmem>>, vector<1x18x64xf32>
    %405 = vector.shape_cast %404 : vector<1x18x64xf32> to vector<18x64xf32>
    %cst_238 = arith.constant 0.000000e+00 : f32
    %406 = vector.broadcast %cst_238 : f32 to vector<8x32xf32>
    %407 = vector.extract_strided_slice %405 {offsets = [0, 0], sizes = [8, 32], strides = [1, 1]} : vector<18x64xf32> to vector<8x32xf32>
    %c0_239 = arith.constant 0 : index
    %c0_240 = arith.constant 0 : index
    %c0_241 = arith.constant 0 : index
    %408 = vector.load %arg11[%c0_239, %c0_240, %c0_241] : memref<3x32x32xf32, #tpu.memory_space<vmem>>, vector<1x32x32xf32>
    %409 = vector.shape_cast %408 : vector<1x32x32xf32> to vector<32x32xf32>
    %cst_242 = arith.constant dense<0.000000e+00> : vector<8x32xf32>
    %410 = tpu.matmul %407, %409, %cst_242 {dimension_numbers = #tpu.dot_dimension_numbers<[1], [0], [0], [1], [0, 0, 1, 1], [], []>} : vector<8x32xf32>, vector<32x32xf32>, vector<8x32xf32> -> vector<8x32xf32>
    %411 = arith.addf %406, %410 : vector<8x32xf32>
    %412 = vector.extract_strided_slice %405 {offsets = [1, 0], sizes = [8, 32], strides = [1, 1]} : vector<18x64xf32> to vector<8x32xf32>
    %c1_243 = arith.constant 1 : index
    %c0_244 = arith.constant 0 : index
    %c0_245 = arith.constant 0 : index
    %413 = vector.load %arg11[%c1_243, %c0_244, %c0_245] : memref<3x32x32xf32, #tpu.memory_space<vmem>>, vector<1x32x32xf32>
    %414 = vector.shape_cast %413 : vector<1x32x32xf32> to vector<32x32xf32>
    %cst_246 = arith.constant dense<0.000000e+00> : vector<8x32xf32>
    %415 = tpu.matmul %412, %414, %cst_246 {dimension_numbers = #tpu.dot_dimension_numbers<[1], [0], [0], [1], [0, 0, 1, 1], [], []>} : vector<8x32xf32>, vector<32x32xf32>, vector<8x32xf32> -> vector<8x32xf32>
    %416 = arith.addf %411, %415 : vector<8x32xf32>
    %417 = vector.extract_strided_slice %405 {offsets = [2, 0], sizes = [8, 32], strides = [1, 1]} : vector<18x64xf32> to vector<8x32xf32>
    %c2_247 = arith.constant 2 : index
    %c0_248 = arith.constant 0 : index
    %c0_249 = arith.constant 0 : index
    %418 = vector.load %arg11[%c2_247, %c0_248, %c0_249] : memref<3x32x32xf32, #tpu.memory_space<vmem>>, vector<1x32x32xf32>
    %419 = vector.shape_cast %418 : vector<1x32x32xf32> to vector<32x32xf32>
    %cst_250 = arith.constant dense<0.000000e+00> : vector<8x32xf32>
    %420 = tpu.matmul %417, %419, %cst_250 {dimension_numbers = #tpu.dot_dimension_numbers<[1], [0], [0], [1], [0, 0, 1, 1], [], []>} : vector<8x32xf32>, vector<32x32xf32>, vector<8x32xf32> -> vector<8x32xf32>
    %421 = arith.addf %416, %420 : vector<8x32xf32>
    %cst_251 = arith.constant 0.000000e+00 : f32
    %422 = vector.broadcast %cst_251 : f32 to vector<1x32xf32>
    %c1_252 = arith.constant 1 : index
    %c0_253 = arith.constant 0 : index
    %c0_254 = arith.constant 0 : index
    %423 = vector.load %arg41[%c1_252, %c0_253, %c0_254] : memref<2x18x64xf32, #tpu.memory_space<vmem>>, vector<1x1x32xf32>
    %424 = vector.shape_cast %423 : vector<1x1x32xf32> to vector<1x32xf32>
    %425 = vector.shape_cast %422 : vector<1x32xf32> to vector<1x1x32xf32>
    tpu.vector_store %arg41[%c1_252, %c0_253, %c0_254], %425 {strides = array<i32>} : memref<2x18x64xf32, #tpu.memory_space<vmem>>, vector<1x1x32xf32>,
    %c1_255 = arith.constant 1 : index
    %c9_256 = arith.constant 9 : index
    %c0_257 = arith.constant 0 : index
    %426 = vector.load %arg41[%c1_255, %c9_256, %c0_257] : memref<2x18x64xf32, #tpu.memory_space<vmem>>, vector<1x1x32xf32>
    %427 = vector.shape_cast %426 : vector<1x1x32xf32> to vector<1x32xf32>
    %428 = vector.shape_cast %422 : vector<1x32xf32> to vector<1x1x32xf32>
    tpu.vector_store %arg41[%c1_255, %c9_256, %c0_257], %428 {strides = array<i32>} : memref<2x18x64xf32, #tpu.memory_space<vmem>>, vector<1x1x32xf32>,
    %c1_258 = arith.constant 1 : index
    %c1_259 = arith.constant 1 : index
    %c0_260 = arith.constant 0 : index
    %429 = vector.load %arg41[%c1_258, %c1_259, %c0_260] : memref<2x18x64xf32, #tpu.memory_space<vmem>>, vector<1x8x32xf32>
    %430 = vector.shape_cast %429 : vector<1x8x32xf32> to vector<8x32xf32>
    %431 = vector.shape_cast %393 : vector<8x32xf32> to vector<1x8x32xf32>
    tpu.vector_store %arg41[%c1_258, %c1_259, %c0_260], %431 {strides = array<i32>} : memref<2x18x64xf32, #tpu.memory_space<vmem>>, vector<1x8x32xf32>,
    %c1_261 = arith.constant 1 : index
    %c0_262 = arith.constant 0 : index
    %c0_263 = arith.constant 0 : index
    %432 = vector.load %arg41[%c1_261, %c0_262, %c0_263] : memref<2x18x64xf32, #tpu.memory_space<vmem>>, vector<1x18x64xf32>
    %433 = vector.shape_cast %432 : vector<1x18x64xf32> to vector<18x64xf32>
    %cst_264 = arith.constant 0.000000e+00 : f32
    %434 = vector.broadcast %cst_264 : f32 to vector<8x32xf32>
    %435 = vector.extract_strided_slice %433 {offsets = [0, 0], sizes = [8, 32], strides = [1, 1]} : vector<18x64xf32> to vector<8x32xf32>
    %c0_265 = arith.constant 0 : index
    %c0_266 = arith.constant 0 : index
    %c0_267 = arith.constant 0 : index
    %436 = vector.load %arg11[%c0_265, %c0_266, %c0_267] : memref<3x32x32xf32, #tpu.memory_space<vmem>>, vector<1x32x32xf32>
    %437 = vector.shape_cast %436 : vector<1x32x32xf32> to vector<32x32xf32>
    %cst_268 = arith.constant dense<0.000000e+00> : vector<8x32xf32>
    %438 = tpu.matmul %435, %437, %cst_268 {dimension_numbers = #tpu.dot_dimension_numbers<[1], [0], [0], [1], [0, 0, 1, 1], [], []>} : vector<8x32xf32>, vector<32x32xf32>, vector<8x32xf32> -> vector<8x32xf32>
    %439 = arith.addf %434, %438 : vector<8x32xf32>
    %440 = vector.extract_strided_slice %433 {offsets = [1, 0], sizes = [8, 32], strides = [1, 1]} : vector<18x64xf32> to vector<8x32xf32>
    %c1_269 = arith.constant 1 : index
    %c0_270 = arith.constant 0 : index
    %c0_271 = arith.constant 0 : index
    %441 = vector.load %arg11[%c1_269, %c0_270, %c0_271] : memref<3x32x32xf32, #tpu.memory_space<vmem>>, vector<1x32x32xf32>
    %442 = vector.shape_cast %441 : vector<1x32x32xf32> to vector<32x32xf32>
    %cst_272 = arith.constant dense<0.000000e+00> : vector<8x32xf32>
    %443 = tpu.matmul %440, %442, %cst_272 {dimension_numbers = #tpu.dot_dimension_numbers<[1], [0], [0], [1], [0, 0, 1, 1], [], []>} : vector<8x32xf32>, vector<32x32xf32>, vector<8x32xf32> -> vector<8x32xf32>
    %444 = arith.addf %439, %443 : vector<8x32xf32>
    %445 = vector.extract_strided_slice %433 {offsets = [2, 0], sizes = [8, 32], strides = [1, 1]} : vector<18x64xf32> to vector<8x32xf32>
    %c2_273 = arith.constant 2 : index
    %c0_274 = arith.constant 0 : index
    %c0_275 = arith.constant 0 : index
    %446 = vector.load %arg11[%c2_273, %c0_274, %c0_275] : memref<3x32x32xf32, #tpu.memory_space<vmem>>, vector<1x32x32xf32>
    %447 = vector.shape_cast %446 : vector<1x32x32xf32> to vector<32x32xf32>
    %cst_276 = arith.constant dense<0.000000e+00> : vector<8x32xf32>
    %448 = tpu.matmul %445, %447, %cst_276 {dimension_numbers = #tpu.dot_dimension_numbers<[1], [0], [0], [1], [0, 0, 1, 1], [], []>} : vector<8x32xf32>, vector<32x32xf32>, vector<8x32xf32> -> vector<8x32xf32>
    %449 = arith.addf %444, %448 : vector<8x32xf32>
    %cst_277 = arith.constant dense<0.000000e+00> : vector<32xf32>
    %450 = vector.multi_reduction <add>, %421, %cst_277 [0] : vector<8x32xf32> to vector<32xf32>
    %451 = vector.shape_cast %450 : vector<32xf32> to vector<1x32xf32>
    %cst_278 = arith.constant 0.000000e+00 : f32
    %452 = vector.broadcast %cst_278 : f32 to vector<1x32xf32>
    %453 = arith.addf %452, %451 : vector<1x32xf32>
    %cst_279 = arith.constant dense<0.000000e+00> : vector<32xf32>
    %454 = vector.multi_reduction <add>, %449, %cst_279 [0] : vector<8x32xf32> to vector<32xf32>
    %455 = vector.shape_cast %454 : vector<32xf32> to vector<1x32xf32>
    %456 = arith.addf %453, %455 : vector<1x32xf32>
    %457 = arith.mulf %421, %421 : vector<8x32xf32>
    %cst_280 = arith.constant dense<0.000000e+00> : vector<32xf32>
    %458 = vector.multi_reduction <add>, %457, %cst_280 [0] : vector<8x32xf32> to vector<32xf32>
    %459 = vector.shape_cast %458 : vector<32xf32> to vector<1x32xf32>
    %cst_281 = arith.constant 0.000000e+00 : f32
    %460 = vector.broadcast %cst_281 : f32 to vector<1x32xf32>
    %461 = arith.addf %460, %459 : vector<1x32xf32>
    %462 = arith.mulf %449, %449 : vector<8x32xf32>
    %cst_282 = arith.constant dense<0.000000e+00> : vector<32xf32>
    %463 = vector.multi_reduction <add>, %462, %cst_282 [0] : vector<8x32xf32> to vector<32xf32>
    %464 = vector.shape_cast %463 : vector<32xf32> to vector<1x32xf32>
    %465 = arith.addf %461, %464 : vector<1x32xf32>
    %cst_283 = arith.constant 1.600000e+01 : f32
    %466 = vector.broadcast %cst_283 : f32 to vector<1x32xf32>
    %467 = arith.divf %456, %466 : vector<1x32xf32>
    %cst_284 = arith.constant 1.600000e+01 : f32
    %468 = vector.broadcast %cst_284 : f32 to vector<1x32xf32>
    %469 = arith.divf %465, %468 : vector<1x32xf32>
    %470 = arith.mulf %467, %467 : vector<1x32xf32>
    %471 = arith.subf %469, %470 : vector<1x32xf32>
    %c0_285 = arith.constant 0 : index
    %c0_286 = arith.constant 0 : index
    %472 = vector.load %arg12[%c0_285, %c0_286] : memref<1x32xf32, #tpu.memory_space<vmem>>, vector<1x32xf32>
    %cst_287 = arith.constant 9.99999974E-6 : f32
    %473 = vector.broadcast %cst_287 : f32 to vector<1x32xf32>
    %474 = arith.addf %471, %473 : vector<1x32xf32>
    %475 = math.rsqrt %474 : vector<1x32xf32>
    %476 = arith.mulf %472, %475 : vector<1x32xf32>
    %c0_288 = arith.constant 0 : index
    %c0_289 = arith.constant 0 : index
    %477 = vector.load %arg13[%c0_288, %c0_289] : memref<1x32xf32, #tpu.memory_space<vmem>>, vector<1x32xf32>
    %478 = arith.mulf %467, %476 : vector<1x32xf32>
    %479 = arith.subf %477, %478 : vector<1x32xf32>
    %480 = vector.broadcast %476 : vector<1x32xf32> to vector<8x32xf32>
    %481 = arith.mulf %421, %480 : vector<8x32xf32>
    %482 = vector.broadcast %479 : vector<1x32xf32> to vector<8x32xf32>
    %483 = arith.addf %481, %482 : vector<8x32xf32>
    %484 = math.tanh %483 : vector<8x32xf32>
    %485 = vector.broadcast %476 : vector<1x32xf32> to vector<8x32xf32>
    %486 = arith.mulf %449, %485 : vector<8x32xf32>
    %487 = vector.broadcast %479 : vector<1x32xf32> to vector<8x32xf32>
    %488 = arith.addf %486, %487 : vector<8x32xf32>
    %489 = math.tanh %488 : vector<8x32xf32>
    %cst_290 = arith.constant 0.000000e+00 : f32
    %490 = vector.broadcast %cst_290 : f32 to vector<1x32xf32>
    %c0_291 = arith.constant 0 : index
    %c0_292 = arith.constant 0 : index
    %c0_293 = arith.constant 0 : index
    %491 = vector.load %arg41[%c0_291, %c0_292, %c0_293] : memref<2x18x64xf32, #tpu.memory_space<vmem>>, vector<1x1x32xf32>
    %492 = vector.shape_cast %491 : vector<1x1x32xf32> to vector<1x32xf32>
    %493 = vector.shape_cast %490 : vector<1x32xf32> to vector<1x1x32xf32>
    tpu.vector_store %arg41[%c0_291, %c0_292, %c0_293], %493 {strides = array<i32>} : memref<2x18x64xf32, #tpu.memory_space<vmem>>, vector<1x1x32xf32>,
    %c0_294 = arith.constant 0 : index
    %c5_295 = arith.constant 5 : index
    %c0_296 = arith.constant 0 : index
    %494 = vector.load %arg41[%c0_294, %c5_295, %c0_296] : memref<2x18x64xf32, #tpu.memory_space<vmem>>, vector<1x1x32xf32>
    %495 = vector.shape_cast %494 : vector<1x1x32xf32> to vector<1x32xf32>
    %496 = vector.shape_cast %490 : vector<1x32xf32> to vector<1x1x32xf32>
    tpu.vector_store %arg41[%c0_294, %c5_295, %c0_296], %496 {strides = array<i32>} : memref<2x18x64xf32, #tpu.memory_space<vmem>>, vector<1x1x32xf32>,
    %497 = vector.extract_strided_slice %484 {offsets = [0, 0], sizes = [1, 32], strides = [1, 1]} : vector<8x32xf32> to vector<1x32xf32>
    %498 = vector.extract_strided_slice %484 {offsets = [1, 0], sizes = [1, 32], strides = [1, 1]} : vector<8x32xf32> to vector<1x32xf32>
    %499 = arith.maximumf %497, %498 : vector<1x32xf32>
    %c0_297 = arith.constant 0 : index
    %c1_298 = arith.constant 1 : index
    %c0_299 = arith.constant 0 : index
    %500 = vector.load %arg41[%c0_297, %c1_298, %c0_299] : memref<2x18x64xf32, #tpu.memory_space<vmem>>, vector<1x1x32xf32>
    %501 = vector.shape_cast %500 : vector<1x1x32xf32> to vector<1x32xf32>
    %502 = vector.shape_cast %499 : vector<1x32xf32> to vector<1x1x32xf32>
    tpu.vector_store %arg41[%c0_297, %c1_298, %c0_299], %502 {strides = array<i32>} : memref<2x18x64xf32, #tpu.memory_space<vmem>>, vector<1x1x32xf32>,
    %503 = vector.extract_strided_slice %484 {offsets = [2, 0], sizes = [1, 32], strides = [1, 1]} : vector<8x32xf32> to vector<1x32xf32>
    %504 = vector.extract_strided_slice %484 {offsets = [3, 0], sizes = [1, 32], strides = [1, 1]} : vector<8x32xf32> to vector<1x32xf32>
    %505 = arith.maximumf %503, %504 : vector<1x32xf32>
    %c0_300 = arith.constant 0 : index
    %c2_301 = arith.constant 2 : index
    %c0_302 = arith.constant 0 : index
    %506 = vector.load %arg41[%c0_300, %c2_301, %c0_302] : memref<2x18x64xf32, #tpu.memory_space<vmem>>, vector<1x1x32xf32>
    %507 = vector.shape_cast %506 : vector<1x1x32xf32> to vector<1x32xf32>
    %508 = vector.shape_cast %505 : vector<1x32xf32> to vector<1x1x32xf32>
    tpu.vector_store %arg41[%c0_300, %c2_301, %c0_302], %508 {strides = array<i32>} : memref<2x18x64xf32, #tpu.memory_space<vmem>>, vector<1x1x32xf32>,
    %509 = vector.extract_strided_slice %484 {offsets = [4, 0], sizes = [1, 32], strides = [1, 1]} : vector<8x32xf32> to vector<1x32xf32>
    %510 = vector.extract_strided_slice %484 {offsets = [5, 0], sizes = [1, 32], strides = [1, 1]} : vector<8x32xf32> to vector<1x32xf32>
    %511 = arith.maximumf %509, %510 : vector<1x32xf32>
    %c0_303 = arith.constant 0 : index
    %c3_304 = arith.constant 3 : index
    %c0_305 = arith.constant 0 : index
    %512 = vector.load %arg41[%c0_303, %c3_304, %c0_305] : memref<2x18x64xf32, #tpu.memory_space<vmem>>, vector<1x1x32xf32>
    %513 = vector.shape_cast %512 : vector<1x1x32xf32> to vector<1x32xf32>
    %514 = vector.shape_cast %511 : vector<1x32xf32> to vector<1x1x32xf32>
    tpu.vector_store %arg41[%c0_303, %c3_304, %c0_305], %514 {strides = array<i32>} : memref<2x18x64xf32, #tpu.memory_space<vmem>>, vector<1x1x32xf32>,
    %515 = vector.extract_strided_slice %484 {offsets = [6, 0], sizes = [1, 32], strides = [1, 1]} : vector<8x32xf32> to vector<1x32xf32>
    %516 = vector.extract_strided_slice %484 {offsets = [7, 0], sizes = [1, 32], strides = [1, 1]} : vector<8x32xf32> to vector<1x32xf32>
    %517 = arith.maximumf %515, %516 : vector<1x32xf32>
    %c0_306 = arith.constant 0 : index
    %c4_307 = arith.constant 4 : index
    %c0_308 = arith.constant 0 : index
    %518 = vector.load %arg41[%c0_306, %c4_307, %c0_308] : memref<2x18x64xf32, #tpu.memory_space<vmem>>, vector<1x1x32xf32>
    %519 = vector.shape_cast %518 : vector<1x1x32xf32> to vector<1x32xf32>
    %520 = vector.shape_cast %517 : vector<1x32xf32> to vector<1x1x32xf32>
    tpu.vector_store %arg41[%c0_306, %c4_307, %c0_308], %520 {strides = array<i32>} : memref<2x18x64xf32, #tpu.memory_space<vmem>>, vector<1x1x32xf32>,
    %c0_309 = arith.constant 0 : index
    %c0_310 = arith.constant 0 : index
    %c0_311 = arith.constant 0 : index
    %521 = vector.load %arg41[%c0_309, %c0_310, %c0_311] : memref<2x18x64xf32, #tpu.memory_space<vmem>>, vector<1x18x64xf32>
    %522 = vector.shape_cast %521 : vector<1x18x64xf32> to vector<18x64xf32>
    %cst_312 = arith.constant 0.000000e+00 : f32
    %523 = vector.broadcast %cst_312 : f32 to vector<4x64xf32>
    %524 = vector.extract_strided_slice %522 {offsets = [0, 0], sizes = [4, 32], strides = [1, 1]} : vector<18x64xf32> to vector<4x32xf32>
    %c0_313 = arith.constant 0 : index
    %c0_314 = arith.constant 0 : index
    %c0_315 = arith.constant 0 : index
    %525 = vector.load %arg14[%c0_313, %c0_314, %c0_315] : memref<3x32x64xf32, #tpu.memory_space<vmem>>, vector<1x32x64xf32>
    %526 = vector.shape_cast %525 : vector<1x32x64xf32> to vector<32x64xf32>
    %cst_316 = arith.constant dense<0.000000e+00> : vector<4x64xf32>
    %527 = tpu.matmul %524, %526, %cst_316 {dimension_numbers = #tpu.dot_dimension_numbers<[1], [0], [0], [1], [0, 0, 1, 1], [], []>} : vector<4x32xf32>, vector<32x64xf32>, vector<4x64xf32> -> vector<4x64xf32>
    %528 = arith.addf %523, %527 : vector<4x64xf32>
    %529 = vector.extract_strided_slice %522 {offsets = [1, 0], sizes = [4, 32], strides = [1, 1]} : vector<18x64xf32> to vector<4x32xf32>
    %c1_317 = arith.constant 1 : index
    %c0_318 = arith.constant 0 : index
    %c0_319 = arith.constant 0 : index
    %530 = vector.load %arg14[%c1_317, %c0_318, %c0_319] : memref<3x32x64xf32, #tpu.memory_space<vmem>>, vector<1x32x64xf32>
    %531 = vector.shape_cast %530 : vector<1x32x64xf32> to vector<32x64xf32>
    %cst_320 = arith.constant dense<0.000000e+00> : vector<4x64xf32>
    %532 = tpu.matmul %529, %531, %cst_320 {dimension_numbers = #tpu.dot_dimension_numbers<[1], [0], [0], [1], [0, 0, 1, 1], [], []>} : vector<4x32xf32>, vector<32x64xf32>, vector<4x64xf32> -> vector<4x64xf32>
    %533 = arith.addf %528, %532 : vector<4x64xf32>
    %534 = vector.extract_strided_slice %522 {offsets = [2, 0], sizes = [4, 32], strides = [1, 1]} : vector<18x64xf32> to vector<4x32xf32>
    %c2_321 = arith.constant 2 : index
    %c0_322 = arith.constant 0 : index
    %c0_323 = arith.constant 0 : index
    %535 = vector.load %arg14[%c2_321, %c0_322, %c0_323] : memref<3x32x64xf32, #tpu.memory_space<vmem>>, vector<1x32x64xf32>
    %536 = vector.shape_cast %535 : vector<1x32x64xf32> to vector<32x64xf32>
    %cst_324 = arith.constant dense<0.000000e+00> : vector<4x64xf32>
    %537 = tpu.matmul %534, %536, %cst_324 {dimension_numbers = #tpu.dot_dimension_numbers<[1], [0], [0], [1], [0, 0, 1, 1], [], []>} : vector<4x32xf32>, vector<32x64xf32>, vector<4x64xf32> -> vector<4x64xf32>
    %538 = arith.addf %533, %537 : vector<4x64xf32>
    %cst_325 = arith.constant 0.000000e+00 : f32
    %539 = vector.broadcast %cst_325 : f32 to vector<1x32xf32>
    %c1_326 = arith.constant 1 : index
    %c0_327 = arith.constant 0 : index
    %c0_328 = arith.constant 0 : index
    %540 = vector.load %arg41[%c1_326, %c0_327, %c0_328] : memref<2x18x64xf32, #tpu.memory_space<vmem>>, vector<1x1x32xf32>
    %541 = vector.shape_cast %540 : vector<1x1x32xf32> to vector<1x32xf32>
    %542 = vector.shape_cast %539 : vector<1x32xf32> to vector<1x1x32xf32>
    tpu.vector_store %arg41[%c1_326, %c0_327, %c0_328], %542 {strides = array<i32>} : memref<2x18x64xf32, #tpu.memory_space<vmem>>, vector<1x1x32xf32>,
    %c1_329 = arith.constant 1 : index
    %c5_330 = arith.constant 5 : index
    %c0_331 = arith.constant 0 : index
    %543 = vector.load %arg41[%c1_329, %c5_330, %c0_331] : memref<2x18x64xf32, #tpu.memory_space<vmem>>, vector<1x1x32xf32>
    %544 = vector.shape_cast %543 : vector<1x1x32xf32> to vector<1x32xf32>
    %545 = vector.shape_cast %539 : vector<1x32xf32> to vector<1x1x32xf32>
    tpu.vector_store %arg41[%c1_329, %c5_330, %c0_331], %545 {strides = array<i32>} : memref<2x18x64xf32, #tpu.memory_space<vmem>>, vector<1x1x32xf32>,
    %546 = vector.extract_strided_slice %489 {offsets = [0, 0], sizes = [1, 32], strides = [1, 1]} : vector<8x32xf32> to vector<1x32xf32>
    %547 = vector.extract_strided_slice %489 {offsets = [1, 0], sizes = [1, 32], strides = [1, 1]} : vector<8x32xf32> to vector<1x32xf32>
    %548 = arith.maximumf %546, %547 : vector<1x32xf32>
    %c1_332 = arith.constant 1 : index
    %c1_333 = arith.constant 1 : index
    %c0_334 = arith.constant 0 : index
    %549 = vector.load %arg41[%c1_332, %c1_333, %c0_334] : memref<2x18x64xf32, #tpu.memory_space<vmem>>, vector<1x1x32xf32>
    %550 = vector.shape_cast %549 : vector<1x1x32xf32> to vector<1x32xf32>
    %551 = vector.shape_cast %548 : vector<1x32xf32> to vector<1x1x32xf32>
    tpu.vector_store %arg41[%c1_332, %c1_333, %c0_334], %551 {strides = array<i32>} : memref<2x18x64xf32, #tpu.memory_space<vmem>>, vector<1x1x32xf32>,
    %552 = vector.extract_strided_slice %489 {offsets = [2, 0], sizes = [1, 32], strides = [1, 1]} : vector<8x32xf32> to vector<1x32xf32>
    %553 = vector.extract_strided_slice %489 {offsets = [3, 0], sizes = [1, 32], strides = [1, 1]} : vector<8x32xf32> to vector<1x32xf32>
    %554 = arith.maximumf %552, %553 : vector<1x32xf32>
    %c1_335 = arith.constant 1 : index
    %c2_336 = arith.constant 2 : index
    %c0_337 = arith.constant 0 : index
    %555 = vector.load %arg41[%c1_335, %c2_336, %c0_337] : memref<2x18x64xf32, #tpu.memory_space<vmem>>, vector<1x1x32xf32>
    %556 = vector.shape_cast %555 : vector<1x1x32xf32> to vector<1x32xf32>
    %557 = vector.shape_cast %554 : vector<1x32xf32> to vector<1x1x32xf32>
    tpu.vector_store %arg41[%c1_335, %c2_336, %c0_337], %557 {strides = array<i32>} : memref<2x18x64xf32, #tpu.memory_space<vmem>>, vector<1x1x32xf32>,
    %558 = vector.extract_strided_slice %489 {offsets = [4, 0], sizes = [1, 32], strides = [1, 1]} : vector<8x32xf32> to vector<1x32xf32>
    %559 = vector.extract_strided_slice %489 {offsets = [5, 0], sizes = [1, 32], strides = [1, 1]} : vector<8x32xf32> to vector<1x32xf32>
    %560 = arith.maximumf %558, %559 : vector<1x32xf32>
    %c1_338 = arith.constant 1 : index
    %c3_339 = arith.constant 3 : index
    %c0_340 = arith.constant 0 : index
    %561 = vector.load %arg41[%c1_338, %c3_339, %c0_340] : memref<2x18x64xf32, #tpu.memory_space<vmem>>, vector<1x1x32xf32>
    %562 = vector.shape_cast %561 : vector<1x1x32xf32> to vector<1x32xf32>
    %563 = vector.shape_cast %560 : vector<1x32xf32> to vector<1x1x32xf32>
    tpu.vector_store %arg41[%c1_338, %c3_339, %c0_340], %563 {strides = array<i32>} : memref<2x18x64xf32, #tpu.memory_space<vmem>>, vector<1x1x32xf32>,
    %564 = vector.extract_strided_slice %489 {offsets = [6, 0], sizes = [1, 32], strides = [1, 1]} : vector<8x32xf32> to vector<1x32xf32>
    %565 = vector.extract_strided_slice %489 {offsets = [7, 0], sizes = [1, 32], strides = [1, 1]} : vector<8x32xf32> to vector<1x32xf32>
    %566 = arith.maximumf %564, %565 : vector<1x32xf32>
    %c1_341 = arith.constant 1 : index
    %c4_342 = arith.constant 4 : index
    %c0_343 = arith.constant 0 : index
    %567 = vector.load %arg41[%c1_341, %c4_342, %c0_343] : memref<2x18x64xf32, #tpu.memory_space<vmem>>, vector<1x1x32xf32>
    %568 = vector.shape_cast %567 : vector<1x1x32xf32> to vector<1x32xf32>
    %569 = vector.shape_cast %566 : vector<1x32xf32> to vector<1x1x32xf32>
    tpu.vector_store %arg41[%c1_341, %c4_342, %c0_343], %569 {strides = array<i32>} : memref<2x18x64xf32, #tpu.memory_space<vmem>>, vector<1x1x32xf32>,
    %c1_344 = arith.constant 1 : index
    %c0_345 = arith.constant 0 : index
    %c0_346 = arith.constant 0 : index
    %570 = vector.load %arg41[%c1_344, %c0_345, %c0_346] : memref<2x18x64xf32, #tpu.memory_space<vmem>>, vector<1x18x64xf32>
    %571 = vector.shape_cast %570 : vector<1x18x64xf32> to vector<18x64xf32>
    %cst_347 = arith.constant 0.000000e+00 : f32
    %572 = vector.broadcast %cst_347 : f32 to vector<4x64xf32>
    %573 = vector.extract_strided_slice %571 {offsets = [0, 0], sizes = [4, 32], strides = [1, 1]} : vector<18x64xf32> to vector<4x32xf32>
    %c0_348 = arith.constant 0 : index
    %c0_349 = arith.constant 0 : index
    %c0_350 = arith.constant 0 : index
    %574 = vector.load %arg14[%c0_348, %c0_349, %c0_350] : memref<3x32x64xf32, #tpu.memory_space<vmem>>, vector<1x32x64xf32>
    %575 = vector.shape_cast %574 : vector<1x32x64xf32> to vector<32x64xf32>
    %cst_351 = arith.constant dense<0.000000e+00> : vector<4x64xf32>
    %576 = tpu.matmul %573, %575, %cst_351 {dimension_numbers = #tpu.dot_dimension_numbers<[1], [0], [0], [1], [0, 0, 1, 1], [], []>} : vector<4x32xf32>, vector<32x64xf32>, vector<4x64xf32> -> vector<4x64xf32>
    %577 = arith.addf %572, %576 : vector<4x64xf32>
    %578 = vector.extract_strided_slice %571 {offsets = [1, 0], sizes = [4, 32], strides = [1, 1]} : vector<18x64xf32> to vector<4x32xf32>
    %c1_352 = arith.constant 1 : index
    %c0_353 = arith.constant 0 : index
    %c0_354 = arith.constant 0 : index
    %579 = vector.load %arg14[%c1_352, %c0_353, %c0_354] : memref<3x32x64xf32, #tpu.memory_space<vmem>>, vector<1x32x64xf32>
    %580 = vector.shape_cast %579 : vector<1x32x64xf32> to vector<32x64xf32>
    %cst_355 = arith.constant dense<0.000000e+00> : vector<4x64xf32>
    %581 = tpu.matmul %578, %580, %cst_355 {dimension_numbers = #tpu.dot_dimension_numbers<[1], [0], [0], [1], [0, 0, 1, 1], [], []>} : vector<4x32xf32>, vector<32x64xf32>, vector<4x64xf32> -> vector<4x64xf32>
    %582 = arith.addf %577, %581 : vector<4x64xf32>
    %583 = vector.extract_strided_slice %571 {offsets = [2, 0], sizes = [4, 32], strides = [1, 1]} : vector<18x64xf32> to vector<4x32xf32>
    %c2_356 = arith.constant 2 : index
    %c0_357 = arith.constant 0 : index
    %c0_358 = arith.constant 0 : index
    %584 = vector.load %arg14[%c2_356, %c0_357, %c0_358] : memref<3x32x64xf32, #tpu.memory_space<vmem>>, vector<1x32x64xf32>
    %585 = vector.shape_cast %584 : vector<1x32x64xf32> to vector<32x64xf32>
    %cst_359 = arith.constant dense<0.000000e+00> : vector<4x64xf32>
    %586 = tpu.matmul %583, %585, %cst_359 {dimension_numbers = #tpu.dot_dimension_numbers<[1], [0], [0], [1], [0, 0, 1, 1], [], []>} : vector<4x32xf32>, vector<32x64xf32>, vector<4x64xf32> -> vector<4x64xf32>
    %587 = arith.addf %582, %586 : vector<4x64xf32>
    %cst_360 = arith.constant dense<0.000000e+00> : vector<64xf32>
    %588 = vector.multi_reduction <add>, %538, %cst_360 [0] : vector<4x64xf32> to vector<64xf32>
    %589 = vector.shape_cast %588 : vector<64xf32> to vector<1x64xf32>
    %cst_361 = arith.constant 0.000000e+00 : f32
    %590 = vector.broadcast %cst_361 : f32 to vector<1x64xf32>
    %591 = arith.addf %590, %589 : vector<1x64xf32>
    %cst_362 = arith.constant dense<0.000000e+00> : vector<64xf32>
    %592 = vector.multi_reduction <add>, %587, %cst_362 [0] : vector<4x64xf32> to vector<64xf32>
    %593 = vector.shape_cast %592 : vector<64xf32> to vector<1x64xf32>
    %594 = arith.addf %591, %593 : vector<1x64xf32>
    %595 = arith.mulf %538, %538 : vector<4x64xf32>
    %cst_363 = arith.constant dense<0.000000e+00> : vector<64xf32>
    %596 = vector.multi_reduction <add>, %595, %cst_363 [0] : vector<4x64xf32> to vector<64xf32>
    %597 = vector.shape_cast %596 : vector<64xf32> to vector<1x64xf32>
    %cst_364 = arith.constant 0.000000e+00 : f32
    %598 = vector.broadcast %cst_364 : f32 to vector<1x64xf32>
    %599 = arith.addf %598, %597 : vector<1x64xf32>
    %600 = arith.mulf %587, %587 : vector<4x64xf32>
    %cst_365 = arith.constant dense<0.000000e+00> : vector<64xf32>
    %601 = vector.multi_reduction <add>, %600, %cst_365 [0] : vector<4x64xf32> to vector<64xf32>
    %602 = vector.shape_cast %601 : vector<64xf32> to vector<1x64xf32>
    %603 = arith.addf %599, %602 : vector<1x64xf32>
    %cst_366 = arith.constant 8.000000e+00 : f32
    %604 = vector.broadcast %cst_366 : f32 to vector<1x64xf32>
    %605 = arith.divf %594, %604 : vector<1x64xf32>
    %cst_367 = arith.constant 8.000000e+00 : f32
    %606 = vector.broadcast %cst_367 : f32 to vector<1x64xf32>
    %607 = arith.divf %603, %606 : vector<1x64xf32>
    %608 = arith.mulf %605, %605 : vector<1x64xf32>
    %609 = arith.subf %607, %608 : vector<1x64xf32>
    %c0_368 = arith.constant 0 : index
    %c0_369 = arith.constant 0 : index
    %610 = vector.load %arg15[%c0_368, %c0_369] : memref<1x64xf32, #tpu.memory_space<vmem>>, vector<1x64xf32>
    %cst_370 = arith.constant 9.99999974E-6 : f32
    %611 = vector.broadcast %cst_370 : f32 to vector<1x64xf32>
    %612 = arith.addf %609, %611 : vector<1x64xf32>
    %613 = math.rsqrt %612 : vector<1x64xf32>
    %614 = arith.mulf %610, %613 : vector<1x64xf32>
    %c0_371 = arith.constant 0 : index
    %c0_372 = arith.constant 0 : index
    %615 = vector.load %arg16[%c0_371, %c0_372] : memref<1x64xf32, #tpu.memory_space<vmem>>, vector<1x64xf32>
    %616 = arith.mulf %605, %614 : vector<1x64xf32>
    %617 = arith.subf %615, %616 : vector<1x64xf32>
    %618 = vector.broadcast %614 : vector<1x64xf32> to vector<4x64xf32>
    %619 = arith.mulf %538, %618 : vector<4x64xf32>
    %620 = vector.broadcast %617 : vector<1x64xf32> to vector<4x64xf32>
    %621 = arith.addf %619, %620 : vector<4x64xf32>
    %622 = math.tanh %621 : vector<4x64xf32>
    %623 = vector.broadcast %614 : vector<1x64xf32> to vector<4x64xf32>
    %624 = arith.mulf %587, %623 : vector<4x64xf32>
    %625 = vector.broadcast %617 : vector<1x64xf32> to vector<4x64xf32>
    %626 = arith.addf %624, %625 : vector<4x64xf32>
    %627 = math.tanh %626 : vector<4x64xf32>
    %cst_373 = arith.constant 0.000000e+00 : f32
    %628 = vector.broadcast %cst_373 : f32 to vector<1x64xf32>
    %c0_374 = arith.constant 0 : index
    %c0_375 = arith.constant 0 : index
    %c0_376 = arith.constant 0 : index
    %629 = vector.load %arg41[%c0_374, %c0_375, %c0_376] : memref<2x18x64xf32, #tpu.memory_space<vmem>>, vector<1x1x64xf32>
    %630 = vector.shape_cast %629 : vector<1x1x64xf32> to vector<1x64xf32>
    %631 = vector.shape_cast %628 : vector<1x64xf32> to vector<1x1x64xf32>
    tpu.vector_store %arg41[%c0_374, %c0_375, %c0_376], %631 {strides = array<i32>} : memref<2x18x64xf32, #tpu.memory_space<vmem>>, vector<1x1x64xf32>,
    %c0_377 = arith.constant 0 : index
    %c5_378 = arith.constant 5 : index
    %c0_379 = arith.constant 0 : index
    %632 = vector.load %arg41[%c0_377, %c5_378, %c0_379] : memref<2x18x64xf32, #tpu.memory_space<vmem>>, vector<1x1x64xf32>
    %633 = vector.shape_cast %632 : vector<1x1x64xf32> to vector<1x64xf32>
    %634 = vector.shape_cast %628 : vector<1x64xf32> to vector<1x1x64xf32>
    tpu.vector_store %arg41[%c0_377, %c5_378, %c0_379], %634 {strides = array<i32>} : memref<2x18x64xf32, #tpu.memory_space<vmem>>, vector<1x1x64xf32>,
    %c0_380 = arith.constant 0 : index
    %c1_381 = arith.constant 1 : index
    %c0_382 = arith.constant 0 : index
    %635 = vector.load %arg41[%c0_380, %c1_381, %c0_382] : memref<2x18x64xf32, #tpu.memory_space<vmem>>, vector<1x4x64xf32>
    %636 = vector.shape_cast %635 : vector<1x4x64xf32> to vector<4x64xf32>
    %637 = vector.shape_cast %622 : vector<4x64xf32> to vector<1x4x64xf32>
    tpu.vector_store %arg41[%c0_380, %c1_381, %c0_382], %637 {strides = array<i32>} : memref<2x18x64xf32, #tpu.memory_space<vmem>>, vector<1x4x64xf32>,
    %c0_383 = arith.constant 0 : index
    %c0_384 = arith.constant 0 : index
    %c0_385 = arith.constant 0 : index
    %638 = vector.load %arg41[%c0_383, %c0_384, %c0_385] : memref<2x18x64xf32, #tpu.memory_space<vmem>>, vector<1x18x64xf32>
    %639 = vector.shape_cast %638 : vector<1x18x64xf32> to vector<18x64xf32>
    %cst_386 = arith.constant 0.000000e+00 : f32
    %640 = vector.broadcast %cst_386 : f32 to vector<4x64xf32>
    %641 = vector.extract_strided_slice %639 {offsets = [0, 0], sizes = [4, 64], strides = [1, 1]} : vector<18x64xf32> to vector<4x64xf32>
    %c0_387 = arith.constant 0 : index
    %c0_388 = arith.constant 0 : index
    %c0_389 = arith.constant 0 : index
    %642 = vector.load %arg17[%c0_387, %c0_388, %c0_389] : memref<3x64x64xf32, #tpu.memory_space<vmem>>, vector<1x64x64xf32>
    %643 = vector.shape_cast %642 : vector<1x64x64xf32> to vector<64x64xf32>
    %cst_390 = arith.constant dense<0.000000e+00> : vector<4x64xf32>
    %644 = tpu.matmul %641, %643, %cst_390 {dimension_numbers = #tpu.dot_dimension_numbers<[1], [0], [0], [1], [0, 0, 1, 1], [], []>} : vector<4x64xf32>, vector<64x64xf32>, vector<4x64xf32> -> vector<4x64xf32>
    %645 = arith.addf %640, %644 : vector<4x64xf32>
    %646 = vector.extract_strided_slice %639 {offsets = [1, 0], sizes = [4, 64], strides = [1, 1]} : vector<18x64xf32> to vector<4x64xf32>
    %c1_391 = arith.constant 1 : index
    %c0_392 = arith.constant 0 : index
    %c0_393 = arith.constant 0 : index
    %647 = vector.load %arg17[%c1_391, %c0_392, %c0_393] : memref<3x64x64xf32, #tpu.memory_space<vmem>>, vector<1x64x64xf32>
    %648 = vector.shape_cast %647 : vector<1x64x64xf32> to vector<64x64xf32>
    %cst_394 = arith.constant dense<0.000000e+00> : vector<4x64xf32>
    %649 = tpu.matmul %646, %648, %cst_394 {dimension_numbers = #tpu.dot_dimension_numbers<[1], [0], [0], [1], [0, 0, 1, 1], [], []>} : vector<4x64xf32>, vector<64x64xf32>, vector<4x64xf32> -> vector<4x64xf32>
    %650 = arith.addf %645, %649 : vector<4x64xf32>
    %651 = vector.extract_strided_slice %639 {offsets = [2, 0], sizes = [4, 64], strides = [1, 1]} : vector<18x64xf32> to vector<4x64xf32>
    %c2_395 = arith.constant 2 : index
    %c0_396 = arith.constant 0 : index
    %c0_397 = arith.constant 0 : index
    %652 = vector.load %arg17[%c2_395, %c0_396, %c0_397] : memref<3x64x64xf32, #tpu.memory_space<vmem>>, vector<1x64x64xf32>
    %653 = vector.shape_cast %652 : vector<1x64x64xf32> to vector<64x64xf32>
    %cst_398 = arith.constant dense<0.000000e+00> : vector<4x64xf32>
    %654 = tpu.matmul %651, %653, %cst_398 {dimension_numbers = #tpu.dot_dimension_numbers<[1], [0], [0], [1], [0, 0, 1, 1], [], []>} : vector<4x64xf32>, vector<64x64xf32>, vector<4x64xf32> -> vector<4x64xf32>
    %655 = arith.addf %650, %654 : vector<4x64xf32>
    %cst_399 = arith.constant 0.000000e+00 : f32
    %656 = vector.broadcast %cst_399 : f32 to vector<1x64xf32>
    %c1_400 = arith.constant 1 : index
    %c0_401 = arith.constant 0 : index
    %c0_402 = arith.constant 0 : index
    %657 = vector.load %arg41[%c1_400, %c0_401, %c0_402] : memref<2x18x64xf32, #tpu.memory_space<vmem>>, vector<1x1x64xf32>
    %658 = vector.shape_cast %657 : vector<1x1x64xf32> to vector<1x64xf32>
    %659 = vector.shape_cast %656 : vector<1x64xf32> to vector<1x1x64xf32>
    tpu.vector_store %arg41[%c1_400, %c0_401, %c0_402], %659 {strides = array<i32>} : memref<2x18x64xf32, #tpu.memory_space<vmem>>, vector<1x1x64xf32>,
    %c1_403 = arith.constant 1 : index
    %c5_404 = arith.constant 5 : index
    %c0_405 = arith.constant 0 : index
    %660 = vector.load %arg41[%c1_403, %c5_404, %c0_405] : memref<2x18x64xf32, #tpu.memory_space<vmem>>, vector<1x1x64xf32>
    %661 = vector.shape_cast %660 : vector<1x1x64xf32> to vector<1x64xf32>
    %662 = vector.shape_cast %656 : vector<1x64xf32> to vector<1x1x64xf32>
    tpu.vector_store %arg41[%c1_403, %c5_404, %c0_405], %662 {strides = array<i32>} : memref<2x18x64xf32, #tpu.memory_space<vmem>>, vector<1x1x64xf32>,
    %c1_406 = arith.constant 1 : index
    %c1_407 = arith.constant 1 : index
    %c0_408 = arith.constant 0 : index
    %663 = vector.load %arg41[%c1_406, %c1_407, %c0_408] : memref<2x18x64xf32, #tpu.memory_space<vmem>>, vector<1x4x64xf32>
    %664 = vector.shape_cast %663 : vector<1x4x64xf32> to vector<4x64xf32>
    %665 = vector.shape_cast %627 : vector<4x64xf32> to vector<1x4x64xf32>
    tpu.vector_store %arg41[%c1_406, %c1_407, %c0_408], %665 {strides = array<i32>} : memref<2x18x64xf32, #tpu.memory_space<vmem>>, vector<1x4x64xf32>,
    %c1_409 = arith.constant 1 : index
    %c0_410 = arith.constant 0 : index
    %c0_411 = arith.constant 0 : index
    %666 = vector.load %arg41[%c1_409, %c0_410, %c0_411] : memref<2x18x64xf32, #tpu.memory_space<vmem>>, vector<1x18x64xf32>
    %667 = vector.shape_cast %666 : vector<1x18x64xf32> to vector<18x64xf32>
    %cst_412 = arith.constant 0.000000e+00 : f32
    %668 = vector.broadcast %cst_412 : f32 to vector<4x64xf32>
    %669 = vector.extract_strided_slice %667 {offsets = [0, 0], sizes = [4, 64], strides = [1, 1]} : vector<18x64xf32> to vector<4x64xf32>
    %c0_413 = arith.constant 0 : index
    %c0_414 = arith.constant 0 : index
    %c0_415 = arith.constant 0 : index
    %670 = vector.load %arg17[%c0_413, %c0_414, %c0_415] : memref<3x64x64xf32, #tpu.memory_space<vmem>>, vector<1x64x64xf32>
    %671 = vector.shape_cast %670 : vector<1x64x64xf32> to vector<64x64xf32>
    %cst_416 = arith.constant dense<0.000000e+00> : vector<4x64xf32>
    %672 = tpu.matmul %669, %671, %cst_416 {dimension_numbers = #tpu.dot_dimension_numbers<[1], [0], [0], [1], [0, 0, 1, 1], [], []>} : vector<4x64xf32>, vector<64x64xf32>, vector<4x64xf32> -> vector<4x64xf32>
    %673 = arith.addf %668, %672 : vector<4x64xf32>
    %674 = vector.extract_strided_slice %667 {offsets = [1, 0], sizes = [4, 64], strides = [1, 1]} : vector<18x64xf32> to vector<4x64xf32>
    %c1_417 = arith.constant 1 : index
    %c0_418 = arith.constant 0 : index
    %c0_419 = arith.constant 0 : index
    %675 = vector.load %arg17[%c1_417, %c0_418, %c0_419] : memref<3x64x64xf32, #tpu.memory_space<vmem>>, vector<1x64x64xf32>
    %676 = vector.shape_cast %675 : vector<1x64x64xf32> to vector<64x64xf32>
    %cst_420 = arith.constant dense<0.000000e+00> : vector<4x64xf32>
    %677 = tpu.matmul %674, %676, %cst_420 {dimension_numbers = #tpu.dot_dimension_numbers<[1], [0], [0], [1], [0, 0, 1, 1], [], []>} : vector<4x64xf32>, vector<64x64xf32>, vector<4x64xf32> -> vector<4x64xf32>
    %678 = arith.addf %673, %677 : vector<4x64xf32>
    %679 = vector.extract_strided_slice %667 {offsets = [2, 0], sizes = [4, 64], strides = [1, 1]} : vector<18x64xf32> to vector<4x64xf32>
    %c2_421 = arith.constant 2 : index
    %c0_422 = arith.constant 0 : index
    %c0_423 = arith.constant 0 : index
    %680 = vector.load %arg17[%c2_421, %c0_422, %c0_423] : memref<3x64x64xf32, #tpu.memory_space<vmem>>, vector<1x64x64xf32>
    %681 = vector.shape_cast %680 : vector<1x64x64xf32> to vector<64x64xf32>
    %cst_424 = arith.constant dense<0.000000e+00> : vector<4x64xf32>
    %682 = tpu.matmul %679, %681, %cst_424 {dimension_numbers = #tpu.dot_dimension_numbers<[1], [0], [0], [1], [0, 0, 1, 1], [], []>} : vector<4x64xf32>, vector<64x64xf32>, vector<4x64xf32> -> vector<4x64xf32>
    %683 = arith.addf %678, %682 : vector<4x64xf32>
    %cst_425 = arith.constant dense<0.000000e+00> : vector<64xf32>
    %684 = vector.multi_reduction <add>, %655, %cst_425 [0] : vector<4x64xf32> to vector<64xf32>
    %685 = vector.shape_cast %684 : vector<64xf32> to vector<1x64xf32>
    %cst_426 = arith.constant 0.000000e+00 : f32
    %686 = vector.broadcast %cst_426 : f32 to vector<1x64xf32>
    %687 = arith.addf %686, %685 : vector<1x64xf32>
    %cst_427 = arith.constant dense<0.000000e+00> : vector<64xf32>
    %688 = vector.multi_reduction <add>, %683, %cst_427 [0] : vector<4x64xf32> to vector<64xf32>
    %689 = vector.shape_cast %688 : vector<64xf32> to vector<1x64xf32>
    %690 = arith.addf %687, %689 : vector<1x64xf32>
    %691 = arith.mulf %655, %655 : vector<4x64xf32>
    %cst_428 = arith.constant dense<0.000000e+00> : vector<64xf32>
    %692 = vector.multi_reduction <add>, %691, %cst_428 [0] : vector<4x64xf32> to vector<64xf32>
    %693 = vector.shape_cast %692 : vector<64xf32> to vector<1x64xf32>
    %cst_429 = arith.constant 0.000000e+00 : f32
    %694 = vector.broadcast %cst_429 : f32 to vector<1x64xf32>
    %695 = arith.addf %694, %693 : vector<1x64xf32>
    %696 = arith.mulf %683, %683 : vector<4x64xf32>
    %cst_430 = arith.constant dense<0.000000e+00> : vector<64xf32>
    %697 = vector.multi_reduction <add>, %696, %cst_430 [0] : vector<4x64xf32> to vector<64xf32>
    %698 = vector.shape_cast %697 : vector<64xf32> to vector<1x64xf32>
    %699 = arith.addf %695, %698 : vector<1x64xf32>
    %cst_431 = arith.constant 8.000000e+00 : f32
    %700 = vector.broadcast %cst_431 : f32 to vector<1x64xf32>
    %701 = arith.divf %690, %700 : vector<1x64xf32>
    %cst_432 = arith.constant 8.000000e+00 : f32
    %702 = vector.broadcast %cst_432 : f32 to vector<1x64xf32>
    %703 = arith.divf %699, %702 : vector<1x64xf32>
    %704 = arith.mulf %701, %701 : vector<1x64xf32>
    %705 = arith.subf %703, %704 : vector<1x64xf32>
    %c0_433 = arith.constant 0 : index
    %c0_434 = arith.constant 0 : index
    %706 = vector.load %arg18[%c0_433, %c0_434] : memref<1x64xf32, #tpu.memory_space<vmem>>, vector<1x64xf32>
    %cst_435 = arith.constant 9.99999974E-6 : f32
    %707 = vector.broadcast %cst_435 : f32 to vector<1x64xf32>
    %708 = arith.addf %705, %707 : vector<1x64xf32>
    %709 = math.rsqrt %708 : vector<1x64xf32>
    %710 = arith.mulf %706, %709 : vector<1x64xf32>
    %c0_436 = arith.constant 0 : index
    %c0_437 = arith.constant 0 : index
    %711 = vector.load %arg19[%c0_436, %c0_437] : memref<1x64xf32, #tpu.memory_space<vmem>>, vector<1x64xf32>
    %712 = arith.mulf %701, %710 : vector<1x64xf32>
    %713 = arith.subf %711, %712 : vector<1x64xf32>
    %714 = vector.broadcast %710 : vector<1x64xf32> to vector<4x64xf32>
    %715 = arith.mulf %655, %714 : vector<4x64xf32>
    %716 = vector.broadcast %713 : vector<1x64xf32> to vector<4x64xf32>
    %717 = arith.addf %715, %716 : vector<4x64xf32>
    %718 = math.tanh %717 : vector<4x64xf32>
    %719 = vector.broadcast %710 : vector<1x64xf32> to vector<4x64xf32>
    %720 = arith.mulf %683, %719 : vector<4x64xf32>
    %721 = vector.broadcast %713 : vector<1x64xf32> to vector<4x64xf32>
    %722 = arith.addf %720, %721 : vector<4x64xf32>
    %723 = math.tanh %722 : vector<4x64xf32>
    %c0_438 = arith.constant 0 : index
    %c0_439 = arith.constant 0 : index
    %724 = vector.load %arg21[%c0_438, %c0_439] : memref<1x32xf32, #tpu.memory_space<vmem>>, vector<1x32xf32>
    %c0_440 = arith.constant 0 : index
    %c0_441 = arith.constant 0 : index
    %c0_442 = arith.constant 0 : index
    %725 = vector.load %arg20[%c0_440, %c0_441, %c0_442] : memref<2x64x32xf32, #tpu.memory_space<vmem>>, vector<1x64x32xf32>
    %726 = vector.shape_cast %725 : vector<1x64x32xf32> to vector<64x32xf32>
    %c1_443 = arith.constant 1 : index
    %c0_444 = arith.constant 0 : index
    %c0_445 = arith.constant 0 : index
    %727 = vector.load %arg20[%c1_443, %c0_444, %c0_445] : memref<2x64x32xf32, #tpu.memory_space<vmem>>, vector<1x64x32xf32>
    %728 = vector.shape_cast %727 : vector<1x64x32xf32> to vector<64x32xf32>
    %cst_446 = arith.constant dense<0.000000e+00> : vector<4x32xf32>
    %729 = tpu.matmul %718, %726, %cst_446 {dimension_numbers = #tpu.dot_dimension_numbers<[1], [0], [0], [1], [0, 0, 1, 1], [], []>} : vector<4x64xf32>, vector<64x32xf32>, vector<4x32xf32> -> vector<4x32xf32>
    %730 = vector.broadcast %724 : vector<1x32xf32> to vector<4x32xf32>
    %731 = arith.addf %729, %730 : vector<4x32xf32>
    %cst_447 = arith.constant dense<0.000000e+00> : vector<4x32xf32>
    %732 = tpu.matmul %723, %726, %cst_447 {dimension_numbers = #tpu.dot_dimension_numbers<[1], [0], [0], [1], [0, 0, 1, 1], [], []>} : vector<4x64xf32>, vector<64x32xf32>, vector<4x32xf32> -> vector<4x32xf32>
    %733 = vector.broadcast %724 : vector<1x32xf32> to vector<4x32xf32>
    %734 = arith.addf %732, %733 : vector<4x32xf32>
    %cst_448 = arith.constant dense<0.000000e+00> : vector<4x32xf32>
    %735 = tpu.matmul %718, %728, %cst_448 {dimension_numbers = #tpu.dot_dimension_numbers<[1], [0], [0], [1], [0, 0, 1, 1], [], []>} : vector<4x64xf32>, vector<64x32xf32>, vector<4x32xf32> -> vector<4x32xf32>
    %736 = vector.broadcast %724 : vector<1x32xf32> to vector<4x32xf32>
    %737 = arith.addf %735, %736 : vector<4x32xf32>
    %cst_449 = arith.constant dense<0.000000e+00> : vector<4x32xf32>
    %738 = tpu.matmul %723, %728, %cst_449 {dimension_numbers = #tpu.dot_dimension_numbers<[1], [0], [0], [1], [0, 0, 1, 1], [], []>} : vector<4x64xf32>, vector<64x32xf32>, vector<4x32xf32> -> vector<4x32xf32>
    %739 = vector.broadcast %724 : vector<1x32xf32> to vector<4x32xf32>
    %740 = arith.addf %738, %739 : vector<4x32xf32>
    %cst_450 = arith.constant 0.000000e+00 : f32
    %741 = vector.broadcast %cst_450 : f32 to vector<1x32xf32>
    %c0_451 = arith.constant 0 : index
    %c0_452 = arith.constant 0 : index
    %c0_453 = arith.constant 0 : index
    %742 = vector.load %arg41[%c0_451, %c0_452, %c0_453] : memref<2x18x64xf32, #tpu.memory_space<vmem>>, vector<1x1x32xf32>
    %743 = vector.shape_cast %742 : vector<1x1x32xf32> to vector<1x32xf32>
    %744 = vector.shape_cast %741 : vector<1x32xf32> to vector<1x1x32xf32>
    tpu.vector_store %arg41[%c0_451, %c0_452, %c0_453], %744 {strides = array<i32>} : memref<2x18x64xf32, #tpu.memory_space<vmem>>, vector<1x1x32xf32>,
    %c0_454 = arith.constant 0 : index
    %c9_455 = arith.constant 9 : index
    %c0_456 = arith.constant 0 : index
    %745 = vector.load %arg41[%c0_454, %c9_455, %c0_456] : memref<2x18x64xf32, #tpu.memory_space<vmem>>, vector<1x1x32xf32>
    %746 = vector.shape_cast %745 : vector<1x1x32xf32> to vector<1x32xf32>
    %747 = vector.shape_cast %741 : vector<1x32xf32> to vector<1x1x32xf32>
    tpu.vector_store %arg41[%c0_454, %c9_455, %c0_456], %747 {strides = array<i32>} : memref<2x18x64xf32, #tpu.memory_space<vmem>>, vector<1x1x32xf32>,
    %748 = vector.extract_strided_slice %731 {offsets = [0, 0], sizes = [1, 32], strides = [1, 1]} : vector<4x32xf32> to vector<1x32xf32>
    %c0_457 = arith.constant 0 : index
    %c1_458 = arith.constant 1 : index
    %c0_459 = arith.constant 0 : index
    %749 = vector.load %arg41[%c0_457, %c1_458, %c0_459] : memref<2x18x64xf32, #tpu.memory_space<vmem>>, vector<1x1x32xf32>
    %750 = vector.shape_cast %749 : vector<1x1x32xf32> to vector<1x32xf32>
    %751 = vector.shape_cast %748 : vector<1x32xf32> to vector<1x1x32xf32>
    tpu.vector_store %arg41[%c0_457, %c1_458, %c0_459], %751 {strides = array<i32>} : memref<2x18x64xf32, #tpu.memory_space<vmem>>, vector<1x1x32xf32>,
    %752 = vector.extract_strided_slice %737 {offsets = [0, 0], sizes = [1, 32], strides = [1, 1]} : vector<4x32xf32> to vector<1x32xf32>
    %c0_460 = arith.constant 0 : index
    %c2_461 = arith.constant 2 : index
    %c0_462 = arith.constant 0 : index
    %753 = vector.load %arg41[%c0_460, %c2_461, %c0_462] : memref<2x18x64xf32, #tpu.memory_space<vmem>>, vector<1x1x32xf32>
    %754 = vector.shape_cast %753 : vector<1x1x32xf32> to vector<1x32xf32>
    %755 = vector.shape_cast %752 : vector<1x32xf32> to vector<1x1x32xf32>
    tpu.vector_store %arg41[%c0_460, %c2_461, %c0_462], %755 {strides = array<i32>} : memref<2x18x64xf32, #tpu.memory_space<vmem>>, vector<1x1x32xf32>,
    %756 = vector.extract_strided_slice %731 {offsets = [1, 0], sizes = [1, 32], strides = [1, 1]} : vector<4x32xf32> to vector<1x32xf32>
    %c0_463 = arith.constant 0 : index
    %c3_464 = arith.constant 3 : index
    %c0_465 = arith.constant 0 : index
    %757 = vector.load %arg41[%c0_463, %c3_464, %c0_465] : memref<2x18x64xf32, #tpu.memory_space<vmem>>, vector<1x1x32xf32>
    %758 = vector.shape_cast %757 : vector<1x1x32xf32> to vector<1x32xf32>
    %759 = vector.shape_cast %756 : vector<1x32xf32> to vector<1x1x32xf32>
    tpu.vector_store %arg41[%c0_463, %c3_464, %c0_465], %759 {strides = array<i32>} : memref<2x18x64xf32, #tpu.memory_space<vmem>>, vector<1x1x32xf32>,
    %760 = vector.extract_strided_slice %737 {offsets = [1, 0], sizes = [1, 32], strides = [1, 1]} : vector<4x32xf32> to vector<1x32xf32>
    %c0_466 = arith.constant 0 : index
    %c4_467 = arith.constant 4 : index
    %c0_468 = arith.constant 0 : index
    %761 = vector.load %arg41[%c0_466, %c4_467, %c0_468] : memref<2x18x64xf32, #tpu.memory_space<vmem>>, vector<1x1x32xf32>
    %762 = vector.shape_cast %761 : vector<1x1x32xf32> to vector<1x32xf32>
    %763 = vector.shape_cast %760 : vector<1x32xf32> to vector<1x1x32xf32>
    tpu.vector_store %arg41[%c0_466, %c4_467, %c0_468], %763 {strides = array<i32>} : memref<2x18x64xf32, #tpu.memory_space<vmem>>, vector<1x1x32xf32>,
    %764 = vector.extract_strided_slice %731 {offsets = [2, 0], sizes = [1, 32], strides = [1, 1]} : vector<4x32xf32> to vector<1x32xf32>
    %c0_469 = arith.constant 0 : index
    %c5_470 = arith.constant 5 : index
    %c0_471 = arith.constant 0 : index
    %765 = vector.load %arg41[%c0_469, %c5_470, %c0_471] : memref<2x18x64xf32, #tpu.memory_space<vmem>>, vector<1x1x32xf32>
    %766 = vector.shape_cast %765 : vector<1x1x32xf32> to vector<1x32xf32>
    %767 = vector.shape_cast %764 : vector<1x32xf32> to vector<1x1x32xf32>
    tpu.vector_store %arg41[%c0_469, %c5_470, %c0_471], %767 {strides = array<i32>} : memref<2x18x64xf32, #tpu.memory_space<vmem>>, vector<1x1x32xf32>,
    %768 = vector.extract_strided_slice %737 {offsets = [2, 0], sizes = [1, 32], strides = [1, 1]} : vector<4x32xf32> to vector<1x32xf32>
    %c0_472 = arith.constant 0 : index
    %c6_473 = arith.constant 6 : index
    %c0_474 = arith.constant 0 : index
    %769 = vector.load %arg41[%c0_472, %c6_473, %c0_474] : memref<2x18x64xf32, #tpu.memory_space<vmem>>, vector<1x1x32xf32>
    %770 = vector.shape_cast %769 : vector<1x1x32xf32> to vector<1x32xf32>
    %771 = vector.shape_cast %768 : vector<1x32xf32> to vector<1x1x32xf32>
    tpu.vector_store %arg41[%c0_472, %c6_473, %c0_474], %771 {strides = array<i32>} : memref<2x18x64xf32, #tpu.memory_space<vmem>>, vector<1x1x32xf32>,
    %772 = vector.extract_strided_slice %731 {offsets = [3, 0], sizes = [1, 32], strides = [1, 1]} : vector<4x32xf32> to vector<1x32xf32>
    %c0_475 = arith.constant 0 : index
    %c7_476 = arith.constant 7 : index
    %c0_477 = arith.constant 0 : index
    %773 = vector.load %arg41[%c0_475, %c7_476, %c0_477] : memref<2x18x64xf32, #tpu.memory_space<vmem>>, vector<1x1x32xf32>
    %774 = vector.shape_cast %773 : vector<1x1x32xf32> to vector<1x32xf32>
    %775 = vector.shape_cast %772 : vector<1x32xf32> to vector<1x1x32xf32>
    tpu.vector_store %arg41[%c0_475, %c7_476, %c0_477], %775 {strides = array<i32>} : memref<2x18x64xf32, #tpu.memory_space<vmem>>, vector<1x1x32xf32>,
    %776 = vector.extract_strided_slice %737 {offsets = [3, 0], sizes = [1, 32], strides = [1, 1]} : vector<4x32xf32> to vector<1x32xf32>
    %c0_478 = arith.constant 0 : index
    %c8_479 = arith.constant 8 : index
    %c0_480 = arith.constant 0 : index
    %777 = vector.load %arg41[%c0_478, %c8_479, %c0_480] : memref<2x18x64xf32, #tpu.memory_space<vmem>>, vector<1x1x32xf32>
    %778 = vector.shape_cast %777 : vector<1x1x32xf32> to vector<1x32xf32>
    %779 = vector.shape_cast %776 : vector<1x32xf32> to vector<1x1x32xf32>
    tpu.vector_store %arg41[%c0_478, %c8_479, %c0_480], %779 {strides = array<i32>} : memref<2x18x64xf32, #tpu.memory_space<vmem>>, vector<1x1x32xf32>,
    %c0_481 = arith.constant 0 : index
    %c0_482 = arith.constant 0 : index
    %c0_483 = arith.constant 0 : index
    %780 = vector.load %arg41[%c0_481, %c0_482, %c0_483] : memref<2x18x64xf32, #tpu.memory_space<vmem>>, vector<1x18x64xf32>
    %781 = vector.shape_cast %780 : vector<1x18x64xf32> to vector<18x64xf32>
    %cst_484 = arith.constant 0.000000e+00 : f32
    %782 = vector.broadcast %cst_484 : f32 to vector<8x32xf32>
    %783 = vector.extract_strided_slice %781 {offsets = [0, 0], sizes = [8, 32], strides = [1, 1]} : vector<18x64xf32> to vector<8x32xf32>
    %c0_485 = arith.constant 0 : index
    %c0_486 = arith.constant 0 : index
    %c0_487 = arith.constant 0 : index
    %784 = vector.load %arg22[%c0_485, %c0_486, %c0_487] : memref<3x32x32xf32, #tpu.memory_space<vmem>>, vector<1x32x32xf32>
    %785 = vector.shape_cast %784 : vector<1x32x32xf32> to vector<32x32xf32>
    %cst_488 = arith.constant dense<0.000000e+00> : vector<8x32xf32>
    %786 = tpu.matmul %783, %785, %cst_488 {dimension_numbers = #tpu.dot_dimension_numbers<[1], [0], [0], [1], [0, 0, 1, 1], [], []>} : vector<8x32xf32>, vector<32x32xf32>, vector<8x32xf32> -> vector<8x32xf32>
    %787 = arith.addf %782, %786 : vector<8x32xf32>
    %788 = vector.extract_strided_slice %781 {offsets = [1, 0], sizes = [8, 32], strides = [1, 1]} : vector<18x64xf32> to vector<8x32xf32>
    %c1_489 = arith.constant 1 : index
    %c0_490 = arith.constant 0 : index
    %c0_491 = arith.constant 0 : index
    %789 = vector.load %arg22[%c1_489, %c0_490, %c0_491] : memref<3x32x32xf32, #tpu.memory_space<vmem>>, vector<1x32x32xf32>
    %790 = vector.shape_cast %789 : vector<1x32x32xf32> to vector<32x32xf32>
    %cst_492 = arith.constant dense<0.000000e+00> : vector<8x32xf32>
    %791 = tpu.matmul %788, %790, %cst_492 {dimension_numbers = #tpu.dot_dimension_numbers<[1], [0], [0], [1], [0, 0, 1, 1], [], []>} : vector<8x32xf32>, vector<32x32xf32>, vector<8x32xf32> -> vector<8x32xf32>
    %792 = arith.addf %787, %791 : vector<8x32xf32>
    %793 = vector.extract_strided_slice %781 {offsets = [2, 0], sizes = [8, 32], strides = [1, 1]} : vector<18x64xf32> to vector<8x32xf32>
    %c2_493 = arith.constant 2 : index
    %c0_494 = arith.constant 0 : index
    %c0_495 = arith.constant 0 : index
    %794 = vector.load %arg22[%c2_493, %c0_494, %c0_495] : memref<3x32x32xf32, #tpu.memory_space<vmem>>, vector<1x32x32xf32>
    %795 = vector.shape_cast %794 : vector<1x32x32xf32> to vector<32x32xf32>
    %cst_496 = arith.constant dense<0.000000e+00> : vector<8x32xf32>
    %796 = tpu.matmul %793, %795, %cst_496 {dimension_numbers = #tpu.dot_dimension_numbers<[1], [0], [0], [1], [0, 0, 1, 1], [], []>} : vector<8x32xf32>, vector<32x32xf32>, vector<8x32xf32> -> vector<8x32xf32>
    %797 = arith.addf %792, %796 : vector<8x32xf32>
    %cst_497 = arith.constant 0.000000e+00 : f32
    %798 = vector.broadcast %cst_497 : f32 to vector<1x32xf32>
    %c0_498 = arith.constant 0 : index
    %c0_499 = arith.constant 0 : index
    %c0_500 = arith.constant 0 : index
    %799 = vector.load %arg41[%c0_498, %c0_499, %c0_500] : memref<2x18x64xf32, #tpu.memory_space<vmem>>, vector<1x1x32xf32>
    %800 = vector.shape_cast %799 : vector<1x1x32xf32> to vector<1x32xf32>
    %801 = vector.shape_cast %798 : vector<1x32xf32> to vector<1x1x32xf32>
    tpu.vector_store %arg41[%c0_498, %c0_499, %c0_500], %801 {strides = array<i32>} : memref<2x18x64xf32, #tpu.memory_space<vmem>>, vector<1x1x32xf32>,
    %c0_501 = arith.constant 0 : index
    %c9_502 = arith.constant 9 : index
    %c0_503 = arith.constant 0 : index
    %802 = vector.load %arg41[%c0_501, %c9_502, %c0_503] : memref<2x18x64xf32, #tpu.memory_space<vmem>>, vector<1x1x32xf32>
    %803 = vector.shape_cast %802 : vector<1x1x32xf32> to vector<1x32xf32>
    %804 = vector.shape_cast %798 : vector<1x32xf32> to vector<1x1x32xf32>
    tpu.vector_store %arg41[%c0_501, %c9_502, %c0_503], %804 {strides = array<i32>} : memref<2x18x64xf32, #tpu.memory_space<vmem>>, vector<1x1x32xf32>,
    %c0_504 = arith.constant 0 : index
    %c1_505 = arith.constant 1 : index
    %c0_506 = arith.constant 0 : index
    %805 = vector.load %arg41[%c0_504, %c1_505, %c0_506] : memref<2x18x64xf32, #tpu.memory_space<vmem>>, vector<1x8x32xf32>
    %806 = vector.shape_cast %805 : vector<1x8x32xf32> to vector<8x32xf32>
    %807 = vector.shape_cast %484 : vector<8x32xf32> to vector<1x8x32xf32>
    tpu.vector_store %arg41[%c0_504, %c1_505, %c0_506], %807 {strides = array<i32>} : memref<2x18x64xf32, #tpu.memory_space<vmem>>, vector<1x8x32xf32>,
    %c0_507 = arith.constant 0 : index
    %c0_508 = arith.constant 0 : index
    %c0_509 = arith.constant 0 : index
    %808 = vector.load %arg41[%c0_507, %c0_508, %c0_509] : memref<2x18x64xf32, #tpu.memory_space<vmem>>, vector<1x18x64xf32>
    %809 = vector.shape_cast %808 : vector<1x18x64xf32> to vector<18x64xf32>
    %810 = vector.extract_strided_slice %809 {offsets = [0, 0], sizes = [8, 32], strides = [1, 1]} : vector<18x64xf32> to vector<8x32xf32>
    %c0_510 = arith.constant 0 : index
    %c0_511 = arith.constant 0 : index
    %c0_512 = arith.constant 0 : index
    %811 = vector.load %arg23[%c0_510, %c0_511, %c0_512] : memref<3x32x32xf32, #tpu.memory_space<vmem>>, vector<1x32x32xf32>
    %812 = vector.shape_cast %811 : vector<1x32x32xf32> to vector<32x32xf32>
    %cst_513 = arith.constant dense<0.000000e+00> : vector<8x32xf32>
    %813 = tpu.matmul %810, %812, %cst_513 {dimension_numbers = #tpu.dot_dimension_numbers<[1], [0], [0], [1], [0, 0, 1, 1], [], []>} : vector<8x32xf32>, vector<32x32xf32>, vector<8x32xf32> -> vector<8x32xf32>
    %814 = arith.addf %797, %813 : vector<8x32xf32>
    %815 = vector.extract_strided_slice %809 {offsets = [1, 0], sizes = [8, 32], strides = [1, 1]} : vector<18x64xf32> to vector<8x32xf32>
    %c1_514 = arith.constant 1 : index
    %c0_515 = arith.constant 0 : index
    %c0_516 = arith.constant 0 : index
    %816 = vector.load %arg23[%c1_514, %c0_515, %c0_516] : memref<3x32x32xf32, #tpu.memory_space<vmem>>, vector<1x32x32xf32>
    %817 = vector.shape_cast %816 : vector<1x32x32xf32> to vector<32x32xf32>
    %cst_517 = arith.constant dense<0.000000e+00> : vector<8x32xf32>
    %818 = tpu.matmul %815, %817, %cst_517 {dimension_numbers = #tpu.dot_dimension_numbers<[1], [0], [0], [1], [0, 0, 1, 1], [], []>} : vector<8x32xf32>, vector<32x32xf32>, vector<8x32xf32> -> vector<8x32xf32>
    %819 = arith.addf %814, %818 : vector<8x32xf32>
    %820 = vector.extract_strided_slice %809 {offsets = [2, 0], sizes = [8, 32], strides = [1, 1]} : vector<18x64xf32> to vector<8x32xf32>
    %c2_518 = arith.constant 2 : index
    %c0_519 = arith.constant 0 : index
    %c0_520 = arith.constant 0 : index
    %821 = vector.load %arg23[%c2_518, %c0_519, %c0_520] : memref<3x32x32xf32, #tpu.memory_space<vmem>>, vector<1x32x32xf32>
    %822 = vector.shape_cast %821 : vector<1x32x32xf32> to vector<32x32xf32>
    %cst_521 = arith.constant dense<0.000000e+00> : vector<8x32xf32>
    %823 = tpu.matmul %820, %822, %cst_521 {dimension_numbers = #tpu.dot_dimension_numbers<[1], [0], [0], [1], [0, 0, 1, 1], [], []>} : vector<8x32xf32>, vector<32x32xf32>, vector<8x32xf32> -> vector<8x32xf32>
    %824 = arith.addf %819, %823 : vector<8x32xf32>
    %cst_522 = arith.constant 0.000000e+00 : f32
    %825 = vector.broadcast %cst_522 : f32 to vector<1x32xf32>
    %c1_523 = arith.constant 1 : index
    %c0_524 = arith.constant 0 : index
    %c0_525 = arith.constant 0 : index
    %826 = vector.load %arg41[%c1_523, %c0_524, %c0_525] : memref<2x18x64xf32, #tpu.memory_space<vmem>>, vector<1x1x32xf32>
    %827 = vector.shape_cast %826 : vector<1x1x32xf32> to vector<1x32xf32>
    %828 = vector.shape_cast %825 : vector<1x32xf32> to vector<1x1x32xf32>
    tpu.vector_store %arg41[%c1_523, %c0_524, %c0_525], %828 {strides = array<i32>} : memref<2x18x64xf32, #tpu.memory_space<vmem>>, vector<1x1x32xf32>,
    %c1_526 = arith.constant 1 : index
    %c9_527 = arith.constant 9 : index
    %c0_528 = arith.constant 0 : index
    %829 = vector.load %arg41[%c1_526, %c9_527, %c0_528] : memref<2x18x64xf32, #tpu.memory_space<vmem>>, vector<1x1x32xf32>
    %830 = vector.shape_cast %829 : vector<1x1x32xf32> to vector<1x32xf32>
    %831 = vector.shape_cast %825 : vector<1x32xf32> to vector<1x1x32xf32>
    tpu.vector_store %arg41[%c1_526, %c9_527, %c0_528], %831 {strides = array<i32>} : memref<2x18x64xf32, #tpu.memory_space<vmem>>, vector<1x1x32xf32>,
    %832 = vector.extract_strided_slice %734 {offsets = [0, 0], sizes = [1, 32], strides = [1, 1]} : vector<4x32xf32> to vector<1x32xf32>
    %c1_529 = arith.constant 1 : index
    %c1_530 = arith.constant 1 : index
    %c0_531 = arith.constant 0 : index
    %833 = vector.load %arg41[%c1_529, %c1_530, %c0_531] : memref<2x18x64xf32, #tpu.memory_space<vmem>>, vector<1x1x32xf32>
    %834 = vector.shape_cast %833 : vector<1x1x32xf32> to vector<1x32xf32>
    %835 = vector.shape_cast %832 : vector<1x32xf32> to vector<1x1x32xf32>
    tpu.vector_store %arg41[%c1_529, %c1_530, %c0_531], %835 {strides = array<i32>} : memref<2x18x64xf32, #tpu.memory_space<vmem>>, vector<1x1x32xf32>,
    %836 = vector.extract_strided_slice %740 {offsets = [0, 0], sizes = [1, 32], strides = [1, 1]} : vector<4x32xf32> to vector<1x32xf32>
    %c1_532 = arith.constant 1 : index
    %c2_533 = arith.constant 2 : index
    %c0_534 = arith.constant 0 : index
    %837 = vector.load %arg41[%c1_532, %c2_533, %c0_534] : memref<2x18x64xf32, #tpu.memory_space<vmem>>, vector<1x1x32xf32>
    %838 = vector.shape_cast %837 : vector<1x1x32xf32> to vector<1x32xf32>
    %839 = vector.shape_cast %836 : vector<1x32xf32> to vector<1x1x32xf32>
    tpu.vector_store %arg41[%c1_532, %c2_533, %c0_534], %839 {strides = array<i32>} : memref<2x18x64xf32, #tpu.memory_space<vmem>>, vector<1x1x32xf32>,
    %840 = vector.extract_strided_slice %734 {offsets = [1, 0], sizes = [1, 32], strides = [1, 1]} : vector<4x32xf32> to vector<1x32xf32>
    %c1_535 = arith.constant 1 : index
    %c3_536 = arith.constant 3 : index
    %c0_537 = arith.constant 0 : index
    %841 = vector.load %arg41[%c1_535, %c3_536, %c0_537] : memref<2x18x64xf32, #tpu.memory_space<vmem>>, vector<1x1x32xf32>
    %842 = vector.shape_cast %841 : vector<1x1x32xf32> to vector<1x32xf32>
    %843 = vector.shape_cast %840 : vector<1x32xf32> to vector<1x1x32xf32>
    tpu.vector_store %arg41[%c1_535, %c3_536, %c0_537], %843 {strides = array<i32>} : memref<2x18x64xf32, #tpu.memory_space<vmem>>, vector<1x1x32xf32>,
    %844 = vector.extract_strided_slice %740 {offsets = [1, 0], sizes = [1, 32], strides = [1, 1]} : vector<4x32xf32> to vector<1x32xf32>
    %c1_538 = arith.constant 1 : index
    %c4_539 = arith.constant 4 : index
    %c0_540 = arith.constant 0 : index
    %845 = vector.load %arg41[%c1_538, %c4_539, %c0_540] : memref<2x18x64xf32, #tpu.memory_space<vmem>>, vector<1x1x32xf32>
    %846 = vector.shape_cast %845 : vector<1x1x32xf32> to vector<1x32xf32>
    %847 = vector.shape_cast %844 : vector<1x32xf32> to vector<1x1x32xf32>
    tpu.vector_store %arg41[%c1_538, %c4_539, %c0_540], %847 {strides = array<i32>} : memref<2x18x64xf32, #tpu.memory_space<vmem>>, vector<1x1x32xf32>,
    %848 = vector.extract_strided_slice %734 {offsets = [2, 0], sizes = [1, 32], strides = [1, 1]} : vector<4x32xf32> to vector<1x32xf32>
    %c1_541 = arith.constant 1 : index
    %c5_542 = arith.constant 5 : index
    %c0_543 = arith.constant 0 : index
    %849 = vector.load %arg41[%c1_541, %c5_542, %c0_543] : memref<2x18x64xf32, #tpu.memory_space<vmem>>, vector<1x1x32xf32>
    %850 = vector.shape_cast %849 : vector<1x1x32xf32> to vector<1x32xf32>
    %851 = vector.shape_cast %848 : vector<1x32xf32> to vector<1x1x32xf32>
    tpu.vector_store %arg41[%c1_541, %c5_542, %c0_543], %851 {strides = array<i32>} : memref<2x18x64xf32, #tpu.memory_space<vmem>>, vector<1x1x32xf32>,
    %852 = vector.extract_strided_slice %740 {offsets = [2, 0], sizes = [1, 32], strides = [1, 1]} : vector<4x32xf32> to vector<1x32xf32>
    %c1_544 = arith.constant 1 : index
    %c6_545 = arith.constant 6 : index
    %c0_546 = arith.constant 0 : index
    %853 = vector.load %arg41[%c1_544, %c6_545, %c0_546] : memref<2x18x64xf32, #tpu.memory_space<vmem>>, vector<1x1x32xf32>
    %854 = vector.shape_cast %853 : vector<1x1x32xf32> to vector<1x32xf32>
    %855 = vector.shape_cast %852 : vector<1x32xf32> to vector<1x1x32xf32>
    tpu.vector_store %arg41[%c1_544, %c6_545, %c0_546], %855 {strides = array<i32>} : memref<2x18x64xf32, #tpu.memory_space<vmem>>, vector<1x1x32xf32>,
    %856 = vector.extract_strided_slice %734 {offsets = [3, 0], sizes = [1, 32], strides = [1, 1]} : vector<4x32xf32> to vector<1x32xf32>
    %c1_547 = arith.constant 1 : index
    %c7_548 = arith.constant 7 : index
    %c0_549 = arith.constant 0 : index
    %857 = vector.load %arg41[%c1_547, %c7_548, %c0_549] : memref<2x18x64xf32, #tpu.memory_space<vmem>>, vector<1x1x32xf32>
    %858 = vector.shape_cast %857 : vector<1x1x32xf32> to vector<1x32xf32>
    %859 = vector.shape_cast %856 : vector<1x32xf32> to vector<1x1x32xf32>
    tpu.vector_store %arg41[%c1_547, %c7_548, %c0_549], %859 {strides = array<i32>} : memref<2x18x64xf32, #tpu.memory_space<vmem>>, vector<1x1x32xf32>,
    %860 = vector.extract_strided_slice %740 {offsets = [3, 0], sizes = [1, 32], strides = [1, 1]} : vector<4x32xf32> to vector<1x32xf32>
    %c1_550 = arith.constant 1 : index
    %c8_551 = arith.constant 8 : index
    %c0_552 = arith.constant 0 : index
    %861 = vector.load %arg41[%c1_550, %c8_551, %c0_552] : memref<2x18x64xf32, #tpu.memory_space<vmem>>, vector<1x1x32xf32>
    %862 = vector.shape_cast %861 : vector<1x1x32xf32> to vector<1x32xf32>
    %863 = vector.shape_cast %860 : vector<1x32xf32> to vector<1x1x32xf32>
    tpu.vector_store %arg41[%c1_550, %c8_551, %c0_552], %863 {strides = array<i32>} : memref<2x18x64xf32, #tpu.memory_space<vmem>>, vector<1x1x32xf32>,
    %c1_553 = arith.constant 1 : index
    %c0_554 = arith.constant 0 : index
    %c0_555 = arith.constant 0 : index
    %864 = vector.load %arg41[%c1_553, %c0_554, %c0_555] : memref<2x18x64xf32, #tpu.memory_space<vmem>>, vector<1x18x64xf32>
    %865 = vector.shape_cast %864 : vector<1x18x64xf32> to vector<18x64xf32>
    %cst_556 = arith.constant 0.000000e+00 : f32
    %866 = vector.broadcast %cst_556 : f32 to vector<8x32xf32>
    %867 = vector.extract_strided_slice %865 {offsets = [0, 0], sizes = [8, 32], strides = [1, 1]} : vector<18x64xf32> to vector<8x32xf32>
    %c0_557 = arith.constant 0 : index
    %c0_558 = arith.constant 0 : index
    %c0_559 = arith.constant 0 : index
    %868 = vector.load %arg22[%c0_557, %c0_558, %c0_559] : memref<3x32x32xf32, #tpu.memory_space<vmem>>, vector<1x32x32xf32>
    %869 = vector.shape_cast %868 : vector<1x32x32xf32> to vector<32x32xf32>
    %cst_560 = arith.constant dense<0.000000e+00> : vector<8x32xf32>
    %870 = tpu.matmul %867, %869, %cst_560 {dimension_numbers = #tpu.dot_dimension_numbers<[1], [0], [0], [1], [0, 0, 1, 1], [], []>} : vector<8x32xf32>, vector<32x32xf32>, vector<8x32xf32> -> vector<8x32xf32>
    %871 = arith.addf %866, %870 : vector<8x32xf32>
    %872 = vector.extract_strided_slice %865 {offsets = [1, 0], sizes = [8, 32], strides = [1, 1]} : vector<18x64xf32> to vector<8x32xf32>
    %c1_561 = arith.constant 1 : index
    %c0_562 = arith.constant 0 : index
    %c0_563 = arith.constant 0 : index
    %873 = vector.load %arg22[%c1_561, %c0_562, %c0_563] : memref<3x32x32xf32, #tpu.memory_space<vmem>>, vector<1x32x32xf32>
    %874 = vector.shape_cast %873 : vector<1x32x32xf32> to vector<32x32xf32>
    %cst_564 = arith.constant dense<0.000000e+00> : vector<8x32xf32>
    %875 = tpu.matmul %872, %874, %cst_564 {dimension_numbers = #tpu.dot_dimension_numbers<[1], [0], [0], [1], [0, 0, 1, 1], [], []>} : vector<8x32xf32>, vector<32x32xf32>, vector<8x32xf32> -> vector<8x32xf32>
    %876 = arith.addf %871, %875 : vector<8x32xf32>
    %877 = vector.extract_strided_slice %865 {offsets = [2, 0], sizes = [8, 32], strides = [1, 1]} : vector<18x64xf32> to vector<8x32xf32>
    %c2_565 = arith.constant 2 : index
    %c0_566 = arith.constant 0 : index
    %c0_567 = arith.constant 0 : index
    %878 = vector.load %arg22[%c2_565, %c0_566, %c0_567] : memref<3x32x32xf32, #tpu.memory_space<vmem>>, vector<1x32x32xf32>
    %879 = vector.shape_cast %878 : vector<1x32x32xf32> to vector<32x32xf32>
    %cst_568 = arith.constant dense<0.000000e+00> : vector<8x32xf32>
    %880 = tpu.matmul %877, %879, %cst_568 {dimension_numbers = #tpu.dot_dimension_numbers<[1], [0], [0], [1], [0, 0, 1, 1], [], []>} : vector<8x32xf32>, vector<32x32xf32>, vector<8x32xf32> -> vector<8x32xf32>
    %881 = arith.addf %876, %880 : vector<8x32xf32>
    %cst_569 = arith.constant 0.000000e+00 : f32
    %882 = vector.broadcast %cst_569 : f32 to vector<1x32xf32>
    %c1_570 = arith.constant 1 : index
    %c0_571 = arith.constant 0 : index
    %c0_572 = arith.constant 0 : index
    %883 = vector.load %arg41[%c1_570, %c0_571, %c0_572] : memref<2x18x64xf32, #tpu.memory_space<vmem>>, vector<1x1x32xf32>
    %884 = vector.shape_cast %883 : vector<1x1x32xf32> to vector<1x32xf32>
    %885 = vector.shape_cast %882 : vector<1x32xf32> to vector<1x1x32xf32>
    tpu.vector_store %arg41[%c1_570, %c0_571, %c0_572], %885 {strides = array<i32>} : memref<2x18x64xf32, #tpu.memory_space<vmem>>, vector<1x1x32xf32>,
    %c1_573 = arith.constant 1 : index
    %c9_574 = arith.constant 9 : index
    %c0_575 = arith.constant 0 : index
    %886 = vector.load %arg41[%c1_573, %c9_574, %c0_575] : memref<2x18x64xf32, #tpu.memory_space<vmem>>, vector<1x1x32xf32>
    %887 = vector.shape_cast %886 : vector<1x1x32xf32> to vector<1x32xf32>
    %888 = vector.shape_cast %882 : vector<1x32xf32> to vector<1x1x32xf32>
    tpu.vector_store %arg41[%c1_573, %c9_574, %c0_575], %888 {strides = array<i32>} : memref<2x18x64xf32, #tpu.memory_space<vmem>>, vector<1x1x32xf32>,
    %c1_576 = arith.constant 1 : index
    %c1_577 = arith.constant 1 : index
    %c0_578 = arith.constant 0 : index
    %889 = vector.load %arg41[%c1_576, %c1_577, %c0_578] : memref<2x18x64xf32, #tpu.memory_space<vmem>>, vector<1x8x32xf32>
    %890 = vector.shape_cast %889 : vector<1x8x32xf32> to vector<8x32xf32>
    %891 = vector.shape_cast %489 : vector<8x32xf32> to vector<1x8x32xf32>
    tpu.vector_store %arg41[%c1_576, %c1_577, %c0_578], %891 {strides = array<i32>} : memref<2x18x64xf32, #tpu.memory_space<vmem>>, vector<1x8x32xf32>,
    %c1_579 = arith.constant 1 : index
    %c0_580 = arith.constant 0 : index
    %c0_581 = arith.constant 0 : index
    %892 = vector.load %arg41[%c1_579, %c0_580, %c0_581] : memref<2x18x64xf32, #tpu.memory_space<vmem>>, vector<1x18x64xf32>
    %893 = vector.shape_cast %892 : vector<1x18x64xf32> to vector<18x64xf32>
    %894 = vector.extract_strided_slice %893 {offsets = [0, 0], sizes = [8, 32], strides = [1, 1]} : vector<18x64xf32> to vector<8x32xf32>
    %c0_582 = arith.constant 0 : index
    %c0_583 = arith.constant 0 : index
    %c0_584 = arith.constant 0 : index
    %895 = vector.load %arg23[%c0_582, %c0_583, %c0_584] : memref<3x32x32xf32, #tpu.memory_space<vmem>>, vector<1x32x32xf32>
    %896 = vector.shape_cast %895 : vector<1x32x32xf32> to vector<32x32xf32>
    %cst_585 = arith.constant dense<0.000000e+00> : vector<8x32xf32>
    %897 = tpu.matmul %894, %896, %cst_585 {dimension_numbers = #tpu.dot_dimension_numbers<[1], [0], [0], [1], [0, 0, 1, 1], [], []>} : vector<8x32xf32>, vector<32x32xf32>, vector<8x32xf32> -> vector<8x32xf32>
    %898 = arith.addf %881, %897 : vector<8x32xf32>
    %899 = vector.extract_strided_slice %893 {offsets = [1, 0], sizes = [8, 32], strides = [1, 1]} : vector<18x64xf32> to vector<8x32xf32>
    %c1_586 = arith.constant 1 : index
    %c0_587 = arith.constant 0 : index
    %c0_588 = arith.constant 0 : index
    %900 = vector.load %arg23[%c1_586, %c0_587, %c0_588] : memref<3x32x32xf32, #tpu.memory_space<vmem>>, vector<1x32x32xf32>
    %901 = vector.shape_cast %900 : vector<1x32x32xf32> to vector<32x32xf32>
    %cst_589 = arith.constant dense<0.000000e+00> : vector<8x32xf32>
    %902 = tpu.matmul %899, %901, %cst_589 {dimension_numbers = #tpu.dot_dimension_numbers<[1], [0], [0], [1], [0, 0, 1, 1], [], []>} : vector<8x32xf32>, vector<32x32xf32>, vector<8x32xf32> -> vector<8x32xf32>
    %903 = arith.addf %898, %902 : vector<8x32xf32>
    %904 = vector.extract_strided_slice %893 {offsets = [2, 0], sizes = [8, 32], strides = [1, 1]} : vector<18x64xf32> to vector<8x32xf32>
    %c2_590 = arith.constant 2 : index
    %c0_591 = arith.constant 0 : index
    %c0_592 = arith.constant 0 : index
    %905 = vector.load %arg23[%c2_590, %c0_591, %c0_592] : memref<3x32x32xf32, #tpu.memory_space<vmem>>, vector<1x32x32xf32>
    %906 = vector.shape_cast %905 : vector<1x32x32xf32> to vector<32x32xf32>
    %cst_593 = arith.constant dense<0.000000e+00> : vector<8x32xf32>
    %907 = tpu.matmul %904, %906, %cst_593 {dimension_numbers = #tpu.dot_dimension_numbers<[1], [0], [0], [1], [0, 0, 1, 1], [], []>} : vector<8x32xf32>, vector<32x32xf32>, vector<8x32xf32> -> vector<8x32xf32>
    %908 = arith.addf %903, %907 : vector<8x32xf32>
    %cst_594 = arith.constant dense<0.000000e+00> : vector<32xf32>
    %909 = vector.multi_reduction <add>, %824, %cst_594 [0] : vector<8x32xf32> to vector<32xf32>
    %910 = vector.shape_cast %909 : vector<32xf32> to vector<1x32xf32>
    %cst_595 = arith.constant 0.000000e+00 : f32
    %911 = vector.broadcast %cst_595 : f32 to vector<1x32xf32>
    %912 = arith.addf %911, %910 : vector<1x32xf32>
    %cst_596 = arith.constant dense<0.000000e+00> : vector<32xf32>
    %913 = vector.multi_reduction <add>, %908, %cst_596 [0] : vector<8x32xf32> to vector<32xf32>
    %914 = vector.shape_cast %913 : vector<32xf32> to vector<1x32xf32>
    %915 = arith.addf %912, %914 : vector<1x32xf32>
    %916 = arith.mulf %824, %824 : vector<8x32xf32>
    %cst_597 = arith.constant dense<0.000000e+00> : vector<32xf32>
    %917 = vector.multi_reduction <add>, %916, %cst_597 [0] : vector<8x32xf32> to vector<32xf32>
    %918 = vector.shape_cast %917 : vector<32xf32> to vector<1x32xf32>
    %cst_598 = arith.constant 0.000000e+00 : f32
    %919 = vector.broadcast %cst_598 : f32 to vector<1x32xf32>
    %920 = arith.addf %919, %918 : vector<1x32xf32>
    %921 = arith.mulf %908, %908 : vector<8x32xf32>
    %cst_599 = arith.constant dense<0.000000e+00> : vector<32xf32>
    %922 = vector.multi_reduction <add>, %921, %cst_599 [0] : vector<8x32xf32> to vector<32xf32>
    %923 = vector.shape_cast %922 : vector<32xf32> to vector<1x32xf32>
    %924 = arith.addf %920, %923 : vector<1x32xf32>
    %cst_600 = arith.constant 1.600000e+01 : f32
    %925 = vector.broadcast %cst_600 : f32 to vector<1x32xf32>
    %926 = arith.divf %915, %925 : vector<1x32xf32>
    %cst_601 = arith.constant 1.600000e+01 : f32
    %927 = vector.broadcast %cst_601 : f32 to vector<1x32xf32>
    %928 = arith.divf %924, %927 : vector<1x32xf32>
    %929 = arith.mulf %926, %926 : vector<1x32xf32>
    %930 = arith.subf %928, %929 : vector<1x32xf32>
    %c0_602 = arith.constant 0 : index
    %c0_603 = arith.constant 0 : index
    %931 = vector.load %arg24[%c0_602, %c0_603] : memref<1x32xf32, #tpu.memory_space<vmem>>, vector<1x32xf32>
    %cst_604 = arith.constant 9.99999974E-6 : f32
    %932 = vector.broadcast %cst_604 : f32 to vector<1x32xf32>
    %933 = arith.addf %930, %932 : vector<1x32xf32>
    %934 = math.rsqrt %933 : vector<1x32xf32>
    %935 = arith.mulf %931, %934 : vector<1x32xf32>
    %c0_605 = arith.constant 0 : index
    %c0_606 = arith.constant 0 : index
    %936 = vector.load %arg25[%c0_605, %c0_606] : memref<1x32xf32, #tpu.memory_space<vmem>>, vector<1x32xf32>
    %937 = arith.mulf %926, %935 : vector<1x32xf32>
    %938 = arith.subf %936, %937 : vector<1x32xf32>
    %939 = vector.broadcast %935 : vector<1x32xf32> to vector<8x32xf32>
    %940 = arith.mulf %824, %939 : vector<8x32xf32>
    %941 = vector.broadcast %938 : vector<1x32xf32> to vector<8x32xf32>
    %942 = arith.addf %940, %941 : vector<8x32xf32>
    %943 = math.tanh %942 : vector<8x32xf32>
    %944 = vector.broadcast %935 : vector<1x32xf32> to vector<8x32xf32>
    %945 = arith.mulf %908, %944 : vector<8x32xf32>
    %946 = vector.broadcast %938 : vector<1x32xf32> to vector<8x32xf32>
    %947 = arith.addf %945, %946 : vector<8x32xf32>
    %948 = math.tanh %947 : vector<8x32xf32>
    %cst_607 = arith.constant 0.000000e+00 : f32
    %949 = vector.broadcast %cst_607 : f32 to vector<1x32xf32>
    %c0_608 = arith.constant 0 : index
    %c0_609 = arith.constant 0 : index
    %c0_610 = arith.constant 0 : index
    %950 = vector.load %arg41[%c0_608, %c0_609, %c0_610] : memref<2x18x64xf32, #tpu.memory_space<vmem>>, vector<1x1x32xf32>
    %951 = vector.shape_cast %950 : vector<1x1x32xf32> to vector<1x32xf32>
    %952 = vector.shape_cast %949 : vector<1x32xf32> to vector<1x1x32xf32>
    tpu.vector_store %arg41[%c0_608, %c0_609, %c0_610], %952 {strides = array<i32>} : memref<2x18x64xf32, #tpu.memory_space<vmem>>, vector<1x1x32xf32>,
    %c0_611 = arith.constant 0 : index
    %c9_612 = arith.constant 9 : index
    %c0_613 = arith.constant 0 : index
    %953 = vector.load %arg41[%c0_611, %c9_612, %c0_613] : memref<2x18x64xf32, #tpu.memory_space<vmem>>, vector<1x1x32xf32>
    %954 = vector.shape_cast %953 : vector<1x1x32xf32> to vector<1x32xf32>
    %955 = vector.shape_cast %949 : vector<1x32xf32> to vector<1x1x32xf32>
    tpu.vector_store %arg41[%c0_611, %c9_612, %c0_613], %955 {strides = array<i32>} : memref<2x18x64xf32, #tpu.memory_space<vmem>>, vector<1x1x32xf32>,
    %c0_614 = arith.constant 0 : index
    %c1_615 = arith.constant 1 : index
    %c0_616 = arith.constant 0 : index
    %956 = vector.load %arg41[%c0_614, %c1_615, %c0_616] : memref<2x18x64xf32, #tpu.memory_space<vmem>>, vector<1x8x32xf32>
    %957 = vector.shape_cast %956 : vector<1x8x32xf32> to vector<8x32xf32>
    %958 = vector.shape_cast %943 : vector<8x32xf32> to vector<1x8x32xf32>
    tpu.vector_store %arg41[%c0_614, %c1_615, %c0_616], %958 {strides = array<i32>} : memref<2x18x64xf32, #tpu.memory_space<vmem>>, vector<1x8x32xf32>,
    %c0_617 = arith.constant 0 : index
    %c0_618 = arith.constant 0 : index
    %c0_619 = arith.constant 0 : index
    %959 = vector.load %arg41[%c0_617, %c0_618, %c0_619] : memref<2x18x64xf32, #tpu.memory_space<vmem>>, vector<1x18x64xf32>
    %960 = vector.shape_cast %959 : vector<1x18x64xf32> to vector<18x64xf32>
    %cst_620 = arith.constant 0.000000e+00 : f32
    %961 = vector.broadcast %cst_620 : f32 to vector<8x32xf32>
    %962 = vector.extract_strided_slice %960 {offsets = [0, 0], sizes = [8, 32], strides = [1, 1]} : vector<18x64xf32> to vector<8x32xf32>
    %c0_621 = arith.constant 0 : index
    %c0_622 = arith.constant 0 : index
    %c0_623 = arith.constant 0 : index
    %963 = vector.load %arg26[%c0_621, %c0_622, %c0_623] : memref<3x32x32xf32, #tpu.memory_space<vmem>>, vector<1x32x32xf32>
    %964 = vector.shape_cast %963 : vector<1x32x32xf32> to vector<32x32xf32>
    %cst_624 = arith.constant dense<0.000000e+00> : vector<8x32xf32>
    %965 = tpu.matmul %962, %964, %cst_624 {dimension_numbers = #tpu.dot_dimension_numbers<[1], [0], [0], [1], [0, 0, 1, 1], [], []>} : vector<8x32xf32>, vector<32x32xf32>, vector<8x32xf32> -> vector<8x32xf32>
    %966 = arith.addf %961, %965 : vector<8x32xf32>
    %967 = vector.extract_strided_slice %960 {offsets = [1, 0], sizes = [8, 32], strides = [1, 1]} : vector<18x64xf32> to vector<8x32xf32>
    %c1_625 = arith.constant 1 : index
    %c0_626 = arith.constant 0 : index
    %c0_627 = arith.constant 0 : index
    %968 = vector.load %arg26[%c1_625, %c0_626, %c0_627] : memref<3x32x32xf32, #tpu.memory_space<vmem>>, vector<1x32x32xf32>
    %969 = vector.shape_cast %968 : vector<1x32x32xf32> to vector<32x32xf32>
    %cst_628 = arith.constant dense<0.000000e+00> : vector<8x32xf32>
    %970 = tpu.matmul %967, %969, %cst_628 {dimension_numbers = #tpu.dot_dimension_numbers<[1], [0], [0], [1], [0, 0, 1, 1], [], []>} : vector<8x32xf32>, vector<32x32xf32>, vector<8x32xf32> -> vector<8x32xf32>
    %971 = arith.addf %966, %970 : vector<8x32xf32>
    %972 = vector.extract_strided_slice %960 {offsets = [2, 0], sizes = [8, 32], strides = [1, 1]} : vector<18x64xf32> to vector<8x32xf32>
    %c2_629 = arith.constant 2 : index
    %c0_630 = arith.constant 0 : index
    %c0_631 = arith.constant 0 : index
    %973 = vector.load %arg26[%c2_629, %c0_630, %c0_631] : memref<3x32x32xf32, #tpu.memory_space<vmem>>, vector<1x32x32xf32>
    %974 = vector.shape_cast %973 : vector<1x32x32xf32> to vector<32x32xf32>
    %cst_632 = arith.constant dense<0.000000e+00> : vector<8x32xf32>
    %975 = tpu.matmul %972, %974, %cst_632 {dimension_numbers = #tpu.dot_dimension_numbers<[1], [0], [0], [1], [0, 0, 1, 1], [], []>} : vector<8x32xf32>, vector<32x32xf32>, vector<8x32xf32> -> vector<8x32xf32>
    %976 = arith.addf %971, %975 : vector<8x32xf32>
    %cst_633 = arith.constant 0.000000e+00 : f32
    %977 = vector.broadcast %cst_633 : f32 to vector<1x32xf32>
    %c1_634 = arith.constant 1 : index
    %c0_635 = arith.constant 0 : index
    %c0_636 = arith.constant 0 : index
    %978 = vector.load %arg41[%c1_634, %c0_635, %c0_636] : memref<2x18x64xf32, #tpu.memory_space<vmem>>, vector<1x1x32xf32>
    %979 = vector.shape_cast %978 : vector<1x1x32xf32> to vector<1x32xf32>
    %980 = vector.shape_cast %977 : vector<1x32xf32> to vector<1x1x32xf32>
    tpu.vector_store %arg41[%c1_634, %c0_635, %c0_636], %980 {strides = array<i32>} : memref<2x18x64xf32, #tpu.memory_space<vmem>>, vector<1x1x32xf32>,
    %c1_637 = arith.constant 1 : index
    %c9_638 = arith.constant 9 : index
    %c0_639 = arith.constant 0 : index
    %981 = vector.load %arg41[%c1_637, %c9_638, %c0_639] : memref<2x18x64xf32, #tpu.memory_space<vmem>>, vector<1x1x32xf32>
    %982 = vector.shape_cast %981 : vector<1x1x32xf32> to vector<1x32xf32>
    %983 = vector.shape_cast %977 : vector<1x32xf32> to vector<1x1x32xf32>
    tpu.vector_store %arg41[%c1_637, %c9_638, %c0_639], %983 {strides = array<i32>} : memref<2x18x64xf32, #tpu.memory_space<vmem>>, vector<1x1x32xf32>,
    %c1_640 = arith.constant 1 : index
    %c1_641 = arith.constant 1 : index
    %c0_642 = arith.constant 0 : index
    %984 = vector.load %arg41[%c1_640, %c1_641, %c0_642] : memref<2x18x64xf32, #tpu.memory_space<vmem>>, vector<1x8x32xf32>
    %985 = vector.shape_cast %984 : vector<1x8x32xf32> to vector<8x32xf32>
    %986 = vector.shape_cast %948 : vector<8x32xf32> to vector<1x8x32xf32>
    tpu.vector_store %arg41[%c1_640, %c1_641, %c0_642], %986 {strides = array<i32>} : memref<2x18x64xf32, #tpu.memory_space<vmem>>, vector<1x8x32xf32>,
    %c1_643 = arith.constant 1 : index
    %c0_644 = arith.constant 0 : index
    %c0_645 = arith.constant 0 : index
    %987 = vector.load %arg41[%c1_643, %c0_644, %c0_645] : memref<2x18x64xf32, #tpu.memory_space<vmem>>, vector<1x18x64xf32>
    %988 = vector.shape_cast %987 : vector<1x18x64xf32> to vector<18x64xf32>
    %cst_646 = arith.constant 0.000000e+00 : f32
    %989 = vector.broadcast %cst_646 : f32 to vector<8x32xf32>
    %990 = vector.extract_strided_slice %988 {offsets = [0, 0], sizes = [8, 32], strides = [1, 1]} : vector<18x64xf32> to vector<8x32xf32>
    %c0_647 = arith.constant 0 : index
    %c0_648 = arith.constant 0 : index
    %c0_649 = arith.constant 0 : index
    %991 = vector.load %arg26[%c0_647, %c0_648, %c0_649] : memref<3x32x32xf32, #tpu.memory_space<vmem>>, vector<1x32x32xf32>
    %992 = vector.shape_cast %991 : vector<1x32x32xf32> to vector<32x32xf32>
    %cst_650 = arith.constant dense<0.000000e+00> : vector<8x32xf32>
    %993 = tpu.matmul %990, %992, %cst_650 {dimension_numbers = #tpu.dot_dimension_numbers<[1], [0], [0], [1], [0, 0, 1, 1], [], []>} : vector<8x32xf32>, vector<32x32xf32>, vector<8x32xf32> -> vector<8x32xf32>
    %994 = arith.addf %989, %993 : vector<8x32xf32>
    %995 = vector.extract_strided_slice %988 {offsets = [1, 0], sizes = [8, 32], strides = [1, 1]} : vector<18x64xf32> to vector<8x32xf32>
    %c1_651 = arith.constant 1 : index
    %c0_652 = arith.constant 0 : index
    %c0_653 = arith.constant 0 : index
    %996 = vector.load %arg26[%c1_651, %c0_652, %c0_653] : memref<3x32x32xf32, #tpu.memory_space<vmem>>, vector<1x32x32xf32>
    %997 = vector.shape_cast %996 : vector<1x32x32xf32> to vector<32x32xf32>
    %cst_654 = arith.constant dense<0.000000e+00> : vector<8x32xf32>
    %998 = tpu.matmul %995, %997, %cst_654 {dimension_numbers = #tpu.dot_dimension_numbers<[1], [0], [0], [1], [0, 0, 1, 1], [], []>} : vector<8x32xf32>, vector<32x32xf32>, vector<8x32xf32> -> vector<8x32xf32>
    %999 = arith.addf %994, %998 : vector<8x32xf32>
    %1000 = vector.extract_strided_slice %988 {offsets = [2, 0], sizes = [8, 32], strides = [1, 1]} : vector<18x64xf32> to vector<8x32xf32>
    %c2_655 = arith.constant 2 : index
    %c0_656 = arith.constant 0 : index
    %c0_657 = arith.constant 0 : index
    %1001 = vector.load %arg26[%c2_655, %c0_656, %c0_657] : memref<3x32x32xf32, #tpu.memory_space<vmem>>, vector<1x32x32xf32>
    %1002 = vector.shape_cast %1001 : vector<1x32x32xf32> to vector<32x32xf32>
    %cst_658 = arith.constant dense<0.000000e+00> : vector<8x32xf32>
    %1003 = tpu.matmul %1000, %1002, %cst_658 {dimension_numbers = #tpu.dot_dimension_numbers<[1], [0], [0], [1], [0, 0, 1, 1], [], []>} : vector<8x32xf32>, vector<32x32xf32>, vector<8x32xf32> -> vector<8x32xf32>
    %1004 = arith.addf %999, %1003 : vector<8x32xf32>
    %cst_659 = arith.constant dense<0.000000e+00> : vector<32xf32>
    %1005 = vector.multi_reduction <add>, %976, %cst_659 [0] : vector<8x32xf32> to vector<32xf32>
    %1006 = vector.shape_cast %1005 : vector<32xf32> to vector<1x32xf32>
    %cst_660 = arith.constant 0.000000e+00 : f32
    %1007 = vector.broadcast %cst_660 : f32 to vector<1x32xf32>
    %1008 = arith.addf %1007, %1006 : vector<1x32xf32>
    %cst_661 = arith.constant dense<0.000000e+00> : vector<32xf32>
    %1009 = vector.multi_reduction <add>, %1004, %cst_661 [0] : vector<8x32xf32> to vector<32xf32>
    %1010 = vector.shape_cast %1009 : vector<32xf32> to vector<1x32xf32>
    %1011 = arith.addf %1008, %1010 : vector<1x32xf32>
    %1012 = arith.mulf %976, %976 : vector<8x32xf32>
    %cst_662 = arith.constant dense<0.000000e+00> : vector<32xf32>
    %1013 = vector.multi_reduction <add>, %1012, %cst_662 [0] : vector<8x32xf32> to vector<32xf32>
    %1014 = vector.shape_cast %1013 : vector<32xf32> to vector<1x32xf32>
    %cst_663 = arith.constant 0.000000e+00 : f32
    %1015 = vector.broadcast %cst_663 : f32 to vector<1x32xf32>
    %1016 = arith.addf %1015, %1014 : vector<1x32xf32>
    %1017 = arith.mulf %1004, %1004 : vector<8x32xf32>
    %cst_664 = arith.constant dense<0.000000e+00> : vector<32xf32>
    %1018 = vector.multi_reduction <add>, %1017, %cst_664 [0] : vector<8x32xf32> to vector<32xf32>
    %1019 = vector.shape_cast %1018 : vector<32xf32> to vector<1x32xf32>
    %1020 = arith.addf %1016, %1019 : vector<1x32xf32>
    %cst_665 = arith.constant 1.600000e+01 : f32
    %1021 = vector.broadcast %cst_665 : f32 to vector<1x32xf32>
    %1022 = arith.divf %1011, %1021 : vector<1x32xf32>
    %cst_666 = arith.constant 1.600000e+01 : f32
    %1023 = vector.broadcast %cst_666 : f32 to vector<1x32xf32>
    %1024 = arith.divf %1020, %1023 : vector<1x32xf32>
    %1025 = arith.mulf %1022, %1022 : vector<1x32xf32>
    %1026 = arith.subf %1024, %1025 : vector<1x32xf32>
    %c0_667 = arith.constant 0 : index
    %c0_668 = arith.constant 0 : index
    %1027 = vector.load %arg27[%c0_667, %c0_668] : memref<1x32xf32, #tpu.memory_space<vmem>>, vector<1x32xf32>
    %cst_669 = arith.constant 9.99999974E-6 : f32
    %1028 = vector.broadcast %cst_669 : f32 to vector<1x32xf32>
    %1029 = arith.addf %1026, %1028 : vector<1x32xf32>
    %1030 = math.rsqrt %1029 : vector<1x32xf32>
    %1031 = arith.mulf %1027, %1030 : vector<1x32xf32>
    %c0_670 = arith.constant 0 : index
    %c0_671 = arith.constant 0 : index
    %1032 = vector.load %arg28[%c0_670, %c0_671] : memref<1x32xf32, #tpu.memory_space<vmem>>, vector<1x32xf32>
    %1033 = arith.mulf %1022, %1031 : vector<1x32xf32>
    %1034 = arith.subf %1032, %1033 : vector<1x32xf32>
    %1035 = vector.broadcast %1031 : vector<1x32xf32> to vector<8x32xf32>
    %1036 = arith.mulf %976, %1035 : vector<8x32xf32>
    %1037 = vector.broadcast %1034 : vector<1x32xf32> to vector<8x32xf32>
    %1038 = arith.addf %1036, %1037 : vector<8x32xf32>
    %1039 = math.tanh %1038 : vector<8x32xf32>
    %1040 = vector.broadcast %1031 : vector<1x32xf32> to vector<8x32xf32>
    %1041 = arith.mulf %1004, %1040 : vector<8x32xf32>
    %1042 = vector.broadcast %1034 : vector<1x32xf32> to vector<8x32xf32>
    %1043 = arith.addf %1041, %1042 : vector<8x32xf32>
    %1044 = math.tanh %1043 : vector<8x32xf32>
    %c0_672 = arith.constant 0 : index
    %c0_673 = arith.constant 0 : index
    %1045 = vector.load %arg30[%c0_672, %c0_673] : memref<1x16xf32, #tpu.memory_space<vmem>>, vector<1x16xf32>
    %c0_674 = arith.constant 0 : index
    %c0_675 = arith.constant 0 : index
    %c0_676 = arith.constant 0 : index
    %1046 = vector.load %arg29[%c0_674, %c0_675, %c0_676] : memref<2x32x16xf32, #tpu.memory_space<vmem>>, vector<1x32x16xf32>
    %1047 = vector.shape_cast %1046 : vector<1x32x16xf32> to vector<32x16xf32>
    %c1_677 = arith.constant 1 : index
    %c0_678 = arith.constant 0 : index
    %c0_679 = arith.constant 0 : index
    %1048 = vector.load %arg29[%c1_677, %c0_678, %c0_679] : memref<2x32x16xf32, #tpu.memory_space<vmem>>, vector<1x32x16xf32>
    %1049 = vector.shape_cast %1048 : vector<1x32x16xf32> to vector<32x16xf32>
    %cst_680 = arith.constant dense<0.000000e+00> : vector<8x16xf32>
    %1050 = tpu.matmul %1039, %1047, %cst_680 {dimension_numbers = #tpu.dot_dimension_numbers<[1], [0], [0], [1], [0, 0, 1, 1], [], []>} : vector<8x32xf32>, vector<32x16xf32>, vector<8x16xf32> -> vector<8x16xf32>
    %1051 = vector.broadcast %1045 : vector<1x16xf32> to vector<8x16xf32>
    %1052 = arith.addf %1050, %1051 : vector<8x16xf32>
    %cst_681 = arith.constant dense<0.000000e+00> : vector<8x16xf32>
    %1053 = tpu.matmul %1044, %1047, %cst_681 {dimension_numbers = #tpu.dot_dimension_numbers<[1], [0], [0], [1], [0, 0, 1, 1], [], []>} : vector<8x32xf32>, vector<32x16xf32>, vector<8x16xf32> -> vector<8x16xf32>
    %1054 = vector.broadcast %1045 : vector<1x16xf32> to vector<8x16xf32>
    %1055 = arith.addf %1053, %1054 : vector<8x16xf32>
    %cst_682 = arith.constant dense<0.000000e+00> : vector<8x16xf32>
    %1056 = tpu.matmul %1039, %1049, %cst_682 {dimension_numbers = #tpu.dot_dimension_numbers<[1], [0], [0], [1], [0, 0, 1, 1], [], []>} : vector<8x32xf32>, vector<32x16xf32>, vector<8x16xf32> -> vector<8x16xf32>
    %1057 = vector.broadcast %1045 : vector<1x16xf32> to vector<8x16xf32>
    %1058 = arith.addf %1056, %1057 : vector<8x16xf32>
    %cst_683 = arith.constant dense<0.000000e+00> : vector<8x16xf32>
    %1059 = tpu.matmul %1044, %1049, %cst_683 {dimension_numbers = #tpu.dot_dimension_numbers<[1], [0], [0], [1], [0, 0, 1, 1], [], []>} : vector<8x32xf32>, vector<32x16xf32>, vector<8x16xf32> -> vector<8x16xf32>
    %1060 = vector.broadcast %1045 : vector<1x16xf32> to vector<8x16xf32>
    %1061 = arith.addf %1059, %1060 : vector<8x16xf32>
    %cst_684 = arith.constant 0.000000e+00 : f32
    %1062 = vector.broadcast %cst_684 : f32 to vector<1x16xf32>
    %c0_685 = arith.constant 0 : index
    %c0_686 = arith.constant 0 : index
    %c0_687 = arith.constant 0 : index
    %1063 = vector.load %arg41[%c0_685, %c0_686, %c0_687] : memref<2x18x64xf32, #tpu.memory_space<vmem>>, vector<1x1x16xf32>
    %1064 = vector.shape_cast %1063 : vector<1x1x16xf32> to vector<1x16xf32>
    %1065 = vector.shape_cast %1062 : vector<1x16xf32> to vector<1x1x16xf32>
    tpu.vector_store %arg41[%c0_685, %c0_686, %c0_687], %1065 {strides = array<i32>} : memref<2x18x64xf32, #tpu.memory_space<vmem>>, vector<1x1x16xf32>,
    %c0_688 = arith.constant 0 : index
    %c17_689 = arith.constant 17 : index
    %c0_690 = arith.constant 0 : index
    %1066 = vector.load %arg41[%c0_688, %c17_689, %c0_690] : memref<2x18x64xf32, #tpu.memory_space<vmem>>, vector<1x1x16xf32>
    %1067 = vector.shape_cast %1066 : vector<1x1x16xf32> to vector<1x16xf32>
    %1068 = vector.shape_cast %1062 : vector<1x16xf32> to vector<1x1x16xf32>
    tpu.vector_store %arg41[%c0_688, %c17_689, %c0_690], %1068 {strides = array<i32>} : memref<2x18x64xf32, #tpu.memory_space<vmem>>, vector<1x1x16xf32>,
    %1069 = vector.extract_strided_slice %1052 {offsets = [0, 0], sizes = [1, 16], strides = [1, 1]} : vector<8x16xf32> to vector<1x16xf32>
    %c0_691 = arith.constant 0 : index
    %c1_692 = arith.constant 1 : index
    %c0_693 = arith.constant 0 : index
    %1070 = vector.load %arg41[%c0_691, %c1_692, %c0_693] : memref<2x18x64xf32, #tpu.memory_space<vmem>>, vector<1x1x16xf32>
    %1071 = vector.shape_cast %1070 : vector<1x1x16xf32> to vector<1x16xf32>
    %1072 = vector.shape_cast %1069 : vector<1x16xf32> to vector<1x1x16xf32>
    tpu.vector_store %arg41[%c0_691, %c1_692, %c0_693], %1072 {strides = array<i32>} : memref<2x18x64xf32, #tpu.memory_space<vmem>>, vector<1x1x16xf32>,
    %1073 = vector.extract_strided_slice %1058 {offsets = [0, 0], sizes = [1, 16], strides = [1, 1]} : vector<8x16xf32> to vector<1x16xf32>
    %c0_694 = arith.constant 0 : index
    %c2_695 = arith.constant 2 : index
    %c0_696 = arith.constant 0 : index
    %1074 = vector.load %arg41[%c0_694, %c2_695, %c0_696] : memref<2x18x64xf32, #tpu.memory_space<vmem>>, vector<1x1x16xf32>
    %1075 = vector.shape_cast %1074 : vector<1x1x16xf32> to vector<1x16xf32>
    %1076 = vector.shape_cast %1073 : vector<1x16xf32> to vector<1x1x16xf32>
    tpu.vector_store %arg41[%c0_694, %c2_695, %c0_696], %1076 {strides = array<i32>} : memref<2x18x64xf32, #tpu.memory_space<vmem>>, vector<1x1x16xf32>,
    %1077 = vector.extract_strided_slice %1052 {offsets = [1, 0], sizes = [1, 16], strides = [1, 1]} : vector<8x16xf32> to vector<1x16xf32>
    %c0_697 = arith.constant 0 : index
    %c3_698 = arith.constant 3 : index
    %c0_699 = arith.constant 0 : index
    %1078 = vector.load %arg41[%c0_697, %c3_698, %c0_699] : memref<2x18x64xf32, #tpu.memory_space<vmem>>, vector<1x1x16xf32>
    %1079 = vector.shape_cast %1078 : vector<1x1x16xf32> to vector<1x16xf32>
    %1080 = vector.shape_cast %1077 : vector<1x16xf32> to vector<1x1x16xf32>
    tpu.vector_store %arg41[%c0_697, %c3_698, %c0_699], %1080 {strides = array<i32>} : memref<2x18x64xf32, #tpu.memory_space<vmem>>, vector<1x1x16xf32>,
    %1081 = vector.extract_strided_slice %1058 {offsets = [1, 0], sizes = [1, 16], strides = [1, 1]} : vector<8x16xf32> to vector<1x16xf32>
    %c0_700 = arith.constant 0 : index
    %c4_701 = arith.constant 4 : index
    %c0_702 = arith.constant 0 : index
    %1082 = vector.load %arg41[%c0_700, %c4_701, %c0_702] : memref<2x18x64xf32, #tpu.memory_space<vmem>>, vector<1x1x16xf32>
    %1083 = vector.shape_cast %1082 : vector<1x1x16xf32> to vector<1x16xf32>
    %1084 = vector.shape_cast %1081 : vector<1x16xf32> to vector<1x1x16xf32>
    tpu.vector_store %arg41[%c0_700, %c4_701, %c0_702], %1084 {strides = array<i32>} : memref<2x18x64xf32, #tpu.memory_space<vmem>>, vector<1x1x16xf32>,
    %1085 = vector.extract_strided_slice %1052 {offsets = [2, 0], sizes = [1, 16], strides = [1, 1]} : vector<8x16xf32> to vector<1x16xf32>
    %c0_703 = arith.constant 0 : index
    %c5_704 = arith.constant 5 : index
    %c0_705 = arith.constant 0 : index
    %1086 = vector.load %arg41[%c0_703, %c5_704, %c0_705] : memref<2x18x64xf32, #tpu.memory_space<vmem>>, vector<1x1x16xf32>
    %1087 = vector.shape_cast %1086 : vector<1x1x16xf32> to vector<1x16xf32>
    %1088 = vector.shape_cast %1085 : vector<1x16xf32> to vector<1x1x16xf32>
    tpu.vector_store %arg41[%c0_703, %c5_704, %c0_705], %1088 {strides = array<i32>} : memref<2x18x64xf32, #tpu.memory_space<vmem>>, vector<1x1x16xf32>,
    %1089 = vector.extract_strided_slice %1058 {offsets = [2, 0], sizes = [1, 16], strides = [1, 1]} : vector<8x16xf32> to vector<1x16xf32>
    %c0_706 = arith.constant 0 : index
    %c6_707 = arith.constant 6 : index
    %c0_708 = arith.constant 0 : index
    %1090 = vector.load %arg41[%c0_706, %c6_707, %c0_708] : memref<2x18x64xf32, #tpu.memory_space<vmem>>, vector<1x1x16xf32>
    %1091 = vector.shape_cast %1090 : vector<1x1x16xf32> to vector<1x16xf32>
    %1092 = vector.shape_cast %1089 : vector<1x16xf32> to vector<1x1x16xf32>
    tpu.vector_store %arg41[%c0_706, %c6_707, %c0_708], %1092 {strides = array<i32>} : memref<2x18x64xf32, #tpu.memory_space<vmem>>, vector<1x1x16xf32>,
    %1093 = vector.extract_strided_slice %1052 {offsets = [3, 0], sizes = [1, 16], strides = [1, 1]} : vector<8x16xf32> to vector<1x16xf32>
    %c0_709 = arith.constant 0 : index
    %c7_710 = arith.constant 7 : index
    %c0_711 = arith.constant 0 : index
    %1094 = vector.load %arg41[%c0_709, %c7_710, %c0_711] : memref<2x18x64xf32, #tpu.memory_space<vmem>>, vector<1x1x16xf32>
    %1095 = vector.shape_cast %1094 : vector<1x1x16xf32> to vector<1x16xf32>
    %1096 = vector.shape_cast %1093 : vector<1x16xf32> to vector<1x1x16xf32>
    tpu.vector_store %arg41[%c0_709, %c7_710, %c0_711], %1096 {strides = array<i32>} : memref<2x18x64xf32, #tpu.memory_space<vmem>>, vector<1x1x16xf32>,
    %1097 = vector.extract_strided_slice %1058 {offsets = [3, 0], sizes = [1, 16], strides = [1, 1]} : vector<8x16xf32> to vector<1x16xf32>
    %c0_712 = arith.constant 0 : index
    %c8_713 = arith.constant 8 : index
    %c0_714 = arith.constant 0 : index
    %1098 = vector.load %arg41[%c0_712, %c8_713, %c0_714] : memref<2x18x64xf32, #tpu.memory_space<vmem>>, vector<1x1x16xf32>
    %1099 = vector.shape_cast %1098 : vector<1x1x16xf32> to vector<1x16xf32>
    %1100 = vector.shape_cast %1097 : vector<1x16xf32> to vector<1x1x16xf32>
    tpu.vector_store %arg41[%c0_712, %c8_713, %c0_714], %1100 {strides = array<i32>} : memref<2x18x64xf32, #tpu.memory_space<vmem>>, vector<1x1x16xf32>,
    %1101 = vector.extract_strided_slice %1052 {offsets = [4, 0], sizes = [1, 16], strides = [1, 1]} : vector<8x16xf32> to vector<1x16xf32>
    %c0_715 = arith.constant 0 : index
    %c9_716 = arith.constant 9 : index
    %c0_717 = arith.constant 0 : index
    %1102 = vector.load %arg41[%c0_715, %c9_716, %c0_717] : memref<2x18x64xf32, #tpu.memory_space<vmem>>, vector<1x1x16xf32>
    %1103 = vector.shape_cast %1102 : vector<1x1x16xf32> to vector<1x16xf32>
    %1104 = vector.shape_cast %1101 : vector<1x16xf32> to vector<1x1x16xf32>
    tpu.vector_store %arg41[%c0_715, %c9_716, %c0_717], %1104 {strides = array<i32>} : memref<2x18x64xf32, #tpu.memory_space<vmem>>, vector<1x1x16xf32>,
    %1105 = vector.extract_strided_slice %1058 {offsets = [4, 0], sizes = [1, 16], strides = [1, 1]} : vector<8x16xf32> to vector<1x16xf32>
    %c0_718 = arith.constant 0 : index
    %c10 = arith.constant 10 : index
    %c0_719 = arith.constant 0 : index
    %1106 = vector.load %arg41[%c0_718, %c10, %c0_719] : memref<2x18x64xf32, #tpu.memory_space<vmem>>, vector<1x1x16xf32>
    %1107 = vector.shape_cast %1106 : vector<1x1x16xf32> to vector<1x16xf32>
    %1108 = vector.shape_cast %1105 : vector<1x16xf32> to vector<1x1x16xf32>
    tpu.vector_store %arg41[%c0_718, %c10, %c0_719], %1108 {strides = array<i32>} : memref<2x18x64xf32, #tpu.memory_space<vmem>>, vector<1x1x16xf32>,
    %1109 = vector.extract_strided_slice %1052 {offsets = [5, 0], sizes = [1, 16], strides = [1, 1]} : vector<8x16xf32> to vector<1x16xf32>
    %c0_720 = arith.constant 0 : index
    %c11 = arith.constant 11 : index
    %c0_721 = arith.constant 0 : index
    %1110 = vector.load %arg41[%c0_720, %c11, %c0_721] : memref<2x18x64xf32, #tpu.memory_space<vmem>>, vector<1x1x16xf32>
    %1111 = vector.shape_cast %1110 : vector<1x1x16xf32> to vector<1x16xf32>
    %1112 = vector.shape_cast %1109 : vector<1x16xf32> to vector<1x1x16xf32>
    tpu.vector_store %arg41[%c0_720, %c11, %c0_721], %1112 {strides = array<i32>} : memref<2x18x64xf32, #tpu.memory_space<vmem>>, vector<1x1x16xf32>,
    %1113 = vector.extract_strided_slice %1058 {offsets = [5, 0], sizes = [1, 16], strides = [1, 1]} : vector<8x16xf32> to vector<1x16xf32>
    %c0_722 = arith.constant 0 : index
    %c12 = arith.constant 12 : index
    %c0_723 = arith.constant 0 : index
    %1114 = vector.load %arg41[%c0_722, %c12, %c0_723] : memref<2x18x64xf32, #tpu.memory_space<vmem>>, vector<1x1x16xf32>
    %1115 = vector.shape_cast %1114 : vector<1x1x16xf32> to vector<1x16xf32>
    %1116 = vector.shape_cast %1113 : vector<1x16xf32> to vector<1x1x16xf32>
    tpu.vector_store %arg41[%c0_722, %c12, %c0_723], %1116 {strides = array<i32>} : memref<2x18x64xf32, #tpu.memory_space<vmem>>, vector<1x1x16xf32>,
    %1117 = vector.extract_strided_slice %1052 {offsets = [6, 0], sizes = [1, 16], strides = [1, 1]} : vector<8x16xf32> to vector<1x16xf32>
    %c0_724 = arith.constant 0 : index
    %c13 = arith.constant 13 : index
    %c0_725 = arith.constant 0 : index
    %1118 = vector.load %arg41[%c0_724, %c13, %c0_725] : memref<2x18x64xf32, #tpu.memory_space<vmem>>, vector<1x1x16xf32>
    %1119 = vector.shape_cast %1118 : vector<1x1x16xf32> to vector<1x16xf32>
    %1120 = vector.shape_cast %1117 : vector<1x16xf32> to vector<1x1x16xf32>
    tpu.vector_store %arg41[%c0_724, %c13, %c0_725], %1120 {strides = array<i32>} : memref<2x18x64xf32, #tpu.memory_space<vmem>>, vector<1x1x16xf32>,
    %1121 = vector.extract_strided_slice %1058 {offsets = [6, 0], sizes = [1, 16], strides = [1, 1]} : vector<8x16xf32> to vector<1x16xf32>
    %c0_726 = arith.constant 0 : index
    %c14 = arith.constant 14 : index
    %c0_727 = arith.constant 0 : index
    %1122 = vector.load %arg41[%c0_726, %c14, %c0_727] : memref<2x18x64xf32, #tpu.memory_space<vmem>>, vector<1x1x16xf32>
    %1123 = vector.shape_cast %1122 : vector<1x1x16xf32> to vector<1x16xf32>
    %1124 = vector.shape_cast %1121 : vector<1x16xf32> to vector<1x1x16xf32>
    tpu.vector_store %arg41[%c0_726, %c14, %c0_727], %1124 {strides = array<i32>} : memref<2x18x64xf32, #tpu.memory_space<vmem>>, vector<1x1x16xf32>,
    %1125 = vector.extract_strided_slice %1052 {offsets = [7, 0], sizes = [1, 16], strides = [1, 1]} : vector<8x16xf32> to vector<1x16xf32>
    %c0_728 = arith.constant 0 : index
    %c15 = arith.constant 15 : index
    %c0_729 = arith.constant 0 : index
    %1126 = vector.load %arg41[%c0_728, %c15, %c0_729] : memref<2x18x64xf32, #tpu.memory_space<vmem>>, vector<1x1x16xf32>
    %1127 = vector.shape_cast %1126 : vector<1x1x16xf32> to vector<1x16xf32>
    %1128 = vector.shape_cast %1125 : vector<1x16xf32> to vector<1x1x16xf32>
    tpu.vector_store %arg41[%c0_728, %c15, %c0_729], %1128 {strides = array<i32>} : memref<2x18x64xf32, #tpu.memory_space<vmem>>, vector<1x1x16xf32>,
    %1129 = vector.extract_strided_slice %1058 {offsets = [7, 0], sizes = [1, 16], strides = [1, 1]} : vector<8x16xf32> to vector<1x16xf32>
    %c0_730 = arith.constant 0 : index
    %c16 = arith.constant 16 : index
    %c0_731 = arith.constant 0 : index
    %1130 = vector.load %arg41[%c0_730, %c16, %c0_731] : memref<2x18x64xf32, #tpu.memory_space<vmem>>, vector<1x1x16xf32>
    %1131 = vector.shape_cast %1130 : vector<1x1x16xf32> to vector<1x16xf32>
    %1132 = vector.shape_cast %1129 : vector<1x16xf32> to vector<1x1x16xf32>
    tpu.vector_store %arg41[%c0_730, %c16, %c0_731], %1132 {strides = array<i32>} : memref<2x18x64xf32, #tpu.memory_space<vmem>>, vector<1x1x16xf32>,
    %c0_732 = arith.constant 0 : index
    %c0_733 = arith.constant 0 : index
    %c0_734 = arith.constant 0 : index
    %1133 = vector.load %arg41[%c0_732, %c0_733, %c0_734] : memref<2x18x64xf32, #tpu.memory_space<vmem>>, vector<1x18x64xf32>
    %1134 = vector.shape_cast %1133 : vector<1x18x64xf32> to vector<18x64xf32>
    %cst_735 = arith.constant 0.000000e+00 : f32
    %1135 = vector.broadcast %cst_735 : f32 to vector<16x16xf32>
    %1136 = vector.extract_strided_slice %1134 {offsets = [0, 0], sizes = [16, 16], strides = [1, 1]} : vector<18x64xf32> to vector<16x16xf32>
    %c0_736 = arith.constant 0 : index
    %c0_737 = arith.constant 0 : index
    %c0_738 = arith.constant 0 : index
    %1137 = vector.load %arg31[%c0_736, %c0_737, %c0_738] : memref<3x16x16xf32, #tpu.memory_space<vmem>>, vector<1x16x16xf32>
    %1138 = vector.shape_cast %1137 : vector<1x16x16xf32> to vector<16x16xf32>
    %cst_739 = arith.constant dense<0.000000e+00> : vector<16x16xf32>
    %1139 = tpu.matmul %1136, %1138, %cst_739 {dimension_numbers = #tpu.dot_dimension_numbers<[1], [0], [0], [1], [0, 0, 1, 1], [], []>} : vector<16x16xf32>, vector<16x16xf32>, vector<16x16xf32> -> vector<16x16xf32>
    %1140 = arith.addf %1135, %1139 : vector<16x16xf32>
    %1141 = vector.extract_strided_slice %1134 {offsets = [1, 0], sizes = [16, 16], strides = [1, 1]} : vector<18x64xf32> to vector<16x16xf32>
    %c1_740 = arith.constant 1 : index
    %c0_741 = arith.constant 0 : index
    %c0_742 = arith.constant 0 : index
    %1142 = vector.load %arg31[%c1_740, %c0_741, %c0_742] : memref<3x16x16xf32, #tpu.memory_space<vmem>>, vector<1x16x16xf32>
    %1143 = vector.shape_cast %1142 : vector<1x16x16xf32> to vector<16x16xf32>
    %cst_743 = arith.constant dense<0.000000e+00> : vector<16x16xf32>
    %1144 = tpu.matmul %1141, %1143, %cst_743 {dimension_numbers = #tpu.dot_dimension_numbers<[1], [0], [0], [1], [0, 0, 1, 1], [], []>} : vector<16x16xf32>, vector<16x16xf32>, vector<16x16xf32> -> vector<16x16xf32>
    %1145 = arith.addf %1140, %1144 : vector<16x16xf32>
    %1146 = vector.extract_strided_slice %1134 {offsets = [2, 0], sizes = [16, 16], strides = [1, 1]} : vector<18x64xf32> to vector<16x16xf32>
    %c2_744 = arith.constant 2 : index
    %c0_745 = arith.constant 0 : index
    %c0_746 = arith.constant 0 : index
    %1147 = vector.load %arg31[%c2_744, %c0_745, %c0_746] : memref<3x16x16xf32, #tpu.memory_space<vmem>>, vector<1x16x16xf32>
    %1148 = vector.shape_cast %1147 : vector<1x16x16xf32> to vector<16x16xf32>
    %cst_747 = arith.constant dense<0.000000e+00> : vector<16x16xf32>
    %1149 = tpu.matmul %1146, %1148, %cst_747 {dimension_numbers = #tpu.dot_dimension_numbers<[1], [0], [0], [1], [0, 0, 1, 1], [], []>} : vector<16x16xf32>, vector<16x16xf32>, vector<16x16xf32> -> vector<16x16xf32>
    %1150 = arith.addf %1145, %1149 : vector<16x16xf32>
    %cst_748 = arith.constant 0.000000e+00 : f32
    %1151 = vector.broadcast %cst_748 : f32 to vector<1x16xf32>
    %c0_749 = arith.constant 0 : index
    %c0_750 = arith.constant 0 : index
    %c0_751 = arith.constant 0 : index
    %1152 = vector.load %arg41[%c0_749, %c0_750, %c0_751] : memref<2x18x64xf32, #tpu.memory_space<vmem>>, vector<1x1x16xf32>
    %1153 = vector.shape_cast %1152 : vector<1x1x16xf32> to vector<1x16xf32>
    %1154 = vector.shape_cast %1151 : vector<1x16xf32> to vector<1x1x16xf32>
    tpu.vector_store %arg41[%c0_749, %c0_750, %c0_751], %1154 {strides = array<i32>} : memref<2x18x64xf32, #tpu.memory_space<vmem>>, vector<1x1x16xf32>,
    %c0_752 = arith.constant 0 : index
    %c17_753 = arith.constant 17 : index
    %c0_754 = arith.constant 0 : index
    %1155 = vector.load %arg41[%c0_752, %c17_753, %c0_754] : memref<2x18x64xf32, #tpu.memory_space<vmem>>, vector<1x1x16xf32>
    %1156 = vector.shape_cast %1155 : vector<1x1x16xf32> to vector<1x16xf32>
    %1157 = vector.shape_cast %1151 : vector<1x16xf32> to vector<1x1x16xf32>
    tpu.vector_store %arg41[%c0_752, %c17_753, %c0_754], %1157 {strides = array<i32>} : memref<2x18x64xf32, #tpu.memory_space<vmem>>, vector<1x1x16xf32>,
    %c0_755 = arith.constant 0 : index
    %c1_756 = arith.constant 1 : index
    %c0_757 = arith.constant 0 : index
    %1158 = vector.load %arg41[%c0_755, %c1_756, %c0_757] : memref<2x18x64xf32, #tpu.memory_space<vmem>>, vector<1x16x16xf32>
    %1159 = vector.shape_cast %1158 : vector<1x16x16xf32> to vector<16x16xf32>
    %1160 = vector.shape_cast %202 : vector<16x16xf32> to vector<1x16x16xf32>
    tpu.vector_store %arg41[%c0_755, %c1_756, %c0_757], %1160 {strides = array<i32>} : memref<2x18x64xf32, #tpu.memory_space<vmem>>, vector<1x16x16xf32>,
    %c0_758 = arith.constant 0 : index
    %c0_759 = arith.constant 0 : index
    %c0_760 = arith.constant 0 : index
    %1161 = vector.load %arg41[%c0_758, %c0_759, %c0_760] : memref<2x18x64xf32, #tpu.memory_space<vmem>>, vector<1x18x64xf32>
    %1162 = vector.shape_cast %1161 : vector<1x18x64xf32> to vector<18x64xf32>
    %1163 = vector.extract_strided_slice %1162 {offsets = [0, 0], sizes = [16, 16], strides = [1, 1]} : vector<18x64xf32> to vector<16x16xf32>
    %c0_761 = arith.constant 0 : index
    %c0_762 = arith.constant 0 : index
    %c0_763 = arith.constant 0 : index
    %1164 = vector.load %arg32[%c0_761, %c0_762, %c0_763] : memref<3x16x16xf32, #tpu.memory_space<vmem>>, vector<1x16x16xf32>
    %1165 = vector.shape_cast %1164 : vector<1x16x16xf32> to vector<16x16xf32>
    %cst_764 = arith.constant dense<0.000000e+00> : vector<16x16xf32>
    %1166 = tpu.matmul %1163, %1165, %cst_764 {dimension_numbers = #tpu.dot_dimension_numbers<[1], [0], [0], [1], [0, 0, 1, 1], [], []>} : vector<16x16xf32>, vector<16x16xf32>, vector<16x16xf32> -> vector<16x16xf32>
    %1167 = arith.addf %1150, %1166 : vector<16x16xf32>
    %1168 = vector.extract_strided_slice %1162 {offsets = [1, 0], sizes = [16, 16], strides = [1, 1]} : vector<18x64xf32> to vector<16x16xf32>
    %c1_765 = arith.constant 1 : index
    %c0_766 = arith.constant 0 : index
    %c0_767 = arith.constant 0 : index
    %1169 = vector.load %arg32[%c1_765, %c0_766, %c0_767] : memref<3x16x16xf32, #tpu.memory_space<vmem>>, vector<1x16x16xf32>
    %1170 = vector.shape_cast %1169 : vector<1x16x16xf32> to vector<16x16xf32>
    %cst_768 = arith.constant dense<0.000000e+00> : vector<16x16xf32>
    %1171 = tpu.matmul %1168, %1170, %cst_768 {dimension_numbers = #tpu.dot_dimension_numbers<[1], [0], [0], [1], [0, 0, 1, 1], [], []>} : vector<16x16xf32>, vector<16x16xf32>, vector<16x16xf32> -> vector<16x16xf32>
    %1172 = arith.addf %1167, %1171 : vector<16x16xf32>
    %1173 = vector.extract_strided_slice %1162 {offsets = [2, 0], sizes = [16, 16], strides = [1, 1]} : vector<18x64xf32> to vector<16x16xf32>
    %c2_769 = arith.constant 2 : index
    %c0_770 = arith.constant 0 : index
    %c0_771 = arith.constant 0 : index
    %1174 = vector.load %arg32[%c2_769, %c0_770, %c0_771] : memref<3x16x16xf32, #tpu.memory_space<vmem>>, vector<1x16x16xf32>
    %1175 = vector.shape_cast %1174 : vector<1x16x16xf32> to vector<16x16xf32>
    %cst_772 = arith.constant dense<0.000000e+00> : vector<16x16xf32>
    %1176 = tpu.matmul %1173, %1175, %cst_772 {dimension_numbers = #tpu.dot_dimension_numbers<[1], [0], [0], [1], [0, 0, 1, 1], [], []>} : vector<16x16xf32>, vector<16x16xf32>, vector<16x16xf32> -> vector<16x16xf32>
    %1177 = arith.addf %1172, %1176 : vector<16x16xf32>
    %cst_773 = arith.constant 0.000000e+00 : f32
    %1178 = vector.broadcast %cst_773 : f32 to vector<1x16xf32>
    %c1_774 = arith.constant 1 : index
    %c0_775 = arith.constant 0 : index
    %c0_776 = arith.constant 0 : index
    %1179 = vector.load %arg41[%c1_774, %c0_775, %c0_776] : memref<2x18x64xf32, #tpu.memory_space<vmem>>, vector<1x1x16xf32>
    %1180 = vector.shape_cast %1179 : vector<1x1x16xf32> to vector<1x16xf32>
    %1181 = vector.shape_cast %1178 : vector<1x16xf32> to vector<1x1x16xf32>
    tpu.vector_store %arg41[%c1_774, %c0_775, %c0_776], %1181 {strides = array<i32>} : memref<2x18x64xf32, #tpu.memory_space<vmem>>, vector<1x1x16xf32>,
    %c1_777 = arith.constant 1 : index
    %c17_778 = arith.constant 17 : index
    %c0_779 = arith.constant 0 : index
    %1182 = vector.load %arg41[%c1_777, %c17_778, %c0_779] : memref<2x18x64xf32, #tpu.memory_space<vmem>>, vector<1x1x16xf32>
    %1183 = vector.shape_cast %1182 : vector<1x1x16xf32> to vector<1x16xf32>
    %1184 = vector.shape_cast %1178 : vector<1x16xf32> to vector<1x1x16xf32>
    tpu.vector_store %arg41[%c1_777, %c17_778, %c0_779], %1184 {strides = array<i32>} : memref<2x18x64xf32, #tpu.memory_space<vmem>>, vector<1x1x16xf32>,
    %1185 = vector.extract_strided_slice %1055 {offsets = [0, 0], sizes = [1, 16], strides = [1, 1]} : vector<8x16xf32> to vector<1x16xf32>
    %c1_780 = arith.constant 1 : index
    %c1_781 = arith.constant 1 : index
    %c0_782 = arith.constant 0 : index
    %1186 = vector.load %arg41[%c1_780, %c1_781, %c0_782] : memref<2x18x64xf32, #tpu.memory_space<vmem>>, vector<1x1x16xf32>
    %1187 = vector.shape_cast %1186 : vector<1x1x16xf32> to vector<1x16xf32>
    %1188 = vector.shape_cast %1185 : vector<1x16xf32> to vector<1x1x16xf32>
    tpu.vector_store %arg41[%c1_780, %c1_781, %c0_782], %1188 {strides = array<i32>} : memref<2x18x64xf32, #tpu.memory_space<vmem>>, vector<1x1x16xf32>,
    %1189 = vector.extract_strided_slice %1061 {offsets = [0, 0], sizes = [1, 16], strides = [1, 1]} : vector<8x16xf32> to vector<1x16xf32>
    %c1_783 = arith.constant 1 : index
    %c2_784 = arith.constant 2 : index
    %c0_785 = arith.constant 0 : index
    %1190 = vector.load %arg41[%c1_783, %c2_784, %c0_785] : memref<2x18x64xf32, #tpu.memory_space<vmem>>, vector<1x1x16xf32>
    %1191 = vector.shape_cast %1190 : vector<1x1x16xf32> to vector<1x16xf32>
    %1192 = vector.shape_cast %1189 : vector<1x16xf32> to vector<1x1x16xf32>
    tpu.vector_store %arg41[%c1_783, %c2_784, %c0_785], %1192 {strides = array<i32>} : memref<2x18x64xf32, #tpu.memory_space<vmem>>, vector<1x1x16xf32>,
    %1193 = vector.extract_strided_slice %1055 {offsets = [1, 0], sizes = [1, 16], strides = [1, 1]} : vector<8x16xf32> to vector<1x16xf32>
    %c1_786 = arith.constant 1 : index
    %c3_787 = arith.constant 3 : index
    %c0_788 = arith.constant 0 : index
    %1194 = vector.load %arg41[%c1_786, %c3_787, %c0_788] : memref<2x18x64xf32, #tpu.memory_space<vmem>>, vector<1x1x16xf32>
    %1195 = vector.shape_cast %1194 : vector<1x1x16xf32> to vector<1x16xf32>
    %1196 = vector.shape_cast %1193 : vector<1x16xf32> to vector<1x1x16xf32>
    tpu.vector_store %arg41[%c1_786, %c3_787, %c0_788], %1196 {strides = array<i32>} : memref<2x18x64xf32, #tpu.memory_space<vmem>>, vector<1x1x16xf32>,
    %1197 = vector.extract_strided_slice %1061 {offsets = [1, 0], sizes = [1, 16], strides = [1, 1]} : vector<8x16xf32> to vector<1x16xf32>
    %c1_789 = arith.constant 1 : index
    %c4_790 = arith.constant 4 : index
    %c0_791 = arith.constant 0 : index
    %1198 = vector.load %arg41[%c1_789, %c4_790, %c0_791] : memref<2x18x64xf32, #tpu.memory_space<vmem>>, vector<1x1x16xf32>
    %1199 = vector.shape_cast %1198 : vector<1x1x16xf32> to vector<1x16xf32>
    %1200 = vector.shape_cast %1197 : vector<1x16xf32> to vector<1x1x16xf32>
    tpu.vector_store %arg41[%c1_789, %c4_790, %c0_791], %1200 {strides = array<i32>} : memref<2x18x64xf32, #tpu.memory_space<vmem>>, vector<1x1x16xf32>,
    %1201 = vector.extract_strided_slice %1055 {offsets = [2, 0], sizes = [1, 16], strides = [1, 1]} : vector<8x16xf32> to vector<1x16xf32>
    %c1_792 = arith.constant 1 : index
    %c5_793 = arith.constant 5 : index
    %c0_794 = arith.constant 0 : index
    %1202 = vector.load %arg41[%c1_792, %c5_793, %c0_794] : memref<2x18x64xf32, #tpu.memory_space<vmem>>, vector<1x1x16xf32>
    %1203 = vector.shape_cast %1202 : vector<1x1x16xf32> to vector<1x16xf32>
    %1204 = vector.shape_cast %1201 : vector<1x16xf32> to vector<1x1x16xf32>
    tpu.vector_store %arg41[%c1_792, %c5_793, %c0_794], %1204 {strides = array<i32>} : memref<2x18x64xf32, #tpu.memory_space<vmem>>, vector<1x1x16xf32>,
    %1205 = vector.extract_strided_slice %1061 {offsets = [2, 0], sizes = [1, 16], strides = [1, 1]} : vector<8x16xf32> to vector<1x16xf32>
    %c1_795 = arith.constant 1 : index
    %c6_796 = arith.constant 6 : index
    %c0_797 = arith.constant 0 : index
    %1206 = vector.load %arg41[%c1_795, %c6_796, %c0_797] : memref<2x18x64xf32, #tpu.memory_space<vmem>>, vector<1x1x16xf32>
    %1207 = vector.shape_cast %1206 : vector<1x1x16xf32> to vector<1x16xf32>
    %1208 = vector.shape_cast %1205 : vector<1x16xf32> to vector<1x1x16xf32>
    tpu.vector_store %arg41[%c1_795, %c6_796, %c0_797], %1208 {strides = array<i32>} : memref<2x18x64xf32, #tpu.memory_space<vmem>>, vector<1x1x16xf32>,
    %1209 = vector.extract_strided_slice %1055 {offsets = [3, 0], sizes = [1, 16], strides = [1, 1]} : vector<8x16xf32> to vector<1x16xf32>
    %c1_798 = arith.constant 1 : index
    %c7_799 = arith.constant 7 : index
    %c0_800 = arith.constant 0 : index
    %1210 = vector.load %arg41[%c1_798, %c7_799, %c0_800] : memref<2x18x64xf32, #tpu.memory_space<vmem>>, vector<1x1x16xf32>
    %1211 = vector.shape_cast %1210 : vector<1x1x16xf32> to vector<1x16xf32>
    %1212 = vector.shape_cast %1209 : vector<1x16xf32> to vector<1x1x16xf32>
    tpu.vector_store %arg41[%c1_798, %c7_799, %c0_800], %1212 {strides = array<i32>} : memref<2x18x64xf32, #tpu.memory_space<vmem>>, vector<1x1x16xf32>,
    %1213 = vector.extract_strided_slice %1061 {offsets = [3, 0], sizes = [1, 16], strides = [1, 1]} : vector<8x16xf32> to vector<1x16xf32>
    %c1_801 = arith.constant 1 : index
    %c8_802 = arith.constant 8 : index
    %c0_803 = arith.constant 0 : index
    %1214 = vector.load %arg41[%c1_801, %c8_802, %c0_803] : memref<2x18x64xf32, #tpu.memory_space<vmem>>, vector<1x1x16xf32>
    %1215 = vector.shape_cast %1214 : vector<1x1x16xf32> to vector<1x16xf32>
    %1216 = vector.shape_cast %1213 : vector<1x16xf32> to vector<1x1x16xf32>
    tpu.vector_store %arg41[%c1_801, %c8_802, %c0_803], %1216 {strides = array<i32>} : memref<2x18x64xf32, #tpu.memory_space<vmem>>, vector<1x1x16xf32>,
    %1217 = vector.extract_strided_slice %1055 {offsets = [4, 0], sizes = [1, 16], strides = [1, 1]} : vector<8x16xf32> to vector<1x16xf32>
    %c1_804 = arith.constant 1 : index
    %c9_805 = arith.constant 9 : index
    %c0_806 = arith.constant 0 : index
    %1218 = vector.load %arg41[%c1_804, %c9_805, %c0_806] : memref<2x18x64xf32, #tpu.memory_space<vmem>>, vector<1x1x16xf32>
    %1219 = vector.shape_cast %1218 : vector<1x1x16xf32> to vector<1x16xf32>
    %1220 = vector.shape_cast %1217 : vector<1x16xf32> to vector<1x1x16xf32>
    tpu.vector_store %arg41[%c1_804, %c9_805, %c0_806], %1220 {strides = array<i32>} : memref<2x18x64xf32, #tpu.memory_space<vmem>>, vector<1x1x16xf32>,
    %1221 = vector.extract_strided_slice %1061 {offsets = [4, 0], sizes = [1, 16], strides = [1, 1]} : vector<8x16xf32> to vector<1x16xf32>
    %c1_807 = arith.constant 1 : index
    %c10_808 = arith.constant 10 : index
    %c0_809 = arith.constant 0 : index
    %1222 = vector.load %arg41[%c1_807, %c10_808, %c0_809] : memref<2x18x64xf32, #tpu.memory_space<vmem>>, vector<1x1x16xf32>
    %1223 = vector.shape_cast %1222 : vector<1x1x16xf32> to vector<1x16xf32>
    %1224 = vector.shape_cast %1221 : vector<1x16xf32> to vector<1x1x16xf32>
    tpu.vector_store %arg41[%c1_807, %c10_808, %c0_809], %1224 {strides = array<i32>} : memref<2x18x64xf32, #tpu.memory_space<vmem>>, vector<1x1x16xf32>,
    %1225 = vector.extract_strided_slice %1055 {offsets = [5, 0], sizes = [1, 16], strides = [1, 1]} : vector<8x16xf32> to vector<1x16xf32>
    %c1_810 = arith.constant 1 : index
    %c11_811 = arith.constant 11 : index
    %c0_812 = arith.constant 0 : index
    %1226 = vector.load %arg41[%c1_810, %c11_811, %c0_812] : memref<2x18x64xf32, #tpu.memory_space<vmem>>, vector<1x1x16xf32>
    %1227 = vector.shape_cast %1226 : vector<1x1x16xf32> to vector<1x16xf32>
    %1228 = vector.shape_cast %1225 : vector<1x16xf32> to vector<1x1x16xf32>
    tpu.vector_store %arg41[%c1_810, %c11_811, %c0_812], %1228 {strides = array<i32>} : memref<2x18x64xf32, #tpu.memory_space<vmem>>, vector<1x1x16xf32>,
    %1229 = vector.extract_strided_slice %1061 {offsets = [5, 0], sizes = [1, 16], strides = [1, 1]} : vector<8x16xf32> to vector<1x16xf32>
    %c1_813 = arith.constant 1 : index
    %c12_814 = arith.constant 12 : index
    %c0_815 = arith.constant 0 : index
    %1230 = vector.load %arg41[%c1_813, %c12_814, %c0_815] : memref<2x18x64xf32, #tpu.memory_space<vmem>>, vector<1x1x16xf32>
    %1231 = vector.shape_cast %1230 : vector<1x1x16xf32> to vector<1x16xf32>
    %1232 = vector.shape_cast %1229 : vector<1x16xf32> to vector<1x1x16xf32>
    tpu.vector_store %arg41[%c1_813, %c12_814, %c0_815], %1232 {strides = array<i32>} : memref<2x18x64xf32, #tpu.memory_space<vmem>>, vector<1x1x16xf32>,
    %1233 = vector.extract_strided_slice %1055 {offsets = [6, 0], sizes = [1, 16], strides = [1, 1]} : vector<8x16xf32> to vector<1x16xf32>
    %c1_816 = arith.constant 1 : index
    %c13_817 = arith.constant 13 : index
    %c0_818 = arith.constant 0 : index
    %1234 = vector.load %arg41[%c1_816, %c13_817, %c0_818] : memref<2x18x64xf32, #tpu.memory_space<vmem>>, vector<1x1x16xf32>
    %1235 = vector.shape_cast %1234 : vector<1x1x16xf32> to vector<1x16xf32>
    %1236 = vector.shape_cast %1233 : vector<1x16xf32> to vector<1x1x16xf32>
    tpu.vector_store %arg41[%c1_816, %c13_817, %c0_818], %1236 {strides = array<i32>} : memref<2x18x64xf32, #tpu.memory_space<vmem>>, vector<1x1x16xf32>,
    %1237 = vector.extract_strided_slice %1061 {offsets = [6, 0], sizes = [1, 16], strides = [1, 1]} : vector<8x16xf32> to vector<1x16xf32>
    %c1_819 = arith.constant 1 : index
    %c14_820 = arith.constant 14 : index
    %c0_821 = arith.constant 0 : index
    %1238 = vector.load %arg41[%c1_819, %c14_820, %c0_821] : memref<2x18x64xf32, #tpu.memory_space<vmem>>, vector<1x1x16xf32>
    %1239 = vector.shape_cast %1238 : vector<1x1x16xf32> to vector<1x16xf32>
    %1240 = vector.shape_cast %1237 : vector<1x16xf32> to vector<1x1x16xf32>
    tpu.vector_store %arg41[%c1_819, %c14_820, %c0_821], %1240 {strides = array<i32>} : memref<2x18x64xf32, #tpu.memory_space<vmem>>, vector<1x1x16xf32>,
    %1241 = vector.extract_strided_slice %1055 {offsets = [7, 0], sizes = [1, 16], strides = [1, 1]} : vector<8x16xf32> to vector<1x16xf32>
    %c1_822 = arith.constant 1 : index
    %c15_823 = arith.constant 15 : index
    %c0_824 = arith.constant 0 : index
    %1242 = vector.load %arg41[%c1_822, %c15_823, %c0_824] : memref<2x18x64xf32, #tpu.memory_space<vmem>>, vector<1x1x16xf32>
    %1243 = vector.shape_cast %1242 : vector<1x1x16xf32> to vector<1x16xf32>
    %1244 = vector.shape_cast %1241 : vector<1x16xf32> to vector<1x1x16xf32>
    tpu.vector_store %arg41[%c1_822, %c15_823, %c0_824], %1244 {strides = array<i32>} : memref<2x18x64xf32, #tpu.memory_space<vmem>>, vector<1x1x16xf32>,
    %1245 = vector.extract_strided_slice %1061 {offsets = [7, 0], sizes = [1, 16], strides = [1, 1]} : vector<8x16xf32> to vector<1x16xf32>
    %c1_825 = arith.constant 1 : index
    %c16_826 = arith.constant 16 : index
    %c0_827 = arith.constant 0 : index
    %1246 = vector.load %arg41[%c1_825, %c16_826, %c0_827] : memref<2x18x64xf32, #tpu.memory_space<vmem>>, vector<1x1x16xf32>
    %1247 = vector.shape_cast %1246 : vector<1x1x16xf32> to vector<1x16xf32>
    %1248 = vector.shape_cast %1245 : vector<1x16xf32> to vector<1x1x16xf32>
    tpu.vector_store %arg41[%c1_825, %c16_826, %c0_827], %1248 {strides = array<i32>} : memref<2x18x64xf32, #tpu.memory_space<vmem>>, vector<1x1x16xf32>,
    %c1_828 = arith.constant 1 : index
    %c0_829 = arith.constant 0 : index
    %c0_830 = arith.constant 0 : index
    %1249 = vector.load %arg41[%c1_828, %c0_829, %c0_830] : memref<2x18x64xf32, #tpu.memory_space<vmem>>, vector<1x18x64xf32>
    %1250 = vector.shape_cast %1249 : vector<1x18x64xf32> to vector<18x64xf32>
    %cst_831 = arith.constant 0.000000e+00 : f32
    %1251 = vector.broadcast %cst_831 : f32 to vector<16x16xf32>
    %1252 = vector.extract_strided_slice %1250 {offsets = [0, 0], sizes = [16, 16], strides = [1, 1]} : vector<18x64xf32> to vector<16x16xf32>
    %c0_832 = arith.constant 0 : index
    %c0_833 = arith.constant 0 : index
    %c0_834 = arith.constant 0 : index
    %1253 = vector.load %arg31[%c0_832, %c0_833, %c0_834] : memref<3x16x16xf32, #tpu.memory_space<vmem>>, vector<1x16x16xf32>
    %1254 = vector.shape_cast %1253 : vector<1x16x16xf32> to vector<16x16xf32>
    %cst_835 = arith.constant dense<0.000000e+00> : vector<16x16xf32>
    %1255 = tpu.matmul %1252, %1254, %cst_835 {dimension_numbers = #tpu.dot_dimension_numbers<[1], [0], [0], [1], [0, 0, 1, 1], [], []>} : vector<16x16xf32>, vector<16x16xf32>, vector<16x16xf32> -> vector<16x16xf32>
    %1256 = arith.addf %1251, %1255 : vector<16x16xf32>
    %1257 = vector.extract_strided_slice %1250 {offsets = [1, 0], sizes = [16, 16], strides = [1, 1]} : vector<18x64xf32> to vector<16x16xf32>
    %c1_836 = arith.constant 1 : index
    %c0_837 = arith.constant 0 : index
    %c0_838 = arith.constant 0 : index
    %1258 = vector.load %arg31[%c1_836, %c0_837, %c0_838] : memref<3x16x16xf32, #tpu.memory_space<vmem>>, vector<1x16x16xf32>
    %1259 = vector.shape_cast %1258 : vector<1x16x16xf32> to vector<16x16xf32>
    %cst_839 = arith.constant dense<0.000000e+00> : vector<16x16xf32>
    %1260 = tpu.matmul %1257, %1259, %cst_839 {dimension_numbers = #tpu.dot_dimension_numbers<[1], [0], [0], [1], [0, 0, 1, 1], [], []>} : vector<16x16xf32>, vector<16x16xf32>, vector<16x16xf32> -> vector<16x16xf32>
    %1261 = arith.addf %1256, %1260 : vector<16x16xf32>
    %1262 = vector.extract_strided_slice %1250 {offsets = [2, 0], sizes = [16, 16], strides = [1, 1]} : vector<18x64xf32> to vector<16x16xf32>
    %c2_840 = arith.constant 2 : index
    %c0_841 = arith.constant 0 : index
    %c0_842 = arith.constant 0 : index
    %1263 = vector.load %arg31[%c2_840, %c0_841, %c0_842] : memref<3x16x16xf32, #tpu.memory_space<vmem>>, vector<1x16x16xf32>
    %1264 = vector.shape_cast %1263 : vector<1x16x16xf32> to vector<16x16xf32>
    %cst_843 = arith.constant dense<0.000000e+00> : vector<16x16xf32>
    %1265 = tpu.matmul %1262, %1264, %cst_843 {dimension_numbers = #tpu.dot_dimension_numbers<[1], [0], [0], [1], [0, 0, 1, 1], [], []>} : vector<16x16xf32>, vector<16x16xf32>, vector<16x16xf32> -> vector<16x16xf32>
    %1266 = arith.addf %1261, %1265 : vector<16x16xf32>
    %cst_844 = arith.constant 0.000000e+00 : f32
    %1267 = vector.broadcast %cst_844 : f32 to vector<1x16xf32>
    %c1_845 = arith.constant 1 : index
    %c0_846 = arith.constant 0 : index
    %c0_847 = arith.constant 0 : index
    %1268 = vector.load %arg41[%c1_845, %c0_846, %c0_847] : memref<2x18x64xf32, #tpu.memory_space<vmem>>, vector<1x1x16xf32>
    %1269 = vector.shape_cast %1268 : vector<1x1x16xf32> to vector<1x16xf32>
    %1270 = vector.shape_cast %1267 : vector<1x16xf32> to vector<1x1x16xf32>
    tpu.vector_store %arg41[%c1_845, %c0_846, %c0_847], %1270 {strides = array<i32>} : memref<2x18x64xf32, #tpu.memory_space<vmem>>, vector<1x1x16xf32>,
    %c1_848 = arith.constant 1 : index
    %c17_849 = arith.constant 17 : index
    %c0_850 = arith.constant 0 : index
    %1271 = vector.load %arg41[%c1_848, %c17_849, %c0_850] : memref<2x18x64xf32, #tpu.memory_space<vmem>>, vector<1x1x16xf32>
    %1272 = vector.shape_cast %1271 : vector<1x1x16xf32> to vector<1x16xf32>
    %1273 = vector.shape_cast %1267 : vector<1x16xf32> to vector<1x1x16xf32>
    tpu.vector_store %arg41[%c1_848, %c17_849, %c0_850], %1273 {strides = array<i32>} : memref<2x18x64xf32, #tpu.memory_space<vmem>>, vector<1x1x16xf32>,
    %c1_851 = arith.constant 1 : index
    %c1_852 = arith.constant 1 : index
    %c0_853 = arith.constant 0 : index
    %1274 = vector.load %arg41[%c1_851, %c1_852, %c0_853] : memref<2x18x64xf32, #tpu.memory_space<vmem>>, vector<1x16x16xf32>
    %1275 = vector.shape_cast %1274 : vector<1x16x16xf32> to vector<16x16xf32>
    %1276 = vector.shape_cast %207 : vector<16x16xf32> to vector<1x16x16xf32>
    tpu.vector_store %arg41[%c1_851, %c1_852, %c0_853], %1276 {strides = array<i32>} : memref<2x18x64xf32, #tpu.memory_space<vmem>>, vector<1x16x16xf32>,
    %c1_854 = arith.constant 1 : index
    %c0_855 = arith.constant 0 : index
    %c0_856 = arith.constant 0 : index
    %1277 = vector.load %arg41[%c1_854, %c0_855, %c0_856] : memref<2x18x64xf32, #tpu.memory_space<vmem>>, vector<1x18x64xf32>
    %1278 = vector.shape_cast %1277 : vector<1x18x64xf32> to vector<18x64xf32>
    %1279 = vector.extract_strided_slice %1278 {offsets = [0, 0], sizes = [16, 16], strides = [1, 1]} : vector<18x64xf32> to vector<16x16xf32>
    %c0_857 = arith.constant 0 : index
    %c0_858 = arith.constant 0 : index
    %c0_859 = arith.constant 0 : index
    %1280 = vector.load %arg32[%c0_857, %c0_858, %c0_859] : memref<3x16x16xf32, #tpu.memory_space<vmem>>, vector<1x16x16xf32>
    %1281 = vector.shape_cast %1280 : vector<1x16x16xf32> to vector<16x16xf32>
    %cst_860 = arith.constant dense<0.000000e+00> : vector<16x16xf32>
    %1282 = tpu.matmul %1279, %1281, %cst_860 {dimension_numbers = #tpu.dot_dimension_numbers<[1], [0], [0], [1], [0, 0, 1, 1], [], []>} : vector<16x16xf32>, vector<16x16xf32>, vector<16x16xf32> -> vector<16x16xf32>
    %1283 = arith.addf %1266, %1282 : vector<16x16xf32>
    %1284 = vector.extract_strided_slice %1278 {offsets = [1, 0], sizes = [16, 16], strides = [1, 1]} : vector<18x64xf32> to vector<16x16xf32>
    %c1_861 = arith.constant 1 : index
    %c0_862 = arith.constant 0 : index
    %c0_863 = arith.constant 0 : index
    %1285 = vector.load %arg32[%c1_861, %c0_862, %c0_863] : memref<3x16x16xf32, #tpu.memory_space<vmem>>, vector<1x16x16xf32>
    %1286 = vector.shape_cast %1285 : vector<1x16x16xf32> to vector<16x16xf32>
    %cst_864 = arith.constant dense<0.000000e+00> : vector<16x16xf32>
    %1287 = tpu.matmul %1284, %1286, %cst_864 {dimension_numbers = #tpu.dot_dimension_numbers<[1], [0], [0], [1], [0, 0, 1, 1], [], []>} : vector<16x16xf32>, vector<16x16xf32>, vector<16x16xf32> -> vector<16x16xf32>
    %1288 = arith.addf %1283, %1287 : vector<16x16xf32>
    %1289 = vector.extract_strided_slice %1278 {offsets = [2, 0], sizes = [16, 16], strides = [1, 1]} : vector<18x64xf32> to vector<16x16xf32>
    %c2_865 = arith.constant 2 : index
    %c0_866 = arith.constant 0 : index
    %c0_867 = arith.constant 0 : index
    %1290 = vector.load %arg32[%c2_865, %c0_866, %c0_867] : memref<3x16x16xf32, #tpu.memory_space<vmem>>, vector<1x16x16xf32>
    %1291 = vector.shape_cast %1290 : vector<1x16x16xf32> to vector<16x16xf32>
    %cst_868 = arith.constant dense<0.000000e+00> : vector<16x16xf32>
    %1292 = tpu.matmul %1289, %1291, %cst_868 {dimension_numbers = #tpu.dot_dimension_numbers<[1], [0], [0], [1], [0, 0, 1, 1], [], []>} : vector<16x16xf32>, vector<16x16xf32>, vector<16x16xf32> -> vector<16x16xf32>
    %1293 = arith.addf %1288, %1292 : vector<16x16xf32>
    %cst_869 = arith.constant dense<0.000000e+00> : vector<16xf32>
    %1294 = vector.multi_reduction <add>, %1177, %cst_869 [0] : vector<16x16xf32> to vector<16xf32>
    %1295 = vector.shape_cast %1294 : vector<16xf32> to vector<1x16xf32>
    %cst_870 = arith.constant 0.000000e+00 : f32
    %1296 = vector.broadcast %cst_870 : f32 to vector<1x16xf32>
    %1297 = arith.addf %1296, %1295 : vector<1x16xf32>
    %cst_871 = arith.constant dense<0.000000e+00> : vector<16xf32>
    %1298 = vector.multi_reduction <add>, %1293, %cst_871 [0] : vector<16x16xf32> to vector<16xf32>
    %1299 = vector.shape_cast %1298 : vector<16xf32> to vector<1x16xf32>
    %1300 = arith.addf %1297, %1299 : vector<1x16xf32>
    %1301 = arith.mulf %1177, %1177 : vector<16x16xf32>
    %cst_872 = arith.constant dense<0.000000e+00> : vector<16xf32>
    %1302 = vector.multi_reduction <add>, %1301, %cst_872 [0] : vector<16x16xf32> to vector<16xf32>
    %1303 = vector.shape_cast %1302 : vector<16xf32> to vector<1x16xf32>
    %cst_873 = arith.constant 0.000000e+00 : f32
    %1304 = vector.broadcast %cst_873 : f32 to vector<1x16xf32>
    %1305 = arith.addf %1304, %1303 : vector<1x16xf32>
    %1306 = arith.mulf %1293, %1293 : vector<16x16xf32>
    %cst_874 = arith.constant dense<0.000000e+00> : vector<16xf32>
    %1307 = vector.multi_reduction <add>, %1306, %cst_874 [0] : vector<16x16xf32> to vector<16xf32>
    %1308 = vector.shape_cast %1307 : vector<16xf32> to vector<1x16xf32>
    %1309 = arith.addf %1305, %1308 : vector<1x16xf32>
    %cst_875 = arith.constant 3.200000e+01 : f32
    %1310 = vector.broadcast %cst_875 : f32 to vector<1x16xf32>
    %1311 = arith.divf %1300, %1310 : vector<1x16xf32>
    %cst_876 = arith.constant 3.200000e+01 : f32
    %1312 = vector.broadcast %cst_876 : f32 to vector<1x16xf32>
    %1313 = arith.divf %1309, %1312 : vector<1x16xf32>
    %1314 = arith.mulf %1311, %1311 : vector<1x16xf32>
    %1315 = arith.subf %1313, %1314 : vector<1x16xf32>
    %c0_877 = arith.constant 0 : index
    %c0_878 = arith.constant 0 : index
    %1316 = vector.load %arg33[%c0_877, %c0_878] : memref<1x16xf32, #tpu.memory_space<vmem>>, vector<1x16xf32>
    %cst_879 = arith.constant 9.99999974E-6 : f32
    %1317 = vector.broadcast %cst_879 : f32 to vector<1x16xf32>
    %1318 = arith.addf %1315, %1317 : vector<1x16xf32>
    %1319 = math.rsqrt %1318 : vector<1x16xf32>
    %1320 = arith.mulf %1316, %1319 : vector<1x16xf32>
    %c0_880 = arith.constant 0 : index
    %c0_881 = arith.constant 0 : index
    %1321 = vector.load %arg34[%c0_880, %c0_881] : memref<1x16xf32, #tpu.memory_space<vmem>>, vector<1x16xf32>
    %1322 = arith.mulf %1311, %1320 : vector<1x16xf32>
    %1323 = arith.subf %1321, %1322 : vector<1x16xf32>
    %1324 = vector.broadcast %1320 : vector<1x16xf32> to vector<16x16xf32>
    %1325 = arith.mulf %1177, %1324 : vector<16x16xf32>
    %1326 = vector.broadcast %1323 : vector<1x16xf32> to vector<16x16xf32>
    %1327 = arith.addf %1325, %1326 : vector<16x16xf32>
    %1328 = math.tanh %1327 : vector<16x16xf32>
    %1329 = vector.broadcast %1320 : vector<1x16xf32> to vector<16x16xf32>
    %1330 = arith.mulf %1293, %1329 : vector<16x16xf32>
    %1331 = vector.broadcast %1323 : vector<1x16xf32> to vector<16x16xf32>
    %1332 = arith.addf %1330, %1331 : vector<16x16xf32>
    %1333 = math.tanh %1332 : vector<16x16xf32>
    %cst_882 = arith.constant 0.000000e+00 : f32
    %1334 = vector.broadcast %cst_882 : f32 to vector<1x16xf32>
    %c0_883 = arith.constant 0 : index
    %c0_884 = arith.constant 0 : index
    %c0_885 = arith.constant 0 : index
    %1335 = vector.load %arg41[%c0_883, %c0_884, %c0_885] : memref<2x18x64xf32, #tpu.memory_space<vmem>>, vector<1x1x16xf32>
    %1336 = vector.shape_cast %1335 : vector<1x1x16xf32> to vector<1x16xf32>
    %1337 = vector.shape_cast %1334 : vector<1x16xf32> to vector<1x1x16xf32>
    tpu.vector_store %arg41[%c0_883, %c0_884, %c0_885], %1337 {strides = array<i32>} : memref<2x18x64xf32, #tpu.memory_space<vmem>>, vector<1x1x16xf32>,
    %c0_886 = arith.constant 0 : index
    %c17_887 = arith.constant 17 : index
    %c0_888 = arith.constant 0 : index
    %1338 = vector.load %arg41[%c0_886, %c17_887, %c0_888] : memref<2x18x64xf32, #tpu.memory_space<vmem>>, vector<1x1x16xf32>
    %1339 = vector.shape_cast %1338 : vector<1x1x16xf32> to vector<1x16xf32>
    %1340 = vector.shape_cast %1334 : vector<1x16xf32> to vector<1x1x16xf32>
    tpu.vector_store %arg41[%c0_886, %c17_887, %c0_888], %1340 {strides = array<i32>} : memref<2x18x64xf32, #tpu.memory_space<vmem>>, vector<1x1x16xf32>,
    %c0_889 = arith.constant 0 : index
    %c1_890 = arith.constant 1 : index
    %c0_891 = arith.constant 0 : index
    %1341 = vector.load %arg41[%c0_889, %c1_890, %c0_891] : memref<2x18x64xf32, #tpu.memory_space<vmem>>, vector<1x16x16xf32>
    %1342 = vector.shape_cast %1341 : vector<1x16x16xf32> to vector<16x16xf32>
    %1343 = vector.shape_cast %1328 : vector<16x16xf32> to vector<1x16x16xf32>
    tpu.vector_store %arg41[%c0_889, %c1_890, %c0_891], %1343 {strides = array<i32>} : memref<2x18x64xf32, #tpu.memory_space<vmem>>, vector<1x16x16xf32>,
    %c0_892 = arith.constant 0 : index
    %c0_893 = arith.constant 0 : index
    %c0_894 = arith.constant 0 : index
    %1344 = vector.load %arg41[%c0_892, %c0_893, %c0_894] : memref<2x18x64xf32, #tpu.memory_space<vmem>>, vector<1x18x64xf32>
    %1345 = vector.shape_cast %1344 : vector<1x18x64xf32> to vector<18x64xf32>
    %cst_895 = arith.constant 0.000000e+00 : f32
    %1346 = vector.broadcast %cst_895 : f32 to vector<16x16xf32>
    %1347 = vector.extract_strided_slice %1345 {offsets = [0, 0], sizes = [16, 16], strides = [1, 1]} : vector<18x64xf32> to vector<16x16xf32>
    %c0_896 = arith.constant 0 : index
    %c0_897 = arith.constant 0 : index
    %c0_898 = arith.constant 0 : index
    %1348 = vector.load %arg35[%c0_896, %c0_897, %c0_898] : memref<3x16x16xf32, #tpu.memory_space<vmem>>, vector<1x16x16xf32>
    %1349 = vector.shape_cast %1348 : vector<1x16x16xf32> to vector<16x16xf32>
    %cst_899 = arith.constant dense<0.000000e+00> : vector<16x16xf32>
    %1350 = tpu.matmul %1347, %1349, %cst_899 {dimension_numbers = #tpu.dot_dimension_numbers<[1], [0], [0], [1], [0, 0, 1, 1], [], []>} : vector<16x16xf32>, vector<16x16xf32>, vector<16x16xf32> -> vector<16x16xf32>
    %1351 = arith.addf %1346, %1350 : vector<16x16xf32>
    %1352 = vector.extract_strided_slice %1345 {offsets = [1, 0], sizes = [16, 16], strides = [1, 1]} : vector<18x64xf32> to vector<16x16xf32>
    %c1_900 = arith.constant 1 : index
    %c0_901 = arith.constant 0 : index
    %c0_902 = arith.constant 0 : index
    %1353 = vector.load %arg35[%c1_900, %c0_901, %c0_902] : memref<3x16x16xf32, #tpu.memory_space<vmem>>, vector<1x16x16xf32>
    %1354 = vector.shape_cast %1353 : vector<1x16x16xf32> to vector<16x16xf32>
    %cst_903 = arith.constant dense<0.000000e+00> : vector<16x16xf32>
    %1355 = tpu.matmul %1352, %1354, %cst_903 {dimension_numbers = #tpu.dot_dimension_numbers<[1], [0], [0], [1], [0, 0, 1, 1], [], []>} : vector<16x16xf32>, vector<16x16xf32>, vector<16x16xf32> -> vector<16x16xf32>
    %1356 = arith.addf %1351, %1355 : vector<16x16xf32>
    %1357 = vector.extract_strided_slice %1345 {offsets = [2, 0], sizes = [16, 16], strides = [1, 1]} : vector<18x64xf32> to vector<16x16xf32>
    %c2_904 = arith.constant 2 : index
    %c0_905 = arith.constant 0 : index
    %c0_906 = arith.constant 0 : index
    %1358 = vector.load %arg35[%c2_904, %c0_905, %c0_906] : memref<3x16x16xf32, #tpu.memory_space<vmem>>, vector<1x16x16xf32>
    %1359 = vector.shape_cast %1358 : vector<1x16x16xf32> to vector<16x16xf32>
    %cst_907 = arith.constant dense<0.000000e+00> : vector<16x16xf32>
    %1360 = tpu.matmul %1357, %1359, %cst_907 {dimension_numbers = #tpu.dot_dimension_numbers<[1], [0], [0], [1], [0, 0, 1, 1], [], []>} : vector<16x16xf32>, vector<16x16xf32>, vector<16x16xf32> -> vector<16x16xf32>
    %1361 = arith.addf %1356, %1360 : vector<16x16xf32>
    %cst_908 = arith.constant 0.000000e+00 : f32
    %1362 = vector.broadcast %cst_908 : f32 to vector<1x16xf32>
    %c1_909 = arith.constant 1 : index
    %c0_910 = arith.constant 0 : index
    %c0_911 = arith.constant 0 : index
    %1363 = vector.load %arg41[%c1_909, %c0_910, %c0_911] : memref<2x18x64xf32, #tpu.memory_space<vmem>>, vector<1x1x16xf32>
    %1364 = vector.shape_cast %1363 : vector<1x1x16xf32> to vector<1x16xf32>
    %1365 = vector.shape_cast %1362 : vector<1x16xf32> to vector<1x1x16xf32>
    tpu.vector_store %arg41[%c1_909, %c0_910, %c0_911], %1365 {strides = array<i32>} : memref<2x18x64xf32, #tpu.memory_space<vmem>>, vector<1x1x16xf32>,
    %c1_912 = arith.constant 1 : index
    %c17_913 = arith.constant 17 : index
    %c0_914 = arith.constant 0 : index
    %1366 = vector.load %arg41[%c1_912, %c17_913, %c0_914] : memref<2x18x64xf32, #tpu.memory_space<vmem>>, vector<1x1x16xf32>
    %1367 = vector.shape_cast %1366 : vector<1x1x16xf32> to vector<1x16xf32>
    %1368 = vector.shape_cast %1362 : vector<1x16xf32> to vector<1x1x16xf32>
    tpu.vector_store %arg41[%c1_912, %c17_913, %c0_914], %1368 {strides = array<i32>} : memref<2x18x64xf32, #tpu.memory_space<vmem>>, vector<1x1x16xf32>,
    %c1_915 = arith.constant 1 : index
    %c1_916 = arith.constant 1 : index
    %c0_917 = arith.constant 0 : index
    %1369 = vector.load %arg41[%c1_915, %c1_916, %c0_917] : memref<2x18x64xf32, #tpu.memory_space<vmem>>, vector<1x16x16xf32>
    %1370 = vector.shape_cast %1369 : vector<1x16x16xf32> to vector<16x16xf32>
    %1371 = vector.shape_cast %1333 : vector<16x16xf32> to vector<1x16x16xf32>
    tpu.vector_store %arg41[%c1_915, %c1_916, %c0_917], %1371 {strides = array<i32>} : memref<2x18x64xf32, #tpu.memory_space<vmem>>, vector<1x16x16xf32>,
    %c1_918 = arith.constant 1 : index
    %c0_919 = arith.constant 0 : index
    %c0_920 = arith.constant 0 : index
    %1372 = vector.load %arg41[%c1_918, %c0_919, %c0_920] : memref<2x18x64xf32, #tpu.memory_space<vmem>>, vector<1x18x64xf32>
    %1373 = vector.shape_cast %1372 : vector<1x18x64xf32> to vector<18x64xf32>
    %cst_921 = arith.constant 0.000000e+00 : f32
    %1374 = vector.broadcast %cst_921 : f32 to vector<16x16xf32>
    %1375 = vector.extract_strided_slice %1373 {offsets = [0, 0], sizes = [16, 16], strides = [1, 1]} : vector<18x64xf32> to vector<16x16xf32>
    %c0_922 = arith.constant 0 : index
    %c0_923 = arith.constant 0 : index
    %c0_924 = arith.constant 0 : index
    %1376 = vector.load %arg35[%c0_922, %c0_923, %c0_924] : memref<3x16x16xf32, #tpu.memory_space<vmem>>, vector<1x16x16xf32>
    %1377 = vector.shape_cast %1376 : vector<1x16x16xf32> to vector<16x16xf32>
    %cst_925 = arith.constant dense<0.000000e+00> : vector<16x16xf32>
    %1378 = tpu.matmul %1375, %1377, %cst_925 {dimension_numbers = #tpu.dot_dimension_numbers<[1], [0], [0], [1], [0, 0, 1, 1], [], []>} : vector<16x16xf32>, vector<16x16xf32>, vector<16x16xf32> -> vector<16x16xf32>
    %1379 = arith.addf %1374, %1378 : vector<16x16xf32>
    %1380 = vector.extract_strided_slice %1373 {offsets = [1, 0], sizes = [16, 16], strides = [1, 1]} : vector<18x64xf32> to vector<16x16xf32>
    %c1_926 = arith.constant 1 : index
    %c0_927 = arith.constant 0 : index
    %c0_928 = arith.constant 0 : index
    %1381 = vector.load %arg35[%c1_926, %c0_927, %c0_928] : memref<3x16x16xf32, #tpu.memory_space<vmem>>, vector<1x16x16xf32>
    %1382 = vector.shape_cast %1381 : vector<1x16x16xf32> to vector<16x16xf32>
    %cst_929 = arith.constant dense<0.000000e+00> : vector<16x16xf32>
    %1383 = tpu.matmul %1380, %1382, %cst_929 {dimension_numbers = #tpu.dot_dimension_numbers<[1], [0], [0], [1], [0, 0, 1, 1], [], []>} : vector<16x16xf32>, vector<16x16xf32>, vector<16x16xf32> -> vector<16x16xf32>
    %1384 = arith.addf %1379, %1383 : vector<16x16xf32>
    %1385 = vector.extract_strided_slice %1373 {offsets = [2, 0], sizes = [16, 16], strides = [1, 1]} : vector<18x64xf32> to vector<16x16xf32>
    %c2_930 = arith.constant 2 : index
    %c0_931 = arith.constant 0 : index
    %c0_932 = arith.constant 0 : index
    %1386 = vector.load %arg35[%c2_930, %c0_931, %c0_932] : memref<3x16x16xf32, #tpu.memory_space<vmem>>, vector<1x16x16xf32>
    %1387 = vector.shape_cast %1386 : vector<1x16x16xf32> to vector<16x16xf32>
    %cst_933 = arith.constant dense<0.000000e+00> : vector<16x16xf32>
    %1388 = tpu.matmul %1385, %1387, %cst_933 {dimension_numbers = #tpu.dot_dimension_numbers<[1], [0], [0], [1], [0, 0, 1, 1], [], []>} : vector<16x16xf32>, vector<16x16xf32>, vector<16x16xf32> -> vector<16x16xf32>
    %1389 = arith.addf %1384, %1388 : vector<16x16xf32>
    %cst_934 = arith.constant dense<0.000000e+00> : vector<16xf32>
    %1390 = vector.multi_reduction <add>, %1361, %cst_934 [0] : vector<16x16xf32> to vector<16xf32>
    %1391 = vector.shape_cast %1390 : vector<16xf32> to vector<1x16xf32>
    %cst_935 = arith.constant 0.000000e+00 : f32
    %1392 = vector.broadcast %cst_935 : f32 to vector<1x16xf32>
    %1393 = arith.addf %1392, %1391 : vector<1x16xf32>
    %cst_936 = arith.constant dense<0.000000e+00> : vector<16xf32>
    %1394 = vector.multi_reduction <add>, %1389, %cst_936 [0] : vector<16x16xf32> to vector<16xf32>
    %1395 = vector.shape_cast %1394 : vector<16xf32> to vector<1x16xf32>
    %1396 = arith.addf %1393, %1395 : vector<1x16xf32>
    %1397 = arith.mulf %1361, %1361 : vector<16x16xf32>
    %cst_937 = arith.constant dense<0.000000e+00> : vector<16xf32>
    %1398 = vector.multi_reduction <add>, %1397, %cst_937 [0] : vector<16x16xf32> to vector<16xf32>
    %1399 = vector.shape_cast %1398 : vector<16xf32> to vector<1x16xf32>
    %cst_938 = arith.constant 0.000000e+00 : f32
    %1400 = vector.broadcast %cst_938 : f32 to vector<1x16xf32>
    %1401 = arith.addf %1400, %1399 : vector<1x16xf32>
    %1402 = arith.mulf %1389, %1389 : vector<16x16xf32>
    %cst_939 = arith.constant dense<0.000000e+00> : vector<16xf32>
    %1403 = vector.multi_reduction <add>, %1402, %cst_939 [0] : vector<16x16xf32> to vector<16xf32>
    %1404 = vector.shape_cast %1403 : vector<16xf32> to vector<1x16xf32>
    %1405 = arith.addf %1401, %1404 : vector<1x16xf32>
    %cst_940 = arith.constant 3.200000e+01 : f32
    %1406 = vector.broadcast %cst_940 : f32 to vector<1x16xf32>
    %1407 = arith.divf %1396, %1406 : vector<1x16xf32>
    %cst_941 = arith.constant 3.200000e+01 : f32
    %1408 = vector.broadcast %cst_941 : f32 to vector<1x16xf32>
    %1409 = arith.divf %1405, %1408 : vector<1x16xf32>
    %1410 = arith.mulf %1407, %1407 : vector<1x16xf32>
    %1411 = arith.subf %1409, %1410 : vector<1x16xf32>
    %c0_942 = arith.constant 0 : index
    %c0_943 = arith.constant 0 : index
    %1412 = vector.load %arg36[%c0_942, %c0_943] : memref<1x16xf32, #tpu.memory_space<vmem>>, vector<1x16xf32>
    %cst_944 = arith.constant 9.99999974E-6 : f32
    %1413 = vector.broadcast %cst_944 : f32 to vector<1x16xf32>
    %1414 = arith.addf %1411, %1413 : vector<1x16xf32>
    %1415 = math.rsqrt %1414 : vector<1x16xf32>
    %1416 = arith.mulf %1412, %1415 : vector<1x16xf32>
    %c0_945 = arith.constant 0 : index
    %c0_946 = arith.constant 0 : index
    %1417 = vector.load %arg37[%c0_945, %c0_946] : memref<1x16xf32, #tpu.memory_space<vmem>>, vector<1x16xf32>
    %1418 = arith.mulf %1407, %1416 : vector<1x16xf32>
    %1419 = arith.subf %1417, %1418 : vector<1x16xf32>
    %1420 = vector.broadcast %1416 : vector<1x16xf32> to vector<16x16xf32>
    %1421 = arith.mulf %1361, %1420 : vector<16x16xf32>
    %1422 = vector.broadcast %1419 : vector<1x16xf32> to vector<16x16xf32>
    %1423 = arith.addf %1421, %1422 : vector<16x16xf32>
    %1424 = math.tanh %1423 : vector<16x16xf32>
    %1425 = vector.broadcast %1416 : vector<1x16xf32> to vector<16x16xf32>
    %1426 = arith.mulf %1389, %1425 : vector<16x16xf32>
    %1427 = vector.broadcast %1419 : vector<1x16xf32> to vector<16x16xf32>
    %1428 = arith.addf %1426, %1427 : vector<16x16xf32>
    %1429 = math.tanh %1428 : vector<16x16xf32>
    %c0_947 = arith.constant 0 : index
    %c0_948 = arith.constant 0 : index
    %1430 = vector.load %arg38[%c0_947, %c0_948] : memref<16x3xf32, #tpu.memory_space<vmem>>, vector<16x3xf32>
    %c0_949 = arith.constant 0 : index
    %c0_950 = arith.constant 0 : index
    %1431 = vector.load %arg39[%c0_949, %c0_950] : memref<1x3xf32, #tpu.memory_space<vmem>>, vector<1x3xf32>
    %cst_951 = arith.constant dense<0.000000e+00> : vector<16x3xf32>
    %1432 = tpu.matmul %1424, %1430, %cst_951 {dimension_numbers = #tpu.dot_dimension_numbers<[1], [0], [0], [1], [0, 0, 1, 1], [], []>} : vector<16x16xf32>, vector<16x3xf32>, vector<16x3xf32> -> vector<16x3xf32>
    %1433 = vector.broadcast %1431 : vector<1x3xf32> to vector<16x3xf32>
    %1434 = arith.addf %1432, %1433 : vector<16x3xf32>
    %c0_952 = arith.constant 0 : index
    %c0_953 = arith.constant 0 : index
    %c0_954 = arith.constant 0 : index
    %1435 = vector.load %arg40[%c0_952, %c0_953, %c0_954] : memref<2x16x3xf32, #tpu.memory_space<vmem>>, vector<1x16x3xf32>
    %1436 = vector.shape_cast %1435 : vector<1x16x3xf32> to vector<16x3xf32>
    %1437 = vector.shape_cast %1434 : vector<16x3xf32> to vector<1x16x3xf32>
    tpu.vector_store %arg40[%c0_952, %c0_953, %c0_954], %1437 {strides = array<i32>} : memref<2x16x3xf32, #tpu.memory_space<vmem>>, vector<1x16x3xf32>,
    %cst_955 = arith.constant dense<0.000000e+00> : vector<16x3xf32>
    %1438 = tpu.matmul %1429, %1430, %cst_955 {dimension_numbers = #tpu.dot_dimension_numbers<[1], [0], [0], [1], [0, 0, 1, 1], [], []>} : vector<16x16xf32>, vector<16x3xf32>, vector<16x3xf32> -> vector<16x3xf32>
    %1439 = vector.broadcast %1431 : vector<1x3xf32> to vector<16x3xf32>
    %1440 = arith.addf %1438, %1439 : vector<16x3xf32>
    %c1_956 = arith.constant 1 : index
    %c0_957 = arith.constant 0 : index
    %c0_958 = arith.constant 0 : index
    %1441 = vector.load %arg40[%c1_956, %c0_957, %c0_958] : memref<2x16x3xf32, #tpu.memory_space<vmem>>, vector<1x16x3xf32>
    %1442 = vector.shape_cast %1441 : vector<1x16x3xf32> to vector<16x3xf32>
    %1443 = vector.shape_cast %1440 : vector<16x3xf32> to vector<1x16x3xf32>
    tpu.vector_store %arg40[%c1_956, %c0_957, %c0_958], %1443 {strides = array<i32>} : memref<2x16x3xf32, #tpu.memory_space<vmem>>, vector<1x16x3xf32>,
    return
  }
  func.func @transform_0(%arg0: i32) -> (i32, i32, i32) {
    %c0_i32 = arith.constant 0 : i32
    %c0_i32_0 = arith.constant 0 : i32
    %c0_i32_1 = arith.constant 0 : i32
    %c0_i32_2 = arith.constant 0 : i32
    return %c0_i32, %c0_i32_0, %c0_i32_1 : i32, i32, i32
  }
  func.func @transform_1(%arg0: i32) -> (i32, i32, i32) {
    %c0_i32 = arith.constant 0 : i32
    %c0_i32_0 = arith.constant 0 : i32
    %c0_i32_1 = arith.constant 0 : i32
    %c0_i32_2 = arith.constant 0 : i32
    return %c0_i32, %c0_i32_0, %c0_i32_1 : i32, i32, i32
  }
  func.func @transform_2(%arg0: i32) -> (i32, i32) {
    %c0_i32 = arith.constant 0 : i32
    %c0_i32_0 = arith.constant 0 : i32
    %c0_i32_1 = arith.constant 0 : i32
    return %c0_i32, %c0_i32_0 : i32, i32
  }
  func.func @transform_3(%arg0: i32) -> (i32, i32) {
    %c0_i32 = arith.constant 0 : i32
    %c0_i32_0 = arith.constant 0 : i32
    %c0_i32_1 = arith.constant 0 : i32
    return %c0_i32, %c0_i32_0 : i32, i32
  }
  func.func @transform_4(%arg0: i32) -> (i32, i32, i32) {
    %c0_i32 = arith.constant 0 : i32
    %c0_i32_0 = arith.constant 0 : i32
    %c0_i32_1 = arith.constant 0 : i32
    %c0_i32_2 = arith.constant 0 : i32
    return %c0_i32, %c0_i32_0, %c0_i32_1 : i32, i32, i32
  }
  func.func @transform_5(%arg0: i32) -> (i32, i32) {
    %c0_i32 = arith.constant 0 : i32
    %c0_i32_0 = arith.constant 0 : i32
    %c0_i32_1 = arith.constant 0 : i32
    return %c0_i32, %c0_i32_0 : i32, i32
  }
  func.func @transform_6(%arg0: i32) -> (i32, i32) {
    %c0_i32 = arith.constant 0 : i32
    %c0_i32_0 = arith.constant 0 : i32
    %c0_i32_1 = arith.constant 0 : i32
    return %c0_i32, %c0_i32_0 : i32, i32
  }
  func.func @transform_7(%arg0: i32) -> (i32, i32, i32) {
    %c0_i32 = arith.constant 0 : i32
    %c0_i32_0 = arith.constant 0 : i32
    %c0_i32_1 = arith.constant 0 : i32
    %c0_i32_2 = arith.constant 0 : i32
    return %c0_i32, %c0_i32_0, %c0_i32_1 : i32, i32, i32
  }
  func.func @transform_8(%arg0: i32) -> (i32, i32) {
    %c0_i32 = arith.constant 0 : i32
    %c0_i32_0 = arith.constant 0 : i32
    %c0_i32_1 = arith.constant 0 : i32
    return %c0_i32, %c0_i32_0 : i32, i32
  }
  func.func @transform_9(%arg0: i32) -> (i32, i32) {
    %c0_i32 = arith.constant 0 : i32
    %c0_i32_0 = arith.constant 0 : i32
    %c0_i32_1 = arith.constant 0 : i32
    return %c0_i32, %c0_i32_0 : i32, i32
  }
  func.func @transform_10(%arg0: i32) -> (i32, i32, i32) {
    %c0_i32 = arith.constant 0 : i32
    %c0_i32_0 = arith.constant 0 : i32
    %c0_i32_1 = arith.constant 0 : i32
    %c0_i32_2 = arith.constant 0 : i32
    return %c0_i32, %c0_i32_0, %c0_i32_1 : i32, i32, i32
  }
  func.func @transform_11(%arg0: i32) -> (i32, i32) {
    %c0_i32 = arith.constant 0 : i32
    %c0_i32_0 = arith.constant 0 : i32
    %c0_i32_1 = arith.constant 0 : i32
    return %c0_i32, %c0_i32_0 : i32, i32
  }
  func.func @transform_12(%arg0: i32) -> (i32, i32) {
    %c0_i32 = arith.constant 0 : i32
    %c0_i32_0 = arith.constant 0 : i32
    %c0_i32_1 = arith.constant 0 : i32
    return %c0_i32, %c0_i32_0 : i32, i32
  }
  func.func @transform_13(%arg0: i32) -> (i32, i32, i32) {
    %c0_i32 = arith.constant 0 : i32
    %c0_i32_0 = arith.constant 0 : i32
    %c0_i32_1 = arith.constant 0 : i32
    %c0_i32_2 = arith.constant 0 : i32
    return %c0_i32, %c0_i32_0, %c0_i32_1 : i32, i32, i32
  }
  func.func @transform_14(%arg0: i32) -> (i32, i32) {
    %c0_i32 = arith.constant 0 : i32
    %c0_i32_0 = arith.constant 0 : i32
    %c0_i32_1 = arith.constant 0 : i32
    return %c0_i32, %c0_i32_0 : i32, i32
  }
  func.func @transform_15(%arg0: i32) -> (i32, i32) {
    %c0_i32 = arith.constant 0 : i32
    %c0_i32_0 = arith.constant 0 : i32
    %c0_i32_1 = arith.constant 0 : i32
    return %c0_i32, %c0_i32_0 : i32, i32
  }
  func.func @transform_16(%arg0: i32) -> (i32, i32, i32) {
    %c0_i32 = arith.constant 0 : i32
    %c0_i32_0 = arith.constant 0 : i32
    %c0_i32_1 = arith.constant 0 : i32
    %c0_i32_2 = arith.constant 0 : i32
    return %c0_i32, %c0_i32_0, %c0_i32_1 : i32, i32, i32
  }
  func.func @transform_17(%arg0: i32) -> (i32, i32) {
    %c0_i32 = arith.constant 0 : i32
    %c0_i32_0 = arith.constant 0 : i32
    %c0_i32_1 = arith.constant 0 : i32
    return %c0_i32, %c0_i32_0 : i32, i32
  }
  func.func @transform_18(%arg0: i32) -> (i32, i32) {
    %c0_i32 = arith.constant 0 : i32
    %c0_i32_0 = arith.constant 0 : i32
    %c0_i32_1 = arith.constant 0 : i32
    return %c0_i32, %c0_i32_0 : i32, i32
  }
  func.func @transform_19(%arg0: i32) -> (i32, i32, i32) {
    %c0_i32 = arith.constant 0 : i32
    %c0_i32_0 = arith.constant 0 : i32
    %c0_i32_1 = arith.constant 0 : i32
    %c0_i32_2 = arith.constant 0 : i32
    return %c0_i32, %c0_i32_0, %c0_i32_1 : i32, i32, i32
  }
  func.func @transform_20(%arg0: i32) -> (i32, i32) {
    %c0_i32 = arith.constant 0 : i32
    %c0_i32_0 = arith.constant 0 : i32
    %c0_i32_1 = arith.constant 0 : i32
    return %c0_i32, %c0_i32_0 : i32, i32
  }
  func.func @transform_21(%arg0: i32) -> (i32, i32, i32) {
    %c0_i32 = arith.constant 0 : i32
    %c0_i32_0 = arith.constant 0 : i32
    %c0_i32_1 = arith.constant 0 : i32
    %c0_i32_2 = arith.constant 0 : i32
    return %c0_i32, %c0_i32_0, %c0_i32_1 : i32, i32, i32
  }
  func.func @transform_22(%arg0: i32) -> (i32, i32, i32) {
    %c0_i32 = arith.constant 0 : i32
    %c0_i32_0 = arith.constant 0 : i32
    %c0_i32_1 = arith.constant 0 : i32
    %c0_i32_2 = arith.constant 0 : i32
    return %c0_i32, %c0_i32_0, %c0_i32_1 : i32, i32, i32
  }
  func.func @transform_23(%arg0: i32) -> (i32, i32) {
    %c0_i32 = arith.constant 0 : i32
    %c0_i32_0 = arith.constant 0 : i32
    %c0_i32_1 = arith.constant 0 : i32
    return %c0_i32, %c0_i32_0 : i32, i32
  }
  func.func @transform_24(%arg0: i32) -> (i32, i32) {
    %c0_i32 = arith.constant 0 : i32
    %c0_i32_0 = arith.constant 0 : i32
    %c0_i32_1 = arith.constant 0 : i32
    return %c0_i32, %c0_i32_0 : i32, i32
  }
  func.func @transform_25(%arg0: i32) -> (i32, i32, i32) {
    %c0_i32 = arith.constant 0 : i32
    %c0_i32_0 = arith.constant 0 : i32
    %c0_i32_1 = arith.constant 0 : i32
    %c0_i32_2 = arith.constant 0 : i32
    return %c0_i32, %c0_i32_0, %c0_i32_1 : i32, i32, i32
  }
  func.func @transform_26(%arg0: i32) -> (i32, i32) {
    %c0_i32 = arith.constant 0 : i32
    %c0_i32_0 = arith.constant 0 : i32
    %c0_i32_1 = arith.constant 0 : i32
    return %c0_i32, %c0_i32_0 : i32, i32
  }
  func.func @transform_27(%arg0: i32) -> (i32, i32) {
    %c0_i32 = arith.constant 0 : i32
    %c0_i32_0 = arith.constant 0 : i32
    %c0_i32_1 = arith.constant 0 : i32
    return %c0_i32, %c0_i32_0 : i32, i32
  }
  func.func @transform_28(%arg0: i32) -> (i32, i32, i32) {
    %c0_i32 = arith.constant 0 : i32
    %c0_i32_0 = arith.constant 0 : i32
    %c0_i32_1 = arith.constant 0 : i32
    %c0_i32_2 = arith.constant 0 : i32
    return %c0_i32, %c0_i32_0, %c0_i32_1 : i32, i32, i32
  }
  func.func @transform_29(%arg0: i32) -> (i32, i32) {
    %c0_i32 = arith.constant 0 : i32
    %c0_i32_0 = arith.constant 0 : i32
    %c0_i32_1 = arith.constant 0 : i32
    return %c0_i32, %c0_i32_0 : i32, i32
  }
  func.func @transform_30(%arg0: i32) -> (i32, i32, i32) {
    %c0_i32 = arith.constant 0 : i32
    %c0_i32_0 = arith.constant 0 : i32
    %c0_i32_1 = arith.constant 0 : i32
    %c0_i32_2 = arith.constant 0 : i32
    return %c0_i32, %c0_i32_0, %c0_i32_1 : i32, i32, i32
  }
  func.func @transform_31(%arg0: i32) -> (i32, i32, i32) {
    %c0_i32 = arith.constant 0 : i32
    %c0_i32_0 = arith.constant 0 : i32
    %c0_i32_1 = arith.constant 0 : i32
    %c0_i32_2 = arith.constant 0 : i32
    return %c0_i32, %c0_i32_0, %c0_i32_1 : i32, i32, i32
  }
  func.func @transform_32(%arg0: i32) -> (i32, i32) {
    %c0_i32 = arith.constant 0 : i32
    %c0_i32_0 = arith.constant 0 : i32
    %c0_i32_1 = arith.constant 0 : i32
    return %c0_i32, %c0_i32_0 : i32, i32
  }
  func.func @transform_33(%arg0: i32) -> (i32, i32) {
    %c0_i32 = arith.constant 0 : i32
    %c0_i32_0 = arith.constant 0 : i32
    %c0_i32_1 = arith.constant 0 : i32
    return %c0_i32, %c0_i32_0 : i32, i32
  }
  func.func @transform_34(%arg0: i32) -> (i32, i32, i32) {
    %c0_i32 = arith.constant 0 : i32
    %c0_i32_0 = arith.constant 0 : i32
    %c0_i32_1 = arith.constant 0 : i32
    %c0_i32_2 = arith.constant 0 : i32
    return %c0_i32, %c0_i32_0, %c0_i32_1 : i32, i32, i32
  }
  func.func @transform_35(%arg0: i32) -> (i32, i32) {
    %c0_i32 = arith.constant 0 : i32
    %c0_i32_0 = arith.constant 0 : i32
    %c0_i32_1 = arith.constant 0 : i32
    return %c0_i32, %c0_i32_0 : i32, i32
  }
  func.func @transform_36(%arg0: i32) -> (i32, i32) {
    %c0_i32 = arith.constant 0 : i32
    %c0_i32_0 = arith.constant 0 : i32
    %c0_i32_1 = arith.constant 0 : i32
    return %c0_i32, %c0_i32_0 : i32, i32
  }
  func.func @transform_37(%arg0: i32) -> (i32, i32) {
    %c0_i32 = arith.constant 0 : i32
    %c0_i32_0 = arith.constant 0 : i32
    %c0_i32_1 = arith.constant 0 : i32
    return %c0_i32, %c0_i32_0 : i32, i32
  }
  func.func @transform_38(%arg0: i32) -> (i32, i32) {
    %c0_i32 = arith.constant 0 : i32
    %c0_i32_0 = arith.constant 0 : i32
    %c0_i32_1 = arith.constant 0 : i32
    return %c0_i32, %c0_i32_0 : i32, i32
  }
  func.func @transform_39(%arg0: i32) -> (i32, i32, i32) {
    %c0_i32 = arith.constant 0 : i32
    %c0_i32_0 = arith.constant 0 : i32
    %c0_i32_1 = arith.constant 0 : i32
    %c0_i32_2 = arith.constant 0 : i32
    return %c0_i32, %c0_i32_0, %c0_i32_1 : i32, i32, i32
  }
}

</mosaic_0001>

<llo_original>
// kernel: unet1d_forward.1
$region0: #{unet1d_forward.1}
  #allocation0 [shape = 'u32[]', space=smem, size = 0x4, offset = 0x4, fixed_abs, tag = 'smem constant byte address 0x4 - core index']
  #allocation1 [shape = 'u32[144,128]{1,0:T(1,128)}', space=vmem, size = 0x12000, scoped, tag = 'internal scratch']
  #allocation2 [shape = 'f32[2,18,64]{2,1,0:T(8,128)}', space=vmem, size = 0x6000, scoped, tag = 'scratch operand']
  %s0 = inlined_call_operand.smem [shape: u32[40], index: -1, kind: input, shape index: {}]
  %s1 = sld [smem:[%s0]]
  %s2 = scalar_lea.smem %s0, 1
  %s3 = sld [smem:[%s2]]
  %s4 = scalar_lea.smem %s0, 2
  %s5 = sld [smem:[%s4]]
  %s6 = scalar_lea.smem %s0, 3
  %s7 = sld [smem:[%s6]]
  %s8 = scalar_lea.smem %s0, 4
  %s9 = sld [smem:[%s8]]
  %s10 = scalar_lea.smem %s0, 5
  %s11 = sld [smem:[%s10]]
  %s12 = scalar_lea.smem %s0, 6
  %s13 = sld [smem:[%s12]]
  %s14 = scalar_lea.smem %s0, 7
  %s15 = sld [smem:[%s14]]
  %s16 = scalar_lea.smem %s0, 8
  %s17 = sld [smem:[%s16]]
  %s18 = scalar_lea.smem %s0, 9
  %s19 = sld [smem:[%s18]]
  %s20 = scalar_lea.smem %s0, 10
  %s21 = sld [smem:[%s20]]
  %s22 = scalar_lea.smem %s0, 11
  %s23 = sld [smem:[%s22]]
  %s24 = scalar_lea.smem %s0, 12
  %s25 = sld [smem:[%s24]]
  %s26 = scalar_lea.smem %s0, 13
  %s27 = sld [smem:[%s26]]
  %s28 = scalar_lea.smem %s0, 14
  %s29 = sld [smem:[%s28]]
  %s30 = scalar_lea.smem %s0, 15
  %s31 = sld [smem:[%s30]]
  %s32 = scalar_lea.smem %s0, 16
  %s33 = sld [smem:[%s32]]
  %s34 = scalar_lea.smem %s0, 17
  %s35 = sld [smem:[%s34]]
  %s36 = scalar_lea.smem %s0, 18
  %s37 = sld [smem:[%s36]]
  %s38 = scalar_lea.smem %s0, 19
  %s39 = sld [smem:[%s38]]
  %s40 = scalar_lea.smem %s0, 20
  %s41 = sld [smem:[%s40]]
  %s42 = scalar_lea.smem %s0, 21
  %s43 = sld [smem:[%s42]]
  %s44 = scalar_lea.smem %s0, 22
  %s45 = sld [smem:[%s44]]
  %s46 = scalar_lea.smem %s0, 23
  %s47 = sld [smem:[%s46]]
  %s48 = scalar_lea.smem %s0, 24
  %s49 = sld [smem:[%s48]]
  %s50 = scalar_lea.smem %s0, 25
  %s51 = sld [smem:[%s50]]
  %s52 = scalar_lea.smem %s0, 26
  %s53 = sld [smem:[%s52]]
  %s54 = scalar_lea.smem %s0, 27
  %s55 = sld [smem:[%s54]]
  %s56 = scalar_lea.smem %s0, 28
  %s57 = sld [smem:[%s56]]
  %s58 = scalar_lea.smem %s0, 29
  %s59 = sld [smem:[%s58]]
  %s60 = scalar_lea.smem %s0, 30
  %s61 = sld [smem:[%s60]]
  %s62 = scalar_lea.smem %s0, 31
  %s63 = sld [smem:[%s62]]
  %s64 = scalar_lea.smem %s0, 32
  %s65 = sld [smem:[%s64]]
  %s66 = scalar_lea.smem %s0, 33
  %s67 = sld [smem:[%s66]]
  %s68 = scalar_lea.smem %s0, 34
  %s69 = sld [smem:[%s68]]
  %s70 = scalar_lea.smem %s0, 35
  %s71 = sld [smem:[%s70]]
  %s72 = scalar_lea.smem %s0, 36
  %s73 = sld [smem:[%s72]]
  %s74 = scalar_lea.smem %s0, 37
  %s75 = sld [smem:[%s74]]
  %s76 = scalar_lea.smem %s0, 38
  %s77 = sld [smem:[%s76]]
  %s78 = scalar_lea.smem %s0, 39
  %s79 = sld [smem:[%s78]]
  %s80 = sld [smem:[#allocation0]]
  $region166: #{unet1d_forward.1} parent=0
    _
  %s82 = ssub.s32 1, %s80
  %s83 = scalar_select 0, %s82, %s80
  // Predicated region
  $region2: #{unet1d_forward.1} parent=0 // pred_check
    _
  $region3: #{unet1d_forward.1} parent=0 // pred_check_branch
    %85 = sbr.rel (0) target = $region5
  $region4: #{unet1d_forward.1} parent=0 // pred_region
    _
  $region5: #{unet1d_forward.1} parent=0 // pred_fallthru
    _
  // Predicated region
  $region6: #{unet1d_forward.1} parent=0 // pred_check
    _
  $region7: #{unet1d_forward.1} parent=0 // pred_check_branch
    %87 = sbr.rel (0) target = $region9
  $region8: #{unet1d_forward.1} parent=0 // pred_region
    _
  $region9: #{unet1d_forward.1} parent=0 // pred_fallthru
    _
  // Predicated region
  $region10: #{unet1d_forward.1} parent=0 // pred_check
    _
  $region11: #{unet1d_forward.1} parent=0 // pred_check_branch
    %89 = sbr.rel (0) target = $region13
  $region12: #{unet1d_forward.1} parent=0 // pred_region
    _
  $region13: #{unet1d_forward.1} parent=0 // pred_fallthru
    _
  // Predicated region
  $region14: #{unet1d_forward.1} parent=0 // pred_check
    _
  $region15: #{unet1d_forward.1} parent=0 // pred_check_branch
    %91 = sbr.rel (0) target = $region17
  $region16: #{unet1d_forward.1} parent=0 // pred_region
    _
  $region17: #{unet1d_forward.1} parent=0 // pred_fallthru
    _
  // Predicated region
  $region18: #{unet1d_forward.1} parent=0 // pred_check
    _
  $region19: #{unet1d_forward.1} parent=0 // pred_check_branch
    %93 = sbr.rel (0) target = $region21
  $region20: #{unet1d_forward.1} parent=0 // pred_region
    _
  $region21: #{unet1d_forward.1} parent=0 // pred_fallthru
    _
  // Predicated region
  $region22: #{unet1d_forward.1} parent=0 // pred_check
    _
  $region23: #{unet1d_forward.1} parent=0 // pred_check_branch
    %95 = sbr.rel (0) target = $region25
  $region24: #{unet1d_forward.1} parent=0 // pred_region
    _
  $region25: #{unet1d_forward.1} parent=0 // pred_fallthru
    _
  // Predicated region
  $region26: #{unet1d_forward.1} parent=0 // pred_check
    _
  $region27: #{unet1d_forward.1} parent=0 // pred_check_branch
    %97 = sbr.rel (0) target = $region29
  $region28: #{unet1d_forward.1} parent=0 // pred_region
    _
  $region29: #{unet1d_forward.1} parent=0 // pred_fallthru
    _
  // Predicated region
  $region30: #{unet1d_forward.1} parent=0 // pred_check
    _
  $region31: #{unet1d_forward.1} parent=0 // pred_check_branch
    %99 = sbr.rel (0) target = $region33
  $region32: #{unet1d_forward.1} parent=0 // pred_region
    _
  $region33: #{unet1d_forward.1} parent=0 // pred_fallthru
    _
  // Predicated region
  $region34: #{unet1d_forward.1} parent=0 // pred_check
    _
  $region35: #{unet1d_forward.1} parent=0 // pred_check_branch
    %101 = sbr.rel (0) target = $region37
  $region36: #{unet1d_forward.1} parent=0 // pred_region
    _
  $region37: #{unet1d_forward.1} parent=0 // pred_fallthru
    _
  // Predicated region
  $region38: #{unet1d_forward.1} parent=0 // pred_check
    _
  $region39: #{unet1d_forward.1} parent=0 // pred_check_branch
    %103 = sbr.rel (0) target = $region41
  $region40: #{unet1d_forward.1} parent=0 // pred_region
    _
  $region41: #{unet1d_forward.1} parent=0 // pred_fallthru
    _
  // Predicated region
  $region42: #{unet1d_forward.1} parent=0 // pred_check
    _
  $region43: #{unet1d_forward.1} parent=0 // pred_check_branch
    %105 = sbr.rel (0) target = $region45
  $region44: #{unet1d_forward.1} parent=0 // pred_region
    _
  $region45: #{unet1d_forward.1} parent=0 // pred_fallthru
    _
  // Predicated region
  $region46: #{unet1d_forward.1} parent=0 // pred_check
    _
  $region47: #{unet1d_forward.1} parent=0 // pred_check_branch
    %107 = sbr.rel (0) target = $region49
  $region48: #{unet1d_forward.1} parent=0 // pred_region
    _
  $region49: #{unet1d_forward.1} parent=0 // pred_fallthru
    _
  // Predicated region
  $region50: #{unet1d_forward.1} parent=0 // pred_check
    _
  $region51: #{unet1d_forward.1} parent=0 // pred_check_branch
    %109 = sbr.rel (0) target = $region53
  $region52: #{unet1d_forward.1} parent=0 // pred_region
    _
  $region53: #{unet1d_forward.1} parent=0 // pred_fallthru
    _
  // Predicated region
  $region54: #{unet1d_forward.1} parent=0 // pred_check
    _
  $region55: #{unet1d_forward.1} parent=0 // pred_check_branch
    %111 = sbr.rel (0) target = $region57
  $region56: #{unet1d_forward.1} parent=0 // pred_region
    _
  $region57: #{unet1d_forward.1} parent=0 // pred_fallthru
    _
  // Predicated region
  $region58: #{unet1d_forward.1} parent=0 // pred_check
    _
  $region59: #{unet1d_forward.1} parent=0 // pred_check_branch
    %113 = sbr.rel (0) target = $region61
  $region60: #{unet1d_forward.1} parent=0 // pred_region
    _
  $region61: #{unet1d_forward.1} parent=0 // pred_fallthru
    _
  // Predicated region
  $region62: #{unet1d_forward.1} parent=0 // pred_check
    _
  $region63: #{unet1d_forward.1} parent=0 // pred_check_branch
    %115 = sbr.rel (0) target = $region65
  $region64: #{unet1d_forward.1} parent=0 // pred_region
    _
  $region65: #{unet1d_forward.1} parent=0 // pred_fallthru
    _
  // Predicated region
  $region66: #{unet1d_forward.1} parent=0 // pred_check
    _
  $region67: #{unet1d_forward.1} parent=0 // pred_check_branch
    %117 = sbr.rel (0) target = $region69
  $region68: #{unet1d_forward.1} parent=0 // pred_region
    _
  $region69: #{unet1d_forward.1} parent=0 // pred_fallthru
    _
  // Predicated region
  $region70: #{unet1d_forward.1} parent=0 // pred_check
    _
  $region71: #{unet1d_forward.1} parent=0 // pred_check_branch
    %119 = sbr.rel (0) target = $region73
  $region72: #{unet1d_forward.1} parent=0 // pred_region
    _
  $region73: #{unet1d_forward.1} parent=0 // pred_fallthru
    _
  // Predicated region
  $region74: #{unet1d_forward.1} parent=0 // pred_check
    _
  $region75: #{unet1d_forward.1} parent=0 // pred_check_branch
    %121 = sbr.rel (0) target = $region77
  $region76: #{unet1d_forward.1} parent=0 // pred_region
    _
  $region77: #{unet1d_forward.1} parent=0 // pred_fallthru
    _
  // Predicated region
  $region78: #{unet1d_forward.1} parent=0 // pred_check
    _
  $region79: #{unet1d_forward.1} parent=0 // pred_check_branch
    %123 = sbr.rel (0) target = $region81
  $region80: #{unet1d_forward.1} parent=0 // pred_region
    _
  $region81: #{unet1d_forward.1} parent=0 // pred_fallthru
    _
  // Predicated region
  $region82: #{unet1d_forward.1} parent=0 // pred_check
    _
  $region83: #{unet1d_forward.1} parent=0 // pred_check_branch
    %125 = sbr.rel (0) target = $region85
  $region84: #{unet1d_forward.1} parent=0 // pred_region
    _
  $region85: #{unet1d_forward.1} parent=0 // pred_fallthru
    _
  // Predicated region
  $region86: #{unet1d_forward.1} parent=0 // pred_check
    _
  $region87: #{unet1d_forward.1} parent=0 // pred_check_branch
    %127 = sbr.rel (0) target = $region89
  $region88: #{unet1d_forward.1} parent=0 // pred_region
    _
  $region89: #{unet1d_forward.1} parent=0 // pred_fallthru
    _
  // Predicated region
  $region90: #{unet1d_forward.1} parent=0 // pred_check
    _
  $region91: #{unet1d_forward.1} parent=0 // pred_check_branch
    %129 = sbr.rel (0) target = $region93
  $region92: #{unet1d_forward.1} parent=0 // pred_region
    _
  $region93: #{unet1d_forward.1} parent=0 // pred_fallthru
    _
  // Predicated region
  $region94: #{unet1d_forward.1} parent=0 // pred_check
    _
  $region95: #{unet1d_forward.1} parent=0 // pred_check_branch
    %131 = sbr.rel (0) target = $region97
  $region96: #{unet1d_forward.1} parent=0 // pred_region
    _
  $region97: #{unet1d_forward.1} parent=0 // pred_fallthru
    _
  // Predicated region
  $region98: #{unet1d_forward.1} parent=0 // pred_check
    _
  $region99: #{unet1d_forward.1} parent=0 // pred_check_branch
    %133 = sbr.rel (0) target = $region101
  $region100: #{unet1d_forward.1} parent=0 // pred_region
    _
  $region101: #{unet1d_forward.1} parent=0 // pred_fallthru
    _
  // Predicated region
  $region102: #{unet1d_forward.1} parent=0 // pred_check
    _
  $region103: #{unet1d_forward.1} parent=0 // pred_check_branch
    %135 = sbr.rel (0) target = $region105
  $region104: #{unet1d_forward.1} parent=0 // pred_region
    _
  $region105: #{unet1d_forward.1} parent=0 // pred_fallthru
    _
  // Predicated region
  $region106: #{unet1d_forward.1} parent=0 // pred_check
    _
  $region107: #{unet1d_forward.1} parent=0 // pred_check_branch
    %137 = sbr.rel (0) target = $region109
  $region108: #{unet1d_forward.1} parent=0 // pred_region
    _
  $region109: #{unet1d_forward.1} parent=0 // pred_fallthru
    _
  // Predicated region
  $region110: #{unet1d_forward.1} parent=0 // pred_check
    _
  $region111: #{unet1d_forward.1} parent=0 // pred_check_branch
    %139 = sbr.rel (0) target = $region113
  $region112: #{unet1d_forward.1} parent=0 // pred_region
    _
  $region113: #{unet1d_forward.1} parent=0 // pred_fallthru
    _
  // Predicated region
  $region114: #{unet1d_forward.1} parent=0 // pred_check
    _
  $region115: #{unet1d_forward.1} parent=0 // pred_check_branch
    %141 = sbr.rel (0) target = $region117
  $region116: #{unet1d_forward.1} parent=0 // pred_region
    _
  $region117: #{unet1d_forward.1} parent=0 // pred_fallthru
    _
  // Predicated region
  $region118: #{unet1d_forward.1} parent=0 // pred_check
    _
  $region119: #{unet1d_forward.1} parent=0 // pred_check_branch
    %143 = sbr.rel (0) target = $region121
  $region120: #{unet1d_forward.1} parent=0 // pred_region
    _
  $region121: #{unet1d_forward.1} parent=0 // pred_fallthru
    _
  // Predicated region
  $region122: #{unet1d_forward.1} parent=0 // pred_check
    _
  $region123: #{unet1d_forward.1} parent=0 // pred_check_branch
    %145 = sbr.rel (0) target = $region125
  $region124: #{unet1d_forward.1} parent=0 // pred_region
    _
  $region125: #{unet1d_forward.1} parent=0 // pred_fallthru
    _
  // Predicated region
  $region126: #{unet1d_forward.1} parent=0 // pred_check
    _
  $region127: #{unet1d_forward.1} parent=0 // pred_check_branch
    %147 = sbr.rel (0) target = $region129
  $region128: #{unet1d_forward.1} parent=0 // pred_region
    _
  $region129: #{unet1d_forward.1} parent=0 // pred_fallthru
    _
  // Predicated region
  $region130: #{unet1d_forward.1} parent=0 // pred_check
    _
  $region131: #{unet1d_forward.1} parent=0 // pred_check_branch
    %149 = sbr.rel (0) target = $region133
  $region132: #{unet1d_forward.1} parent=0 // pred_region
    _
  $region133: #{unet1d_forward.1} parent=0 // pred_fallthru
    _
  // Predicated region
  $region134: #{unet1d_forward.1} parent=0 // pred_check
    _
  $region135: #{unet1d_forward.1} parent=0 // pred_check_branch
    %151 = sbr.rel (0) target = $region137
  $region136: #{unet1d_forward.1} parent=0 // pred_region
    _
  $region137: #{unet1d_forward.1} parent=0 // pred_fallthru
    _
  // Predicated region
  $region138: #{unet1d_forward.1} parent=0 // pred_check
    _
  $region139: #{unet1d_forward.1} parent=0 // pred_check_branch
    %153 = sbr.rel (0) target = $region141
  $region140: #{unet1d_forward.1} parent=0 // pred_region
    _
  $region141: #{unet1d_forward.1} parent=0 // pred_fallthru
    _
  // Predicated region
  $region142: #{unet1d_forward.1} parent=0 // pred_check
    _
  $region143: #{unet1d_forward.1} parent=0 // pred_check_branch
    %155 = sbr.rel (0) target = $region145
  $region144: #{unet1d_forward.1} parent=0 // pred_region
    _
  $region145: #{unet1d_forward.1} parent=0 // pred_fallthru
    _
  // Predicated region
  $region146: #{unet1d_forward.1} parent=0 // pred_check
    _
  $region147: #{unet1d_forward.1} parent=0 // pred_check_branch
    %157 = sbr.rel (0) target = $region149
  $region148: #{unet1d_forward.1} parent=0 // pred_region
    _
  $region149: #{unet1d_forward.1} parent=0 // pred_fallthru
    _
  // Predicated region
  $region150: #{unet1d_forward.1} parent=0 // pred_check
    _
  $region151: #{unet1d_forward.1} parent=0 // pred_check_branch
    %159 = sbr.rel (0) target = $region153
  $region152: #{unet1d_forward.1} parent=0 // pred_region
    _
  $region153: #{unet1d_forward.1} parent=0 // pred_fallthru
    _
  // Predicated region
  $region154: #{unet1d_forward.1} parent=0 // pred_check
    _
  $region155: #{unet1d_forward.1} parent=0 // pred_check_branch
    %161 = sbr.rel (0) target = $region157
  $region156: #{unet1d_forward.1} parent=0 // pred_region
    _
  $region157: #{unet1d_forward.1} parent=0 // pred_fallthru
    _
  %v162 = vld [vmem:[%s1] sm:$0xff]
  %v163 = vld [vmem:[%s1 + $0x8] sm:$0xff]
  %vm164 = vcmask 0
  %165 = vst.msk [vmem:[#allocation2] sm:$0x1] %vm164, 0.0
  %166 = vst.msk [vmem:[#allocation2 + $0x11] sm:$0x1] %vm164, 0.0
  %vm167 = vcmask 7168
  %168 = vst.msk [vmem:[#allocation2 + $0x1] sm:$0xff] %vm167, %v162
  %169 = vst.msk [vmem:[#allocation2 + $0x9] sm:$0xff] %vm167, %v163
  %v170 = vld [vmem:[#allocation2] sm:$0xff]
  %v171 = vld [vmem:[#allocation2 + $0x8] sm:$0xff]
  %v172 = vld [vmem:[#allocation2 + $0x10] sm:$0x3]
  %v173 = vld [vmem:[%s3] sm:$0x1]
  %175 = vset.pattern.permute.xlu0 0
  %176 = vperm.xlu0 %175, %v170
  %v177 = vpop.permute.xlu0 %176
  %180 = vset.pattern.permute.xlu0 0
  %181 = vperm.xlu0 %180, %v171
  %v182 = vpop.permute.xlu0 %181
  %v185 = vlaneseq
  %v186 = vshrl.u32 %v185, 7
  %v187 = vsub.s32 0, %v186
  %v188 = vrot.slane %v173, %v187
  %v190 = vmul.f32 %v177, %v188
  %v191 = vmul.f32 %v182, %v188
  %v192 = vadd.f32 %v190, 0.0
  %v193 = vadd.f32 %v191, 0.0
  %s194 = scalar_lea.vmem %s3, 1
  %v195 = vld [vmem:[%s194] sm:$0x1]
  %197 = vset.pattern.permute.xlu0 0
  %198 = vperm.xlu0 %197, %v172
  %v199 = vpop.permute.xlu0 %198
  %v202 = vlaneseq
  %v203 = vshrl.u32 %v202, 7
  %v204 = vsub.s32 0, %v203
  %v205 = vrot.slane %v195, %v204
  %v207 = vmul.f32 %v177, %v205
  %v208 = vmul.f32 %v182, %v205
  %v209 = vmul.f32 %v199, %v205
  %vm213 = vcmask 1046528
  %v214 = vrot.slane %v207, 1
  %v215 = vrot.slane %v208, 1
  %v216 = vsel %vm213, %v214, %v215
  %v217 = vrot.slane %v209, 1
  %v218 = vsel %vm213, %v215, %v217
  %v221 = vadd.f32 %v192, %v216
  %v222 = vadd.f32 %v193, %v218
  %s223 = scalar_lea.vmem %s3, 2
  %v224 = vld [vmem:[%s223] sm:$0x1]
  %v226 = vlaneseq
  %v227 = vshrl.u32 %v226, 7
  %v228 = vsub.s32 0, %v227
  %v229 = vrot.slane %v224, %v228
  %v231 = vmul.f32 %v177, %v229
  %v232 = vmul.f32 %v182, %v229
  %v233 = vmul.f32 %v199, %v229
  %vm237 = vcmask 1045504
  %v238 = vrot.slane %v231, 2
  %v239 = vrot.slane %v232, 2
  %v240 = vsel %vm237, %v238, %v239
  %v241 = vrot.slane %v233, 2
  %v242 = vsel %vm237, %v239, %v241
  %v245 = vadd.f32 %v221, %v240
  %v246 = vadd.f32 %v222, %v242
  %s247 = scalar_lea.vmem %s1, 16
  %v248 = vld [vmem:[%s247] sm:$0xff]
  %v249 = vld [vmem:[%s247 + $0x8] sm:$0xff]
  %s250 = scalar_lea.vmem [#allocation2], 24
  %251 = vst.msk [vmem:[%s250] sm:$0x1] %vm164, 0.0
  %252 = vst.msk [vmem:[%s250 + $0x11] sm:$0x1] %vm164, 0.0
  %253 = vst.msk [vmem:[%s250 + $0x1] sm:$0xff] %vm167, %v248
  %254 = vst.msk [vmem:[%s250 + $0x9] sm:$0xff] %vm167, %v249
  %v255 = vld [vmem:[%s250] sm:$0xff]
  %v256 = vld [vmem:[%s250 + $0x8] sm:$0xff]
  %v257 = vld [vmem:[%s250 + $0x10] sm:$0x3]
  %v258 = vld [vmem:[%s3] sm:$0x1]
  %260 = vset.pattern.permute.xlu0 0
  %261 = vperm.xlu0 %260, %v255
  %v262 = vpop.permute.xlu0 %261
  %265 = vset.pattern.permute.xlu0 0
  %266 = vperm.xlu0 %265, %v256
  %v267 = vpop.permute.xlu0 %266
  %v270 = vlaneseq
  %v271 = vshrl.u32 %v270, 7
  %v272 = vsub.s32 0, %v271
  %v273 = vrot.slane %v258, %v272
  %v275 = vmul.f32 %v262, %v273
  %v276 = vmul.f32 %v267, %v273
  %v277 = vadd.f32 %v275, 0.0
  %v278 = vadd.f32 %v276, 0.0
  %v279 = vld [vmem:[%s194] sm:$0x1]
  %281 = vset.pattern.permute.xlu0 0
  %282 = vperm.xlu0 %281, %v257
  %v283 = vpop.permute.xlu0 %282
  %v286 = vlaneseq
  %v287 = vshrl.u32 %v286, 7
  %v288 = vsub.s32 0, %v287
  %v289 = vrot.slane %v279, %v288
  %v291 = vmul.f32 %v262, %v289
  %v292 = vmul.f32 %v267, %v289
  %v293 = vmul.f32 %v283, %v289
  %v297 = vrot.slane %v291, 1
  %v298 = vrot.slane %v292, 1
  %v299 = vsel %vm213, %v297, %v298
  %v300 = vrot.slane %v293, 1
  %v301 = vsel %vm213, %v298, %v300
  %v304 = vadd.f32 %v277, %v299
  %v305 = vadd.f32 %v278, %v301
  %v306 = vld [vmem:[%s223] sm:$0x1]
  %v308 = vlaneseq
  %v309 = vshrl.u32 %v308, 7
  %v310 = vsub.s32 0, %v309
  %v311 = vrot.slane %v306, %v310
  %v313 = vmul.f32 %v262, %v311
  %v314 = vmul.f32 %v267, %v311
  %v315 = vmul.f32 %v283, %v311
  %v319 = vrot.slane %v313, 2
  %v320 = vrot.slane %v314, 2
  %v321 = vsel %vm237, %v319, %v320
  %v322 = vrot.slane %v315, 2
  %v323 = vsel %vm237, %v320, %v322
  %v326 = vadd.f32 %v304, %v321
  %v327 = vadd.f32 %v305, %v323
  %vm328 = vcmask 130048
  %v329 = vsel %vm328, %v245, 0.0
  %v330 = vsel %vm328, %v246, 0.0
  %v331 = vadd.f32 %v329, %v330
  %v332 = vrot.slane %v331, 4
  %v333 = vadd.f32 %v331, %v332
  %v334 = vrot.slane %v333, 2
  %v335 = vadd.f32 %v333, %v334
  %v336 = vrot.slane %v335, 1
  %v337 = vadd.f32 %v335, %v336
  %v338 = vadd.f32 %v337, 0.0
  %v339 = vsel %vm328, %v326, 0.0
  %v340 = vsel %vm328, %v327, 0.0
  %v341 = vadd.f32 %v339, %v340
  %v342 = vrot.slane %v341, 4
  %v343 = vadd.f32 %v341, %v342
  %v344 = vrot.slane %v343, 2
  %v345 = vadd.f32 %v343, %v344
  %v346 = vrot.slane %v345, 1
  %v347 = vadd.f32 %v345, %v346
  %v348 = vadd.f32 %v338, %v347
  %v349 = vmul.f32 %v245, %v245
  %v350 = vmul.f32 %v246, %v246
  %v351 = vsel %vm328, %v349, 0.0
  %v352 = vsel %vm328, %v350, 0.0
  %v353 = vadd.f32 %v351, %v352
  %v354 = vrot.slane %v353, 4
  %v355 = vadd.f32 %v353, %v354
  %v356 = vrot.slane %v355, 2
  %v357 = vadd.f32 %v355, %v356
  %v358 = vrot.slane %v357, 1
  %v359 = vadd.f32 %v357, %v358
  %v360 = vadd.f32 %v359, 0.0
  %v361 = vmul.f32 %v326, %v326
  %v362 = vmul.f32 %v327, %v327
  %v363 = vsel %vm328, %v361, 0.0
  %v364 = vsel %vm328, %v362, 0.0
  %v365 = vadd.f32 %v363, %v364
  %v366 = vrot.slane %v365, 4
  %v367 = vadd.f32 %v365, %v366
  %v368 = vrot.slane %v367, 2
  %v369 = vadd.f32 %v367, %v368
  %v370 = vrot.slane %v369, 1
  %v371 = vadd.f32 %v369, %v370
  %v372 = vadd.f32 %v360, %v371
  %v373 = vrcp.pop 32.0
  %v374 = vmul.f32 %v348, %v373
  %v375 = vmul.f32 %v372, %v373
  %v376 = vmul.f32 %v374, %v374
  %v377 = vsub.f32 %v375, %v376
  %v378 = vld [vmem:[%s5] sm:$0x1]
  %v379 = vadd.f32 %v377, 1e-05
  %v380 = vrsqrt.pop %v379
  %v381 = vmul.f32 %v378, %v380
  %v382 = vld [vmem:[%s7] sm:$0x1]
  %v383 = vmul.f32 %v374, %v381
  %v384 = vsub.f32 %v382, %v383
  %v386 = vlaneseq
  %v387 = vshrl.u32 %v386, 7
  %v388 = vsub.s32 0, %v387
  %v389 = vrot.slane %v381, %v388
  %v391 = vmul.f32 %v245, %v389
  %v392 = vmul.f32 %v246, %v389
  %v394 = vlaneseq
  %v395 = vshrl.u32 %v394, 7
  %v396 = vsub.s32 0, %v395
  %v397 = vrot.slane %v384, %v396
  %v399 = vadd.f32 %v391, %v397
  %v400 = vadd.f32 %v392, %v397
  %v401 = vtanh.pop %v399
  %v402 = vtanh.pop %v400
  %v403 = vmul.f32 %v326, %v389
  %v404 = vmul.f32 %v327, %v389
  %v405 = vadd.f32 %v403, %v397
  %v406 = vadd.f32 %v404, %v397
  %v407 = vtanh.pop %v405
  %v408 = vtanh.pop %v406
  %vm409 = vcmask 122880
  %410 = vst.msk [vmem:[#allocation2] sm:$0x1] %vm409, 0.0
  %411 = vst.msk [vmem:[#allocation2 + $0x11] sm:$0x1] %vm409, 0.0
  %412 = vst.msk [vmem:[#allocation2 + $0x1] sm:$0xff] %vm328, %v401
  %413 = vst.msk [vmem:[#allocation2 + $0x9] sm:$0xff] %vm328, %v402
  %v414 = vld [vmem:[#allocation2] sm:$0xff]
  %v415 = vld [vmem:[#allocation2 + $0x8] sm:$0xff]
  %v416 = vld [vmem:[#allocation2 + $0x10] sm:$0x3]
  %v417 = vld [vmem:[%s9] sm:$0xff]
  %v418 = vld [vmem:[%s9 + $0x8] sm:$0xff]
  %s419 = scalar_lea.vmem %s9, 16
  %v420 = vld [vmem:[%s419] sm:$0xff]
  %v421 = vld [vmem:[%s419 + $0x8] sm:$0xff]
  %v425 = vrot.slane %v414, 1
  %v426 = vrot.slane %v415, 1
  %v427 = vsel %vm213, %v425, %v426
  %v428 = vrot.slane %v416, 1
  %v429 = vsel %vm213, %v426, %v428
  %v430 = vsel %vm328, %v427, 0
  %v432 = vsel %vm328, %v429, 0
  %434 = vmatprep.subr.mxu0 0.0
  %435 = vmatpush1.msra.mxu0 %v420
  %436 = vmatprep.subr.mxu0 0.0
  %437 = vmatpush1.msra.mxu0 %v421
  %438 = vmatprep.subr.mxu0 0.0
  %439 = vmatpush1.msra.mxu0 0.0
  %440 = vmatprep.subr.mxu0 0.0
  %441 = vmatpush1.msra.mxu0 0.0
  %442 = vmatprep.subr.mxu0 0.0
  %443 = vmatpush1.msra.mxu0 0.0
  %444 = vmatprep.subr.mxu0 0.0
  %445 = vmatpush1.msra.mxu0 0.0
  %446 = vmatprep.subr.mxu0 0.0
  %447 = vmatpush1.msra.mxu0 0.0
  %448 = vmatprep.subr.mxu0 0.0
  %449 = vmatpush1.msra.mxu0 0.0
  %450 = vmatprep.subr.mxu0 0.0
  %451 = vmatpush1.msra.mxu0 0.0
  %452 = vmatprep.subr.mxu0 0.0
  %453 = vmatpush1.msra.mxu0 0.0
  %454 = vmatprep.subr.mxu0 0.0
  %455 = vmatpush1.msra.mxu0 0.0
  %456 = vmatprep.subr.mxu0 0.0
  %457 = vmatpush1.msra.mxu0 0.0
  %458 = vmatprep.subr.mxu0 0.0
  %459 = vmatpush1.msra.mxu0 0.0
  %460 = vmatprep.subr.mxu0 0.0
  %461 = vmatpush1.msra.mxu0 0.0
  %462 = vmatprep.subr.mxu0 0.0
  %463 = vmatpush1.msra.mxu0 0.0
  %464 = vmatprep.subr.mxu0 0.0
  %465 = vmatpush1.msra.mxu0 0.0
  %466 = vmatprep.subr.mxu0 0.0
  %467 = vmatpush1.msra.mxu0 0.0
  %468 = vmatprep.subr.mxu0 0.0
  %469 = vmatpush1.msra.mxu0 0.0
  %470 = vmatprep.subr.mxu0 0.0
  %471 = vmatpush1.msra.mxu0 0.0
  %472 = vmatprep.subr.mxu0 0.0
  %473 = vmatpush1.msra.mxu0 0.0
  %474 = vmatprep.subr.mxu0 0.0
  %475 = vmatpush1.msra.mxu0 0.0
  %476 = vmatprep.subr.mxu0 0.0
  %477 = vmatpush1.msra.mxu0 0.0
  %478 = vmatprep.subr.mxu0 0.0
  %479 = vmatpush1.msra.mxu0 0.0
  %480 = vmatprep.subr.mxu0 0.0
  %481 = vmatpush1.msra.mxu0 0.0
  %482 = vmatprep.subr.mxu0 0.0
  %483 = vmatpush1.msra.mxu0 0.0
  %484 = vmatprep.subr.mxu0 0.0
  %485 = vmatpush1.msra.mxu0 0.0
  %486 = vmatprep.subr.mxu0 0.0
  %487 = vmatpush1.msra.mxu0 0.0
  %488 = vmatprep.subr.mxu0 0.0
  %489 = vmatpush1.msra.mxu0 0.0
  %490 = vmatprep.subr.mxu0 0.0
  %491 = vmatpush1.msra.mxu0 0.0
  %492 = vmatprep.subr.mxu0 0.0
  %493 = vmatpush1.msra.mxu0 0.0
  %494 = vmatprep.subr.mxu0 0.0
  %495 = vmatpush1.msra.mxu0 0.0
  %496 = vmatprep.subr.mxu0 0.0
  %497 = vmatpush1.msra.mxu0 0.0
  %498 = vmatprep.mubr.f32.mxu0 0.0
  %499 = vmatmul.mubr.f32.gmra.mrb[0].mxu0 %v430
  %v500 = vpop.f32.mrb[0].mxu0
  %v501 = vadd.f32 0.0, %v500
  %v502 = vpop.f32.mrb[0].mxu0
  %503 = vmatprep.mubr.f32.mxu0 0.0
  %504 = vmatmul.mubr.f32.gmra.mrb[0].mxu0 %v432
  %v505 = vpop.f32.mrb[0].mxu0
  %v506 = vadd.f32 0.0, %v505
  %v507 = vpop.f32.mrb[0].mxu0
  %508 = vdwg.mxu0
  %v509 = vsel %vm328, %v414, 0
  %v511 = vsel %vm328, %v415, 0
  %513 = vmatprep.subr.mxu0 0.0
  %514 = vmatpush1.msra.mxu0 %v417
  %515 = vmatprep.subr.mxu0 0.0
  %516 = vmatpush1.msra.mxu0 %v418
  %517 = vmatprep.subr.mxu0 0.0
  %518 = vmatpush1.msra.mxu0 0.0
  %519 = vmatprep.subr.mxu0 0.0
  %520 = vmatpush1.msra.mxu0 0.0
  %521 = vmatprep.subr.mxu0 0.0
  %522 = vmatpush1.msra.mxu0 0.0
  %523 = vmatprep.subr.mxu0 0.0
  %524 = vmatpush1.msra.mxu0 0.0
  %525 = vmatprep.subr.mxu0 0.0
  %526 = vmatpush1.msra.mxu0 0.0
  %527 = vmatprep.subr.mxu0 0.0
  %528 = vmatpush1.msra.mxu0 0.0
  %529 = vmatprep.subr.mxu0 0.0
  %530 = vmatpush1.msra.mxu0 0.0
  %531 = vmatprep.subr.mxu0 0.0
  %532 = vmatpush1.msra.mxu0 0.0
  %533 = vmatprep.subr.mxu0 0.0
  %534 = vmatpush1.msra.mxu0 0.0
  %535 = vmatprep.subr.mxu0 0.0
  %536 = vmatpush1.msra.mxu0 0.0
  %537 = vmatprep.subr.mxu0 0.0
  %538 = vmatpush1.msra.mxu0 0.0
  %539 = vmatprep.subr.mxu0 0.0
  %540 = vmatpush1.msra.mxu0 0.0
  %541 = vmatprep.subr.mxu0 0.0
  %542 = vmatpush1.msra.mxu0 0.0
  %543 = vmatprep.subr.mxu0 0.0
  %544 = vmatpush1.msra.mxu0 0.0
  %545 = vmatprep.subr.mxu0 0.0
  %546 = vmatpush1.msra.mxu0 0.0
  %547 = vmatprep.subr.mxu0 0.0
  %548 = vmatpush1.msra.mxu0 0.0
  %549 = vmatprep.subr.mxu0 0.0
  %550 = vmatpush1.msra.mxu0 0.0
  %551 = vmatprep.subr.mxu0 0.0
  %552 = vmatpush1.msra.mxu0 0.0
  %553 = vmatprep.subr.mxu0 0.0
  %554 = vmatpush1.msra.mxu0 0.0
  %555 = vmatprep.subr.mxu0 0.0
  %556 = vmatpush1.msra.mxu0 0.0
  %557 = vmatprep.subr.mxu0 0.0
  %558 = vmatpush1.msra.mxu0 0.0
  %559 = vmatprep.subr.mxu0 0.0
  %560 = vmatpush1.msra.mxu0 0.0
  %561 = vmatprep.subr.mxu0 0.0
  %562 = vmatpush1.msra.mxu0 0.0
  %563 = vmatprep.subr.mxu0 0.0
  %564 = vmatpush1.msra.mxu0 0.0
  %565 = vmatprep.subr.mxu0 0.0
  %566 = vmatpush1.msra.mxu0 0.0
  %567 = vmatprep.subr.mxu0 0.0
  %568 = vmatpush1.msra.mxu0 0.0
  %569 = vmatprep.subr.mxu0 0.0
  %570 = vmatpush1.msra.mxu0 0.0
  %571 = vmatprep.subr.mxu0 0.0
  %572 = vmatpush1.msra.mxu0 0.0
  %573 = vmatprep.subr.mxu0 0.0
  %574 = vmatpush1.msra.mxu0 0.0
  %575 = vmatprep.subr.mxu0 0.0
  %576 = vmatpush1.msra.mxu0 0.0
  %577 = vmatprep.mubr.f32.mxu0 0.0
  %578 = vmatmul.mubr.f32.gmra.mrb[0].mxu0 %v509
  %v579 = vpop.f32.mrb[0].mxu0
  %v580 = vadd.f32 %v501, %v579
  %v581 = vpop.f32.mrb[0].mxu0
  %582 = vmatprep.mubr.f32.mxu0 0.0
  %583 = vmatmul.mubr.f32.gmra.mrb[0].mxu0 %v511
  %v584 = vpop.f32.mrb[0].mxu0
  %v585 = vadd.f32 %v506, %v584
  %v586 = vpop.f32.mrb[0].mxu0
  %587 = vdwg.mxu0
  %s588 = scalar_lea.vmem %s9, 32
  %v589 = vld [vmem:[%s588] sm:$0xff]
  %v590 = vld [vmem:[%s588 + $0x8] sm:$0xff]
  %v591 = vrot.slane %v414, 2
  %v592 = vrot.slane %v415, 2
  %v593 = vsel %vm237, %v591, %v592
  %v594 = vrot.slane %v416, 2
  %v595 = vsel %vm237, %v592, %v594
  %v596 = vsel %vm328, %v593, 0
  %v598 = vsel %vm328, %v595, 0
  %600 = vmatprep.subr.mxu0 0.0
  %601 = vmatpush1.msra.mxu0 %v589
  %602 = vmatprep.subr.mxu0 0.0
  %603 = vmatpush1.msra.mxu0 %v590
  %604 = vmatprep.subr.mxu0 0.0
  %605 = vmatpush1.msra.mxu0 0.0
  %606 = vmatprep.subr.mxu0 0.0
  %607 = vmatpush1.msra.mxu0 0.0
  %608 = vmatprep.subr.mxu0 0.0
  %609 = vmatpush1.msra.mxu0 0.0
  %610 = vmatprep.subr.mxu0 0.0
  %611 = vmatpush1.msra.mxu0 0.0
  %612 = vmatprep.subr.mxu0 0.0
  %613 = vmatpush1.msra.mxu0 0.0
  %614 = vmatprep.subr.mxu0 0.0
  %615 = vmatpush1.msra.mxu0 0.0
  %616 = vmatprep.subr.mxu0 0.0
  %617 = vmatpush1.msra.mxu0 0.0
  %618 = vmatprep.subr.mxu0 0.0
  %619 = vmatpush1.msra.mxu0 0.0
  %620 = vmatprep.subr.mxu0 0.0
  %621 = vmatpush1.msra.mxu0 0.0
  %622 = vmatprep.subr.mxu0 0.0
  %623 = vmatpush1.msra.mxu0 0.0
  %624 = vmatprep.subr.mxu0 0.0
  %625 = vmatpush1.msra.mxu0 0.0
  %626 = vmatprep.subr.mxu0 0.0
  %627 = vmatpush1.msra.mxu0 0.0
  %628 = vmatprep.subr.mxu0 0.0
  %629 = vmatpush1.msra.mxu0 0.0
  %630 = vmatprep.subr.mxu0 0.0
  %631 = vmatpush1.msra.mxu0 0.0
  %632 = vmatprep.subr.mxu0 0.0
  %633 = vmatpush1.msra.mxu0 0.0
  %634 = vmatprep.subr.mxu0 0.0
  %635 = vmatpush1.msra.mxu0 0.0
  %636 = vmatprep.subr.mxu0 0.0
  %637 = vmatpush1.msra.mxu0 0.0
  %638 = vmatprep.subr.mxu0 0.0
  %639 = vmatpush1.msra.mxu0 0.0
  %640 = vmatprep.subr.mxu0 0.0
  %641 = vmatpush1.msra.mxu0 0.0
  %642 = vmatprep.subr.mxu0 0.0
  %643 = vmatpush1.msra.mxu0 0.0
  %644 = vmatprep.subr.mxu0 0.0
  %645 = vmatpush1.msra.mxu0 0.0
  %646 = vmatprep.subr.mxu0 0.0
  %647 = vmatpush1.msra.mxu0 0.0
  %648 = vmatprep.subr.mxu0 0.0
  %649 = vmatpush1.msra.mxu0 0.0
  %650 = vmatprep.subr.mxu0 0.0
  %651 = vmatpush1.msra.mxu0 0.0
  %652 = vmatprep.subr.mxu0 0.0
  %653 = vmatpush1.msra.mxu0 0.0
  %654 = vmatprep.subr.mxu0 0.0
  %655 = vmatpush1.msra.mxu0 0.0
  %656 = vmatprep.subr.mxu0 0.0
  %657 = vmatpush1.msra.mxu0 0.0
  %658 = vmatprep.subr.mxu0 0.0
  %659 = vmatpush1.msra.mxu0 0.0
  %660 = vmatprep.subr.mxu0 0.0
  %661 = vmatpush1.msra.mxu0 0.0
  %662 = vmatprep.subr.mxu0 0.0
  %663 = vmatpush1.msra.mxu0 0.0
  %664 = vmatprep.mubr.f32.mxu0 0.0
  %665 = vmatmul.mubr.f32.gmra.mrb[0].mxu0 %v596
  %v666 = vpop.f32.mrb[0].mxu0
  %v667 = vadd.f32 0.0, %v666
  %v668 = vpop.f32.mrb[0].mxu0
  %669 = vmatprep.mubr.f32.mxu0 0.0
  %670 = vmatmul.mubr.f32.gmra.mrb[0].mxu0 %v598
  %v671 = vpop.f32.mrb[0].mxu0
  %v672 = vadd.f32 0.0, %v671
  %v673 = vpop.f32.mrb[0].mxu0
  %674 = vdwg.mxu0
  %v675 = vadd.f32 %v580, %v667
  %v676 = vadd.f32 %v585, %v672
  %677 = vst.msk [vmem:[%s250] sm:$0x1] %vm409, 0.0
  %678 = vst.msk [vmem:[%s250 + $0x11] sm:$0x1] %vm409, 0.0
  %679 = vst.msk [vmem:[%s250 + $0x1] sm:$0xff] %vm328, %v407
  %680 = vst.msk [vmem:[%s250 + $0x9] sm:$0xff] %vm328, %v408
  %v681 = vld [vmem:[%s250] sm:$0xff]
  %v682 = vld [vmem:[%s250 + $0x8] sm:$0xff]
  %v683 = vld [vmem:[%s250 + $0x10] sm:$0x3]
  %v684 = vld [vmem:[%s9] sm:$0xff]
  %v685 = vld [vmem:[%s9 + $0x8] sm:$0xff]
  %v686 = vld [vmem:[%s419] sm:$0xff]
  %v687 = vld [vmem:[%s419 + $0x8] sm:$0xff]
  %v691 = vrot.slane %v681, 1
  %v692 = vrot.slane %v682, 1
  %v693 = vsel %vm213, %v691, %v692
  %v694 = vrot.slane %v683, 1
  %v695 = vsel %vm213, %v692, %v694
  %v696 = vsel %vm328, %v693, 0
  %v698 = vsel %vm328, %v695, 0
  %700 = vmatprep.subr.mxu0 0.0
  %701 = vmatpush1.msra.mxu0 %v686
  %702 = vmatprep.subr.mxu0 0.0
  %703 = vmatpush1.msra.mxu0 %v687
  %704 = vmatprep.subr.mxu0 0.0
  %705 = vmatpush1.msra.mxu0 0.0
  %706 = vmatprep.subr.mxu0 0.0
  %707 = vmatpush1.msra.mxu0 0.0
  %708 = vmatprep.subr.mxu0 0.0
  %709 = vmatpush1.msra.mxu0 0.0
  %710 = vmatprep.subr.mxu0 0.0
  %711 = vmatpush1.msra.mxu0 0.0
  %712 = vmatprep.subr.mxu0 0.0
  %713 = vmatpush1.msra.mxu0 0.0
  %714 = vmatprep.subr.mxu0 0.0
  %715 = vmatpush1.msra.mxu0 0.0
  %716 = vmatprep.subr.mxu0 0.0
  %717 = vmatpush1.msra.mxu0 0.0
  %718 = vmatprep.subr.mxu0 0.0
  %719 = vmatpush1.msra.mxu0 0.0
  %720 = vmatprep.subr.mxu0 0.0
  %721 = vmatpush1.msra.mxu0 0.0
  %722 = vmatprep.subr.mxu0 0.0
  %723 = vmatpush1.msra.mxu0 0.0
  %724 = vmatprep.subr.mxu0 0.0
  %725 = vmatpush1.msra.mxu0 0.0
  %726 = vmatprep.subr.mxu0 0.0
  %727 = vmatpush1.msra.mxu0 0.0
  %728 = vmatprep.subr.mxu0 0.0
  %729 = vmatpush1.msra.mxu0 0.0
  %730 = vmatprep.subr.mxu0 0.0
  %731 = vmatpush1.msra.mxu0 0.0
  %732 = vmatprep.subr.mxu0 0.0
  %733 = vmatpush1.msra.mxu0 0.0
  %734 = vmatprep.subr.mxu0 0.0
  %735 = vmatpush1.msra.mxu0 0.0
  %736 = vmatprep.subr.mxu0 0.0
  %737 = vmatpush1.msra.mxu0 0.0
  %738 = vmatprep.subr.mxu0 0.0
  %739 = vmatpush1.msra.mxu0 0.0
  %740 = vmatprep.subr.mxu0 0.0
  %741 = vmatpush1.msra.mxu0 0.0
  %742 = vmatprep.subr.mxu0 0.0
  %743 = vmatpush1.msra.mxu0 0.0
  %744 = vmatprep.subr.mxu0 0.0
  %745 = vmatpush1.msra.mxu0 0.0
  %746 = vmatprep.subr.mxu0 0.0
  %747 = vmatpush1.msra.mxu0 0.0
  %748 = vmatprep.subr.mxu0 0.0
  %749 = vmatpush1.msra.mxu0 0.0
  %750 = vmatprep.subr.mxu0 0.0
  %751 = vmatpush1.msra.mxu0 0.0
  %752 = vmatprep.subr.mxu0 0.0
  %753 = vmatpush1.msra.mxu0 0.0
  %754 = vmatprep.subr.mxu0 0.0
  %755 = vmatpush1.msra.mxu0 0.0
  %756 = vmatprep.subr.mxu0 0.0
  %757 = vmatpush1.msra.mxu0 0.0
  %758 = vmatprep.subr.mxu0 0.0
  %759 = vmatpush1.msra.mxu0 0.0
  %760 = vmatprep.subr.mxu0 0.0
  %761 = vmatpush1.msra.mxu0 0.0
  %762 = vmatprep.subr.mxu0 0.0
  %763 = vmatpush1.msra.mxu0 0.0
  %764 = vmatprep.mubr.f32.mxu0 0.0
  %765 = vmatmul.mubr.f32.gmra.mrb[0].mxu0 %v696
  %v766 = vpop.f32.mrb[0].mxu0
  %v767 = vadd.f32 0.0, %v766
  %v768 = vpop.f32.mrb[0].mxu0
  %769 = vmatprep.mubr.f32.mxu0 0.0
  %770 = vmatmul.mubr.f32.gmra.mrb[0].mxu0 %v698
  %v771 = vpop.f32.mrb[0].mxu0
  %v772 = vadd.f32 0.0, %v771
  %v773 = vpop.f32.mrb[0].mxu0
  %774 = vdwg.mxu0
  %v775 = vsel %vm328, %v681, 0
  %v777 = vsel %vm328, %v682, 0
  %779 = vmatprep.subr.mxu0 0.0
  %780 = vmatpush1.msra.mxu0 %v684
  %781 = vmatprep.subr.mxu0 0.0
  %782 = vmatpush1.msra.mxu0 %v685
  %783 = vmatprep.subr.mxu0 0.0
  %784 = vmatpush1.msra.mxu0 0.0
  %785 = vmatprep.subr.mxu0 0.0
  %786 = vmatpush1.msra.mxu0 0.0
  %787 = vmatprep.subr.mxu0 0.0
  %788 = vmatpush1.msra.mxu0 0.0
  %789 = vmatprep.subr.mxu0 0.0
  %790 = vmatpush1.msra.mxu0 0.0
  %791 = vmatprep.subr.mxu0 0.0
  %792 = vmatpush1.msra.mxu0 0.0
  %793 = vmatprep.subr.mxu0 0.0
  %794 = vmatpush1.msra.mxu0 0.0
  %795 = vmatprep.subr.mxu0 0.0
  %796 = vmatpush1.msra.mxu0 0.0
  %797 = vmatprep.subr.mxu0 0.0
  %798 = vmatpush1.msra.mxu0 0.0
  %799 = vmatprep.subr.mxu0 0.0
  %800 = vmatpush1.msra.mxu0 0.0
  %801 = vmatprep.subr.mxu0 0.0
  %802 = vmatpush1.msra.mxu0 0.0
  %803 = vmatprep.subr.mxu0 0.0
  %804 = vmatpush1.msra.mxu0 0.0
  %805 = vmatprep.subr.mxu0 0.0
  %806 = vmatpush1.msra.mxu0 0.0
  %807 = vmatprep.subr.mxu0 0.0
  %808 = vmatpush1.msra.mxu0 0.0
  %809 = vmatprep.subr.mxu0 0.0
  %810 = vmatpush1.msra.mxu0 0.0
  %811 = vmatprep.subr.mxu0 0.0
  %812 = vmatpush1.msra.mxu0 0.0
  %813 = vmatprep.subr.mxu0 0.0
  %814 = vmatpush1.msra.mxu0 0.0
  %815 = vmatprep.subr.mxu0 0.0
  %816 = vmatpush1.msra.mxu0 0.0
  %817 = vmatprep.subr.mxu0 0.0
  %818 = vmatpush1.msra.mxu0 0.0
  %819 = vmatprep.subr.mxu0 0.0
  %820 = vmatpush1.msra.mxu0 0.0
  %821 = vmatprep.subr.mxu0 0.0
  %822 = vmatpush1.msra.mxu0 0.0
  %823 = vmatprep.subr.mxu0 0.0
  %824 = vmatpush1.msra.mxu0 0.0
  %825 = vmatprep.subr.mxu0 0.0
  %826 = vmatpush1.msra.mxu0 0.0
  %827 = vmatprep.subr.mxu0 0.0
  %828 = vmatpush1.msra.mxu0 0.0
  %829 = vmatprep.subr.mxu0 0.0
  %830 = vmatpush1.msra.mxu0 0.0
  %831 = vmatprep.subr.mxu0 0.0
  %832 = vmatpush1.msra.mxu0 0.0
  %833 = vmatprep.subr.mxu0 0.0
  %834 = vmatpush1.msra.mxu0 0.0
  %835 = vmatprep.subr.mxu0 0.0
  %836 = vmatpush1.msra.mxu0 0.0
  %837 = vmatprep.subr.mxu0 0.0
  %838 = vmatpush1.msra.mxu0 0.0
  %839 = vmatprep.subr.mxu0 0.0
  %840 = vmatpush1.msra.mxu0 0.0
  %841 = vmatprep.subr.mxu0 0.0
  %842 = vmatpush1.msra.mxu0 0.0
  %843 = vmatprep.mubr.f32.mxu0 0.0
  %844 = vmatmul.mubr.f32.gmra.mrb[0].mxu0 %v775
  %v845 = vpop.f32.mrb[0].mxu0
  %v846 = vadd.f32 %v767, %v845
  %v847 = vpop.f32.mrb[0].mxu0
  %848 = vmatprep.mubr.f32.mxu0 0.0
  %849 = vmatmul.mubr.f32.gmra.mrb[0].mxu0 %v777
  %v850 = vpop.f32.mrb[0].mxu0
  %v851 = vadd.f32 %v772, %v850
  %v852 = vpop.f32.mrb[0].mxu0
  %853 = vdwg.mxu0
  %v854 = vld [vmem:[%s588] sm:$0xff]
  %v855 = vld [vmem:[%s588 + $0x8] sm:$0xff]
  %v856 = vrot.slane %v681, 2
  %v857 = vrot.slane %v682, 2
  %v858 = vsel %vm237, %v856, %v857
  %v859 = vrot.slane %v683, 2
  %v860 = vsel %vm237, %v857, %v859
  %v861 = vsel %vm328, %v858, 0
  %v863 = vsel %vm328, %v860, 0
  %865 = vmatprep.subr.mxu0 0.0
  %866 = vmatpush1.msra.mxu0 %v854
  %867 = vmatprep.subr.mxu0 0.0
  %868 = vmatpush1.msra.mxu0 %v855
  %869 = vmatprep.subr.mxu0 0.0
  %870 = vmatpush1.msra.mxu0 0.0
  %871 = vmatprep.subr.mxu0 0.0
  %872 = vmatpush1.msra.mxu0 0.0
  %873 = vmatprep.subr.mxu0 0.0
  %874 = vmatpush1.msra.mxu0 0.0
  %875 = vmatprep.subr.mxu0 0.0
  %876 = vmatpush1.msra.mxu0 0.0
  %877 = vmatprep.subr.mxu0 0.0
  %878 = vmatpush1.msra.mxu0 0.0
  %879 = vmatprep.subr.mxu0 0.0
  %880 = vmatpush1.msra.mxu0 0.0
  %881 = vmatprep.subr.mxu0 0.0
  %882 = vmatpush1.msra.mxu0 0.0
  %883 = vmatprep.subr.mxu0 0.0
  %884 = vmatpush1.msra.mxu0 0.0
  %885 = vmatprep.subr.mxu0 0.0
  %886 = vmatpush1.msra.mxu0 0.0
  %887 = vmatprep.subr.mxu0 0.0
  %888 = vmatpush1.msra.mxu0 0.0
  %889 = vmatprep.subr.mxu0 0.0
  %890 = vmatpush1.msra.mxu0 0.0
  %891 = vmatprep.subr.mxu0 0.0
  %892 = vmatpush1.msra.mxu0 0.0
  %893 = vmatprep.subr.mxu0 0.0
  %894 = vmatpush1.msra.mxu0 0.0
  %895 = vmatprep.subr.mxu0 0.0
  %896 = vmatpush1.msra.mxu0 0.0
  %897 = vmatprep.subr.mxu0 0.0
  %898 = vmatpush1.msra.mxu0 0.0
  %899 = vmatprep.subr.mxu0 0.0
  %900 = vmatpush1.msra.mxu0 0.0
  %901 = vmatprep.subr.mxu0 0.0
  %902 = vmatpush1.msra.mxu0 0.0
  %903 = vmatprep.subr.mxu0 0.0
  %904 = vmatpush1.msra.mxu0 0.0
  %905 = vmatprep.subr.mxu0 0.0
  %906 = vmatpush1.msra.mxu0 0.0
  %907 = vmatprep.subr.mxu0 0.0
  %908 = vmatpush1.msra.mxu0 0.0
  %909 = vmatprep.subr.mxu0 0.0
  %910 = vmatpush1.msra.mxu0 0.0
  %911 = vmatprep.subr.mxu0 0.0
  %912 = vmatpush1.msra.mxu0 0.0
  %913 = vmatprep.subr.mxu0 0.0
  %914 = vmatpush1.msra.mxu0 0.0
  %915 = vmatprep.subr.mxu0 0.0
  %916 = vmatpush1.msra.mxu0 0.0
  %917 = vmatprep.subr.mxu0 0.0
  %918 = vmatpush1.msra.mxu0 0.0
  %919 = vmatprep.subr.mxu0 0.0
  %920 = vmatpush1.msra.mxu0 0.0
  %921 = vmatprep.subr.mxu0 0.0
  %922 = vmatpush1.msra.mxu0 0.0
  %923 = vmatprep.subr.mxu0 0.0
  %924 = vmatpush1.msra.mxu0 0.0
  %925 = vmatprep.subr.mxu0 0.0
  %926 = vmatpush1.msra.mxu0 0.0
  %927 = vmatprep.subr.mxu0 0.0
  %928 = vmatpush1.msra.mxu0 0.0
  %929 = vmatprep.mubr.f32.mxu0 0.0
  %930 = vmatmul.mubr.f32.gmra.mrb[0].mxu0 %v861
  %v931 = vpop.f32.mrb[0].mxu0
  %v932 = vadd.f32 0.0, %v931
  %v933 = vpop.f32.mrb[0].mxu0
  %934 = vmatprep.mubr.f32.mxu0 0.0
  %935 = vmatmul.mubr.f32.gmra.mrb[0].mxu0 %v863
  %v936 = vpop.f32.mrb[0].mxu0
  %v937 = vadd.f32 0.0, %v936
  %v938 = vpop.f32.mrb[0].mxu0
  %939 = vdwg.mxu0
  %v940 = vadd.f32 %v846, %v932
  %v941 = vadd.f32 %v851, %v937
  %v942 = vsel %vm328, %v675, 0.0
  %v943 = vsel %vm328, %v676, 0.0
  %v944 = vadd.f32 %v942, %v943
  %v945 = vrot.slane %v944, 4
  %v946 = vadd.f32 %v944, %v945
  %v947 = vrot.slane %v946, 2
  %v948 = vadd.f32 %v946, %v947
  %v949 = vrot.slane %v948, 1
  %v950 = vadd.f32 %v948, %v949
  %v951 = vadd.f32 %v950, 0.0
  %v952 = vsel %vm328, %v940, 0.0
  %v953 = vsel %vm328, %v941, 0.0
  %v954 = vadd.f32 %v952, %v953
  %v955 = vrot.slane %v954, 4
  %v956 = vadd.f32 %v954, %v955
  %v957 = vrot.slane %v956, 2
  %v958 = vadd.f32 %v956, %v957
  %v959 = vrot.slane %v958, 1
  %v960 = vadd.f32 %v958, %v959
  %v961 = vadd.f32 %v951, %v960
  %v962 = vmul.f32 %v675, %v675
  %v963 = vmul.f32 %v676, %v676
  %v964 = vsel %vm328, %v962, 0.0
  %v965 = vsel %vm328, %v963, 0.0
  %v966 = vadd.f32 %v964, %v965
  %v967 = vrot.slane %v966, 4
  %v968 = vadd.f32 %v966, %v967
  %v969 = vrot.slane %v968, 2
  %v970 = vadd.f32 %v968, %v969
  %v971 = vrot.slane %v970, 1
  %v972 = vadd.f32 %v970, %v971
  %v973 = vadd.f32 %v972, 0.0
  %v974 = vmul.f32 %v940, %v940
  %v975 = vmul.f32 %v941, %v941
  %v976 = vsel %vm328, %v974, 0.0
  %v977 = vsel %vm328, %v975, 0.0
  %v978 = vadd.f32 %v976, %v977
  %v979 = vrot.slane %v978, 4
  %v980 = vadd.f32 %v978, %v979
  %v981 = vrot.slane %v980, 2
  %v982 = vadd.f32 %v980, %v981
  %v983 = vrot.slane %v982, 1
  %v984 = vadd.f32 %v982, %v983
  %v985 = vadd.f32 %v973, %v984
  %v986 = vmul.f32 %v961, %v373
  %v987 = vmul.f32 %v985, %v373
  %v988 = vmul.f32 %v986, %v986
  %v989 = vsub.f32 %v987, %v988
  %v990 = vld [vmem:[%s11] sm:$0x1]
  %v991 = vadd.f32 %v989, 1e-05
  %v992 = vrsqrt.pop %v991
  %v993 = vmul.f32 %v990, %v992
  %v994 = vld [vmem:[%s13] sm:$0x1]
  %v995 = vmul.f32 %v986, %v993
  %v996 = vsub.f32 %v994, %v995
  %v998 = vlaneseq
  %v999 = vshrl.u32 %v998, 7
  %v1000 = vsub.s32 0, %v999
  %v1001 = vrot.slane %v993, %v1000
  %v1003 = vmul.f32 %v675, %v1001
  %v1004 = vmul.f32 %v676, %v1001
  %v1006 = vlaneseq
  %v1007 = vshrl.u32 %v1006, 7
  %v1008 = vsub.s32 0, %v1007
  %v1009 = vrot.slane %v996, %v1008
  %v1011 = vadd.f32 %v1003, %v1009
  %v1012 = vadd.f32 %v1004, %v1009
  %v1013 = vtanh.pop %v1011
  %v1014 = vtanh.pop %v1012
  %v1015 = vmul.f32 %v940, %v1001
  %v1016 = vmul.f32 %v941, %v1001
  %v1017 = vadd.f32 %v1015, %v1009
  %v1018 = vadd.f32 %v1016, %v1009
  %v1019 = vtanh.pop %v1017
  %v1020 = vtanh.pop %v1018
  %1021 = vst.msk [vmem:[#allocation2] sm:$0x1] %vm409, 0.0
  %1022 = vst.msk [vmem:[#allocation2 + $0x9] sm:$0x1] %vm409, 0.0
  %v1024 = vrot.slane %v1013, 1
  %v1026 = vmax.f32 %v1013, %v1024
  %1027 = vst.msk [vmem:[#allocation2 + $0x1] sm:$0x1] %vm409, %v1026
  %vm1028 = vcmask 124930
  %1029 = vst.msk [vmem:[#allocation2] sm:$0x4] %vm1028, %v1026
  %vm1030 = vcmask 126980
  %1031 = vst.msk [vmem:[#allocation2 - $0x1] sm:$0x10] %vm1030, %v1026
  %vm1032 = vcmask 129030
  %1033 = vst.msk [vmem:[#allocation2 - $0x2] sm:$0x40] %vm1032, %v1026
  %v1035 = vrot.slane %v1014, 1
  %v1037 = vmax.f32 %v1014, %v1035
  %1038 = vst.msk [vmem:[#allocation2 + $0x5] sm:$0x1] %vm409, %v1037
  %1039 = vst.msk [vmem:[#allocation2 + $0x4] sm:$0x4] %vm1028, %v1037
  %1040 = vst.msk [vmem:[#allocation2 + $0x3] sm:$0x10] %vm1030, %v1037
  %1041 = vst.msk [vmem:[#allocation2 + $0x2] sm:$0x40] %vm1032, %v1037
  %v1042 = vld [vmem:[#allocation2] sm:$0xff]
  %v1043 = vld [vmem:[#allocation2 + $0x8] sm:$0xff]
  %v1044 = vld [vmem:[%s15] sm:$0xff]
  %v1045 = vld [vmem:[%s15 + $0x8] sm:$0xff]
  %s1046 = scalar_lea.vmem %s15, 16
  %v1047 = vld [vmem:[%s1046] sm:$0xff]
  %v1048 = vld [vmem:[%s1046 + $0x8] sm:$0xff]
  %v1051 = vrot.slane %v1042, 1
  %v1052 = vrot.slane %v1043, 1
  %v1053 = vsel %vm213, %v1051, %v1052
  %v1054 = vsel %vm328, %v1053, 0
  %1056 = vmatprep.subr.mxu0 0.0
  %1057 = vmatpush1.msra.mxu0 %v1047
  %1058 = vmatprep.subr.mxu0 0.0
  %1059 = vmatpush1.msra.mxu0 %v1048
  %1060 = vmatprep.subr.mxu0 0.0
  %1061 = vmatpush1.msra.mxu0 0.0
  %1062 = vmatprep.subr.mxu0 0.0
  %1063 = vmatpush1.msra.mxu0 0.0
  %1064 = vmatprep.subr.mxu0 0.0
  %1065 = vmatpush1.msra.mxu0 0.0
  %1066 = vmatprep.subr.mxu0 0.0
  %1067 = vmatpush1.msra.mxu0 0.0
  %1068 = vmatprep.subr.mxu0 0.0
  %1069 = vmatpush1.msra.mxu0 0.0
  %1070 = vmatprep.subr.mxu0 0.0
  %1071 = vmatpush1.msra.mxu0 0.0
  %1072 = vmatprep.subr.mxu0 0.0
  %1073 = vmatpush1.msra.mxu0 0.0
  %1074 = vmatprep.subr.mxu0 0.0
  %1075 = vmatpush1.msra.mxu0 0.0
  %1076 = vmatprep.subr.mxu0 0.0
  %1077 = vmatpush1.msra.mxu0 0.0
  %1078 = vmatprep.subr.mxu0 0.0
  %1079 = vmatpush1.msra.mxu0 0.0
  %1080 = vmatprep.subr.mxu0 0.0
  %1081 = vmatpush1.msra.mxu0 0.0
  %1082 = vmatprep.subr.mxu0 0.0
  %1083 = vmatpush1.msra.mxu0 0.0
  %1084 = vmatprep.subr.mxu0 0.0
  %1085 = vmatpush1.msra.mxu0 0.0
  %1086 = vmatprep.subr.mxu0 0.0
  %1087 = vmatpush1.msra.mxu0 0.0
  %1088 = vmatprep.subr.mxu0 0.0
  %1089 = vmatpush1.msra.mxu0 0.0
  %1090 = vmatprep.subr.mxu0 0.0
  %1091 = vmatpush1.msra.mxu0 0.0
  %1092 = vmatprep.subr.mxu0 0.0
  %1093 = vmatpush1.msra.mxu0 0.0
  %1094 = vmatprep.subr.mxu0 0.0
  %1095 = vmatpush1.msra.mxu0 0.0
  %1096 = vmatprep.subr.mxu0 0.0
  %1097 = vmatpush1.msra.mxu0 0.0
  %1098 = vmatprep.subr.mxu0 0.0
  %1099 = vmatpush1.msra.mxu0 0.0
  %1100 = vmatprep.subr.mxu0 0.0
  %1101 = vmatpush1.msra.mxu0 0.0
  %1102 = vmatprep.subr.mxu0 0.0
  %1103 = vmatpush1.msra.mxu0 0.0
  %1104 = vmatprep.subr.mxu0 0.0
  %1105 = vmatpush1.msra.mxu0 0.0
  %1106 = vmatprep.subr.mxu0 0.0
  %1107 = vmatpush1.msra.mxu0 0.0
  %1108 = vmatprep.subr.mxu0 0.0
  %1109 = vmatpush1.msra.mxu0 0.0
  %1110 = vmatprep.subr.mxu0 0.0
  %1111 = vmatpush1.msra.mxu0 0.0
  %1112 = vmatprep.subr.mxu0 0.0
  %1113 = vmatpush1.msra.mxu0 0.0
  %1114 = vmatprep.subr.mxu0 0.0
  %1115 = vmatpush1.msra.mxu0 0.0
  %1116 = vmatprep.subr.mxu0 0.0
  %1117 = vmatpush1.msra.mxu0 0.0
  %1118 = vmatprep.subr.mxu0 0.0
  %1119 = vmatpush1.msra.mxu0 0.0
  %1120 = vmatprep.mubr.f32.mxu0 0.0
  %1121 = vmatmul.mubr.f32.gmra.mrb[0].mxu0 %v1054
  %v1122 = vpop.f32.mrb[0].mxu0
  %v1123 = vadd.f32 0.0, %v1122
  %v1124 = vpop.f32.mrb[0].mxu0
  %1125 = vdwg.mxu0
  %v1126 = vsel %vm328, %v1042, 0
  %1128 = vmatprep.subr.mxu0 0.0
  %1129 = vmatpush1.msra.mxu0 %v1044
  %1130 = vmatprep.subr.mxu0 0.0
  %1131 = vmatpush1.msra.mxu0 %v1045
  %1132 = vmatprep.subr.mxu0 0.0
  %1133 = vmatpush1.msra.mxu0 0.0
  %1134 = vmatprep.subr.mxu0 0.0
  %1135 = vmatpush1.msra.mxu0 0.0
  %1136 = vmatprep.subr.mxu0 0.0
  %1137 = vmatpush1.msra.mxu0 0.0
  %1138 = vmatprep.subr.mxu0 0.0
  %1139 = vmatpush1.msra.mxu0 0.0
  %1140 = vmatprep.subr.mxu0 0.0
  %1141 = vmatpush1.msra.mxu0 0.0
  %1142 = vmatprep.subr.mxu0 0.0
  %1143 = vmatpush1.msra.mxu0 0.0
  %1144 = vmatprep.subr.mxu0 0.0
  %1145 = vmatpush1.msra.mxu0 0.0
  %1146 = vmatprep.subr.mxu0 0.0
  %1147 = vmatpush1.msra.mxu0 0.0
  %1148 = vmatprep.subr.mxu0 0.0
  %1149 = vmatpush1.msra.mxu0 0.0
  %1150 = vmatprep.subr.mxu0 0.0
  %1151 = vmatpush1.msra.mxu0 0.0
  %1152 = vmatprep.subr.mxu0 0.0
  %1153 = vmatpush1.msra.mxu0 0.0
  %1154 = vmatprep.subr.mxu0 0.0
  %1155 = vmatpush1.msra.mxu0 0.0
  %1156 = vmatprep.subr.mxu0 0.0
  %1157 = vmatpush1.msra.mxu0 0.0
  %1158 = vmatprep.subr.mxu0 0.0
  %1159 = vmatpush1.msra.mxu0 0.0
  %1160 = vmatprep.subr.mxu0 0.0
  %1161 = vmatpush1.msra.mxu0 0.0
  %1162 = vmatprep.subr.mxu0 0.0
  %1163 = vmatpush1.msra.mxu0 0.0
  %1164 = vmatprep.subr.mxu0 0.0
  %1165 = vmatpush1.msra.mxu0 0.0
  %1166 = vmatprep.subr.mxu0 0.0
  %1167 = vmatpush1.msra.mxu0 0.0
  %1168 = vmatprep.subr.mxu0 0.0
  %1169 = vmatpush1.msra.mxu0 0.0
  %1170 = vmatprep.subr.mxu0 0.0
  %1171 = vmatpush1.msra.mxu0 0.0
  %1172 = vmatprep.subr.mxu0 0.0
  %1173 = vmatpush1.msra.mxu0 0.0
  %1174 = vmatprep.subr.mxu0 0.0
  %1175 = vmatpush1.msra.mxu0 0.0
  %1176 = vmatprep.subr.mxu0 0.0
  %1177 = vmatpush1.msra.mxu0 0.0
  %1178 = vmatprep.subr.mxu0 0.0
  %1179 = vmatpush1.msra.mxu0 0.0
  %1180 = vmatprep.subr.mxu0 0.0
  %1181 = vmatpush1.msra.mxu0 0.0
  %1182 = vmatprep.subr.mxu0 0.0
  %1183 = vmatpush1.msra.mxu0 0.0
  %1184 = vmatprep.subr.mxu0 0.0
  %1185 = vmatpush1.msra.mxu0 0.0
  %1186 = vmatprep.subr.mxu0 0.0
  %1187 = vmatpush1.msra.mxu0 0.0
  %1188 = vmatprep.subr.mxu0 0.0
  %1189 = vmatpush1.msra.mxu0 0.0
  %1190 = vmatprep.subr.mxu0 0.0
  %1191 = vmatpush1.msra.mxu0 0.0
  %1192 = vmatprep.mubr.f32.mxu0 0.0
  %1193 = vmatmul.mubr.f32.gmra.mrb[0].mxu0 %v1126
  %v1194 = vpop.f32.mrb[0].mxu0
  %v1195 = vadd.f32 %v1123, %v1194
  %v1196 = vpop.f32.mrb[0].mxu0
  %1197 = vdwg.mxu0
  %s1198 = scalar_lea.vmem %s15, 32
  %v1199 = vld [vmem:[%s1198] sm:$0xff]
  %v1200 = vld [vmem:[%s1198 + $0x8] sm:$0xff]
  %v1201 = vrot.slane %v1042, 2
  %v1202 = vrot.slane %v1043, 2
  %v1203 = vsel %vm237, %v1201, %v1202
  %v1204 = vsel %vm328, %v1203, 0
  %1206 = vmatprep.subr.mxu0 0.0
  %1207 = vmatpush1.msra.mxu0 %v1199
  %1208 = vmatprep.subr.mxu0 0.0
  %1209 = vmatpush1.msra.mxu0 %v1200
  %1210 = vmatprep.subr.mxu0 0.0
  %1211 = vmatpush1.msra.mxu0 0.0
  %1212 = vmatprep.subr.mxu0 0.0
  %1213 = vmatpush1.msra.mxu0 0.0
  %1214 = vmatprep.subr.mxu0 0.0
  %1215 = vmatpush1.msra.mxu0 0.0
  %1216 = vmatprep.subr.mxu0 0.0
  %1217 = vmatpush1.msra.mxu0 0.0
  %1218 = vmatprep.subr.mxu0 0.0
  %1219 = vmatpush1.msra.mxu0 0.0
  %1220 = vmatprep.subr.mxu0 0.0
  %1221 = vmatpush1.msra.mxu0 0.0
  %1222 = vmatprep.subr.mxu0 0.0
  %1223 = vmatpush1.msra.mxu0 0.0
  %1224 = vmatprep.subr.mxu0 0.0
  %1225 = vmatpush1.msra.mxu0 0.0
  %1226 = vmatprep.subr.mxu0 0.0
  %1227 = vmatpush1.msra.mxu0 0.0
  %1228 = vmatprep.subr.mxu0 0.0
  %1229 = vmatpush1.msra.mxu0 0.0
  %1230 = vmatprep.subr.mxu0 0.0
  %1231 = vmatpush1.msra.mxu0 0.0
  %1232 = vmatprep.subr.mxu0 0.0
  %1233 = vmatpush1.msra.mxu0 0.0
  %1234 = vmatprep.subr.mxu0 0.0
  %1235 = vmatpush1.msra.mxu0 0.0
  %1236 = vmatprep.subr.mxu0 0.0
  %1237 = vmatpush1.msra.mxu0 0.0
  %1238 = vmatprep.subr.mxu0 0.0
  %1239 = vmatpush1.msra.mxu0 0.0
  %1240 = vmatprep.subr.mxu0 0.0
  %1241 = vmatpush1.msra.mxu0 0.0
  %1242 = vmatprep.subr.mxu0 0.0
  %1243 = vmatpush1.msra.mxu0 0.0
  %1244 = vmatprep.subr.mxu0 0.0
  %1245 = vmatpush1.msra.mxu0 0.0
  %1246 = vmatprep.subr.mxu0 0.0
  %1247 = vmatpush1.msra.mxu0 0.0
  %1248 = vmatprep.subr.mxu0 0.0
  %1249 = vmatpush1.msra.mxu0 0.0
  %1250 = vmatprep.subr.mxu0 0.0
  %1251 = vmatpush1.msra.mxu0 0.0
  %1252 = vmatprep.subr.mxu0 0.0
  %1253 = vmatpush1.msra.mxu0 0.0
  %1254 = vmatprep.subr.mxu0 0.0
  %1255 = vmatpush1.msra.mxu0 0.0
  %1256 = vmatprep.subr.mxu0 0.0
  %1257 = vmatpush1.msra.mxu0 0.0
  %1258 = vmatprep.subr.mxu0 0.0
  %1259 = vmatpush1.msra.mxu0 0.0
  %1260 = vmatprep.subr.mxu0 0.0
  %1261 = vmatpush1.msra.mxu0 0.0
  %1262 = vmatprep.subr.mxu0 0.0
  %1263 = vmatpush1.msra.mxu0 0.0
  %1264 = vmatprep.subr.mxu0 0.0
  %1265 = vmatpush1.msra.mxu0 0.0
  %1266 = vmatprep.subr.mxu0 0.0
  %1267 = vmatpush1.msra.mxu0 0.0
  %1268 = vmatprep.subr.mxu0 0.0
  %1269 = vmatpush1.msra.mxu0 0.0
  %1270 = vmatprep.mubr.f32.mxu0 0.0
  %1271 = vmatmul.mubr.f32.gmra.mrb[0].mxu0 %v1204
  %v1272 = vpop.f32.mrb[0].mxu0
  %v1273 = vadd.f32 0.0, %v1272
  %v1274 = vpop.f32.mrb[0].mxu0
  %1275 = vdwg.mxu0
  %v1276 = vadd.f32 %v1195, %v1273
  %1277 = vst.msk [vmem:[%s250] sm:$0x1] %vm409, 0.0
  %1278 = vst.msk [vmem:[%s250 + $0x9] sm:$0x1] %vm409, 0.0
  %v1280 = vrot.slane %v1019, 1
  %v1282 = vmax.f32 %v1019, %v1280
  %1283 = vst.msk [vmem:[%s250 + $0x1] sm:$0x1] %vm409, %v1282
  %1284 = vst.msk [vmem:[%s250] sm:$0x4] %vm1028, %v1282
  %1285 = vst.msk [vmem:[%s250 - $0x1] sm:$0x10] %vm1030, %v1282
  %1286 = vst.msk [vmem:[%s250 - $0x2] sm:$0x40] %vm1032, %v1282
  %v1288 = vrot.slane %v1020, 1
  %v1290 = vmax.f32 %v1020, %v1288
  %1291 = vst.msk [vmem:[%s250 + $0x5] sm:$0x1] %vm409, %v1290
  %1292 = vst.msk [vmem:[%s250 + $0x4] sm:$0x4] %vm1028, %v1290
  %1293 = vst.msk [vmem:[%s250 + $0x3] sm:$0x10] %vm1030, %v1290
  %1294 = vst.msk [vmem:[%s250 + $0x2] sm:$0x40] %vm1032, %v1290
  %v1295 = vld [vmem:[%s250] sm:$0xff]
  %v1296 = vld [vmem:[%s250 + $0x8] sm:$0xff]
  %v1297 = vld [vmem:[%s15] sm:$0xff]
  %v1298 = vld [vmem:[%s15 + $0x8] sm:$0xff]
  %v1299 = vld [vmem:[%s1046] sm:$0xff]
  %v1300 = vld [vmem:[%s1046 + $0x8] sm:$0xff]
  %v1303 = vrot.slane %v1295, 1
  %v1304 = vrot.slane %v1296, 1
  %v1305 = vsel %vm213, %v1303, %v1304
  %v1306 = vsel %vm328, %v1305, 0
  %1308 = vmatprep.subr.mxu0 0.0
  %1309 = vmatpush1.msra.mxu0 %v1299
  %1310 = vmatprep.subr.mxu0 0.0
  %1311 = vmatpush1.msra.mxu0 %v1300
  %1312 = vmatprep.subr.mxu0 0.0
  %1313 = vmatpush1.msra.mxu0 0.0
  %1314 = vmatprep.subr.mxu0 0.0
  %1315 = vmatpush1.msra.mxu0 0.0
  %1316 = vmatprep.subr.mxu0 0.0
  %1317 = vmatpush1.msra.mxu0 0.0
  %1318 = vmatprep.subr.mxu0 0.0
  %1319 = vmatpush1.msra.mxu0 0.0
  %1320 = vmatprep.subr.mxu0 0.0
  %1321 = vmatpush1.msra.mxu0 0.0
  %1322 = vmatprep.subr.mxu0 0.0
  %1323 = vmatpush1.msra.mxu0 0.0
  %1324 = vmatprep.subr.mxu0 0.0
  %1325 = vmatpush1.msra.mxu0 0.0
  %1326 = vmatprep.subr.mxu0 0.0
  %1327 = vmatpush1.msra.mxu0 0.0
  %1328 = vmatprep.subr.mxu0 0.0
  %1329 = vmatpush1.msra.mxu0 0.0
  %1330 = vmatprep.subr.mxu0 0.0
  %1331 = vmatpush1.msra.mxu0 0.0
  %1332 = vmatprep.subr.mxu0 0.0
  %1333 = vmatpush1.msra.mxu0 0.0
  %1334 = vmatprep.subr.mxu0 0.0
  %1335 = vmatpush1.msra.mxu0 0.0
  %1336 = vmatprep.subr.mxu0 0.0
  %1337 = vmatpush1.msra.mxu0 0.0
  %1338 = vmatprep.subr.mxu0 0.0
  %1339 = vmatpush1.msra.mxu0 0.0
  %1340 = vmatprep.subr.mxu0 0.0
  %1341 = vmatpush1.msra.mxu0 0.0
  %1342 = vmatprep.subr.mxu0 0.0
  %1343 = vmatpush1.msra.mxu0 0.0
  %1344 = vmatprep.subr.mxu0 0.0
  %1345 = vmatpush1.msra.mxu0 0.0
  %1346 = vmatprep.subr.mxu0 0.0
  %1347 = vmatpush1.msra.mxu0 0.0
  %1348 = vmatprep.subr.mxu0 0.0
  %1349 = vmatpush1.msra.mxu0 0.0
  %1350 = vmatprep.subr.mxu0 0.0
  %1351 = vmatpush1.msra.mxu0 0.0
  %1352 = vmatprep.subr.mxu0 0.0
  %1353 = vmatpush1.msra.mxu0 0.0
  %1354 = vmatprep.subr.mxu0 0.0
  %1355 = vmatpush1.msra.mxu0 0.0
  %1356 = vmatprep.subr.mxu0 0.0
  %1357 = vmatpush1.msra.mxu0 0.0
  %1358 = vmatprep.subr.mxu0 0.0
  %1359 = vmatpush1.msra.mxu0 0.0
  %1360 = vmatprep.subr.mxu0 0.0
  %1361 = vmatpush1.msra.mxu0 0.0
  %1362 = vmatprep.subr.mxu0 0.0
  %1363 = vmatpush1.msra.mxu0 0.0
  %1364 = vmatprep.subr.mxu0 0.0
  %1365 = vmatpush1.msra.mxu0 0.0
  %1366 = vmatprep.subr.mxu0 0.0
  %1367 = vmatpush1.msra.mxu0 0.0
  %1368 = vmatprep.subr.mxu0 0.0
  %1369 = vmatpush1.msra.mxu0 0.0
  %1370 = vmatprep.subr.mxu0 0.0
  %1371 = vmatpush1.msra.mxu0 0.0
  %1372 = vmatprep.mubr.f32.mxu0 0.0
  %1373 = vmatmul.mubr.f32.gmra.mrb[0].mxu0 %v1306
  %v1374 = vpop.f32.mrb[0].mxu0
  %v1375 = vadd.f32 0.0, %v1374
  %v1376 = vpop.f32.mrb[0].mxu0
  %1377 = vdwg.mxu0
  %v1378 = vsel %vm328, %v1295, 0
  %1380 = vmatprep.subr.mxu0 0.0
  %1381 = vmatpush1.msra.mxu0 %v1297
  %1382 = vmatprep.subr.mxu0 0.0
  %1383 = vmatpush1.msra.mxu0 %v1298
  %1384 = vmatprep.subr.mxu0 0.0
  %1385 = vmatpush1.msra.mxu0 0.0
  %1386 = vmatprep.subr.mxu0 0.0
  %1387 = vmatpush1.msra.mxu0 0.0
  %1388 = vmatprep.subr.mxu0 0.0
  %1389 = vmatpush1.msra.mxu0 0.0
  %1390 = vmatprep.subr.mxu0 0.0
  %1391 = vmatpush1.msra.mxu0 0.0
  %1392 = vmatprep.subr.mxu0 0.0
  %1393 = vmatpush1.msra.mxu0 0.0
  %1394 = vmatprep.subr.mxu0 0.0
  %1395 = vmatpush1.msra.mxu0 0.0
  %1396 = vmatprep.subr.mxu0 0.0
  %1397 = vmatpush1.msra.mxu0 0.0
  %1398 = vmatprep.subr.mxu0 0.0
  %1399 = vmatpush1.msra.mxu0 0.0
  %1400 = vmatprep.subr.mxu0 0.0
  %1401 = vmatpush1.msra.mxu0 0.0
  %1402 = vmatprep.subr.mxu0 0.0
  %1403 = vmatpush1.msra.mxu0 0.0
  %1404 = vmatprep.subr.mxu0 0.0
  %1405 = vmatpush1.msra.mxu0 0.0
  %1406 = vmatprep.subr.mxu0 0.0
  %1407 = vmatpush1.msra.mxu0 0.0
  %1408 = vmatprep.subr.mxu0 0.0
  %1409 = vmatpush1.msra.mxu0 0.0
  %1410 = vmatprep.subr.mxu0 0.0
  %1411 = vmatpush1.msra.mxu0 0.0
  %1412 = vmatprep.subr.mxu0 0.0
  %1413 = vmatpush1.msra.mxu0 0.0
  %1414 = vmatprep.subr.mxu0 0.0
  %1415 = vmatpush1.msra.mxu0 0.0
  %1416 = vmatprep.subr.mxu0 0.0
  %1417 = vmatpush1.msra.mxu0 0.0
  %1418 = vmatprep.subr.mxu0 0.0
  %1419 = vmatpush1.msra.mxu0 0.0
  %1420 = vmatprep.subr.mxu0 0.0
  %1421 = vmatpush1.msra.mxu0 0.0
  %1422 = vmatprep.subr.mxu0 0.0
  %1423 = vmatpush1.msra.mxu0 0.0
  %1424 = vmatprep.subr.mxu0 0.0
  %1425 = vmatpush1.msra.mxu0 0.0
  %1426 = vmatprep.subr.mxu0 0.0
  %1427 = vmatpush1.msra.mxu0 0.0
  %1428 = vmatprep.subr.mxu0 0.0
  %1429 = vmatpush1.msra.mxu0 0.0
  %1430 = vmatprep.subr.mxu0 0.0
  %1431 = vmatpush1.msra.mxu0 0.0
  %1432 = vmatprep.subr.mxu0 0.0
  %1433 = vmatpush1.msra.mxu0 0.0
  %1434 = vmatprep.subr.mxu0 0.0
  %1435 = vmatpush1.msra.mxu0 0.0
  %1436 = vmatprep.subr.mxu0 0.0
  %1437 = vmatpush1.msra.mxu0 0.0
  %1438 = vmatprep.subr.mxu0 0.0
  %1439 = vmatpush1.msra.mxu0 0.0
  %1440 = vmatprep.subr.mxu0 0.0
  %1441 = vmatpush1.msra.mxu0 0.0
  %1442 = vmatprep.subr.mxu0 0.0
  %1443 = vmatpush1.msra.mxu0 0.0
  %1444 = vmatprep.mubr.f32.mxu0 0.0
  %1445 = vmatmul.mubr.f32.gmra.mrb[0].mxu0 %v1378
  %v1446 = vpop.f32.mrb[0].mxu0
  %v1447 = vadd.f32 %v1375, %v1446
  %v1448 = vpop.f32.mrb[0].mxu0
  %1449 = vdwg.mxu0
  %v1450 = vld [vmem:[%s1198] sm:$0xff]
  %v1451 = vld [vmem:[%s1198 + $0x8] sm:$0xff]
  %v1452 = vrot.slane %v1295, 2
  %v1453 = vrot.slane %v1296, 2
  %v1454 = vsel %vm237, %v1452, %v1453
  %v1455 = vsel %vm328, %v1454, 0
  %1457 = vmatprep.subr.mxu0 0.0
  %1458 = vmatpush1.msra.mxu0 %v1450
  %1459 = vmatprep.subr.mxu0 0.0
  %1460 = vmatpush1.msra.mxu0 %v1451
  %1461 = vmatprep.subr.mxu0 0.0
  %1462 = vmatpush1.msra.mxu0 0.0
  %1463 = vmatprep.subr.mxu0 0.0
  %1464 = vmatpush1.msra.mxu0 0.0
  %1465 = vmatprep.subr.mxu0 0.0
  %1466 = vmatpush1.msra.mxu0 0.0
  %1467 = vmatprep.subr.mxu0 0.0
  %1468 = vmatpush1.msra.mxu0 0.0
  %1469 = vmatprep.subr.mxu0 0.0
  %1470 = vmatpush1.msra.mxu0 0.0
  %1471 = vmatprep.subr.mxu0 0.0
  %1472 = vmatpush1.msra.mxu0 0.0
  %1473 = vmatprep.subr.mxu0 0.0
  %1474 = vmatpush1.msra.mxu0 0.0
  %1475 = vmatprep.subr.mxu0 0.0
  %1476 = vmatpush1.msra.mxu0 0.0
  %1477 = vmatprep.subr.mxu0 0.0
  %1478 = vmatpush1.msra.mxu0 0.0
  %1479 = vmatprep.subr.mxu0 0.0
  %1480 = vmatpush1.msra.mxu0 0.0
  %1481 = vmatprep.subr.mxu0 0.0
  %1482 = vmatpush1.msra.mxu0 0.0
  %1483 = vmatprep.subr.mxu0 0.0
  %1484 = vmatpush1.msra.mxu0 0.0
  %1485 = vmatprep.subr.mxu0 0.0
  %1486 = vmatpush1.msra.mxu0 0.0
  %1487 = vmatprep.subr.mxu0 0.0
  %1488 = vmatpush1.msra.mxu0 0.0
  %1489 = vmatprep.subr.mxu0 0.0
  %1490 = vmatpush1.msra.mxu0 0.0
  %1491 = vmatprep.subr.mxu0 0.0
  %1492 = vmatpush1.msra.mxu0 0.0
  %1493 = vmatprep.subr.mxu0 0.0
  %1494 = vmatpush1.msra.mxu0 0.0
  %1495 = vmatprep.subr.mxu0 0.0
  %1496 = vmatpush1.msra.mxu0 0.0
  %1497 = vmatprep.subr.mxu0 0.0
  %1498 = vmatpush1.msra.mxu0 0.0
  %1499 = vmatprep.subr.mxu0 0.0
  %1500 = vmatpush1.msra.mxu0 0.0
  %1501 = vmatprep.subr.mxu0 0.0
  %1502 = vmatpush1.msra.mxu0 0.0
  %1503 = vmatprep.subr.mxu0 0.0
  %1504 = vmatpush1.msra.mxu0 0.0
  %1505 = vmatprep.subr.mxu0 0.0
  %1506 = vmatpush1.msra.mxu0 0.0
  %1507 = vmatprep.subr.mxu0 0.0
  %1508 = vmatpush1.msra.mxu0 0.0
  %1509 = vmatprep.subr.mxu0 0.0
  %1510 = vmatpush1.msra.mxu0 0.0
  %1511 = vmatprep.subr.mxu0 0.0
  %1512 = vmatpush1.msra.mxu0 0.0
  %1513 = vmatprep.subr.mxu0 0.0
  %1514 = vmatpush1.msra.mxu0 0.0
  %1515 = vmatprep.subr.mxu0 0.0
  %1516 = vmatpush1.msra.mxu0 0.0
  %1517 = vmatprep.subr.mxu0 0.0
  %1518 = vmatpush1.msra.mxu0 0.0
  %1519 = vmatprep.subr.mxu0 0.0
  %1520 = vmatpush1.msra.mxu0 0.0
  %1521 = vmatprep.mubr.f32.mxu0 0.0
  %1522 = vmatmul.mubr.f32.gmra.mrb[0].mxu0 %v1455
  %v1523 = vpop.f32.mrb[0].mxu0
  %v1524 = vadd.f32 0.0, %v1523
  %v1525 = vpop.f32.mrb[0].mxu0
  %1526 = vdwg.mxu0
  %v1527 = vadd.f32 %v1447, %v1524
  %vm1528 = vcmask 261120
  %v1529 = vsel %vm1528, %v1276, 0.0
  %v1530 = vrot.slane %v1529, 4
  %v1531 = vadd.f32 %v1529, %v1530
  %v1532 = vrot.slane %v1531, 2
  %v1533 = vadd.f32 %v1531, %v1532
  %v1534 = vrot.slane %v1533, 1
  %v1535 = vadd.f32 %v1533, %v1534
  %v1536 = vadd.f32 %v1535, 0.0
  %v1537 = vsel %vm1528, %v1527, 0.0
  %v1538 = vrot.slane %v1537, 4
  %v1539 = vadd.f32 %v1537, %v1538
  %v1540 = vrot.slane %v1539, 2
  %v1541 = vadd.f32 %v1539, %v1540
  %v1542 = vrot.slane %v1541, 1
  %v1543 = vadd.f32 %v1541, %v1542
  %v1544 = vadd.f32 %v1536, %v1543
  %v1545 = vmul.f32 %v1276, %v1276
  %v1546 = vsel %vm1528, %v1545, 0.0
  %v1547 = vrot.slane %v1546, 4
  %v1548 = vadd.f32 %v1546, %v1547
  %v1549 = vrot.slane %v1548, 2
  %v1550 = vadd.f32 %v1548, %v1549
  %v1551 = vrot.slane %v1550, 1
  %v1552 = vadd.f32 %v1550, %v1551
  %v1553 = vadd.f32 %v1552, 0.0
  %v1554 = vmul.f32 %v1527, %v1527
  %v1555 = vsel %vm1528, %v1554, 0.0
  %v1556 = vrot.slane %v1555, 4
  %v1557 = vadd.f32 %v1555, %v1556
  %v1558 = vrot.slane %v1557, 2
  %v1559 = vadd.f32 %v1557, %v1558
  %v1560 = vrot.slane %v1559, 1
  %v1561 = vadd.f32 %v1559, %v1560
  %v1562 = vadd.f32 %v1553, %v1561
  %v1563 = vrcp.pop 16.0
  %v1564 = vmul.f32 %v1544, %v1563
  %v1565 = vmul.f32 %v1562, %v1563
  %v1566 = vmul.f32 %v1564, %v1564
  %v1567 = vsub.f32 %v1565, %v1566
  %v1568 = vld [vmem:[%s17] sm:$0x1]
  %v1569 = vadd.f32 %v1567, 1e-05
  %v1570 = vrsqrt.pop %v1569
  %v1571 = vmul.f32 %v1568, %v1570
  %v1572 = vld [vmem:[%s19] sm:$0x1]
  %v1573 = vmul.f32 %v1564, %v1571
  %v1574 = vsub.f32 %v1572, %v1573
  %v1576 = vlaneseq
  %v1577 = vshrl.u32 %v1576, 7
  %v1578 = vsub.s32 0, %v1577
  %v1579 = vrot.slane %v1571, %v1578
  %v1581 = vmul.f32 %v1276, %v1579
  %v1583 = vlaneseq
  %v1584 = vshrl.u32 %v1583, 7
  %v1585 = vsub.s32 0, %v1584
  %v1586 = vrot.slane %v1574, %v1585
  %v1588 = vadd.f32 %v1581, %v1586
  %v1589 = vtanh.pop %v1588
  %v1590 = vmul.f32 %v1527, %v1579
  %v1591 = vadd.f32 %v1590, %v1586
  %v1592 = vtanh.pop %v1591
  %vm1593 = vcmask 253952
  %1594 = vst.msk [vmem:[#allocation2] sm:$0x1] %vm1593, 0.0
  %1595 = vst.msk [vmem:[#allocation2 + $0x9] sm:$0x1] %vm1593, 0.0
  %1596 = vst.msk [vmem:[#allocation2 + $0x1] sm:$0xff] %vm1528, %v1589
  %v1597 = vld [vmem:[#allocation2] sm:$0xff]
  %v1598 = vld [vmem:[#allocation2 + $0x8] sm:$0xff]
  %v1599 = vld [vmem:[%s21] sm:$0xff]
  %v1600 = vld [vmem:[%s21 + $0x8] sm:$0xff]
  %v1601 = vld [vmem:[%s21 + $0x10] sm:$0xff]
  %v1602 = vld [vmem:[%s21 + $0x18] sm:$0xff]
  %s1603 = scalar_lea.vmem %s21, 32
  %v1604 = vld [vmem:[%s1603] sm:$0xff]
  %v1605 = vld [vmem:[%s1603 + $0x8] sm:$0xff]
  %v1606 = vld [vmem:[%s1603 + $0x10] sm:$0xff]
  %v1607 = vld [vmem:[%s1603 + $0x18] sm:$0xff]
  %v1610 = vrot.slane %v1597, 1
  %v1611 = vrot.slane %v1598, 1
  %v1612 = vsel %vm213, %v1610, %v1611
  %v1613 = vsel %vm1528, %v1612, 0
  %1615 = vmatprep.subr.mxu0 0.0
  %1616 = vmatpush1.msra.mxu0 %v1604
  %1617 = vmatprep.subr.mxu0 0.0
  %1618 = vmatpush1.msra.mxu0 %v1605
  %1619 = vmatprep.subr.mxu0 0.0
  %1620 = vmatpush1.msra.mxu0 %v1606
  %1621 = vmatprep.subr.mxu0 0.0
  %1622 = vmatpush1.msra.mxu0 %v1607
  %1623 = vmatprep.subr.mxu0 0.0
  %1624 = vmatpush1.msra.mxu0 0.0
  %1625 = vmatprep.subr.mxu0 0.0
  %1626 = vmatpush1.msra.mxu0 0.0
  %1627 = vmatprep.subr.mxu0 0.0
  %1628 = vmatpush1.msra.mxu0 0.0
  %1629 = vmatprep.subr.mxu0 0.0
  %1630 = vmatpush1.msra.mxu0 0.0
  %1631 = vmatprep.subr.mxu0 0.0
  %1632 = vmatpush1.msra.mxu0 0.0
  %1633 = vmatprep.subr.mxu0 0.0
  %1634 = vmatpush1.msra.mxu0 0.0
  %1635 = vmatprep.subr.mxu0 0.0
  %1636 = vmatpush1.msra.mxu0 0.0
  %1637 = vmatprep.subr.mxu0 0.0
  %1638 = vmatpush1.msra.mxu0 0.0
  %1639 = vmatprep.subr.mxu0 0.0
  %1640 = vmatpush1.msra.mxu0 0.0
  %1641 = vmatprep.subr.mxu0 0.0
  %1642 = vmatpush1.msra.mxu0 0.0
  %1643 = vmatprep.subr.mxu0 0.0
  %1644 = vmatpush1.msra.mxu0 0.0
  %1645 = vmatprep.subr.mxu0 0.0
  %1646 = vmatpush1.msra.mxu0 0.0
  %1647 = vmatprep.subr.mxu0 0.0
  %1648 = vmatpush1.msra.mxu0 0.0
  %1649 = vmatprep.subr.mxu0 0.0
  %1650 = vmatpush1.msra.mxu0 0.0
  %1651 = vmatprep.subr.mxu0 0.0
  %1652 = vmatpush1.msra.mxu0 0.0
  %1653 = vmatprep.subr.mxu0 0.0
  %1654 = vmatpush1.msra.mxu0 0.0
  %1655 = vmatprep.subr.mxu0 0.0
  %1656 = vmatpush1.msra.mxu0 0.0
  %1657 = vmatprep.subr.mxu0 0.0
  %1658 = vmatpush1.msra.mxu0 0.0
  %1659 = vmatprep.subr.mxu0 0.0
  %1660 = vmatpush1.msra.mxu0 0.0
  %1661 = vmatprep.subr.mxu0 0.0
  %1662 = vmatpush1.msra.mxu0 0.0
  %1663 = vmatprep.subr.mxu0 0.0
  %1664 = vmatpush1.msra.mxu0 0.0
  %1665 = vmatprep.subr.mxu0 0.0
  %1666 = vmatpush1.msra.mxu0 0.0
  %1667 = vmatprep.subr.mxu0 0.0
  %1668 = vmatpush1.msra.mxu0 0.0
  %1669 = vmatprep.subr.mxu0 0.0
  %1670 = vmatpush1.msra.mxu0 0.0
  %1671 = vmatprep.subr.mxu0 0.0
  %1672 = vmatpush1.msra.mxu0 0.0
  %1673 = vmatprep.subr.mxu0 0.0
  %1674 = vmatpush1.msra.mxu0 0.0
  %1675 = vmatprep.subr.mxu0 0.0
  %1676 = vmatpush1.msra.mxu0 0.0
  %1677 = vmatprep.subr.mxu0 0.0
  %1678 = vmatpush1.msra.mxu0 0.0
  %1679 = vmatprep.mubr.f32.mxu0 0.0
  %1680 = vmatmul.mubr.f32.gmra.mrb[0].mxu0 %v1613
  %v1681 = vpop.f32.mrb[0].mxu0
  %v1682 = vadd.f32 0.0, %v1681
  %v1683 = vpop.f32.mrb[0].mxu0
  %1684 = vdwg.mxu0
  %v1685 = vsel %vm1528, %v1597, 0
  %1687 = vmatprep.subr.mxu0 0.0
  %1688 = vmatpush1.msra.mxu0 %v1599
  %1689 = vmatprep.subr.mxu0 0.0
  %1690 = vmatpush1.msra.mxu0 %v1600
  %1691 = vmatprep.subr.mxu0 0.0
  %1692 = vmatpush1.msra.mxu0 %v1601
  %1693 = vmatprep.subr.mxu0 0.0
  %1694 = vmatpush1.msra.mxu0 %v1602
  %1695 = vmatprep.subr.mxu0 0.0
  %1696 = vmatpush1.msra.mxu0 0.0
  %1697 = vmatprep.subr.mxu0 0.0
  %1698 = vmatpush1.msra.mxu0 0.0
  %1699 = vmatprep.subr.mxu0 0.0
  %1700 = vmatpush1.msra.mxu0 0.0
  %1701 = vmatprep.subr.mxu0 0.0
  %1702 = vmatpush1.msra.mxu0 0.0
  %1703 = vmatprep.subr.mxu0 0.0
  %1704 = vmatpush1.msra.mxu0 0.0
  %1705 = vmatprep.subr.mxu0 0.0
  %1706 = vmatpush1.msra.mxu0 0.0
  %1707 = vmatprep.subr.mxu0 0.0
  %1708 = vmatpush1.msra.mxu0 0.0
  %1709 = vmatprep.subr.mxu0 0.0
  %1710 = vmatpush1.msra.mxu0 0.0
  %1711 = vmatprep.subr.mxu0 0.0
  %1712 = vmatpush1.msra.mxu0 0.0
  %1713 = vmatprep.subr.mxu0 0.0
  %1714 = vmatpush1.msra.mxu0 0.0
  %1715 = vmatprep.subr.mxu0 0.0
  %1716 = vmatpush1.msra.mxu0 0.0
  %1717 = vmatprep.subr.mxu0 0.0
  %1718 = vmatpush1.msra.mxu0 0.0
  %1719 = vmatprep.subr.mxu0 0.0
  %1720 = vmatpush1.msra.mxu0 0.0
  %1721 = vmatprep.subr.mxu0 0.0
  %1722 = vmatpush1.msra.mxu0 0.0
  %1723 = vmatprep.subr.mxu0 0.0
  %1724 = vmatpush1.msra.mxu0 0.0
  %1725 = vmatprep.subr.mxu0 0.0
  %1726 = vmatpush1.msra.mxu0 0.0
  %1727 = vmatprep.subr.mxu0 0.0
  %1728 = vmatpush1.msra.mxu0 0.0
  %1729 = vmatprep.subr.mxu0 0.0
  %1730 = vmatpush1.msra.mxu0 0.0
  %1731 = vmatprep.subr.mxu0 0.0
  %1732 = vmatpush1.msra.mxu0 0.0
  %1733 = vmatprep.subr.mxu0 0.0
  %1734 = vmatpush1.msra.mxu0 0.0
  %1735 = vmatprep.subr.mxu0 0.0
  %1736 = vmatpush1.msra.mxu0 0.0
  %1737 = vmatprep.subr.mxu0 0.0
  %1738 = vmatpush1.msra.mxu0 0.0
  %1739 = vmatprep.subr.mxu0 0.0
  %1740 = vmatpush1.msra.mxu0 0.0
  %1741 = vmatprep.subr.mxu0 0.0
  %1742 = vmatpush1.msra.mxu0 0.0
  %1743 = vmatprep.subr.mxu0 0.0
  %1744 = vmatpush1.msra.mxu0 0.0
  %1745 = vmatprep.subr.mxu0 0.0
  %1746 = vmatpush1.msra.mxu0 0.0
  %1747 = vmatprep.subr.mxu0 0.0
  %1748 = vmatpush1.msra.mxu0 0.0
  %1749 = vmatprep.subr.mxu0 0.0
  %1750 = vmatpush1.msra.mxu0 0.0
  %1751 = vmatprep.mubr.f32.mxu0 0.0
  %1752 = vmatmul.mubr.f32.gmra.mrb[0].mxu0 %v1685
  %v1753 = vpop.f32.mrb[0].mxu0
  %v1754 = vadd.f32 %v1682, %v1753
  %v1755 = vpop.f32.mrb[0].mxu0
  %1756 = vdwg.mxu0
  %s1757 = scalar_lea.vmem %s21, 64
  %v1758 = vld [vmem:[%s1757] sm:$0xff]
  %v1759 = vld [vmem:[%s1757 + $0x8] sm:$0xff]
  %v1760 = vld [vmem:[%s1757 + $0x10] sm:$0xff]
  %v1761 = vld [vmem:[%s1757 + $0x18] sm:$0xff]
  %v1762 = vrot.slane %v1597, 2
  %v1763 = vrot.slane %v1598, 2
  %v1764 = vsel %vm237, %v1762, %v1763
  %v1765 = vsel %vm1528, %v1764, 0
  %1767 = vmatprep.subr.mxu0 0.0
  %1768 = vmatpush1.msra.mxu0 %v1758
  %1769 = vmatprep.subr.mxu0 0.0
  %1770 = vmatpush1.msra.mxu0 %v1759
  %1771 = vmatprep.subr.mxu0 0.0
  %1772 = vmatpush1.msra.mxu0 %v1760
  %1773 = vmatprep.subr.mxu0 0.0
  %1774 = vmatpush1.msra.mxu0 %v1761
  %1775 = vmatprep.subr.mxu0 0.0
  %1776 = vmatpush1.msra.mxu0 0.0
  %1777 = vmatprep.subr.mxu0 0.0
  %1778 = vmatpush1.msra.mxu0 0.0
  %1779 = vmatprep.subr.mxu0 0.0
  %1780 = vmatpush1.msra.mxu0 0.0
  %1781 = vmatprep.subr.mxu0 0.0
  %1782 = vmatpush1.msra.mxu0 0.0
  %1783 = vmatprep.subr.mxu0 0.0
  %1784 = vmatpush1.msra.mxu0 0.0
  %1785 = vmatprep.subr.mxu0 0.0
  %1786 = vmatpush1.msra.mxu0 0.0
  %1787 = vmatprep.subr.mxu0 0.0
  %1788 = vmatpush1.msra.mxu0 0.0
  %1789 = vmatprep.subr.mxu0 0.0
  %1790 = vmatpush1.msra.mxu0 0.0
  %1791 = vmatprep.subr.mxu0 0.0
  %1792 = vmatpush1.msra.mxu0 0.0
  %1793 = vmatprep.subr.mxu0 0.0
  %1794 = vmatpush1.msra.mxu0 0.0
  %1795 = vmatprep.subr.mxu0 0.0
  %1796 = vmatpush1.msra.mxu0 0.0
  %1797 = vmatprep.subr.mxu0 0.0
  %1798 = vmatpush1.msra.mxu0 0.0
  %1799 = vmatprep.subr.mxu0 0.0
  %1800 = vmatpush1.msra.mxu0 0.0
  %1801 = vmatprep.subr.mxu0 0.0
  %1802 = vmatpush1.msra.mxu0 0.0
  %1803 = vmatprep.subr.mxu0 0.0
  %1804 = vmatpush1.msra.mxu0 0.0
  %1805 = vmatprep.subr.mxu0 0.0
  %1806 = vmatpush1.msra.mxu0 0.0
  %1807 = vmatprep.subr.mxu0 0.0
  %1808 = vmatpush1.msra.mxu0 0.0
  %1809 = vmatprep.subr.mxu0 0.0
  %1810 = vmatpush1.msra.mxu0 0.0
  %1811 = vmatprep.subr.mxu0 0.0
  %1812 = vmatpush1.msra.mxu0 0.0
  %1813 = vmatprep.subr.mxu0 0.0
  %1814 = vmatpush1.msra.mxu0 0.0
  %1815 = vmatprep.subr.mxu0 0.0
  %1816 = vmatpush1.msra.mxu0 0.0
  %1817 = vmatprep.subr.mxu0 0.0
  %1818 = vmatpush1.msra.mxu0 0.0
  %1819 = vmatprep.subr.mxu0 0.0
  %1820 = vmatpush1.msra.mxu0 0.0
  %1821 = vmatprep.subr.mxu0 0.0
  %1822 = vmatpush1.msra.mxu0 0.0
  %1823 = vmatprep.subr.mxu0 0.0
  %1824 = vmatpush1.msra.mxu0 0.0
  %1825 = vmatprep.subr.mxu0 0.0
  %1826 = vmatpush1.msra.mxu0 0.0
  %1827 = vmatprep.subr.mxu0 0.0
  %1828 = vmatpush1.msra.mxu0 0.0
  %1829 = vmatprep.subr.mxu0 0.0
  %1830 = vmatpush1.msra.mxu0 0.0
  %1831 = vmatprep.mubr.f32.mxu0 0.0
  %1832 = vmatmul.mubr.f32.gmra.mrb[0].mxu0 %v1765
  %v1833 = vpop.f32.mrb[0].mxu0
  %v1834 = vadd.f32 0.0, %v1833
  %v1835 = vpop.f32.mrb[0].mxu0
  %1836 = vdwg.mxu0
  %v1837 = vadd.f32 %v1754, %v1834
  %1838 = vst.msk [vmem:[%s250] sm:$0x1] %vm1593, 0.0
  %1839 = vst.msk [vmem:[%s250 + $0x9] sm:$0x1] %vm1593, 0.0
  %1840 = vst.msk [vmem:[%s250 + $0x1] sm:$0xff] %vm1528, %v1592
  %v1841 = vld [vmem:[%s250] sm:$0xff]
  %v1842 = vld [vmem:[%s250 + $0x8] sm:$0xff]
  %v1843 = vld [vmem:[%s21] sm:$0xff]
  %v1844 = vld [vmem:[%s21 + $0x8] sm:$0xff]
  %v1845 = vld [vmem:[%s21 + $0x10] sm:$0xff]
  %v1846 = vld [vmem:[%s21 + $0x18] sm:$0xff]
  %v1847 = vld [vmem:[%s1603] sm:$0xff]
  %v1848 = vld [vmem:[%s1603 + $0x8] sm:$0xff]
  %v1849 = vld [vmem:[%s1603 + $0x10] sm:$0xff]
  %v1850 = vld [vmem:[%s1603 + $0x18] sm:$0xff]
  %v1853 = vrot.slane %v1841, 1
  %v1854 = vrot.slane %v1842, 1
  %v1855 = vsel %vm213, %v1853, %v1854
  %v1856 = vsel %vm1528, %v1855, 0
  %1858 = vmatprep.subr.mxu0 0.0
  %1859 = vmatpush1.msra.mxu0 %v1847
  %1860 = vmatprep.subr.mxu0 0.0
  %1861 = vmatpush1.msra.mxu0 %v1848
  %1862 = vmatprep.subr.mxu0 0.0
  %1863 = vmatpush1.msra.mxu0 %v1849
  %1864 = vmatprep.subr.mxu0 0.0
  %1865 = vmatpush1.msra.mxu0 %v1850
  %1866 = vmatprep.subr.mxu0 0.0
  %1867 = vmatpush1.msra.mxu0 0.0
  %1868 = vmatprep.subr.mxu0 0.0
  %1869 = vmatpush1.msra.mxu0 0.0
  %1870 = vmatprep.subr.mxu0 0.0
  %1871 = vmatpush1.msra.mxu0 0.0
  %1872 = vmatprep.subr.mxu0 0.0
  %1873 = vmatpush1.msra.mxu0 0.0
  %1874 = vmatprep.subr.mxu0 0.0
  %1875 = vmatpush1.msra.mxu0 0.0
  %1876 = vmatprep.subr.mxu0 0.0
  %1877 = vmatpush1.msra.mxu0 0.0
  %1878 = vmatprep.subr.mxu0 0.0
  %1879 = vmatpush1.msra.mxu0 0.0
  %1880 = vmatprep.subr.mxu0 0.0
  %1881 = vmatpush1.msra.mxu0 0.0
  %1882 = vmatprep.subr.mxu0 0.0
  %1883 = vmatpush1.msra.mxu0 0.0
  %1884 = vmatprep.subr.mxu0 0.0
  %1885 = vmatpush1.msra.mxu0 0.0
  %1886 = vmatprep.subr.mxu0 0.0
  %1887 = vmatpush1.msra.mxu0 0.0
  %1888 = vmatprep.subr.mxu0 0.0
  %1889 = vmatpush1.msra.mxu0 0.0
  %1890 = vmatprep.subr.mxu0 0.0
  %1891 = vmatpush1.msra.mxu0 0.0
  %1892 = vmatprep.subr.mxu0 0.0
  %1893 = vmatpush1.msra.mxu0 0.0
  %1894 = vmatprep.subr.mxu0 0.0
  %1895 = vmatpush1.msra.mxu0 0.0
  %1896 = vmatprep.subr.mxu0 0.0
  %1897 = vmatpush1.msra.mxu0 0.0
  %1898 = vmatprep.subr.mxu0 0.0
  %1899 = vmatpush1.msra.mxu0 0.0
  %1900 = vmatprep.subr.mxu0 0.0
  %1901 = vmatpush1.msra.mxu0 0.0
  %1902 = vmatprep.subr.mxu0 0.0
  %1903 = vmatpush1.msra.mxu0 0.0
  %1904 = vmatprep.subr.mxu0 0.0
  %1905 = vmatpush1.msra.mxu0 0.0
  %1906 = vmatprep.subr.mxu0 0.0
  %1907 = vmatpush1.msra.mxu0 0.0
  %1908 = vmatprep.subr.mxu0 0.0
  %1909 = vmatpush1.msra.mxu0 0.0
  %1910 = vmatprep.subr.mxu0 0.0
  %1911 = vmatpush1.msra.mxu0 0.0
  %1912 = vmatprep.subr.mxu0 0.0
  %1913 = vmatpush1.msra.mxu0 0.0
  %1914 = vmatprep.subr.mxu0 0.0
  %1915 = vmatpush1.msra.mxu0 0.0
  %1916 = vmatprep.subr.mxu0 0.0
  %1917 = vmatpush1.msra.mxu0 0.0
  %1918 = vmatprep.subr.mxu0 0.0
  %1919 = vmatpush1.msra.mxu0 0.0
  %1920 = vmatprep.subr.mxu0 0.0
  %1921 = vmatpush1.msra.mxu0 0.0
  %1922 = vmatprep.mubr.f32.mxu0 0.0
  %1923 = vmatmul.mubr.f32.gmra.mrb[0].mxu0 %v1856
  %v1924 = vpop.f32.mrb[0].mxu0
  %v1925 = vadd.f32 0.0, %v1924
  %v1926 = vpop.f32.mrb[0].mxu0
  %1927 = vdwg.mxu0
  %v1928 = vsel %vm1528, %v1841, 0
  %1930 = vmatprep.subr.mxu0 0.0
  %1931 = vmatpush1.msra.mxu0 %v1843
  %1932 = vmatprep.subr.mxu0 0.0
  %1933 = vmatpush1.msra.mxu0 %v1844
  %1934 = vmatprep.subr.mxu0 0.0
  %1935 = vmatpush1.msra.mxu0 %v1845
  %1936 = vmatprep.subr.mxu0 0.0
  %1937 = vmatpush1.msra.mxu0 %v1846
  %1938 = vmatprep.subr.mxu0 0.0
  %1939 = vmatpush1.msra.mxu0 0.0
  %1940 = vmatprep.subr.mxu0 0.0
  %1941 = vmatpush1.msra.mxu0 0.0
  %1942 = vmatprep.subr.mxu0 0.0
  %1943 = vmatpush1.msra.mxu0 0.0
  %1944 = vmatprep.subr.mxu0 0.0
  %1945 = vmatpush1.msra.mxu0 0.0
  %1946 = vmatprep.subr.mxu0 0.0
  %1947 = vmatpush1.msra.mxu0 0.0
  %1948 = vmatprep.subr.mxu0 0.0
  %1949 = vmatpush1.msra.mxu0 0.0
  %1950 = vmatprep.subr.mxu0 0.0
  %1951 = vmatpush1.msra.mxu0 0.0
  %1952 = vmatprep.subr.mxu0 0.0
  %1953 = vmatpush1.msra.mxu0 0.0
  %1954 = vmatprep.subr.mxu0 0.0
  %1955 = vmatpush1.msra.mxu0 0.0
  %1956 = vmatprep.subr.mxu0 0.0
  %1957 = vmatpush1.msra.mxu0 0.0
  %1958 = vmatprep.subr.mxu0 0.0
  %1959 = vmatpush1.msra.mxu0 0.0
  %1960 = vmatprep.subr.mxu0 0.0
  %1961 = vmatpush1.msra.mxu0 0.0
  %1962 = vmatprep.subr.mxu0 0.0
  %1963 = vmatpush1.msra.mxu0 0.0
  %1964 = vmatprep.subr.mxu0 0.0
  %1965 = vmatpush1.msra.mxu0 0.0
  %1966 = vmatprep.subr.mxu0 0.0
  %1967 = vmatpush1.msra.mxu0 0.0
  %1968 = vmatprep.subr.mxu0 0.0
  %1969 = vmatpush1.msra.mxu0 0.0
  %1970 = vmatprep.subr.mxu0 0.0
  %1971 = vmatpush1.msra.mxu0 0.0
  %1972 = vmatprep.subr.mxu0 0.0
  %1973 = vmatpush1.msra.mxu0 0.0
  %1974 = vmatprep.subr.mxu0 0.0
  %1975 = vmatpush1.msra.mxu0 0.0
  %1976 = vmatprep.subr.mxu0 0.0
  %1977 = vmatpush1.msra.mxu0 0.0
  %1978 = vmatprep.subr.mxu0 0.0
  %1979 = vmatpush1.msra.mxu0 0.0
  %1980 = vmatprep.subr.mxu0 0.0
  %1981 = vmatpush1.msra.mxu0 0.0
  %1982 = vmatprep.subr.mxu0 0.0
  %1983 = vmatpush1.msra.mxu0 0.0
  %1984 = vmatprep.subr.mxu0 0.0
  %1985 = vmatpush1.msra.mxu0 0.0
  %1986 = vmatprep.subr.mxu0 0.0
  %1987 = vmatpush1.msra.mxu0 0.0
  %1988 = vmatprep.subr.mxu0 0.0
  %1989 = vmatpush1.msra.mxu0 0.0
  %1990 = vmatprep.subr.mxu0 0.0
  %1991 = vmatpush1.msra.mxu0 0.0
  %1992 = vmatprep.subr.mxu0 0.0
  %1993 = vmatpush1.msra.mxu0 0.0
  %1994 = vmatprep.mubr.f32.mxu0 0.0
  %1995 = vmatmul.mubr.f32.gmra.mrb[0].mxu0 %v1928
  %v1996 = vpop.f32.mrb[0].mxu0
  %v1997 = vadd.f32 %v1925, %v1996
  %v1998 = vpop.f32.mrb[0].mxu0
  %1999 = vdwg.mxu0
  %v2000 = vld [vmem:[%s1757] sm:$0xff]
  %v2001 = vld [vmem:[%s1757 + $0x8] sm:$0xff]
  %v2002 = vld [vmem:[%s1757 + $0x10] sm:$0xff]
  %v2003 = vld [vmem:[%s1757 + $0x18] sm:$0xff]
  %v2004 = vrot.slane %v1841, 2
  %v2005 = vrot.slane %v1842, 2
  %v2006 = vsel %vm237, %v2004, %v2005
  %v2007 = vsel %vm1528, %v2006, 0
  %2009 = vmatprep.subr.mxu0 0.0
  %2010 = vmatpush1.msra.mxu0 %v2000
  %2011 = vmatprep.subr.mxu0 0.0
  %2012 = vmatpush1.msra.mxu0 %v2001
  %2013 = vmatprep.subr.mxu0 0.0
  %2014 = vmatpush1.msra.mxu0 %v2002
  %2015 = vmatprep.subr.mxu0 0.0
  %2016 = vmatpush1.msra.mxu0 %v2003
  %2017 = vmatprep.subr.mxu0 0.0
  %2018 = vmatpush1.msra.mxu0 0.0
  %2019 = vmatprep.subr.mxu0 0.0
  %2020 = vmatpush1.msra.mxu0 0.0
  %2021 = vmatprep.subr.mxu0 0.0
  %2022 = vmatpush1.msra.mxu0 0.0
  %2023 = vmatprep.subr.mxu0 0.0
  %2024 = vmatpush1.msra.mxu0 0.0
  %2025 = vmatprep.subr.mxu0 0.0
  %2026 = vmatpush1.msra.mxu0 0.0
  %2027 = vmatprep.subr.mxu0 0.0
  %2028 = vmatpush1.msra.mxu0 0.0
  %2029 = vmatprep.subr.mxu0 0.0
  %2030 = vmatpush1.msra.mxu0 0.0
  %2031 = vmatprep.subr.mxu0 0.0
  %2032 = vmatpush1.msra.mxu0 0.0
  %2033 = vmatprep.subr.mxu0 0.0
  %2034 = vmatpush1.msra.mxu0 0.0
  %2035 = vmatprep.subr.mxu0 0.0
  %2036 = vmatpush1.msra.mxu0 0.0
  %2037 = vmatprep.subr.mxu0 0.0
  %2038 = vmatpush1.msra.mxu0 0.0
  %2039 = vmatprep.subr.mxu0 0.0
  %2040 = vmatpush1.msra.mxu0 0.0
  %2041 = vmatprep.subr.mxu0 0.0
  %2042 = vmatpush1.msra.mxu0 0.0
  %2043 = vmatprep.subr.mxu0 0.0
  %2044 = vmatpush1.msra.mxu0 0.0
  %2045 = vmatprep.subr.mxu0 0.0
  %2046 = vmatpush1.msra.mxu0 0.0
  %2047 = vmatprep.subr.mxu0 0.0
  %2048 = vmatpush1.msra.mxu0 0.0
  %2049 = vmatprep.subr.mxu0 0.0
  %2050 = vmatpush1.msra.mxu0 0.0
  %2051 = vmatprep.subr.mxu0 0.0
  %2052 = vmatpush1.msra.mxu0 0.0
  %2053 = vmatprep.subr.mxu0 0.0
  %2054 = vmatpush1.msra.mxu0 0.0
  %2055 = vmatprep.subr.mxu0 0.0
  %2056 = vmatpush1.msra.mxu0 0.0
  %2057 = vmatprep.subr.mxu0 0.0
  %2058 = vmatpush1.msra.mxu0 0.0
  %2059 = vmatprep.subr.mxu0 0.0
  %2060 = vmatpush1.msra.mxu0 0.0
  %2061 = vmatprep.subr.mxu0 0.0
  %2062 = vmatpush1.msra.mxu0 0.0
  %2063 = vmatprep.subr.mxu0 0.0
  %2064 = vmatpush1.msra.mxu0 0.0
  %2065 = vmatprep.subr.mxu0 0.0
  %2066 = vmatpush1.msra.mxu0 0.0
  %2067 = vmatprep.subr.mxu0 0.0
  %2068 = vmatpush1.msra.mxu0 0.0
  %2069 = vmatprep.subr.mxu0 0.0
  %2070 = vmatpush1.msra.mxu0 0.0
  %2071 = vmatprep.subr.mxu0 0.0
  %2072 = vmatpush1.msra.mxu0 0.0
  %2073 = vmatprep.mubr.f32.mxu0 0.0
  %2074 = vmatmul.mubr.f32.gmra.mrb[0].mxu0 %v2007
  %v2075 = vpop.f32.mrb[0].mxu0
  %v2076 = vadd.f32 0.0, %v2075
  %v2077 = vpop.f32.mrb[0].mxu0
  %2078 = vdwg.mxu0
  %v2079 = vadd.f32 %v1997, %v2076
  %v2080 = vsel %vm1528, %v1837, 0.0
  %v2081 = vrot.slane %v2080, 4
  %v2082 = vadd.f32 %v2080, %v2081
  %v2083 = vrot.slane %v2082, 2
  %v2084 = vadd.f32 %v2082, %v2083
  %v2085 = vrot.slane %v2084, 1
  %v2086 = vadd.f32 %v2084, %v2085
  %v2087 = vadd.f32 %v2086, 0.0
  %v2088 = vsel %vm1528, %v2079, 0.0
  %v2089 = vrot.slane %v2088, 4
  %v2090 = vadd.f32 %v2088, %v2089
  %v2091 = vrot.slane %v2090, 2
  %v2092 = vadd.f32 %v2090, %v2091
  %v2093 = vrot.slane %v2092, 1
  %v2094 = vadd.f32 %v2092, %v2093
  %v2095 = vadd.f32 %v2087, %v2094
  %v2096 = vmul.f32 %v1837, %v1837
  %v2097 = vsel %vm1528, %v2096, 0.0
  %v2098 = vrot.slane %v2097, 4
  %v2099 = vadd.f32 %v2097, %v2098
  %v2100 = vrot.slane %v2099, 2
  %v2101 = vadd.f32 %v2099, %v2100
  %v2102 = vrot.slane %v2101, 1
  %v2103 = vadd.f32 %v2101, %v2102
  %v2104 = vadd.f32 %v2103, 0.0
  %v2105 = vmul.f32 %v2079, %v2079
  %v2106 = vsel %vm1528, %v2105, 0.0
  %v2107 = vrot.slane %v2106, 4
  %v2108 = vadd.f32 %v2106, %v2107
  %v2109 = vrot.slane %v2108, 2
  %v2110 = vadd.f32 %v2108, %v2109
  %v2111 = vrot.slane %v2110, 1
  %v2112 = vadd.f32 %v2110, %v2111
  %v2113 = vadd.f32 %v2104, %v2112
  %v2114 = vmul.f32 %v2095, %v1563
  %v2115 = vmul.f32 %v2113, %v1563
  %v2116 = vmul.f32 %v2114, %v2114
  %v2117 = vsub.f32 %v2115, %v2116
  %v2118 = vld [vmem:[%s23] sm:$0x1]
  %v2119 = vadd.f32 %v2117, 1e-05
  %v2120 = vrsqrt.pop %v2119
  %v2121 = vmul.f32 %v2118, %v2120
  %v2122 = vld [vmem:[%s25] sm:$0x1]
  %v2123 = vmul.f32 %v2114, %v2121
  %v2124 = vsub.f32 %v2122, %v2123
  %v2126 = vlaneseq
  %v2127 = vshrl.u32 %v2126, 7
  %v2128 = vsub.s32 0, %v2127
  %v2129 = vrot.slane %v2121, %v2128
  %v2131 = vmul.f32 %v1837, %v2129
  %v2133 = vlaneseq
  %v2134 = vshrl.u32 %v2133, 7
  %v2135 = vsub.s32 0, %v2134
  %v2136 = vrot.slane %v2124, %v2135
  %v2138 = vadd.f32 %v2131, %v2136
  %v2139 = vtanh.pop %v2138
  %v2140 = vmul.f32 %v2079, %v2129
  %v2141 = vadd.f32 %v2140, %v2136
  %v2142 = vtanh.pop %v2141
  %2143 = vst.msk [vmem:[#allocation2] sm:$0x1] %vm1593, 0.0
  %2144 = vst.msk [vmem:[#allocation2 + $0x5] sm:$0x1] %vm1593, 0.0
  %v2146 = vrot.slane %v2139, 1
  %v2148 = vmax.f32 %v2139, %v2146
  %2149 = vst.msk [vmem:[#allocation2 + $0x1] sm:$0x1] %vm1593, %v2148
  %vm2150 = vcmask 256002
  %2151 = vst.msk [vmem:[#allocation2] sm:$0x4] %vm2150, %v2148
  %vm2152 = vcmask 258052
  %2153 = vst.msk [vmem:[#allocation2 - $0x1] sm:$0x10] %vm2152, %v2148
  %vm2154 = vcmask 260102
  %2155 = vst.msk [vmem:[#allocation2 - $0x2] sm:$0x40] %vm2154, %v2148
  %v2156 = vld [vmem:[#allocation2] sm:$0xff]
  %v2157 = vld [vmem:[%s27] sm:$0xff]
  %v2158 = vld [vmem:[%s27 + $0x8] sm:$0xff]
  %v2159 = vld [vmem:[%s27 + $0x10] sm:$0xff]
  %v2160 = vld [vmem:[%s27 + $0x18] sm:$0xff]
  %s2161 = scalar_lea.vmem %s27, 32
  %v2162 = vld [vmem:[%s2161] sm:$0xff]
  %v2163 = vld [vmem:[%s2161 + $0x8] sm:$0xff]
  %v2164 = vld [vmem:[%s2161 + $0x10] sm:$0xff]
  %v2165 = vld [vmem:[%s2161 + $0x18] sm:$0xff]
  %v2167 = vrot.slane %v2156, 1
  %v2168 = vsel %vm1528, %v2167, 0
  %2170 = vmatprep.subr.mxu0 0.0
  %2171 = vmatpush1.msra.mxu0 %v2162
  %2172 = vmatprep.subr.mxu0 0.0
  %2173 = vmatpush1.msra.mxu0 %v2163
  %2174 = vmatprep.subr.mxu0 0.0
  %2175 = vmatpush1.msra.mxu0 %v2164
  %2176 = vmatprep.subr.mxu0 0.0
  %2177 = vmatpush1.msra.mxu0 %v2165
  %2178 = vmatprep.subr.mxu0 0.0
  %2179 = vmatpush1.msra.mxu0 0.0
  %2180 = vmatprep.subr.mxu0 0.0
  %2181 = vmatpush1.msra.mxu0 0.0
  %2182 = vmatprep.subr.mxu0 0.0
  %2183 = vmatpush1.msra.mxu0 0.0
  %2184 = vmatprep.subr.mxu0 0.0
  %2185 = vmatpush1.msra.mxu0 0.0
  %2186 = vmatprep.subr.mxu0 0.0
  %2187 = vmatpush1.msra.mxu0 0.0
  %2188 = vmatprep.subr.mxu0 0.0
  %2189 = vmatpush1.msra.mxu0 0.0
  %2190 = vmatprep.subr.mxu0 0.0
  %2191 = vmatpush1.msra.mxu0 0.0
  %2192 = vmatprep.subr.mxu0 0.0
  %2193 = vmatpush1.msra.mxu0 0.0
  %2194 = vmatprep.subr.mxu0 0.0
  %2195 = vmatpush1.msra.mxu0 0.0
  %2196 = vmatprep.subr.mxu0 0.0
  %2197 = vmatpush1.msra.mxu0 0.0
  %2198 = vmatprep.subr.mxu0 0.0
  %2199 = vmatpush1.msra.mxu0 0.0
  %2200 = vmatprep.subr.mxu0 0.0
  %2201 = vmatpush1.msra.mxu0 0.0
  %2202 = vmatprep.subr.mxu0 0.0
  %2203 = vmatpush1.msra.mxu0 0.0
  %2204 = vmatprep.subr.mxu0 0.0
  %2205 = vmatpush1.msra.mxu0 0.0
  %2206 = vmatprep.subr.mxu0 0.0
  %2207 = vmatpush1.msra.mxu0 0.0
  %2208 = vmatprep.subr.mxu0 0.0
  %2209 = vmatpush1.msra.mxu0 0.0
  %2210 = vmatprep.subr.mxu0 0.0
  %2211 = vmatpush1.msra.mxu0 0.0
  %2212 = vmatprep.subr.mxu0 0.0
  %2213 = vmatpush1.msra.mxu0 0.0
  %2214 = vmatprep.subr.mxu0 0.0
  %2215 = vmatpush1.msra.mxu0 0.0
  %2216 = vmatprep.subr.mxu0 0.0
  %2217 = vmatpush1.msra.mxu0 0.0
  %2218 = vmatprep.subr.mxu0 0.0
  %2219 = vmatpush1.msra.mxu0 0.0
  %2220 = vmatprep.subr.mxu0 0.0
  %2221 = vmatpush1.msra.mxu0 0.0
  %2222 = vmatprep.subr.mxu0 0.0
  %2223 = vmatpush1.msra.mxu0 0.0
  %2224 = vmatprep.subr.mxu0 0.0
  %2225 = vmatpush1.msra.mxu0 0.0
  %2226 = vmatprep.subr.mxu0 0.0
  %2227 = vmatpush1.msra.mxu0 0.0
  %2228 = vmatprep.subr.mxu0 0.0
  %2229 = vmatpush1.msra.mxu0 0.0
  %2230 = vmatprep.subr.mxu0 0.0
  %2231 = vmatpush1.msra.mxu0 0.0
  %2232 = vmatprep.subr.mxu0 0.0
  %2233 = vmatpush1.msra.mxu0 0.0
  %2234 = vmatprep.mubr.f32.mxu0 0.0
  %2235 = vmatmul.mubr.f32.gmra.mrb[0].mxu0 %v2168
  %v2236 = vpop.f32.mrb[0].mxu0
  %v2237 = vadd.f32 0.0, %v2236
  %v2238 = vpop.f32.mrb[0].mxu0
  %2239 = vdwg.mxu0
  %v2240 = vsel %vm1528, %v2156, 0
  %2242 = vmatprep.subr.mxu0 0.0
  %2243 = vmatpush1.msra.mxu0 %v2157
  %2244 = vmatprep.subr.mxu0 0.0
  %2245 = vmatpush1.msra.mxu0 %v2158
  %2246 = vmatprep.subr.mxu0 0.0
  %2247 = vmatpush1.msra.mxu0 %v2159
  %2248 = vmatprep.subr.mxu0 0.0
  %2249 = vmatpush1.msra.mxu0 %v2160
  %2250 = vmatprep.subr.mxu0 0.0
  %2251 = vmatpush1.msra.mxu0 0.0
  %2252 = vmatprep.subr.mxu0 0.0
  %2253 = vmatpush1.msra.mxu0 0.0
  %2254 = vmatprep.subr.mxu0 0.0
  %2255 = vmatpush1.msra.mxu0 0.0
  %2256 = vmatprep.subr.mxu0 0.0
  %2257 = vmatpush1.msra.mxu0 0.0
  %2258 = vmatprep.subr.mxu0 0.0
  %2259 = vmatpush1.msra.mxu0 0.0
  %2260 = vmatprep.subr.mxu0 0.0
  %2261 = vmatpush1.msra.mxu0 0.0
  %2262 = vmatprep.subr.mxu0 0.0
  %2263 = vmatpush1.msra.mxu0 0.0
  %2264 = vmatprep.subr.mxu0 0.0
  %2265 = vmatpush1.msra.mxu0 0.0
  %2266 = vmatprep.subr.mxu0 0.0
  %2267 = vmatpush1.msra.mxu0 0.0
  %2268 = vmatprep.subr.mxu0 0.0
  %2269 = vmatpush1.msra.mxu0 0.0
  %2270 = vmatprep.subr.mxu0 0.0
  %2271 = vmatpush1.msra.mxu0 0.0
  %2272 = vmatprep.subr.mxu0 0.0
  %2273 = vmatpush1.msra.mxu0 0.0
  %2274 = vmatprep.subr.mxu0 0.0
  %2275 = vmatpush1.msra.mxu0 0.0
  %2276 = vmatprep.subr.mxu0 0.0
  %2277 = vmatpush1.msra.mxu0 0.0
  %2278 = vmatprep.subr.mxu0 0.0
  %2279 = vmatpush1.msra.mxu0 0.0
  %2280 = vmatprep.subr.mxu0 0.0
  %2281 = vmatpush1.msra.mxu0 0.0
  %2282 = vmatprep.subr.mxu0 0.0
  %2283 = vmatpush1.msra.mxu0 0.0
  %2284 = vmatprep.subr.mxu0 0.0
  %2285 = vmatpush1.msra.mxu0 0.0
  %2286 = vmatprep.subr.mxu0 0.0
  %2287 = vmatpush1.msra.mxu0 0.0
  %2288 = vmatprep.subr.mxu0 0.0
  %2289 = vmatpush1.msra.mxu0 0.0
  %2290 = vmatprep.subr.mxu0 0.0
  %2291 = vmatpush1.msra.mxu0 0.0
  %2292 = vmatprep.subr.mxu0 0.0
  %2293 = vmatpush1.msra.mxu0 0.0
  %2294 = vmatprep.subr.mxu0 0.0
  %2295 = vmatpush1.msra.mxu0 0.0
  %2296 = vmatprep.subr.mxu0 0.0
  %2297 = vmatpush1.msra.mxu0 0.0
  %2298 = vmatprep.subr.mxu0 0.0
  %2299 = vmatpush1.msra.mxu0 0.0
  %2300 = vmatprep.subr.mxu0 0.0
  %2301 = vmatpush1.msra.mxu0 0.0
  %2302 = vmatprep.subr.mxu0 0.0
  %2303 = vmatpush1.msra.mxu0 0.0
  %2304 = vmatprep.subr.mxu0 0.0
  %2305 = vmatpush1.msra.mxu0 0.0
  %2306 = vmatprep.mubr.f32.mxu0 0.0
  %2307 = vmatmul.mubr.f32.gmra.mrb[0].mxu0 %v2240
  %v2308 = vpop.f32.mrb[0].mxu0
  %v2309 = vadd.f32 %v2237, %v2308
  %v2310 = vpop.f32.mrb[0].mxu0
  %2311 = vdwg.mxu0
  %s2312 = scalar_lea.vmem %s27, 64
  %v2313 = vld [vmem:[%s2312] sm:$0xff]
  %v2314 = vld [vmem:[%s2312 + $0x8] sm:$0xff]
  %v2315 = vld [vmem:[%s2312 + $0x10] sm:$0xff]
  %v2316 = vld [vmem:[%s2312 + $0x18] sm:$0xff]
  %v2317 = vrot.slane %v2156, 2
  %v2318 = vsel %vm1528, %v2317, 0
  %2320 = vmatprep.subr.mxu0 0.0
  %2321 = vmatpush1.msra.mxu0 %v2313
  %2322 = vmatprep.subr.mxu0 0.0
  %2323 = vmatpush1.msra.mxu0 %v2314
  %2324 = vmatprep.subr.mxu0 0.0
  %2325 = vmatpush1.msra.mxu0 %v2315
  %2326 = vmatprep.subr.mxu0 0.0
  %2327 = vmatpush1.msra.mxu0 %v2316
  %2328 = vmatprep.subr.mxu0 0.0
  %2329 = vmatpush1.msra.mxu0 0.0
  %2330 = vmatprep.subr.mxu0 0.0
  %2331 = vmatpush1.msra.mxu0 0.0
  %2332 = vmatprep.subr.mxu0 0.0
  %2333 = vmatpush1.msra.mxu0 0.0
  %2334 = vmatprep.subr.mxu0 0.0
  %2335 = vmatpush1.msra.mxu0 0.0
  %2336 = vmatprep.subr.mxu0 0.0
  %2337 = vmatpush1.msra.mxu0 0.0
  %2338 = vmatprep.subr.mxu0 0.0
  %2339 = vmatpush1.msra.mxu0 0.0
  %2340 = vmatprep.subr.mxu0 0.0
  %2341 = vmatpush1.msra.mxu0 0.0
  %2342 = vmatprep.subr.mxu0 0.0
  %2343 = vmatpush1.msra.mxu0 0.0
  %2344 = vmatprep.subr.mxu0 0.0
  %2345 = vmatpush1.msra.mxu0 0.0
  %2346 = vmatprep.subr.mxu0 0.0
  %2347 = vmatpush1.msra.mxu0 0.0
  %2348 = vmatprep.subr.mxu0 0.0
  %2349 = vmatpush1.msra.mxu0 0.0
  %2350 = vmatprep.subr.mxu0 0.0
  %2351 = vmatpush1.msra.mxu0 0.0
  %2352 = vmatprep.subr.mxu0 0.0
  %2353 = vmatpush1.msra.mxu0 0.0
  %2354 = vmatprep.subr.mxu0 0.0
  %2355 = vmatpush1.msra.mxu0 0.0
  %2356 = vmatprep.subr.mxu0 0.0
  %2357 = vmatpush1.msra.mxu0 0.0
  %2358 = vmatprep.subr.mxu0 0.0
  %2359 = vmatpush1.msra.mxu0 0.0
  %2360 = vmatprep.subr.mxu0 0.0
  %2361 = vmatpush1.msra.mxu0 0.0
  %2362 = vmatprep.subr.mxu0 0.0
  %2363 = vmatpush1.msra.mxu0 0.0
  %2364 = vmatprep.subr.mxu0 0.0
  %2365 = vmatpush1.msra.mxu0 0.0
  %2366 = vmatprep.subr.mxu0 0.0
  %2367 = vmatpush1.msra.mxu0 0.0
  %2368 = vmatprep.subr.mxu0 0.0
  %2369 = vmatpush1.msra.mxu0 0.0
  %2370 = vmatprep.subr.mxu0 0.0
  %2371 = vmatpush1.msra.mxu0 0.0
  %2372 = vmatprep.subr.mxu0 0.0
  %2373 = vmatpush1.msra.mxu0 0.0
  %2374 = vmatprep.subr.mxu0 0.0
  %2375 = vmatpush1.msra.mxu0 0.0
  %2376 = vmatprep.subr.mxu0 0.0
  %2377 = vmatpush1.msra.mxu0 0.0
  %2378 = vmatprep.subr.mxu0 0.0
  %2379 = vmatpush1.msra.mxu0 0.0
  %2380 = vmatprep.subr.mxu0 0.0
  %2381 = vmatpush1.msra.mxu0 0.0
  %2382 = vmatprep.subr.mxu0 0.0
  %2383 = vmatpush1.msra.mxu0 0.0
  %2384 = vmatprep.mubr.f32.mxu0 0.0
  %2385 = vmatmul.mubr.f32.gmra.mrb[0].mxu0 %v2318
  %v2386 = vpop.f32.mrb[0].mxu0
  %v2387 = vadd.f32 0.0, %v2386
  %v2388 = vpop.f32.mrb[0].mxu0
  %2389 = vdwg.mxu0
  %v2390 = vadd.f32 %v2309, %v2387
  %2391 = vst.msk [vmem:[%s250] sm:$0x1] %vm1593, 0.0
  %2392 = vst.msk [vmem:[%s250 + $0x5] sm:$0x1] %vm1593, 0.0
  %v2394 = vrot.slane %v2142, 1
  %v2396 = vmax.f32 %v2142, %v2394
  %2397 = vst.msk [vmem:[%s250 + $0x1] sm:$0x1] %vm1593, %v2396
  %2398 = vst.msk [vmem:[%s250] sm:$0x4] %vm2150, %v2396
  %2399 = vst.msk [vmem:[%s250 - $0x1] sm:$0x10] %vm2152, %v2396
  %2400 = vst.msk [vmem:[%s250 - $0x2] sm:$0x40] %vm2154, %v2396
  %v2401 = vld [vmem:[%s250] sm:$0xff]
  %v2402 = vld [vmem:[%s27] sm:$0xff]
  %v2403 = vld [vmem:[%s27 + $0x8] sm:$0xff]
  %v2404 = vld [vmem:[%s27 + $0x10] sm:$0xff]
  %v2405 = vld [vmem:[%s27 + $0x18] sm:$0xff]
  %v2406 = vld [vmem:[%s2161] sm:$0xff]
  %v2407 = vld [vmem:[%s2161 + $0x8] sm:$0xff]
  %v2408 = vld [vmem:[%s2161 + $0x10] sm:$0xff]
  %v2409 = vld [vmem:[%s2161 + $0x18] sm:$0xff]
  %v2411 = vrot.slane %v2401, 1
  %v2412 = vsel %vm1528, %v2411, 0
  %2414 = vmatprep.subr.mxu0 0.0
  %2415 = vmatpush1.msra.mxu0 %v2406
  %2416 = vmatprep.subr.mxu0 0.0
  %2417 = vmatpush1.msra.mxu0 %v2407
  %2418 = vmatprep.subr.mxu0 0.0
  %2419 = vmatpush1.msra.mxu0 %v2408
  %2420 = vmatprep.subr.mxu0 0.0
  %2421 = vmatpush1.msra.mxu0 %v2409
  %2422 = vmatprep.subr.mxu0 0.0
  %2423 = vmatpush1.msra.mxu0 0.0
  %2424 = vmatprep.subr.mxu0 0.0
  %2425 = vmatpush1.msra.mxu0 0.0
  %2426 = vmatprep.subr.mxu0 0.0
  %2427 = vmatpush1.msra.mxu0 0.0
  %2428 = vmatprep.subr.mxu0 0.0
  %2429 = vmatpush1.msra.mxu0 0.0
  %2430 = vmatprep.subr.mxu0 0.0
  %2431 = vmatpush1.msra.mxu0 0.0
  %2432 = vmatprep.subr.mxu0 0.0
  %2433 = vmatpush1.msra.mxu0 0.0
  %2434 = vmatprep.subr.mxu0 0.0
  %2435 = vmatpush1.msra.mxu0 0.0
  %2436 = vmatprep.subr.mxu0 0.0
  %2437 = vmatpush1.msra.mxu0 0.0
  %2438 = vmatprep.subr.mxu0 0.0
  %2439 = vmatpush1.msra.mxu0 0.0
  %2440 = vmatprep.subr.mxu0 0.0
  %2441 = vmatpush1.msra.mxu0 0.0
  %2442 = vmatprep.subr.mxu0 0.0
  %2443 = vmatpush1.msra.mxu0 0.0
  %2444 = vmatprep.subr.mxu0 0.0
  %2445 = vmatpush1.msra.mxu0 0.0
  %2446 = vmatprep.subr.mxu0 0.0
  %2447 = vmatpush1.msra.mxu0 0.0
  %2448 = vmatprep.subr.mxu0 0.0
  %2449 = vmatpush1.msra.mxu0 0.0
  %2450 = vmatprep.subr.mxu0 0.0
  %2451 = vmatpush1.msra.mxu0 0.0
  %2452 = vmatprep.subr.mxu0 0.0
  %2453 = vmatpush1.msra.mxu0 0.0
  %2454 = vmatprep.subr.mxu0 0.0
  %2455 = vmatpush1.msra.mxu0 0.0
  %2456 = vmatprep.subr.mxu0 0.0
  %2457 = vmatpush1.msra.mxu0 0.0
  %2458 = vmatprep.subr.mxu0 0.0
  %2459 = vmatpush1.msra.mxu0 0.0
  %2460 = vmatprep.subr.mxu0 0.0
  %2461 = vmatpush1.msra.mxu0 0.0
  %2462 = vmatprep.subr.mxu0 0.0
  %2463 = vmatpush1.msra.mxu0 0.0
  %2464 = vmatprep.subr.mxu0 0.0
  %2465 = vmatpush1.msra.mxu0 0.0
  %2466 = vmatprep.subr.mxu0 0.0
  %2467 = vmatpush1.msra.mxu0 0.0
  %2468 = vmatprep.subr.mxu0 0.0
  %2469 = vmatpush1.msra.mxu0 0.0
  %2470 = vmatprep.subr.mxu0 0.0
  %2471 = vmatpush1.msra.mxu0 0.0
  %2472 = vmatprep.subr.mxu0 0.0
  %2473 = vmatpush1.msra.mxu0 0.0
  %2474 = vmatprep.subr.mxu0 0.0
  %2475 = vmatpush1.msra.mxu0 0.0
  %2476 = vmatprep.subr.mxu0 0.0
  %2477 = vmatpush1.msra.mxu0 0.0
  %2478 = vmatprep.mubr.f32.mxu0 0.0
  %2479 = vmatmul.mubr.f32.gmra.mrb[0].mxu0 %v2412
  %v2480 = vpop.f32.mrb[0].mxu0
  %v2481 = vadd.f32 0.0, %v2480
  %v2482 = vpop.f32.mrb[0].mxu0
  %2483 = vdwg.mxu0
  %v2484 = vsel %vm1528, %v2401, 0
  %2486 = vmatprep.subr.mxu0 0.0
  %2487 = vmatpush1.msra.mxu0 %v2402
  %2488 = vmatprep.subr.mxu0 0.0
  %2489 = vmatpush1.msra.mxu0 %v2403
  %2490 = vmatprep.subr.mxu0 0.0
  %2491 = vmatpush1.msra.mxu0 %v2404
  %2492 = vmatprep.subr.mxu0 0.0
  %2493 = vmatpush1.msra.mxu0 %v2405
  %2494 = vmatprep.subr.mxu0 0.0
  %2495 = vmatpush1.msra.mxu0 0.0
  %2496 = vmatprep.subr.mxu0 0.0
  %2497 = vmatpush1.msra.mxu0 0.0
  %2498 = vmatprep.subr.mxu0 0.0
  %2499 = vmatpush1.msra.mxu0 0.0
  %2500 = vmatprep.subr.mxu0 0.0
  %2501 = vmatpush1.msra.mxu0 0.0
  %2502 = vmatprep.subr.mxu0 0.0
  %2503 = vmatpush1.msra.mxu0 0.0
  %2504 = vmatprep.subr.mxu0 0.0
  %2505 = vmatpush1.msra.mxu0 0.0
  %2506 = vmatprep.subr.mxu0 0.0
  %2507 = vmatpush1.msra.mxu0 0.0
  %2508 = vmatprep.subr.mxu0 0.0
  %2509 = vmatpush1.msra.mxu0 0.0
  %2510 = vmatprep.subr.mxu0 0.0
  %2511 = vmatpush1.msra.mxu0 0.0
  %2512 = vmatprep.subr.mxu0 0.0
  %2513 = vmatpush1.msra.mxu0 0.0
  %2514 = vmatprep.subr.mxu0 0.0
  %2515 = vmatpush1.msra.mxu0 0.0
  %2516 = vmatprep.subr.mxu0 0.0
  %2517 = vmatpush1.msra.mxu0 0.0
  %2518 = vmatprep.subr.mxu0 0.0
  %2519 = vmatpush1.msra.mxu0 0.0
  %2520 = vmatprep.subr.mxu0 0.0
  %2521 = vmatpush1.msra.mxu0 0.0
  %2522 = vmatprep.subr.mxu0 0.0
  %2523 = vmatpush1.msra.mxu0 0.0
  %2524 = vmatprep.subr.mxu0 0.0
  %2525 = vmatpush1.msra.mxu0 0.0
  %2526 = vmatprep.subr.mxu0 0.0
  %2527 = vmatpush1.msra.mxu0 0.0
  %2528 = vmatprep.subr.mxu0 0.0
  %2529 = vmatpush1.msra.mxu0 0.0
  %2530 = vmatprep.subr.mxu0 0.0
  %2531 = vmatpush1.msra.mxu0 0.0
  %2532 = vmatprep.subr.mxu0 0.0
  %2533 = vmatpush1.msra.mxu0 0.0
  %2534 = vmatprep.subr.mxu0 0.0
  %2535 = vmatpush1.msra.mxu0 0.0
  %2536 = vmatprep.subr.mxu0 0.0
  %2537 = vmatpush1.msra.mxu0 0.0
  %2538 = vmatprep.subr.mxu0 0.0
  %2539 = vmatpush1.msra.mxu0 0.0
  %2540 = vmatprep.subr.mxu0 0.0
  %2541 = vmatpush1.msra.mxu0 0.0
  %2542 = vmatprep.subr.mxu0 0.0
  %2543 = vmatpush1.msra.mxu0 0.0
  %2544 = vmatprep.subr.mxu0 0.0
  %2545 = vmatpush1.msra.mxu0 0.0
  %2546 = vmatprep.subr.mxu0 0.0
  %2547 = vmatpush1.msra.mxu0 0.0
  %2548 = vmatprep.subr.mxu0 0.0
  %2549 = vmatpush1.msra.mxu0 0.0
  %2550 = vmatprep.mubr.f32.mxu0 0.0
  %2551 = vmatmul.mubr.f32.gmra.mrb[0].mxu0 %v2484
  %v2552 = vpop.f32.mrb[0].mxu0
  %v2553 = vadd.f32 %v2481, %v2552
  %v2554 = vpop.f32.mrb[0].mxu0
  %2555 = vdwg.mxu0
  %v2556 = vld [vmem:[%s2312] sm:$0xff]
  %v2557 = vld [vmem:[%s2312 + $0x8] sm:$0xff]
  %v2558 = vld [vmem:[%s2312 + $0x10] sm:$0xff]
  %v2559 = vld [vmem:[%s2312 + $0x18] sm:$0xff]
  %v2560 = vrot.slane %v2401, 2
  %v2561 = vsel %vm1528, %v2560, 0
  %2563 = vmatprep.subr.mxu0 0.0
  %2564 = vmatpush1.msra.mxu0 %v2556
  %2565 = vmatprep.subr.mxu0 0.0
  %2566 = vmatpush1.msra.mxu0 %v2557
  %2567 = vmatprep.subr.mxu0 0.0
  %2568 = vmatpush1.msra.mxu0 %v2558
  %2569 = vmatprep.subr.mxu0 0.0
  %2570 = vmatpush1.msra.mxu0 %v2559
  %2571 = vmatprep.subr.mxu0 0.0
  %2572 = vmatpush1.msra.mxu0 0.0
  %2573 = vmatprep.subr.mxu0 0.0
  %2574 = vmatpush1.msra.mxu0 0.0
  %2575 = vmatprep.subr.mxu0 0.0
  %2576 = vmatpush1.msra.mxu0 0.0
  %2577 = vmatprep.subr.mxu0 0.0
  %2578 = vmatpush1.msra.mxu0 0.0
  %2579 = vmatprep.subr.mxu0 0.0
  %2580 = vmatpush1.msra.mxu0 0.0
  %2581 = vmatprep.subr.mxu0 0.0
  %2582 = vmatpush1.msra.mxu0 0.0
  %2583 = vmatprep.subr.mxu0 0.0
  %2584 = vmatpush1.msra.mxu0 0.0
  %2585 = vmatprep.subr.mxu0 0.0
  %2586 = vmatpush1.msra.mxu0 0.0
  %2587 = vmatprep.subr.mxu0 0.0
  %2588 = vmatpush1.msra.mxu0 0.0
  %2589 = vmatprep.subr.mxu0 0.0
  %2590 = vmatpush1.msra.mxu0 0.0
  %2591 = vmatprep.subr.mxu0 0.0
  %2592 = vmatpush1.msra.mxu0 0.0
  %2593 = vmatprep.subr.mxu0 0.0
  %2594 = vmatpush1.msra.mxu0 0.0
  %2595 = vmatprep.subr.mxu0 0.0
  %2596 = vmatpush1.msra.mxu0 0.0
  %2597 = vmatprep.subr.mxu0 0.0
  %2598 = vmatpush1.msra.mxu0 0.0
  %2599 = vmatprep.subr.mxu0 0.0
  %2600 = vmatpush1.msra.mxu0 0.0
  %2601 = vmatprep.subr.mxu0 0.0
  %2602 = vmatpush1.msra.mxu0 0.0
  %2603 = vmatprep.subr.mxu0 0.0
  %2604 = vmatpush1.msra.mxu0 0.0
  %2605 = vmatprep.subr.mxu0 0.0
  %2606 = vmatpush1.msra.mxu0 0.0
  %2607 = vmatprep.subr.mxu0 0.0
  %2608 = vmatpush1.msra.mxu0 0.0
  %2609 = vmatprep.subr.mxu0 0.0
  %2610 = vmatpush1.msra.mxu0 0.0
  %2611 = vmatprep.subr.mxu0 0.0
  %2612 = vmatpush1.msra.mxu0 0.0
  %2613 = vmatprep.subr.mxu0 0.0
  %2614 = vmatpush1.msra.mxu0 0.0
  %2615 = vmatprep.subr.mxu0 0.0
  %2616 = vmatpush1.msra.mxu0 0.0
  %2617 = vmatprep.subr.mxu0 0.0
  %2618 = vmatpush1.msra.mxu0 0.0
  %2619 = vmatprep.subr.mxu0 0.0
  %2620 = vmatpush1.msra.mxu0 0.0
  %2621 = vmatprep.subr.mxu0 0.0
  %2622 = vmatpush1.msra.mxu0 0.0
  %2623 = vmatprep.subr.mxu0 0.0
  %2624 = vmatpush1.msra.mxu0 0.0
  %2625 = vmatprep.subr.mxu0 0.0
  %2626 = vmatpush1.msra.mxu0 0.0
  %2627 = vmatprep.mubr.f32.mxu0 0.0
  %2628 = vmatmul.mubr.f32.gmra.mrb[0].mxu0 %v2561
  %v2629 = vpop.f32.mrb[0].mxu0
  %v2630 = vadd.f32 0.0, %v2629
  %v2631 = vpop.f32.mrb[0].mxu0
  %2632 = vdwg.mxu0
  %v2633 = vadd.f32 %v2553, %v2630
  %vm2634 = vcmask 519168
  %v2635 = vsel %vm2634, %v2390, 0.0
  %v2636 = vrot.slane %v2635, 4
  %v2637 = vadd.f32 %v2635, %v2636
  %v2638 = vrot.slane %v2637, 2
  %v2639 = vadd.f32 %v2637, %v2638
  %v2640 = vrot.slane %v2639, 1
  %v2641 = vadd.f32 %v2639, %v2640
  %v2642 = vadd.f32 %v2641, 0.0
  %v2643 = vsel %vm2634, %v2633, 0.0
  %v2644 = vrot.slane %v2643, 4
  %v2645 = vadd.f32 %v2643, %v2644
  %v2646 = vrot.slane %v2645, 2
  %v2647 = vadd.f32 %v2645, %v2646
  %v2648 = vrot.slane %v2647, 1
  %v2649 = vadd.f32 %v2647, %v2648
  %v2650 = vadd.f32 %v2642, %v2649
  %v2651 = vmul.f32 %v2390, %v2390
  %v2652 = vsel %vm2634, %v2651, 0.0
  %v2653 = vrot.slane %v2652, 4
  %v2654 = vadd.f32 %v2652, %v2653
  %v2655 = vrot.slane %v2654, 2
  %v2656 = vadd.f32 %v2654, %v2655
  %v2657 = vrot.slane %v2656, 1
  %v2658 = vadd.f32 %v2656, %v2657
  %v2659 = vadd.f32 %v2658, 0.0
  %v2660 = vmul.f32 %v2633, %v2633
  %v2661 = vsel %vm2634, %v2660, 0.0
  %v2662 = vrot.slane %v2661, 4
  %v2663 = vadd.f32 %v2661, %v2662
  %v2664 = vrot.slane %v2663, 2
  %v2665 = vadd.f32 %v2663, %v2664
  %v2666 = vrot.slane %v2665, 1
  %v2667 = vadd.f32 %v2665, %v2666
  %v2668 = vadd.f32 %v2659, %v2667
  %v2669 = vrcp.pop 8.0
  %v2670 = vmul.f32 %v2650, %v2669
  %v2671 = vmul.f32 %v2668, %v2669
  %v2672 = vmul.f32 %v2670, %v2670
  %v2673 = vsub.f32 %v2671, %v2672
  %v2674 = vld [vmem:[%s29] sm:$0x1]
  %v2675 = vadd.f32 %v2673, 1e-05
  %v2676 = vrsqrt.pop %v2675
  %v2677 = vmul.f32 %v2674, %v2676
  %v2678 = vld [vmem:[%s31] sm:$0x1]
  %v2679 = vmul.f32 %v2670, %v2677
  %v2680 = vsub.f32 %v2678, %v2679
  %v2682 = vlaneseq
  %v2683 = vshrl.u32 %v2682, 7
  %v2684 = vsub.s32 0, %v2683
  %v2685 = vrot.slane %v2677, %v2684
  %v2687 = vmul.f32 %v2390, %v2685
  %v2689 = vlaneseq
  %v2690 = vshrl.u32 %v2689, 7
  %v2691 = vsub.s32 0, %v2690
  %v2692 = vrot.slane %v2680, %v2691
  %v2694 = vadd.f32 %v2687, %v2692
  %v2695 = vtanh.pop %v2694
  %v2696 = vmul.f32 %v2633, %v2685
  %v2697 = vadd.f32 %v2696, %v2692
  %v2698 = vtanh.pop %v2697
  %vm2699 = vcmask 516096
  %2700 = vst.msk [vmem:[#allocation2] sm:$0x1] %vm2699, 0.0
  %2701 = vst.msk [vmem:[#allocation2 + $0x5] sm:$0x1] %vm2699, 0.0
  %2702 = vst.msk [vmem:[#allocation2 + $0x1] sm:$0xf] %vm2634, %v2695
  %v2703 = vld [vmem:[#allocation2] sm:$0xff]
  %v2704 = vld [vmem:[%s33] sm:$0xff]
  %v2705 = vld [vmem:[%s33 + $0x8] sm:$0xff]
  %v2706 = vld [vmem:[%s33 + $0x10] sm:$0xff]
  %v2707 = vld [vmem:[%s33 + $0x18] sm:$0xff]
  %v2708 = vld [vmem:[%s33 + $0x20] sm:$0xff]
  %v2709 = vld [vmem:[%s33 + $0x28] sm:$0xff]
  %v2710 = vld [vmem:[%s33 + $0x30] sm:$0xff]
  %v2711 = vld [vmem:[%s33 + $0x38] sm:$0xff]
  %s2712 = scalar_lea.vmem %s33, 64
  %v2713 = vld [vmem:[%s2712] sm:$0xff]
  %v2714 = vld [vmem:[%s2712 + $0x8] sm:$0xff]
  %v2715 = vld [vmem:[%s2712 + $0x10] sm:$0xff]
  %v2716 = vld [vmem:[%s2712 + $0x18] sm:$0xff]
  %v2717 = vld [vmem:[%s2712 + $0x20] sm:$0xff]
  %v2718 = vld [vmem:[%s2712 + $0x28] sm:$0xff]
  %v2719 = vld [vmem:[%s2712 + $0x30] sm:$0xff]
  %v2720 = vld [vmem:[%s2712 + $0x38] sm:$0xff]
  %v2722 = vrot.slane %v2703, 1
  %vm2723 = vcmask 523264
  %v2724 = vsel %vm2723, %v2722, 0
  %2726 = vmatprep.subr.mxu0 0.0
  %2727 = vmatpush1.msra.mxu0 %v2713
  %2728 = vmatprep.subr.mxu0 0.0
  %2729 = vmatpush1.msra.mxu0 %v2714
  %2730 = vmatprep.subr.mxu0 0.0
  %2731 = vmatpush1.msra.mxu0 %v2715
  %2732 = vmatprep.subr.mxu0 0.0
  %2733 = vmatpush1.msra.mxu0 %v2716
  %2734 = vmatprep.subr.mxu0 0.0
  %2735 = vmatpush1.msra.mxu0 %v2717
  %2736 = vmatprep.subr.mxu0 0.0
  %2737 = vmatpush1.msra.mxu0 %v2718
  %2738 = vmatprep.subr.mxu0 0.0
  %2739 = vmatpush1.msra.mxu0 %v2719
  %2740 = vmatprep.subr.mxu0 0.0
  %2741 = vmatpush1.msra.mxu0 %v2720
  %2742 = vmatprep.subr.mxu0 0.0
  %2743 = vmatpush1.msra.mxu0 0.0
  %2744 = vmatprep.subr.mxu0 0.0
  %2745 = vmatpush1.msra.mxu0 0.0
  %2746 = vmatprep.subr.mxu0 0.0
  %2747 = vmatpush1.msra.mxu0 0.0
  %2748 = vmatprep.subr.mxu0 0.0
  %2749 = vmatpush1.msra.mxu0 0.0
  %2750 = vmatprep.subr.mxu0 0.0
  %2751 = vmatpush1.msra.mxu0 0.0
  %2752 = vmatprep.subr.mxu0 0.0
  %2753 = vmatpush1.msra.mxu0 0.0
  %2754 = vmatprep.subr.mxu0 0.0
  %2755 = vmatpush1.msra.mxu0 0.0
  %2756 = vmatprep.subr.mxu0 0.0
  %2757 = vmatpush1.msra.mxu0 0.0
  %2758 = vmatprep.subr.mxu0 0.0
  %2759 = vmatpush1.msra.mxu0 0.0
  %2760 = vmatprep.subr.mxu0 0.0
  %2761 = vmatpush1.msra.mxu0 0.0
  %2762 = vmatprep.subr.mxu0 0.0
  %2763 = vmatpush1.msra.mxu0 0.0
  %2764 = vmatprep.subr.mxu0 0.0
  %2765 = vmatpush1.msra.mxu0 0.0
  %2766 = vmatprep.subr.mxu0 0.0
  %2767 = vmatpush1.msra.mxu0 0.0
  %2768 = vmatprep.subr.mxu0 0.0
  %2769 = vmatpush1.msra.mxu0 0.0
  %2770 = vmatprep.subr.mxu0 0.0
  %2771 = vmatpush1.msra.mxu0 0.0
  %2772 = vmatprep.subr.mxu0 0.0
  %2773 = vmatpush1.msra.mxu0 0.0
  %2774 = vmatprep.subr.mxu0 0.0
  %2775 = vmatpush1.msra.mxu0 0.0
  %2776 = vmatprep.subr.mxu0 0.0
  %2777 = vmatpush1.msra.mxu0 0.0
  %2778 = vmatprep.subr.mxu0 0.0
  %2779 = vmatpush1.msra.mxu0 0.0
  %2780 = vmatprep.subr.mxu0 0.0
  %2781 = vmatpush1.msra.mxu0 0.0
  %2782 = vmatprep.subr.mxu0 0.0
  %2783 = vmatpush1.msra.mxu0 0.0
  %2784 = vmatprep.subr.mxu0 0.0
  %2785 = vmatpush1.msra.mxu0 0.0
  %2786 = vmatprep.subr.mxu0 0.0
  %2787 = vmatpush1.msra.mxu0 0.0
  %2788 = vmatprep.subr.mxu0 0.0
  %2789 = vmatpush1.msra.mxu0 0.0
  %2790 = vmatprep.mubr.f32.mxu0 0.0
  %2791 = vmatmul.mubr.f32.gmra.mrb[0].mxu0 %v2724
  %v2792 = vpop.f32.mrb[0].mxu0
  %v2793 = vadd.f32 0.0, %v2792
  %v2794 = vpop.f32.mrb[0].mxu0
  %2795 = vdwg.mxu0
  %v2796 = vsel %vm2723, %v2703, 0
  %2798 = vmatprep.subr.mxu0 0.0
  %2799 = vmatpush1.msra.mxu0 %v2704
  %2800 = vmatprep.subr.mxu0 0.0
  %2801 = vmatpush1.msra.mxu0 %v2705
  %2802 = vmatprep.subr.mxu0 0.0
  %2803 = vmatpush1.msra.mxu0 %v2706
  %2804 = vmatprep.subr.mxu0 0.0
  %2805 = vmatpush1.msra.mxu0 %v2707
  %2806 = vmatprep.subr.mxu0 0.0
  %2807 = vmatpush1.msra.mxu0 %v2708
  %2808 = vmatprep.subr.mxu0 0.0
  %2809 = vmatpush1.msra.mxu0 %v2709
  %2810 = vmatprep.subr.mxu0 0.0
  %2811 = vmatpush1.msra.mxu0 %v2710
  %2812 = vmatprep.subr.mxu0 0.0
  %2813 = vmatpush1.msra.mxu0 %v2711
  %2814 = vmatprep.subr.mxu0 0.0
  %2815 = vmatpush1.msra.mxu0 0.0
  %2816 = vmatprep.subr.mxu0 0.0
  %2817 = vmatpush1.msra.mxu0 0.0
  %2818 = vmatprep.subr.mxu0 0.0
  %2819 = vmatpush1.msra.mxu0 0.0
  %2820 = vmatprep.subr.mxu0 0.0
  %2821 = vmatpush1.msra.mxu0 0.0
  %2822 = vmatprep.subr.mxu0 0.0
  %2823 = vmatpush1.msra.mxu0 0.0
  %2824 = vmatprep.subr.mxu0 0.0
  %2825 = vmatpush1.msra.mxu0 0.0
  %2826 = vmatprep.subr.mxu0 0.0
  %2827 = vmatpush1.msra.mxu0 0.0
  %2828 = vmatprep.subr.mxu0 0.0
  %2829 = vmatpush1.msra.mxu0 0.0
  %2830 = vmatprep.subr.mxu0 0.0
  %2831 = vmatpush1.msra.mxu0 0.0
  %2832 = vmatprep.subr.mxu0 0.0
  %2833 = vmatpush1.msra.mxu0 0.0
  %2834 = vmatprep.subr.mxu0 0.0
  %2835 = vmatpush1.msra.mxu0 0.0
  %2836 = vmatprep.subr.mxu0 0.0
  %2837 = vmatpush1.msra.mxu0 0.0
  %2838 = vmatprep.subr.mxu0 0.0
  %2839 = vmatpush1.msra.mxu0 0.0
  %2840 = vmatprep.subr.mxu0 0.0
  %2841 = vmatpush1.msra.mxu0 0.0
  %2842 = vmatprep.subr.mxu0 0.0
  %2843 = vmatpush1.msra.mxu0 0.0
  %2844 = vmatprep.subr.mxu0 0.0
  %2845 = vmatpush1.msra.mxu0 0.0
  %2846 = vmatprep.subr.mxu0 0.0
  %2847 = vmatpush1.msra.mxu0 0.0
  %2848 = vmatprep.subr.mxu0 0.0
  %2849 = vmatpush1.msra.mxu0 0.0
  %2850 = vmatprep.subr.mxu0 0.0
  %2851 = vmatpush1.msra.mxu0 0.0
  %2852 = vmatprep.subr.mxu0 0.0
  %2853 = vmatpush1.msra.mxu0 0.0
  %2854 = vmatprep.subr.mxu0 0.0
  %2855 = vmatpush1.msra.mxu0 0.0
  %2856 = vmatprep.subr.mxu0 0.0
  %2857 = vmatpush1.msra.mxu0 0.0
  %2858 = vmatprep.subr.mxu0 0.0
  %2859 = vmatpush1.msra.mxu0 0.0
  %2860 = vmatprep.subr.mxu0 0.0
  %2861 = vmatpush1.msra.mxu0 0.0
  %2862 = vmatprep.mubr.f32.mxu0 0.0
  %2863 = vmatmul.mubr.f32.gmra.mrb[0].mxu0 %v2796
  %v2864 = vpop.f32.mrb[0].mxu0
  %v2865 = vadd.f32 %v2793, %v2864
  %v2866 = vpop.f32.mrb[0].mxu0
  %2867 = vdwg.mxu0
  %s2868 = scalar_lea.vmem %s33, 128
  %v2869 = vld [vmem:[%s2868] sm:$0xff]
  %v2870 = vld [vmem:[%s2868 + $0x8] sm:$0xff]
  %v2871 = vld [vmem:[%s2868 + $0x10] sm:$0xff]
  %v2872 = vld [vmem:[%s2868 + $0x18] sm:$0xff]
  %v2873 = vld [vmem:[%s2868 + $0x20] sm:$0xff]
  %v2874 = vld [vmem:[%s2868 + $0x28] sm:$0xff]
  %v2875 = vld [vmem:[%s2868 + $0x30] sm:$0xff]
  %v2876 = vld [vmem:[%s2868 + $0x38] sm:$0xff]
  %v2877 = vrot.slane %v2703, 2
  %v2878 = vsel %vm2723, %v2877, 0
  %2880 = vmatprep.subr.mxu0 0.0
  %2881 = vmatpush1.msra.mxu0 %v2869
  %2882 = vmatprep.subr.mxu0 0.0
  %2883 = vmatpush1.msra.mxu0 %v2870
  %2884 = vmatprep.subr.mxu0 0.0
  %2885 = vmatpush1.msra.mxu0 %v2871
  %2886 = vmatprep.subr.mxu0 0.0
  %2887 = vmatpush1.msra.mxu0 %v2872
  %2888 = vmatprep.subr.mxu0 0.0
  %2889 = vmatpush1.msra.mxu0 %v2873
  %2890 = vmatprep.subr.mxu0 0.0
  %2891 = vmatpush1.msra.mxu0 %v2874
  %2892 = vmatprep.subr.mxu0 0.0
  %2893 = vmatpush1.msra.mxu0 %v2875
  %2894 = vmatprep.subr.mxu0 0.0
  %2895 = vmatpush1.msra.mxu0 %v2876
  %2896 = vmatprep.subr.mxu0 0.0
  %2897 = vmatpush1.msra.mxu0 0.0
  %2898 = vmatprep.subr.mxu0 0.0
  %2899 = vmatpush1.msra.mxu0 0.0
  %2900 = vmatprep.subr.mxu0 0.0
  %2901 = vmatpush1.msra.mxu0 0.0
  %2902 = vmatprep.subr.mxu0 0.0
  %2903 = vmatpush1.msra.mxu0 0.0
  %2904 = vmatprep.subr.mxu0 0.0
  %2905 = vmatpush1.msra.mxu0 0.0
  %2906 = vmatprep.subr.mxu0 0.0
  %2907 = vmatpush1.msra.mxu0 0.0
  %2908 = vmatprep.subr.mxu0 0.0
  %2909 = vmatpush1.msra.mxu0 0.0
  %2910 = vmatprep.subr.mxu0 0.0
  %2911 = vmatpush1.msra.mxu0 0.0
  %2912 = vmatprep.subr.mxu0 0.0
  %2913 = vmatpush1.msra.mxu0 0.0
  %2914 = vmatprep.subr.mxu0 0.0
  %2915 = vmatpush1.msra.mxu0 0.0
  %2916 = vmatprep.subr.mxu0 0.0
  %2917 = vmatpush1.msra.mxu0 0.0
  %2918 = vmatprep.subr.mxu0 0.0
  %2919 = vmatpush1.msra.mxu0 0.0
  %2920 = vmatprep.subr.mxu0 0.0
  %2921 = vmatpush1.msra.mxu0 0.0
  %2922 = vmatprep.subr.mxu0 0.0
  %2923 = vmatpush1.msra.mxu0 0.0
  %2924 = vmatprep.subr.mxu0 0.0
  %2925 = vmatpush1.msra.mxu0 0.0
  %2926 = vmatprep.subr.mxu0 0.0
  %2927 = vmatpush1.msra.mxu0 0.0
  %2928 = vmatprep.subr.mxu0 0.0
  %2929 = vmatpush1.msra.mxu0 0.0
  %2930 = vmatprep.subr.mxu0 0.0
  %2931 = vmatpush1.msra.mxu0 0.0
  %2932 = vmatprep.subr.mxu0 0.0
  %2933 = vmatpush1.msra.mxu0 0.0
  %2934 = vmatprep.subr.mxu0 0.0
  %2935 = vmatpush1.msra.mxu0 0.0
  %2936 = vmatprep.subr.mxu0 0.0
  %2937 = vmatpush1.msra.mxu0 0.0
  %2938 = vmatprep.subr.mxu0 0.0
  %2939 = vmatpush1.msra.mxu0 0.0
  %2940 = vmatprep.subr.mxu0 0.0
  %2941 = vmatpush1.msra.mxu0 0.0
  %2942 = vmatprep.subr.mxu0 0.0
  %2943 = vmatpush1.msra.mxu0 0.0
  %2944 = vmatprep.mubr.f32.mxu0 0.0
  %2945 = vmatmul.mubr.f32.gmra.mrb[0].mxu0 %v2878
  %v2946 = vpop.f32.mrb[0].mxu0
  %v2947 = vadd.f32 0.0, %v2946
  %v2948 = vpop.f32.mrb[0].mxu0
  %2949 = vdwg.mxu0
  %v2950 = vadd.f32 %v2865, %v2947
  %2951 = vst.msk [vmem:[%s250] sm:$0x1] %vm2699, 0.0
  %2952 = vst.msk [vmem:[%s250 + $0x5] sm:$0x1] %vm2699, 0.0
  %2953 = vst.msk [vmem:[%s250 + $0x1] sm:$0xf] %vm2634, %v2698
  %v2954 = vld [vmem:[%s250] sm:$0xff]
  %v2955 = vld [vmem:[%s33] sm:$0xff]
  %v2956 = vld [vmem:[%s33 + $0x8] sm:$0xff]
  %v2957 = vld [vmem:[%s33 + $0x10] sm:$0xff]
  %v2958 = vld [vmem:[%s33 + $0x18] sm:$0xff]
  %v2959 = vld [vmem:[%s33 + $0x20] sm:$0xff]
  %v2960 = vld [vmem:[%s33 + $0x28] sm:$0xff]
  %v2961 = vld [vmem:[%s33 + $0x30] sm:$0xff]
  %v2962 = vld [vmem:[%s33 + $0x38] sm:$0xff]
  %v2963 = vld [vmem:[%s2712] sm:$0xff]
  %v2964 = vld [vmem:[%s2712 + $0x8] sm:$0xff]
  %v2965 = vld [vmem:[%s2712 + $0x10] sm:$0xff]
  %v2966 = vld [vmem:[%s2712 + $0x18] sm:$0xff]
  %v2967 = vld [vmem:[%s2712 + $0x20] sm:$0xff]
  %v2968 = vld [vmem:[%s2712 + $0x28] sm:$0xff]
  %v2969 = vld [vmem:[%s2712 + $0x30] sm:$0xff]
  %v2970 = vld [vmem:[%s2712 + $0x38] sm:$0xff]
  %v2972 = vrot.slane %v2954, 1
  %v2973 = vsel %vm2723, %v2972, 0
  %2975 = vmatprep.subr.mxu0 0.0
  %2976 = vmatpush1.msra.mxu0 %v2963
  %2977 = vmatprep.subr.mxu0 0.0
  %2978 = vmatpush1.msra.mxu0 %v2964
  %2979 = vmatprep.subr.mxu0 0.0
  %2980 = vmatpush1.msra.mxu0 %v2965
  %2981 = vmatprep.subr.mxu0 0.0
  %2982 = vmatpush1.msra.mxu0 %v2966
  %2983 = vmatprep.subr.mxu0 0.0
  %2984 = vmatpush1.msra.mxu0 %v2967
  %2985 = vmatprep.subr.mxu0 0.0
  %2986 = vmatpush1.msra.mxu0 %v2968
  %2987 = vmatprep.subr.mxu0 0.0
  %2988 = vmatpush1.msra.mxu0 %v2969
  %2989 = vmatprep.subr.mxu0 0.0
  %2990 = vmatpush1.msra.mxu0 %v2970
  %2991 = vmatprep.subr.mxu0 0.0
  %2992 = vmatpush1.msra.mxu0 0.0
  %2993 = vmatprep.subr.mxu0 0.0
  %2994 = vmatpush1.msra.mxu0 0.0
  %2995 = vmatprep.subr.mxu0 0.0
  %2996 = vmatpush1.msra.mxu0 0.0
  %2997 = vmatprep.subr.mxu0 0.0
  %2998 = vmatpush1.msra.mxu0 0.0
  %2999 = vmatprep.subr.mxu0 0.0
  %3000 = vmatpush1.msra.mxu0 0.0
  %3001 = vmatprep.subr.mxu0 0.0
  %3002 = vmatpush1.msra.mxu0 0.0
  %3003 = vmatprep.subr.mxu0 0.0
  %3004 = vmatpush1.msra.mxu0 0.0
  %3005 = vmatprep.subr.mxu0 0.0
  %3006 = vmatpush1.msra.mxu0 0.0
  %3007 = vmatprep.subr.mxu0 0.0
  %3008 = vmatpush1.msra.mxu0 0.0
  %3009 = vmatprep.subr.mxu0 0.0
  %3010 = vmatpush1.msra.mxu0 0.0
  %3011 = vmatprep.subr.mxu0 0.0
  %3012 = vmatpush1.msra.mxu0 0.0
  %3013 = vmatprep.subr.mxu0 0.0
  %3014 = vmatpush1.msra.mxu0 0.0
  %3015 = vmatprep.subr.mxu0 0.0
  %3016 = vmatpush1.msra.mxu0 0.0
  %3017 = vmatprep.subr.mxu0 0.0
  %3018 = vmatpush1.msra.mxu0 0.0
  %3019 = vmatprep.subr.mxu0 0.0
  %3020 = vmatpush1.msra.mxu0 0.0
  %3021 = vmatprep.subr.mxu0 0.0
  %3022 = vmatpush1.msra.mxu0 0.0
  %3023 = vmatprep.subr.mxu0 0.0
  %3024 = vmatpush1.msra.mxu0 0.0
  %3025 = vmatprep.subr.mxu0 0.0
  %3026 = vmatpush1.msra.mxu0 0.0
  %3027 = vmatprep.subr.mxu0 0.0
  %3028 = vmatpush1.msra.mxu0 0.0
  %3029 = vmatprep.subr.mxu0 0.0
  %3030 = vmatpush1.msra.mxu0 0.0
  %3031 = vmatprep.subr.mxu0 0.0
  %3032 = vmatpush1.msra.mxu0 0.0
  %3033 = vmatprep.subr.mxu0 0.0
  %3034 = vmatpush1.msra.mxu0 0.0
  %3035 = vmatprep.subr.mxu0 0.0
  %3036 = vmatpush1.msra.mxu0 0.0
  %3037 = vmatprep.subr.mxu0 0.0
  %3038 = vmatpush1.msra.mxu0 0.0
  %3039 = vmatprep.mubr.f32.mxu0 0.0
  %3040 = vmatmul.mubr.f32.gmra.mrb[0].mxu0 %v2973
  %v3041 = vpop.f32.mrb[0].mxu0
  %v3042 = vadd.f32 0.0, %v3041
  %v3043 = vpop.f32.mrb[0].mxu0
  %3044 = vdwg.mxu0
  %v3045 = vsel %vm2723, %v2954, 0
  %3047 = vmatprep.subr.mxu0 0.0
  %3048 = vmatpush1.msra.mxu0 %v2955
  %3049 = vmatprep.subr.mxu0 0.0
  %3050 = vmatpush1.msra.mxu0 %v2956
  %3051 = vmatprep.subr.mxu0 0.0
  %3052 = vmatpush1.msra.mxu0 %v2957
  %3053 = vmatprep.subr.mxu0 0.0
  %3054 = vmatpush1.msra.mxu0 %v2958
  %3055 = vmatprep.subr.mxu0 0.0
  %3056 = vmatpush1.msra.mxu0 %v2959
  %3057 = vmatprep.subr.mxu0 0.0
  %3058 = vmatpush1.msra.mxu0 %v2960
  %3059 = vmatprep.subr.mxu0 0.0
  %3060 = vmatpush1.msra.mxu0 %v2961
  %3061 = vmatprep.subr.mxu0 0.0
  %3062 = vmatpush1.msra.mxu0 %v2962
  %3063 = vmatprep.subr.mxu0 0.0
  %3064 = vmatpush1.msra.mxu0 0.0
  %3065 = vmatprep.subr.mxu0 0.0
  %3066 = vmatpush1.msra.mxu0 0.0
  %3067 = vmatprep.subr.mxu0 0.0
  %3068 = vmatpush1.msra.mxu0 0.0
  %3069 = vmatprep.subr.mxu0 0.0
  %3070 = vmatpush1.msra.mxu0 0.0
  %3071 = vmatprep.subr.mxu0 0.0
  %3072 = vmatpush1.msra.mxu0 0.0
  %3073 = vmatprep.subr.mxu0 0.0
  %3074 = vmatpush1.msra.mxu0 0.0
  %3075 = vmatprep.subr.mxu0 0.0
  %3076 = vmatpush1.msra.mxu0 0.0
  %3077 = vmatprep.subr.mxu0 0.0
  %3078 = vmatpush1.msra.mxu0 0.0
  %3079 = vmatprep.subr.mxu0 0.0
  %3080 = vmatpush1.msra.mxu0 0.0
  %3081 = vmatprep.subr.mxu0 0.0
  %3082 = vmatpush1.msra.mxu0 0.0
  %3083 = vmatprep.subr.mxu0 0.0
  %3084 = vmatpush1.msra.mxu0 0.0
  %3085 = vmatprep.subr.mxu0 0.0
  %3086 = vmatpush1.msra.mxu0 0.0
  %3087 = vmatprep.subr.mxu0 0.0
  %3088 = vmatpush1.msra.mxu0 0.0
  %3089 = vmatprep.subr.mxu0 0.0
  %3090 = vmatpush1.msra.mxu0 0.0
  %3091 = vmatprep.subr.mxu0 0.0
  %3092 = vmatpush1.msra.mxu0 0.0
  %3093 = vmatprep.subr.mxu0 0.0
  %3094 = vmatpush1.msra.mxu0 0.0
  %3095 = vmatprep.subr.mxu0 0.0
  %3096 = vmatpush1.msra.mxu0 0.0
  %3097 = vmatprep.subr.mxu0 0.0
  %3098 = vmatpush1.msra.mxu0 0.0
  %3099 = vmatprep.subr.mxu0 0.0
  %3100 = vmatpush1.msra.mxu0 0.0
  %3101 = vmatprep.subr.mxu0 0.0
  %3102 = vmatpush1.msra.mxu0 0.0
  %3103 = vmatprep.subr.mxu0 0.0
  %3104 = vmatpush1.msra.mxu0 0.0
  %3105 = vmatprep.subr.mxu0 0.0
  %3106 = vmatpush1.msra.mxu0 0.0
  %3107 = vmatprep.subr.mxu0 0.0
  %3108 = vmatpush1.msra.mxu0 0.0
  %3109 = vmatprep.subr.mxu0 0.0
  %3110 = vmatpush1.msra.mxu0 0.0
  %3111 = vmatprep.mubr.f32.mxu0 0.0
  %3112 = vmatmul.mubr.f32.gmra.mrb[0].mxu0 %v3045
  %v3113 = vpop.f32.mrb[0].mxu0
  %v3114 = vadd.f32 %v3042, %v3113
  %v3115 = vpop.f32.mrb[0].mxu0
  %3116 = vdwg.mxu0
  %v3117 = vld [vmem:[%s2868] sm:$0xff]
  %v3118 = vld [vmem:[%s2868 + $0x8] sm:$0xff]
  %v3119 = vld [vmem:[%s2868 + $0x10] sm:$0xff]
  %v3120 = vld [vmem:[%s2868 + $0x18] sm:$0xff]
  %v3121 = vld [vmem:[%s2868 + $0x20] sm:$0xff]
  %v3122 = vld [vmem:[%s2868 + $0x28] sm:$0xff]
  %v3123 = vld [vmem:[%s2868 + $0x30] sm:$0xff]
  %v3124 = vld [vmem:[%s2868 + $0x38] sm:$0xff]
  %v3125 = vrot.slane %v2954, 2
  %v3126 = vsel %vm2723, %v3125, 0
  %3128 = vmatprep.subr.mxu0 0.0
  %3129 = vmatpush1.msra.mxu0 %v3117
  %3130 = vmatprep.subr.mxu0 0.0
  %3131 = vmatpush1.msra.mxu0 %v3118
  %3132 = vmatprep.subr.mxu0 0.0
  %3133 = vmatpush1.msra.mxu0 %v3119
  %3134 = vmatprep.subr.mxu0 0.0
  %3135 = vmatpush1.msra.mxu0 %v3120
  %3136 = vmatprep.subr.mxu0 0.0
  %3137 = vmatpush1.msra.mxu0 %v3121
  %3138 = vmatprep.subr.mxu0 0.0
  %3139 = vmatpush1.msra.mxu0 %v3122
  %3140 = vmatprep.subr.mxu0 0.0
  %3141 = vmatpush1.msra.mxu0 %v3123
  %3142 = vmatprep.subr.mxu0 0.0
  %3143 = vmatpush1.msra.mxu0 %v3124
  %3144 = vmatprep.subr.mxu0 0.0
  %3145 = vmatpush1.msra.mxu0 0.0
  %3146 = vmatprep.subr.mxu0 0.0
  %3147 = vmatpush1.msra.mxu0 0.0
  %3148 = vmatprep.subr.mxu0 0.0
  %3149 = vmatpush1.msra.mxu0 0.0
  %3150 = vmatprep.subr.mxu0 0.0
  %3151 = vmatpush1.msra.mxu0 0.0
  %3152 = vmatprep.subr.mxu0 0.0
  %3153 = vmatpush1.msra.mxu0 0.0
  %3154 = vmatprep.subr.mxu0 0.0
  %3155 = vmatpush1.msra.mxu0 0.0
  %3156 = vmatprep.subr.mxu0 0.0
  %3157 = vmatpush1.msra.mxu0 0.0
  %3158 = vmatprep.subr.mxu0 0.0
  %3159 = vmatpush1.msra.mxu0 0.0
  %3160 = vmatprep.subr.mxu0 0.0
  %3161 = vmatpush1.msra.mxu0 0.0
  %3162 = vmatprep.subr.mxu0 0.0
  %3163 = vmatpush1.msra.mxu0 0.0
  %3164 = vmatprep.subr.mxu0 0.0
  %3165 = vmatpush1.msra.mxu0 0.0
  %3166 = vmatprep.subr.mxu0 0.0
  %3167 = vmatpush1.msra.mxu0 0.0
  %3168 = vmatprep.subr.mxu0 0.0
  %3169 = vmatpush1.msra.mxu0 0.0
  %3170 = vmatprep.subr.mxu0 0.0
  %3171 = vmatpush1.msra.mxu0 0.0
  %3172 = vmatprep.subr.mxu0 0.0
  %3173 = vmatpush1.msra.mxu0 0.0
  %3174 = vmatprep.subr.mxu0 0.0
  %3175 = vmatpush1.msra.mxu0 0.0
  %3176 = vmatprep.subr.mxu0 0.0
  %3177 = vmatpush1.msra.mxu0 0.0
  %3178 = vmatprep.subr.mxu0 0.0
  %3179 = vmatpush1.msra.mxu0 0.0
  %3180 = vmatprep.subr.mxu0 0.0
  %3181 = vmatpush1.msra.mxu0 0.0
  %3182 = vmatprep.subr.mxu0 0.0
  %3183 = vmatpush1.msra.mxu0 0.0
  %3184 = vmatprep.subr.mxu0 0.0
  %3185 = vmatpush1.msra.mxu0 0.0
  %3186 = vmatprep.subr.mxu0 0.0
  %3187 = vmatpush1.msra.mxu0 0.0
  %3188 = vmatprep.subr.mxu0 0.0
  %3189 = vmatpush1.msra.mxu0 0.0
  %3190 = vmatprep.subr.mxu0 0.0
  %3191 = vmatpush1.msra.mxu0 0.0
  %3192 = vmatprep.mubr.f32.mxu0 0.0
  %3193 = vmatmul.mubr.f32.gmra.mrb[0].mxu0 %v3126
  %v3194 = vpop.f32.mrb[0].mxu0
  %v3195 = vadd.f32 0.0, %v3194
  %v3196 = vpop.f32.mrb[0].mxu0
  %3197 = vdwg.mxu0
  %v3198 = vadd.f32 %v3114, %v3195
  %v3199 = vsel %vm2634, %v2950, 0.0
  %v3200 = vrot.slane %v3199, 4
  %v3201 = vadd.f32 %v3199, %v3200
  %v3202 = vrot.slane %v3201, 2
  %v3203 = vadd.f32 %v3201, %v3202
  %v3204 = vrot.slane %v3203, 1
  %v3205 = vadd.f32 %v3203, %v3204
  %v3206 = vadd.f32 %v3205, 0.0
  %v3207 = vsel %vm2634, %v3198, 0.0
  %v3208 = vrot.slane %v3207, 4
  %v3209 = vadd.f32 %v3207, %v3208
  %v3210 = vrot.slane %v3209, 2
  %v3211 = vadd.f32 %v3209, %v3210
  %v3212 = vrot.slane %v3211, 1
  %v3213 = vadd.f32 %v3211, %v3212
  %v3214 = vadd.f32 %v3206, %v3213
  %v3215 = vmul.f32 %v2950, %v2950
  %v3216 = vsel %vm2634, %v3215, 0.0
  %v3217 = vrot.slane %v3216, 4
  %v3218 = vadd.f32 %v3216, %v3217
  %v3219 = vrot.slane %v3218, 2
  %v3220 = vadd.f32 %v3218, %v3219
  %v3221 = vrot.slane %v3220, 1
  %v3222 = vadd.f32 %v3220, %v3221
  %v3223 = vadd.f32 %v3222, 0.0
  %v3224 = vmul.f32 %v3198, %v3198
  %v3225 = vsel %vm2634, %v3224, 0.0
  %v3226 = vrot.slane %v3225, 4
  %v3227 = vadd.f32 %v3225, %v3226
  %v3228 = vrot.slane %v3227, 2
  %v3229 = vadd.f32 %v3227, %v3228
  %v3230 = vrot.slane %v3229, 1
  %v3231 = vadd.f32 %v3229, %v3230
  %v3232 = vadd.f32 %v3223, %v3231
  %v3233 = vmul.f32 %v3214, %v2669
  %v3234 = vmul.f32 %v3232, %v2669
  %v3235 = vmul.f32 %v3233, %v3233
  %v3236 = vsub.f32 %v3234, %v3235
  %v3237 = vld [vmem:[%s35] sm:$0x1]
  %v3238 = vadd.f32 %v3236, 1e-05
  %v3239 = vrsqrt.pop %v3238
  %v3240 = vmul.f32 %v3237, %v3239
  %v3241 = vld [vmem:[%s37] sm:$0x1]
  %v3242 = vmul.f32 %v3233, %v3240
  %v3243 = vsub.f32 %v3241, %v3242
  %v3245 = vlaneseq
  %v3246 = vshrl.u32 %v3245, 7
  %v3247 = vsub.s32 0, %v3246
  %v3248 = vrot.slane %v3240, %v3247
  %v3250 = vmul.f32 %v2950, %v3248
  %v3252 = vlaneseq
  %v3253 = vshrl.u32 %v3252, 7
  %v3254 = vsub.s32 0, %v3253
  %v3255 = vrot.slane %v3243, %v3254
  %v3257 = vadd.f32 %v3250, %v3255
  %v3258 = vtanh.pop %v3257
  %v3259 = vmul.f32 %v3198, %v3248
  %v3260 = vadd.f32 %v3259, %v3255
  %v3261 = vtanh.pop %v3260
  %v3262 = vld [vmem:[%s41] sm:$0x1]
  %v3263 = vld [vmem:[%s39] sm:$0xff]
  %v3264 = vld [vmem:[%s39 + $0x8] sm:$0xff]
  %v3265 = vld [vmem:[%s39 + $0x10] sm:$0xff]
  %v3266 = vld [vmem:[%s39 + $0x18] sm:$0xff]
  %v3267 = vld [vmem:[%s39 + $0x20] sm:$0xff]
  %v3268 = vld [vmem:[%s39 + $0x28] sm:$0xff]
  %v3269 = vld [vmem:[%s39 + $0x30] sm:$0xff]
  %v3270 = vld [vmem:[%s39 + $0x38] sm:$0xff]
  %s3271 = scalar_lea.vmem %s39, 64
  %v3272 = vld [vmem:[%s3271] sm:$0xff]
  %v3273 = vld [vmem:[%s3271 + $0x8] sm:$0xff]
  %v3274 = vld [vmem:[%s3271 + $0x10] sm:$0xff]
  %v3275 = vld [vmem:[%s3271 + $0x18] sm:$0xff]
  %v3276 = vld [vmem:[%s3271 + $0x20] sm:$0xff]
  %v3277 = vld [vmem:[%s3271 + $0x28] sm:$0xff]
  %v3278 = vld [vmem:[%s3271 + $0x30] sm:$0xff]
  %v3279 = vld [vmem:[%s3271 + $0x38] sm:$0xff]
  %v3281 = vlaneseq
  %v3282 = vshrl.u32 %v3281, 7
  %v3283 = vsub.s32 0, %v3282
  %v3284 = vrot.slane %v3262, %v3283
  %v3287 = vsel %vm2723, %v3258, 0
  %3289 = vmatprep.subr.mxu0 0.0
  %3290 = vmatpush1.msra.mxu0 %v3263
  %3291 = vmatprep.subr.mxu0 0.0
  %3292 = vmatpush1.msra.mxu0 %v3264
  %3293 = vmatprep.subr.mxu0 0.0
  %3294 = vmatpush1.msra.mxu0 %v3265
  %3295 = vmatprep.subr.mxu0 0.0
  %3296 = vmatpush1.msra.mxu0 %v3266
  %3297 = vmatprep.subr.mxu0 0.0
  %3298 = vmatpush1.msra.mxu0 %v3267
  %3299 = vmatprep.subr.mxu0 0.0
  %3300 = vmatpush1.msra.mxu0 %v3268
  %3301 = vmatprep.subr.mxu0 0.0
  %3302 = vmatpush1.msra.mxu0 %v3269
  %3303 = vmatprep.subr.mxu0 0.0
  %3304 = vmatpush1.msra.mxu0 %v3270
  %3305 = vmatprep.subr.mxu0 0.0
  %3306 = vmatpush1.msra.mxu0 0.0
  %3307 = vmatprep.subr.mxu0 0.0
  %3308 = vmatpush1.msra.mxu0 0.0
  %3309 = vmatprep.subr.mxu0 0.0
  %3310 = vmatpush1.msra.mxu0 0.0
  %3311 = vmatprep.subr.mxu0 0.0
  %3312 = vmatpush1.msra.mxu0 0.0
  %3313 = vmatprep.subr.mxu0 0.0
  %3314 = vmatpush1.msra.mxu0 0.0
  %3315 = vmatprep.subr.mxu0 0.0
  %3316 = vmatpush1.msra.mxu0 0.0
  %3317 = vmatprep.subr.mxu0 0.0
  %3318 = vmatpush1.msra.mxu0 0.0
  %3319 = vmatprep.subr.mxu0 0.0
  %3320 = vmatpush1.msra.mxu0 0.0
  %3321 = vmatprep.subr.mxu0 0.0
  %3322 = vmatpush1.msra.mxu0 0.0
  %3323 = vmatprep.subr.mxu0 0.0
  %3324 = vmatpush1.msra.mxu0 0.0
  %3325 = vmatprep.subr.mxu0 0.0
  %3326 = vmatpush1.msra.mxu0 0.0
  %3327 = vmatprep.subr.mxu0 0.0
  %3328 = vmatpush1.msra.mxu0 0.0
  %3329 = vmatprep.subr.mxu0 0.0
  %3330 = vmatpush1.msra.mxu0 0.0
  %3331 = vmatprep.subr.mxu0 0.0
  %3332 = vmatpush1.msra.mxu0 0.0
  %3333 = vmatprep.subr.mxu0 0.0
  %3334 = vmatpush1.msra.mxu0 0.0
  %3335 = vmatprep.subr.mxu0 0.0
  %3336 = vmatpush1.msra.mxu0 0.0
  %3337 = vmatprep.subr.mxu0 0.0
  %3338 = vmatpush1.msra.mxu0 0.0
  %3339 = vmatprep.subr.mxu0 0.0
  %3340 = vmatpush1.msra.mxu0 0.0
  %3341 = vmatprep.subr.mxu0 0.0
  %3342 = vmatpush1.msra.mxu0 0.0
  %3343 = vmatprep.subr.mxu0 0.0
  %3344 = vmatpush1.msra.mxu0 0.0
  %3345 = vmatprep.subr.mxu0 0.0
  %3346 = vmatpush1.msra.mxu0 0.0
  %3347 = vmatprep.subr.mxu0 0.0
  %3348 = vmatpush1.msra.mxu0 0.0
  %3349 = vmatprep.subr.mxu0 0.0
  %3350 = vmatpush1.msra.mxu0 0.0
  %3351 = vmatprep.subr.mxu0 0.0
  %3352 = vmatpush1.msra.mxu0 0.0
  %3353 = vmatprep.mubr.f32.mxu0 0.0
  %3354 = vmatmul.mubr.f32.gmra.mrb[0].mxu0 %v3287
  %v3355 = vpop.f32.mrb[0].mxu0
  %v3356 = vadd.f32 %v3284, %v3355
  %v3357 = vpop.f32.mrb[0].mxu0
  %3358 = vdwg.mxu0
  %v3360 = vsel %vm2723, %v3261, 0
  %3362 = vmatprep.subr.mxu0 0.0
  %3363 = vmatpush1.msra.mxu0 %v3263
  %3364 = vmatprep.subr.mxu0 0.0
  %3365 = vmatpush1.msra.mxu0 %v3264
  %3366 = vmatprep.subr.mxu0 0.0
  %3367 = vmatpush1.msra.mxu0 %v3265
  %3368 = vmatprep.subr.mxu0 0.0
  %3369 = vmatpush1.msra.mxu0 %v3266
  %3370 = vmatprep.subr.mxu0 0.0
  %3371 = vmatpush1.msra.mxu0 %v3267
  %3372 = vmatprep.subr.mxu0 0.0
  %3373 = vmatpush1.msra.mxu0 %v3268
  %3374 = vmatprep.subr.mxu0 0.0
  %3375 = vmatpush1.msra.mxu0 %v3269
  %3376 = vmatprep.subr.mxu0 0.0
  %3377 = vmatpush1.msra.mxu0 %v3270
  %3378 = vmatprep.subr.mxu0 0.0
  %3379 = vmatpush1.msra.mxu0 0.0
  %3380 = vmatprep.subr.mxu0 0.0
  %3381 = vmatpush1.msra.mxu0 0.0
  %3382 = vmatprep.subr.mxu0 0.0
  %3383 = vmatpush1.msra.mxu0 0.0
  %3384 = vmatprep.subr.mxu0 0.0
  %3385 = vmatpush1.msra.mxu0 0.0
  %3386 = vmatprep.subr.mxu0 0.0
  %3387 = vmatpush1.msra.mxu0 0.0
  %3388 = vmatprep.subr.mxu0 0.0
  %3389 = vmatpush1.msra.mxu0 0.0
  %3390 = vmatprep.subr.mxu0 0.0
  %3391 = vmatpush1.msra.mxu0 0.0
  %3392 = vmatprep.subr.mxu0 0.0
  %3393 = vmatpush1.msra.mxu0 0.0
  %3394 = vmatprep.subr.mxu0 0.0
  %3395 = vmatpush1.msra.mxu0 0.0
  %3396 = vmatprep.subr.mxu0 0.0
  %3397 = vmatpush1.msra.mxu0 0.0
  %3398 = vmatprep.subr.mxu0 0.0
  %3399 = vmatpush1.msra.mxu0 0.0
  %3400 = vmatprep.subr.mxu0 0.0
  %3401 = vmatpush1.msra.mxu0 0.0
  %3402 = vmatprep.subr.mxu0 0.0
  %3403 = vmatpush1.msra.mxu0 0.0
  %3404 = vmatprep.subr.mxu0 0.0
  %3405 = vmatpush1.msra.mxu0 0.0
  %3406 = vmatprep.subr.mxu0 0.0
  %3407 = vmatpush1.msra.mxu0 0.0
  %3408 = vmatprep.subr.mxu0 0.0
  %3409 = vmatpush1.msra.mxu0 0.0
  %3410 = vmatprep.subr.mxu0 0.0
  %3411 = vmatpush1.msra.mxu0 0.0
  %3412 = vmatprep.subr.mxu0 0.0
  %3413 = vmatpush1.msra.mxu0 0.0
  %3414 = vmatprep.subr.mxu0 0.0
  %3415 = vmatpush1.msra.mxu0 0.0
  %3416 = vmatprep.subr.mxu0 0.0
  %3417 = vmatpush1.msra.mxu0 0.0
  %3418 = vmatprep.subr.mxu0 0.0
  %3419 = vmatpush1.msra.mxu0 0.0
  %3420 = vmatprep.subr.mxu0 0.0
  %3421 = vmatpush1.msra.mxu0 0.0
  %3422 = vmatprep.subr.mxu0 0.0
  %3423 = vmatpush1.msra.mxu0 0.0
  %3424 = vmatprep.subr.mxu0 0.0
  %3425 = vmatpush1.msra.mxu0 0.0
  %3426 = vmatprep.mubr.f32.mxu0 0.0
  %3427 = vmatmul.mubr.f32.gmra.mrb[0].mxu0 %v3360
  %v3428 = vpop.f32.mrb[0].mxu0
  %v3429 = vadd.f32 %v3284, %v3428
  %v3430 = vpop.f32.mrb[0].mxu0
  %3431 = vdwg.mxu0
  %3432 = vmatprep.subr.mxu0 0.0
  %3433 = vmatpush1.msra.mxu0 %v3272
  %3434 = vmatprep.subr.mxu0 0.0
  %3435 = vmatpush1.msra.mxu0 %v3273
  %3436 = vmatprep.subr.mxu0 0.0
  %3437 = vmatpush1.msra.mxu0 %v3274
  %3438 = vmatprep.subr.mxu0 0.0
  %3439 = vmatpush1.msra.mxu0 %v3275
  %3440 = vmatprep.subr.mxu0 0.0
  %3441 = vmatpush1.msra.mxu0 %v3276
  %3442 = vmatprep.subr.mxu0 0.0
  %3443 = vmatpush1.msra.mxu0 %v3277
  %3444 = vmatprep.subr.mxu0 0.0
  %3445 = vmatpush1.msra.mxu0 %v3278
  %3446 = vmatprep.subr.mxu0 0.0
  %3447 = vmatpush1.msra.mxu0 %v3279
  %3448 = vmatprep.subr.mxu0 0.0
  %3449 = vmatpush1.msra.mxu0 0.0
  %3450 = vmatprep.subr.mxu0 0.0
  %3451 = vmatpush1.msra.mxu0 0.0
  %3452 = vmatprep.subr.mxu0 0.0
  %3453 = vmatpush1.msra.mxu0 0.0
  %3454 = vmatprep.subr.mxu0 0.0
  %3455 = vmatpush1.msra.mxu0 0.0
  %3456 = vmatprep.subr.mxu0 0.0
  %3457 = vmatpush1.msra.mxu0 0.0
  %3458 = vmatprep.subr.mxu0 0.0
  %3459 = vmatpush1.msra.mxu0 0.0
  %3460 = vmatprep.subr.mxu0 0.0
  %3461 = vmatpush1.msra.mxu0 0.0
  %3462 = vmatprep.subr.mxu0 0.0
  %3463 = vmatpush1.msra.mxu0 0.0
  %3464 = vmatprep.subr.mxu0 0.0
  %3465 = vmatpush1.msra.mxu0 0.0
  %3466 = vmatprep.subr.mxu0 0.0
  %3467 = vmatpush1.msra.mxu0 0.0
  %3468 = vmatprep.subr.mxu0 0.0
  %3469 = vmatpush1.msra.mxu0 0.0
  %3470 = vmatprep.subr.mxu0 0.0
  %3471 = vmatpush1.msra.mxu0 0.0
  %3472 = vmatprep.subr.mxu0 0.0
  %3473 = vmatpush1.msra.mxu0 0.0
  %3474 = vmatprep.subr.mxu0 0.0
  %3475 = vmatpush1.msra.mxu0 0.0
  %3476 = vmatprep.subr.mxu0 0.0
  %3477 = vmatpush1.msra.mxu0 0.0
  %3478 = vmatprep.subr.mxu0 0.0
  %3479 = vmatpush1.msra.mxu0 0.0
  %3480 = vmatprep.subr.mxu0 0.0
  %3481 = vmatpush1.msra.mxu0 0.0
  %3482 = vmatprep.subr.mxu0 0.0
  %3483 = vmatpush1.msra.mxu0 0.0
  %3484 = vmatprep.subr.mxu0 0.0
  %3485 = vmatpush1.msra.mxu0 0.0
  %3486 = vmatprep.subr.mxu0 0.0
  %3487 = vmatpush1.msra.mxu0 0.0
  %3488 = vmatprep.subr.mxu0 0.0
  %3489 = vmatpush1.msra.mxu0 0.0
  %3490 = vmatprep.subr.mxu0 0.0
  %3491 = vmatpush1.msra.mxu0 0.0
  %3492 = vmatprep.subr.mxu0 0.0
  %3493 = vmatpush1.msra.mxu0 0.0
  %3494 = vmatprep.subr.mxu0 0.0
  %3495 = vmatpush1.msra.mxu0 0.0
  %3496 = vmatprep.mubr.f32.mxu0 0.0
  %3497 = vmatmul.mubr.f32.gmra.mrb[0].mxu0 %v3287
  %v3498 = vpop.f32.mrb[0].mxu0
  %v3499 = vadd.f32 %v3284, %v3498
  %v3500 = vpop.f32.mrb[0].mxu0
  %3501 = vdwg.mxu0
  %3502 = vmatprep.subr.mxu0 0.0
  %3503 = vmatpush1.msra.mxu0 %v3272
  %3504 = vmatprep.subr.mxu0 0.0
  %3505 = vmatpush1.msra.mxu0 %v3273
  %3506 = vmatprep.subr.mxu0 0.0
  %3507 = vmatpush1.msra.mxu0 %v3274
  %3508 = vmatprep.subr.mxu0 0.0
  %3509 = vmatpush1.msra.mxu0 %v3275
  %3510 = vmatprep.subr.mxu0 0.0
  %3511 = vmatpush1.msra.mxu0 %v3276
  %3512 = vmatprep.subr.mxu0 0.0
  %3513 = vmatpush1.msra.mxu0 %v3277
  %3514 = vmatprep.subr.mxu0 0.0
  %3515 = vmatpush1.msra.mxu0 %v3278
  %3516 = vmatprep.subr.mxu0 0.0
  %3517 = vmatpush1.msra.mxu0 %v3279
  %3518 = vmatprep.subr.mxu0 0.0
  %3519 = vmatpush1.msra.mxu0 0.0
  %3520 = vmatprep.subr.mxu0 0.0
  %3521 = vmatpush1.msra.mxu0 0.0
  %3522 = vmatprep.subr.mxu0 0.0
  %3523 = vmatpush1.msra.mxu0 0.0
  %3524 = vmatprep.subr.mxu0 0.0
  %3525 = vmatpush1.msra.mxu0 0.0
  %3526 = vmatprep.subr.mxu0 0.0
  %3527 = vmatpush1.msra.mxu0 0.0
  %3528 = vmatprep.subr.mxu0 0.0
  %3529 = vmatpush1.msra.mxu0 0.0
  %3530 = vmatprep.subr.mxu0 0.0
  %3531 = vmatpush1.msra.mxu0 0.0
  %3532 = vmatprep.subr.mxu0 0.0
  %3533 = vmatpush1.msra.mxu0 0.0
  %3534 = vmatprep.subr.mxu0 0.0
  %3535 = vmatpush1.msra.mxu0 0.0
  %3536 = vmatprep.subr.mxu0 0.0
  %3537 = vmatpush1.msra.mxu0 0.0
  %3538 = vmatprep.subr.mxu0 0.0
  %3539 = vmatpush1.msra.mxu0 0.0
  %3540 = vmatprep.subr.mxu0 0.0
  %3541 = vmatpush1.msra.mxu0 0.0
  %3542 = vmatprep.subr.mxu0 0.0
  %3543 = vmatpush1.msra.mxu0 0.0
  %3544 = vmatprep.subr.mxu0 0.0
  %3545 = vmatpush1.msra.mxu0 0.0
  %3546 = vmatprep.subr.mxu0 0.0
  %3547 = vmatpush1.msra.mxu0 0.0
  %3548 = vmatprep.subr.mxu0 0.0
  %3549 = vmatpush1.msra.mxu0 0.0
  %3550 = vmatprep.subr.mxu0 0.0
  %3551 = vmatpush1.msra.mxu0 0.0
  %3552 = vmatprep.subr.mxu0 0.0
  %3553 = vmatpush1.msra.mxu0 0.0
  %3554 = vmatprep.subr.mxu0 0.0
  %3555 = vmatpush1.msra.mxu0 0.0
  %3556 = vmatprep.subr.mxu0 0.0
  %3557 = vmatpush1.msra.mxu0 0.0
  %3558 = vmatprep.subr.mxu0 0.0
  %3559 = vmatpush1.msra.mxu0 0.0
  %3560 = vmatprep.subr.mxu0 0.0
  %3561 = vmatpush1.msra.mxu0 0.0
  %3562 = vmatprep.subr.mxu0 0.0
  %3563 = vmatpush1.msra.mxu0 0.0
  %3564 = vmatprep.subr.mxu0 0.0
  %3565 = vmatpush1.msra.mxu0 0.0
  %3566 = vmatprep.mubr.f32.mxu0 0.0
  %3567 = vmatmul.mubr.f32.gmra.mrb[0].mxu0 %v3360
  %v3568 = vpop.f32.mrb[0].mxu0
  %v3569 = vadd.f32 %v3284, %v3568
  %v3570 = vpop.f32.mrb[0].mxu0
  %3571 = vdwg.mxu0
  %3572 = vst.msk [vmem:[#allocation2] sm:$0x1] %vm1593, 0.0
  %3573 = vst.msk [vmem:[#allocation2 + $0x9] sm:$0x1] %vm1593, 0.0
  %3574 = vst.msk [vmem:[#allocation2 + $0x1] sm:$0x1] %vm1593, %v3356
  %3575 = vst.msk [vmem:[#allocation2 + $0x2] sm:$0x1] %vm1593, %v3499
  %vm3576 = vcmask 254977
  %3577 = vst.msk [vmem:[#allocation2 + $0x2] sm:$0x2] %vm3576, %v3356
  %3578 = vst.msk [vmem:[#allocation2 + $0x3] sm:$0x2] %vm3576, %v3499
  %3579 = vst.msk [vmem:[#allocation2 + $0x3] sm:$0x4] %vm2150, %v3356
  %3580 = vst.msk [vmem:[#allocation2 + $0x4] sm:$0x4] %vm2150, %v3499
  %vm3581 = vcmask 257027
  %3582 = vst.msk [vmem:[#allocation2 + $0x4] sm:$0x8] %vm3581, %v3356
  %3583 = vst.msk [vmem:[#allocation2 + $0x5] sm:$0x8] %vm3581, %v3499
  %v3584 = vld [vmem:[#allocation2] sm:$0xff]
  %v3585 = vld [vmem:[#allocation2 + $0x8] sm:$0xff]
  %v3586 = vld [vmem:[%s43] sm:$0xff]
  %v3587 = vld [vmem:[%s43 + $0x8] sm:$0xff]
  %v3588 = vld [vmem:[%s43 + $0x10] sm:$0xff]
  %v3589 = vld [vmem:[%s43 + $0x18] sm:$0xff]
  %s3590 = scalar_lea.vmem %s43, 32
  %v3591 = vld [vmem:[%s3590] sm:$0xff]
  %v3592 = vld [vmem:[%s3590 + $0x8] sm:$0xff]
  %v3593 = vld [vmem:[%s3590 + $0x10] sm:$0xff]
  %v3594 = vld [vmem:[%s3590 + $0x18] sm:$0xff]
  %v3597 = vrot.slane %v3584, 1
  %v3598 = vrot.slane %v3585, 1
  %v3599 = vsel %vm213, %v3597, %v3598
  %v3600 = vsel %vm1528, %v3599, 0
  %3602 = vmatprep.subr.mxu0 0.0
  %3603 = vmatpush1.msra.mxu0 %v3591
  %3604 = vmatprep.subr.mxu0 0.0
  %3605 = vmatpush1.msra.mxu0 %v3592
  %3606 = vmatprep.subr.mxu0 0.0
  %3607 = vmatpush1.msra.mxu0 %v3593
  %3608 = vmatprep.subr.mxu0 0.0
  %3609 = vmatpush1.msra.mxu0 %v3594
  %3610 = vmatprep.subr.mxu0 0.0
  %3611 = vmatpush1.msra.mxu0 0.0
  %3612 = vmatprep.subr.mxu0 0.0
  %3613 = vmatpush1.msra.mxu0 0.0
  %3614 = vmatprep.subr.mxu0 0.0
  %3615 = vmatpush1.msra.mxu0 0.0
  %3616 = vmatprep.subr.mxu0 0.0
  %3617 = vmatpush1.msra.mxu0 0.0
  %3618 = vmatprep.subr.mxu0 0.0
  %3619 = vmatpush1.msra.mxu0 0.0
  %3620 = vmatprep.subr.mxu0 0.0
  %3621 = vmatpush1.msra.mxu0 0.0
  %3622 = vmatprep.subr.mxu0 0.0
  %3623 = vmatpush1.msra.mxu0 0.0
  %3624 = vmatprep.subr.mxu0 0.0
  %3625 = vmatpush1.msra.mxu0 0.0
  %3626 = vmatprep.subr.mxu0 0.0
  %3627 = vmatpush1.msra.mxu0 0.0
  %3628 = vmatprep.subr.mxu0 0.0
  %3629 = vmatpush1.msra.mxu0 0.0
  %3630 = vmatprep.subr.mxu0 0.0
  %3631 = vmatpush1.msra.mxu0 0.0
  %3632 = vmatprep.subr.mxu0 0.0
  %3633 = vmatpush1.msra.mxu0 0.0
  %3634 = vmatprep.subr.mxu0 0.0
  %3635 = vmatpush1.msra.mxu0 0.0
  %3636 = vmatprep.subr.mxu0 0.0
  %3637 = vmatpush1.msra.mxu0 0.0
  %3638 = vmatprep.subr.mxu0 0.0
  %3639 = vmatpush1.msra.mxu0 0.0
  %3640 = vmatprep.subr.mxu0 0.0
  %3641 = vmatpush1.msra.mxu0 0.0
  %3642 = vmatprep.subr.mxu0 0.0
  %3643 = vmatpush1.msra.mxu0 0.0
  %3644 = vmatprep.subr.mxu0 0.0
  %3645 = vmatpush1.msra.mxu0 0.0
  %3646 = vmatprep.subr.mxu0 0.0
  %3647 = vmatpush1.msra.mxu0 0.0
  %3648 = vmatprep.subr.mxu0 0.0
  %3649 = vmatpush1.msra.mxu0 0.0
  %3650 = vmatprep.subr.mxu0 0.0
  %3651 = vmatpush1.msra.mxu0 0.0
  %3652 = vmatprep.subr.mxu0 0.0
  %3653 = vmatpush1.msra.mxu0 0.0
  %3654 = vmatprep.subr.mxu0 0.0
  %3655 = vmatpush1.msra.mxu0 0.0
  %3656 = vmatprep.subr.mxu0 0.0
  %3657 = vmatpush1.msra.mxu0 0.0
  %3658 = vmatprep.subr.mxu0 0.0
  %3659 = vmatpush1.msra.mxu0 0.0
  %3660 = vmatprep.subr.mxu0 0.0
  %3661 = vmatpush1.msra.mxu0 0.0
  %3662 = vmatprep.subr.mxu0 0.0
  %3663 = vmatpush1.msra.mxu0 0.0
  %3664 = vmatprep.subr.mxu0 0.0
  %3665 = vmatpush1.msra.mxu0 0.0
  %3666 = vmatprep.mubr.f32.mxu0 0.0
  %3667 = vmatmul.mubr.f32.gmra.mrb[0].mxu0 %v3600
  %v3668 = vpop.f32.mrb[0].mxu0
  %v3669 = vadd.f32 0.0, %v3668
  %v3670 = vpop.f32.mrb[0].mxu0
  %3671 = vdwg.mxu0
  %v3672 = vsel %vm1528, %v3584, 0
  %3674 = vmatprep.subr.mxu0 0.0
  %3675 = vmatpush1.msra.mxu0 %v3586
  %3676 = vmatprep.subr.mxu0 0.0
  %3677 = vmatpush1.msra.mxu0 %v3587
  %3678 = vmatprep.subr.mxu0 0.0
  %3679 = vmatpush1.msra.mxu0 %v3588
  %3680 = vmatprep.subr.mxu0 0.0
  %3681 = vmatpush1.msra.mxu0 %v3589
  %3682 = vmatprep.subr.mxu0 0.0
  %3683 = vmatpush1.msra.mxu0 0.0
  %3684 = vmatprep.subr.mxu0 0.0
  %3685 = vmatpush1.msra.mxu0 0.0
  %3686 = vmatprep.subr.mxu0 0.0
  %3687 = vmatpush1.msra.mxu0 0.0
  %3688 = vmatprep.subr.mxu0 0.0
  %3689 = vmatpush1.msra.mxu0 0.0
  %3690 = vmatprep.subr.mxu0 0.0
  %3691 = vmatpush1.msra.mxu0 0.0
  %3692 = vmatprep.subr.mxu0 0.0
  %3693 = vmatpush1.msra.mxu0 0.0
  %3694 = vmatprep.subr.mxu0 0.0
  %3695 = vmatpush1.msra.mxu0 0.0
  %3696 = vmatprep.subr.mxu0 0.0
  %3697 = vmatpush1.msra.mxu0 0.0
  %3698 = vmatprep.subr.mxu0 0.0
  %3699 = vmatpush1.msra.mxu0 0.0
  %3700 = vmatprep.subr.mxu0 0.0
  %3701 = vmatpush1.msra.mxu0 0.0
  %3702 = vmatprep.subr.mxu0 0.0
  %3703 = vmatpush1.msra.mxu0 0.0
  %3704 = vmatprep.subr.mxu0 0.0
  %3705 = vmatpush1.msra.mxu0 0.0
  %3706 = vmatprep.subr.mxu0 0.0
  %3707 = vmatpush1.msra.mxu0 0.0
  %3708 = vmatprep.subr.mxu0 0.0
  %3709 = vmatpush1.msra.mxu0 0.0
  %3710 = vmatprep.subr.mxu0 0.0
  %3711 = vmatpush1.msra.mxu0 0.0
  %3712 = vmatprep.subr.mxu0 0.0
  %3713 = vmatpush1.msra.mxu0 0.0
  %3714 = vmatprep.subr.mxu0 0.0
  %3715 = vmatpush1.msra.mxu0 0.0
  %3716 = vmatprep.subr.mxu0 0.0
  %3717 = vmatpush1.msra.mxu0 0.0
  %3718 = vmatprep.subr.mxu0 0.0
  %3719 = vmatpush1.msra.mxu0 0.0
  %3720 = vmatprep.subr.mxu0 0.0
  %3721 = vmatpush1.msra.mxu0 0.0
  %3722 = vmatprep.subr.mxu0 0.0
  %3723 = vmatpush1.msra.mxu0 0.0
  %3724 = vmatprep.subr.mxu0 0.0
  %3725 = vmatpush1.msra.mxu0 0.0
  %3726 = vmatprep.subr.mxu0 0.0
  %3727 = vmatpush1.msra.mxu0 0.0
  %3728 = vmatprep.subr.mxu0 0.0
  %3729 = vmatpush1.msra.mxu0 0.0
  %3730 = vmatprep.subr.mxu0 0.0
  %3731 = vmatpush1.msra.mxu0 0.0
  %3732 = vmatprep.subr.mxu0 0.0
  %3733 = vmatpush1.msra.mxu0 0.0
  %3734 = vmatprep.subr.mxu0 0.0
  %3735 = vmatpush1.msra.mxu0 0.0
  %3736 = vmatprep.subr.mxu0 0.0
  %3737 = vmatpush1.msra.mxu0 0.0
  %3738 = vmatprep.mubr.f32.mxu0 0.0
  %3739 = vmatmul.mubr.f32.gmra.mrb[0].mxu0 %v3672
  %v3740 = vpop.f32.mrb[0].mxu0
  %v3741 = vadd.f32 %v3669, %v3740
  %v3742 = vpop.f32.mrb[0].mxu0
  %3743 = vdwg.mxu0
  %s3744 = scalar_lea.vmem %s43, 64
  %v3745 = vld [vmem:[%s3744] sm:$0xff]
  %v3746 = vld [vmem:[%s3744 + $0x8] sm:$0xff]
  %v3747 = vld [vmem:[%s3744 + $0x10] sm:$0xff]
  %v3748 = vld [vmem:[%s3744 + $0x18] sm:$0xff]
  %v3749 = vrot.slane %v3584, 2
  %v3750 = vrot.slane %v3585, 2
  %v3751 = vsel %vm237, %v3749, %v3750
  %v3752 = vsel %vm1528, %v3751, 0
  %3754 = vmatprep.subr.mxu0 0.0
  %3755 = vmatpush1.msra.mxu0 %v3745
  %3756 = vmatprep.subr.mxu0 0.0
  %3757 = vmatpush1.msra.mxu0 %v3746
  %3758 = vmatprep.subr.mxu0 0.0
  %3759 = vmatpush1.msra.mxu0 %v3747
  %3760 = vmatprep.subr.mxu0 0.0
  %3761 = vmatpush1.msra.mxu0 %v3748
  %3762 = vmatprep.subr.mxu0 0.0
  %3763 = vmatpush1.msra.mxu0 0.0
  %3764 = vmatprep.subr.mxu0 0.0
  %3765 = vmatpush1.msra.mxu0 0.0
  %3766 = vmatprep.subr.mxu0 0.0
  %3767 = vmatpush1.msra.mxu0 0.0
  %3768 = vmatprep.subr.mxu0 0.0
  %3769 = vmatpush1.msra.mxu0 0.0
  %3770 = vmatprep.subr.mxu0 0.0
  %3771 = vmatpush1.msra.mxu0 0.0
  %3772 = vmatprep.subr.mxu0 0.0
  %3773 = vmatpush1.msra.mxu0 0.0
  %3774 = vmatprep.subr.mxu0 0.0
  %3775 = vmatpush1.msra.mxu0 0.0
  %3776 = vmatprep.subr.mxu0 0.0
  %3777 = vmatpush1.msra.mxu0 0.0
  %3778 = vmatprep.subr.mxu0 0.0
  %3779 = vmatpush1.msra.mxu0 0.0
  %3780 = vmatprep.subr.mxu0 0.0
  %3781 = vmatpush1.msra.mxu0 0.0
  %3782 = vmatprep.subr.mxu0 0.0
  %3783 = vmatpush1.msra.mxu0 0.0
  %3784 = vmatprep.subr.mxu0 0.0
  %3785 = vmatpush1.msra.mxu0 0.0
  %3786 = vmatprep.subr.mxu0 0.0
  %3787 = vmatpush1.msra.mxu0 0.0
  %3788 = vmatprep.subr.mxu0 0.0
  %3789 = vmatpush1.msra.mxu0 0.0
  %3790 = vmatprep.subr.mxu0 0.0
  %3791 = vmatpush1.msra.mxu0 0.0
  %3792 = vmatprep.subr.mxu0 0.0
  %3793 = vmatpush1.msra.mxu0 0.0
  %3794 = vmatprep.subr.mxu0 0.0
  %3795 = vmatpush1.msra.mxu0 0.0
  %3796 = vmatprep.subr.mxu0 0.0
  %3797 = vmatpush1.msra.mxu0 0.0
  %3798 = vmatprep.subr.mxu0 0.0
  %3799 = vmatpush1.msra.mxu0 0.0
  %3800 = vmatprep.subr.mxu0 0.0
  %3801 = vmatpush1.msra.mxu0 0.0
  %3802 = vmatprep.subr.mxu0 0.0
  %3803 = vmatpush1.msra.mxu0 0.0
  %3804 = vmatprep.subr.mxu0 0.0
  %3805 = vmatpush1.msra.mxu0 0.0
  %3806 = vmatprep.subr.mxu0 0.0
  %3807 = vmatpush1.msra.mxu0 0.0
  %3808 = vmatprep.subr.mxu0 0.0
  %3809 = vmatpush1.msra.mxu0 0.0
  %3810 = vmatprep.subr.mxu0 0.0
  %3811 = vmatpush1.msra.mxu0 0.0
  %3812 = vmatprep.subr.mxu0 0.0
  %3813 = vmatpush1.msra.mxu0 0.0
  %3814 = vmatprep.subr.mxu0 0.0
  %3815 = vmatpush1.msra.mxu0 0.0
  %3816 = vmatprep.subr.mxu0 0.0
  %3817 = vmatpush1.msra.mxu0 0.0
  %3818 = vmatprep.mubr.f32.mxu0 0.0
  %3819 = vmatmul.mubr.f32.gmra.mrb[0].mxu0 %v3752
  %v3820 = vpop.f32.mrb[0].mxu0
  %v3821 = vadd.f32 0.0, %v3820
  %v3822 = vpop.f32.mrb[0].mxu0
  %3823 = vdwg.mxu0
  %v3824 = vadd.f32 %v3741, %v3821
  %3825 = vst.msk [vmem:[#allocation2] sm:$0x1] %vm1593, 0.0
  %3826 = vst.msk [vmem:[#allocation2 + $0x9] sm:$0x1] %vm1593, 0.0
  %3827 = vst.msk [vmem:[#allocation2 + $0x1] sm:$0xff] %vm1528, %v2139
  %v3828 = vld [vmem:[#allocation2] sm:$0xff]
  %v3829 = vld [vmem:[#allocation2 + $0x8] sm:$0xff]
  %v3830 = vld [vmem:[%s45] sm:$0xff]
  %v3831 = vld [vmem:[%s45 + $0x8] sm:$0xff]
  %v3832 = vld [vmem:[%s45 + $0x10] sm:$0xff]
  %v3833 = vld [vmem:[%s45 + $0x18] sm:$0xff]
  %v3835 = vsel %vm1528, %v3828, 0
  %3837 = vmatprep.subr.mxu0 0.0
  %3838 = vmatpush1.msra.mxu0 %v3830
  %3839 = vmatprep.subr.mxu0 0.0
  %3840 = vmatpush1.msra.mxu0 %v3831
  %3841 = vmatprep.subr.mxu0 0.0
  %3842 = vmatpush1.msra.mxu0 %v3832
  %3843 = vmatprep.subr.mxu0 0.0
  %3844 = vmatpush1.msra.mxu0 %v3833
  %3845 = vmatprep.subr.mxu0 0.0
  %3846 = vmatpush1.msra.mxu0 0.0
  %3847 = vmatprep.subr.mxu0 0.0
  %3848 = vmatpush1.msra.mxu0 0.0
  %3849 = vmatprep.subr.mxu0 0.0
  %3850 = vmatpush1.msra.mxu0 0.0
  %3851 = vmatprep.subr.mxu0 0.0
  %3852 = vmatpush1.msra.mxu0 0.0
  %3853 = vmatprep.subr.mxu0 0.0
  %3854 = vmatpush1.msra.mxu0 0.0
  %3855 = vmatprep.subr.mxu0 0.0
  %3856 = vmatpush1.msra.mxu0 0.0
  %3857 = vmatprep.subr.mxu0 0.0
  %3858 = vmatpush1.msra.mxu0 0.0
  %3859 = vmatprep.subr.mxu0 0.0
  %3860 = vmatpush1.msra.mxu0 0.0
  %3861 = vmatprep.subr.mxu0 0.0
  %3862 = vmatpush1.msra.mxu0 0.0
  %3863 = vmatprep.subr.mxu0 0.0
  %3864 = vmatpush1.msra.mxu0 0.0
  %3865 = vmatprep.subr.mxu0 0.0
  %3866 = vmatpush1.msra.mxu0 0.0
  %3867 = vmatprep.subr.mxu0 0.0
  %3868 = vmatpush1.msra.mxu0 0.0
  %3869 = vmatprep.subr.mxu0 0.0
  %3870 = vmatpush1.msra.mxu0 0.0
  %3871 = vmatprep.subr.mxu0 0.0
  %3872 = vmatpush1.msra.mxu0 0.0
  %3873 = vmatprep.subr.mxu0 0.0
  %3874 = vmatpush1.msra.mxu0 0.0
  %3875 = vmatprep.subr.mxu0 0.0
  %3876 = vmatpush1.msra.mxu0 0.0
  %3877 = vmatprep.subr.mxu0 0.0
  %3878 = vmatpush1.msra.mxu0 0.0
  %3879 = vmatprep.subr.mxu0 0.0
  %3880 = vmatpush1.msra.mxu0 0.0
  %3881 = vmatprep.subr.mxu0 0.0
  %3882 = vmatpush1.msra.mxu0 0.0
  %3883 = vmatprep.subr.mxu0 0.0
  %3884 = vmatpush1.msra.mxu0 0.0
  %3885 = vmatprep.subr.mxu0 0.0
  %3886 = vmatpush1.msra.mxu0 0.0
  %3887 = vmatprep.subr.mxu0 0.0
  %3888 = vmatpush1.msra.mxu0 0.0
  %3889 = vmatprep.subr.mxu0 0.0
  %3890 = vmatpush1.msra.mxu0 0.0
  %3891 = vmatprep.subr.mxu0 0.0
  %3892 = vmatpush1.msra.mxu0 0.0
  %3893 = vmatprep.subr.mxu0 0.0
  %3894 = vmatpush1.msra.mxu0 0.0
  %3895 = vmatprep.subr.mxu0 0.0
  %3896 = vmatpush1.msra.mxu0 0.0
  %3897 = vmatprep.subr.mxu0 0.0
  %3898 = vmatpush1.msra.mxu0 0.0
  %3899 = vmatprep.subr.mxu0 0.0
  %3900 = vmatpush1.msra.mxu0 0.0
  %3901 = vmatprep.mubr.f32.mxu0 0.0
  %3902 = vmatmul.mubr.f32.gmra.mrb[0].mxu0 %v3835
  %v3903 = vpop.f32.mrb[0].mxu0
  %v3904 = vadd.f32 0.0, %v3903
  %v3905 = vpop.f32.mrb[0].mxu0
  %3906 = vdwg.mxu0
  %v3907 = vadd.f32 %v3824, %v3904
  %s3908 = scalar_lea.vmem %s45, 32
  %v3909 = vld [vmem:[%s3908] sm:$0xff]
  %v3910 = vld [vmem:[%s3908 + $0x8] sm:$0xff]
  %v3911 = vld [vmem:[%s3908 + $0x10] sm:$0xff]
  %v3912 = vld [vmem:[%s3908 + $0x18] sm:$0xff]
  %v3914 = vrot.slane %v3828, 1
  %v3915 = vrot.slane %v3829, 1
  %v3916 = vsel %vm213, %v3914, %v3915
  %v3917 = vsel %vm1528, %v3916, 0
  %3919 = vmatprep.subr.mxu0 0.0
  %3920 = vmatpush1.msra.mxu0 %v3909
  %3921 = vmatprep.subr.mxu0 0.0
  %3922 = vmatpush1.msra.mxu0 %v3910
  %3923 = vmatprep.subr.mxu0 0.0
  %3924 = vmatpush1.msra.mxu0 %v3911
  %3925 = vmatprep.subr.mxu0 0.0
  %3926 = vmatpush1.msra.mxu0 %v3912
  %3927 = vmatprep.subr.mxu0 0.0
  %3928 = vmatpush1.msra.mxu0 0.0
  %3929 = vmatprep.subr.mxu0 0.0
  %3930 = vmatpush1.msra.mxu0 0.0
  %3931 = vmatprep.subr.mxu0 0.0
  %3932 = vmatpush1.msra.mxu0 0.0
  %3933 = vmatprep.subr.mxu0 0.0
  %3934 = vmatpush1.msra.mxu0 0.0
  %3935 = vmatprep.subr.mxu0 0.0
  %3936 = vmatpush1.msra.mxu0 0.0
  %3937 = vmatprep.subr.mxu0 0.0
  %3938 = vmatpush1.msra.mxu0 0.0
  %3939 = vmatprep.subr.mxu0 0.0
  %3940 = vmatpush1.msra.mxu0 0.0
  %3941 = vmatprep.subr.mxu0 0.0
  %3942 = vmatpush1.msra.mxu0 0.0
  %3943 = vmatprep.subr.mxu0 0.0
  %3944 = vmatpush1.msra.mxu0 0.0
  %3945 = vmatprep.subr.mxu0 0.0
  %3946 = vmatpush1.msra.mxu0 0.0
  %3947 = vmatprep.subr.mxu0 0.0
  %3948 = vmatpush1.msra.mxu0 0.0
  %3949 = vmatprep.subr.mxu0 0.0
  %3950 = vmatpush1.msra.mxu0 0.0
  %3951 = vmatprep.subr.mxu0 0.0
  %3952 = vmatpush1.msra.mxu0 0.0
  %3953 = vmatprep.subr.mxu0 0.0
  %3954 = vmatpush1.msra.mxu0 0.0
  %3955 = vmatprep.subr.mxu0 0.0
  %3956 = vmatpush1.msra.mxu0 0.0
  %3957 = vmatprep.subr.mxu0 0.0
  %3958 = vmatpush1.msra.mxu0 0.0
  %3959 = vmatprep.subr.mxu0 0.0
  %3960 = vmatpush1.msra.mxu0 0.0
  %3961 = vmatprep.subr.mxu0 0.0
  %3962 = vmatpush1.msra.mxu0 0.0
  %3963 = vmatprep.subr.mxu0 0.0
  %3964 = vmatpush1.msra.mxu0 0.0
  %3965 = vmatprep.subr.mxu0 0.0
  %3966 = vmatpush1.msra.mxu0 0.0
  %3967 = vmatprep.subr.mxu0 0.0
  %3968 = vmatpush1.msra.mxu0 0.0
  %3969 = vmatprep.subr.mxu0 0.0
  %3970 = vmatpush1.msra.mxu0 0.0
  %3971 = vmatprep.subr.mxu0 0.0
  %3972 = vmatpush1.msra.mxu0 0.0
  %3973 = vmatprep.subr.mxu0 0.0
  %3974 = vmatpush1.msra.mxu0 0.0
  %3975 = vmatprep.subr.mxu0 0.0
  %3976 = vmatpush1.msra.mxu0 0.0
  %3977 = vmatprep.subr.mxu0 0.0
  %3978 = vmatpush1.msra.mxu0 0.0
  %3979 = vmatprep.subr.mxu0 0.0
  %3980 = vmatpush1.msra.mxu0 0.0
  %3981 = vmatprep.subr.mxu0 0.0
  %3982 = vmatpush1.msra.mxu0 0.0
  %3983 = vmatprep.mubr.f32.mxu0 0.0
  %3984 = vmatmul.mubr.f32.gmra.mrb[0].mxu0 %v3917
  %v3985 = vpop.f32.mrb[0].mxu0
  %v3986 = vadd.f32 0.0, %v3985
  %v3987 = vpop.f32.mrb[0].mxu0
  %3988 = vdwg.mxu0
  %v3989 = vadd.f32 %v3907, %v3986
  %s3990 = scalar_lea.vmem %s45, 64
  %v3991 = vld [vmem:[%s3990] sm:$0xff]
  %v3992 = vld [vmem:[%s3990 + $0x8] sm:$0xff]
  %v3993 = vld [vmem:[%s3990 + $0x10] sm:$0xff]
  %v3994 = vld [vmem:[%s3990 + $0x18] sm:$0xff]
  %v3995 = vrot.slane %v3828, 2
  %v3996 = vrot.slane %v3829, 2
  %v3997 = vsel %vm237, %v3995, %v3996
  %v3998 = vsel %vm1528, %v3997, 0
  %4000 = vmatprep.subr.mxu0 0.0
  %4001 = vmatpush1.msra.mxu0 %v3991
  %4002 = vmatprep.subr.mxu0 0.0
  %4003 = vmatpush1.msra.mxu0 %v3992
  %4004 = vmatprep.subr.mxu0 0.0
  %4005 = vmatpush1.msra.mxu0 %v3993
  %4006 = vmatprep.subr.mxu0 0.0
  %4007 = vmatpush1.msra.mxu0 %v3994
  %4008 = vmatprep.subr.mxu0 0.0
  %4009 = vmatpush1.msra.mxu0 0.0
  %4010 = vmatprep.subr.mxu0 0.0
  %4011 = vmatpush1.msra.mxu0 0.0
  %4012 = vmatprep.subr.mxu0 0.0
  %4013 = vmatpush1.msra.mxu0 0.0
  %4014 = vmatprep.subr.mxu0 0.0
  %4015 = vmatpush1.msra.mxu0 0.0
  %4016 = vmatprep.subr.mxu0 0.0
  %4017 = vmatpush1.msra.mxu0 0.0
  %4018 = vmatprep.subr.mxu0 0.0
  %4019 = vmatpush1.msra.mxu0 0.0
  %4020 = vmatprep.subr.mxu0 0.0
  %4021 = vmatpush1.msra.mxu0 0.0
  %4022 = vmatprep.subr.mxu0 0.0
  %4023 = vmatpush1.msra.mxu0 0.0
  %4024 = vmatprep.subr.mxu0 0.0
  %4025 = vmatpush1.msra.mxu0 0.0
  %4026 = vmatprep.subr.mxu0 0.0
  %4027 = vmatpush1.msra.mxu0 0.0
  %4028 = vmatprep.subr.mxu0 0.0
  %4029 = vmatpush1.msra.mxu0 0.0
  %4030 = vmatprep.subr.mxu0 0.0
  %4031 = vmatpush1.msra.mxu0 0.0
  %4032 = vmatprep.subr.mxu0 0.0
  %4033 = vmatpush1.msra.mxu0 0.0
  %4034 = vmatprep.subr.mxu0 0.0
  %4035 = vmatpush1.msra.mxu0 0.0
  %4036 = vmatprep.subr.mxu0 0.0
  %4037 = vmatpush1.msra.mxu0 0.0
  %4038 = vmatprep.subr.mxu0 0.0
  %4039 = vmatpush1.msra.mxu0 0.0
  %4040 = vmatprep.subr.mxu0 0.0
  %4041 = vmatpush1.msra.mxu0 0.0
  %4042 = vmatprep.subr.mxu0 0.0
  %4043 = vmatpush1.msra.mxu0 0.0
  %4044 = vmatprep.subr.mxu0 0.0
  %4045 = vmatpush1.msra.mxu0 0.0
  %4046 = vmatprep.subr.mxu0 0.0
  %4047 = vmatpush1.msra.mxu0 0.0
  %4048 = vmatprep.subr.mxu0 0.0
  %4049 = vmatpush1.msra.mxu0 0.0
  %4050 = vmatprep.subr.mxu0 0.0
  %4051 = vmatpush1.msra.mxu0 0.0
  %4052 = vmatprep.subr.mxu0 0.0
  %4053 = vmatpush1.msra.mxu0 0.0
  %4054 = vmatprep.subr.mxu0 0.0
  %4055 = vmatpush1.msra.mxu0 0.0
  %4056 = vmatprep.subr.mxu0 0.0
  %4057 = vmatpush1.msra.mxu0 0.0
  %4058 = vmatprep.subr.mxu0 0.0
  %4059 = vmatpush1.msra.mxu0 0.0
  %4060 = vmatprep.subr.mxu0 0.0
  %4061 = vmatpush1.msra.mxu0 0.0
  %4062 = vmatprep.subr.mxu0 0.0
  %4063 = vmatpush1.msra.mxu0 0.0
  %4064 = vmatprep.mubr.f32.mxu0 0.0
  %4065 = vmatmul.mubr.f32.gmra.mrb[0].mxu0 %v3998
  %v4066 = vpop.f32.mrb[0].mxu0
  %v4067 = vadd.f32 0.0, %v4066
  %v4068 = vpop.f32.mrb[0].mxu0
  %4069 = vdwg.mxu0
  %v4070 = vadd.f32 %v3989, %v4067
  %4071 = vst.msk [vmem:[%s250] sm:$0x1] %vm1593, 0.0
  %4072 = vst.msk [vmem:[%s250 + $0x9] sm:$0x1] %vm1593, 0.0
  %4073 = vst.msk [vmem:[%s250 + $0x1] sm:$0x1] %vm1593, %v3429
  %4074 = vst.msk [vmem:[%s250 + $0x2] sm:$0x1] %vm1593, %v3569
  %4075 = vst.msk [vmem:[%s250 + $0x2] sm:$0x2] %vm3576, %v3429
  %4076 = vst.msk [vmem:[%s250 + $0x3] sm:$0x2] %vm3576, %v3569
  %4077 = vst.msk [vmem:[%s250 + $0x3] sm:$0x4] %vm2150, %v3429
  %4078 = vst.msk [vmem:[%s250 + $0x4] sm:$0x4] %vm2150, %v3569
  %4079 = vst.msk [vmem:[%s250 + $0x4] sm:$0x8] %vm3581, %v3429
  %4080 = vst.msk [vmem:[%s250 + $0x5] sm:$0x8] %vm3581, %v3569
  %v4081 = vld [vmem:[%s250] sm:$0xff]
  %v4082 = vld [vmem:[%s250 + $0x8] sm:$0xff]
  %v4083 = vld [vmem:[%s43] sm:$0xff]
  %v4084 = vld [vmem:[%s43 + $0x8] sm:$0xff]
  %v4085 = vld [vmem:[%s43 + $0x10] sm:$0xff]
  %v4086 = vld [vmem:[%s43 + $0x18] sm:$0xff]
  %v4087 = vld [vmem:[%s3590] sm:$0xff]
  %v4088 = vld [vmem:[%s3590 + $0x8] sm:$0xff]
  %v4089 = vld [vmem:[%s3590 + $0x10] sm:$0xff]
  %v4090 = vld [vmem:[%s3590 + $0x18] sm:$0xff]
  %v4093 = vrot.slane %v4081, 1
  %v4094 = vrot.slane %v4082, 1
  %v4095 = vsel %vm213, %v4093, %v4094
  %v4096 = vsel %vm1528, %v4095, 0
  %4098 = vmatprep.subr.mxu0 0.0
  %4099 = vmatpush1.msra.mxu0 %v4087
  %4100 = vmatprep.subr.mxu0 0.0
  %4101 = vmatpush1.msra.mxu0 %v4088
  %4102 = vmatprep.subr.mxu0 0.0
  %4103 = vmatpush1.msra.mxu0 %v4089
  %4104 = vmatprep.subr.mxu0 0.0
  %4105 = vmatpush1.msra.mxu0 %v4090
  %4106 = vmatprep.subr.mxu0 0.0
  %4107 = vmatpush1.msra.mxu0 0.0
  %4108 = vmatprep.subr.mxu0 0.0
  %4109 = vmatpush1.msra.mxu0 0.0
  %4110 = vmatprep.subr.mxu0 0.0
  %4111 = vmatpush1.msra.mxu0 0.0
  %4112 = vmatprep.subr.mxu0 0.0
  %4113 = vmatpush1.msra.mxu0 0.0
  %4114 = vmatprep.subr.mxu0 0.0
  %4115 = vmatpush1.msra.mxu0 0.0
  %4116 = vmatprep.subr.mxu0 0.0
  %4117 = vmatpush1.msra.mxu0 0.0
  %4118 = vmatprep.subr.mxu0 0.0
  %4119 = vmatpush1.msra.mxu0 0.0
  %4120 = vmatprep.subr.mxu0 0.0
  %4121 = vmatpush1.msra.mxu0 0.0
  %4122 = vmatprep.subr.mxu0 0.0
  %4123 = vmatpush1.msra.mxu0 0.0
  %4124 = vmatprep.subr.mxu0 0.0
  %4125 = vmatpush1.msra.mxu0 0.0
  %4126 = vmatprep.subr.mxu0 0.0
  %4127 = vmatpush1.msra.mxu0 0.0
  %4128 = vmatprep.subr.mxu0 0.0
  %4129 = vmatpush1.msra.mxu0 0.0
  %4130 = vmatprep.subr.mxu0 0.0
  %4131 = vmatpush1.msra.mxu0 0.0
  %4132 = vmatprep.subr.mxu0 0.0
  %4133 = vmatpush1.msra.mxu0 0.0
  %4134 = vmatprep.subr.mxu0 0.0
  %4135 = vmatpush1.msra.mxu0 0.0
  %4136 = vmatprep.subr.mxu0 0.0
  %4137 = vmatpush1.msra.mxu0 0.0
  %4138 = vmatprep.subr.mxu0 0.0
  %4139 = vmatpush1.msra.mxu0 0.0
  %4140 = vmatprep.subr.mxu0 0.0
  %4141 = vmatpush1.msra.mxu0 0.0
  %4142 = vmatprep.subr.mxu0 0.0
  %4143 = vmatpush1.msra.mxu0 0.0
  %4144 = vmatprep.subr.mxu0 0.0
  %4145 = vmatpush1.msra.mxu0 0.0
  %4146 = vmatprep.subr.mxu0 0.0
  %4147 = vmatpush1.msra.mxu0 0.0
  %4148 = vmatprep.subr.mxu0 0.0
  %4149 = vmatpush1.msra.mxu0 0.0
  %4150 = vmatprep.subr.mxu0 0.0
  %4151 = vmatpush1.msra.mxu0 0.0
  %4152 = vmatprep.subr.mxu0 0.0
  %4153 = vmatpush1.msra.mxu0 0.0
  %4154 = vmatprep.subr.mxu0 0.0
  %4155 = vmatpush1.msra.mxu0 0.0
  %4156 = vmatprep.subr.mxu0 0.0
  %4157 = vmatpush1.msra.mxu0 0.0
  %4158 = vmatprep.subr.mxu0 0.0
  %4159 = vmatpush1.msra.mxu0 0.0
  %4160 = vmatprep.subr.mxu0 0.0
  %4161 = vmatpush1.msra.mxu0 0.0
  %4162 = vmatprep.mubr.f32.mxu0 0.0
  %4163 = vmatmul.mubr.f32.gmra.mrb[0].mxu0 %v4096
  %v4164 = vpop.f32.mrb[0].mxu0
  %v4165 = vadd.f32 0.0, %v4164
  %v4166 = vpop.f32.mrb[0].mxu0
  %4167 = vdwg.mxu0
  %v4168 = vsel %vm1528, %v4081, 0
  %4170 = vmatprep.subr.mxu0 0.0
  %4171 = vmatpush1.msra.mxu0 %v4083
  %4172 = vmatprep.subr.mxu0 0.0
  %4173 = vmatpush1.msra.mxu0 %v4084
  %4174 = vmatprep.subr.mxu0 0.0
  %4175 = vmatpush1.msra.mxu0 %v4085
  %4176 = vmatprep.subr.mxu0 0.0
  %4177 = vmatpush1.msra.mxu0 %v4086
  %4178 = vmatprep.subr.mxu0 0.0
  %4179 = vmatpush1.msra.mxu0 0.0
  %4180 = vmatprep.subr.mxu0 0.0
  %4181 = vmatpush1.msra.mxu0 0.0
  %4182 = vmatprep.subr.mxu0 0.0
  %4183 = vmatpush1.msra.mxu0 0.0
  %4184 = vmatprep.subr.mxu0 0.0
  %4185 = vmatpush1.msra.mxu0 0.0
  %4186 = vmatprep.subr.mxu0 0.0
  %4187 = vmatpush1.msra.mxu0 0.0
  %4188 = vmatprep.subr.mxu0 0.0
  %4189 = vmatpush1.msra.mxu0 0.0
  %4190 = vmatprep.subr.mxu0 0.0
  %4191 = vmatpush1.msra.mxu0 0.0
  %4192 = vmatprep.subr.mxu0 0.0
  %4193 = vmatpush1.msra.mxu0 0.0
  %4194 = vmatprep.subr.mxu0 0.0
  %4195 = vmatpush1.msra.mxu0 0.0
  %4196 = vmatprep.subr.mxu0 0.0
  %4197 = vmatpush1.msra.mxu0 0.0
  %4198 = vmatprep.subr.mxu0 0.0
  %4199 = vmatpush1.msra.mxu0 0.0
  %4200 = vmatprep.subr.mxu0 0.0
  %4201 = vmatpush1.msra.mxu0 0.0
  %4202 = vmatprep.subr.mxu0 0.0
  %4203 = vmatpush1.msra.mxu0 0.0
  %4204 = vmatprep.subr.mxu0 0.0
  %4205 = vmatpush1.msra.mxu0 0.0
  %4206 = vmatprep.subr.mxu0 0.0
  %4207 = vmatpush1.msra.mxu0 0.0
  %4208 = vmatprep.subr.mxu0 0.0
  %4209 = vmatpush1.msra.mxu0 0.0
  %4210 = vmatprep.subr.mxu0 0.0
  %4211 = vmatpush1.msra.mxu0 0.0
  %4212 = vmatprep.subr.mxu0 0.0
  %4213 = vmatpush1.msra.mxu0 0.0
  %4214 = vmatprep.subr.mxu0 0.0
  %4215 = vmatpush1.msra.mxu0 0.0
  %4216 = vmatprep.subr.mxu0 0.0
  %4217 = vmatpush1.msra.mxu0 0.0
  %4218 = vmatprep.subr.mxu0 0.0
  %4219 = vmatpush1.msra.mxu0 0.0
  %4220 = vmatprep.subr.mxu0 0.0
  %4221 = vmatpush1.msra.mxu0 0.0
  %4222 = vmatprep.subr.mxu0 0.0
  %4223 = vmatpush1.msra.mxu0 0.0
  %4224 = vmatprep.subr.mxu0 0.0
  %4225 = vmatpush1.msra.mxu0 0.0
  %4226 = vmatprep.subr.mxu0 0.0
  %4227 = vmatpush1.msra.mxu0 0.0
  %4228 = vmatprep.subr.mxu0 0.0
  %4229 = vmatpush1.msra.mxu0 0.0
  %4230 = vmatprep.subr.mxu0 0.0
  %4231 = vmatpush1.msra.mxu0 0.0
  %4232 = vmatprep.subr.mxu0 0.0
  %4233 = vmatpush1.msra.mxu0 0.0
  %4234 = vmatprep.mubr.f32.mxu0 0.0
  %4235 = vmatmul.mubr.f32.gmra.mrb[0].mxu0 %v4168
  %v4236 = vpop.f32.mrb[0].mxu0
  %v4237 = vadd.f32 %v4165, %v4236
  %v4238 = vpop.f32.mrb[0].mxu0
  %4239 = vdwg.mxu0
  %v4240 = vld [vmem:[%s3744] sm:$0xff]
  %v4241 = vld [vmem:[%s3744 + $0x8] sm:$0xff]
  %v4242 = vld [vmem:[%s3744 + $0x10] sm:$0xff]
  %v4243 = vld [vmem:[%s3744 + $0x18] sm:$0xff]
  %v4244 = vrot.slane %v4081, 2
  %v4245 = vrot.slane %v4082, 2
  %v4246 = vsel %vm237, %v4244, %v4245
  %v4247 = vsel %vm1528, %v4246, 0
  %4249 = vmatprep.subr.mxu0 0.0
  %4250 = vmatpush1.msra.mxu0 %v4240
  %4251 = vmatprep.subr.mxu0 0.0
  %4252 = vmatpush1.msra.mxu0 %v4241
  %4253 = vmatprep.subr.mxu0 0.0
  %4254 = vmatpush1.msra.mxu0 %v4242
  %4255 = vmatprep.subr.mxu0 0.0
  %4256 = vmatpush1.msra.mxu0 %v4243
  %4257 = vmatprep.subr.mxu0 0.0
  %4258 = vmatpush1.msra.mxu0 0.0
  %4259 = vmatprep.subr.mxu0 0.0
  %4260 = vmatpush1.msra.mxu0 0.0
  %4261 = vmatprep.subr.mxu0 0.0
  %4262 = vmatpush1.msra.mxu0 0.0
  %4263 = vmatprep.subr.mxu0 0.0
  %4264 = vmatpush1.msra.mxu0 0.0
  %4265 = vmatprep.subr.mxu0 0.0
  %4266 = vmatpush1.msra.mxu0 0.0
  %4267 = vmatprep.subr.mxu0 0.0
  %4268 = vmatpush1.msra.mxu0 0.0
  %4269 = vmatprep.subr.mxu0 0.0
  %4270 = vmatpush1.msra.mxu0 0.0
  %4271 = vmatprep.subr.mxu0 0.0
  %4272 = vmatpush1.msra.mxu0 0.0
  %4273 = vmatprep.subr.mxu0 0.0
  %4274 = vmatpush1.msra.mxu0 0.0
  %4275 = vmatprep.subr.mxu0 0.0
  %4276 = vmatpush1.msra.mxu0 0.0
  %4277 = vmatprep.subr.mxu0 0.0
  %4278 = vmatpush1.msra.mxu0 0.0
  %4279 = vmatprep.subr.mxu0 0.0
  %4280 = vmatpush1.msra.mxu0 0.0
  %4281 = vmatprep.subr.mxu0 0.0
  %4282 = vmatpush1.msra.mxu0 0.0
  %4283 = vmatprep.subr.mxu0 0.0
  %4284 = vmatpush1.msra.mxu0 0.0
  %4285 = vmatprep.subr.mxu0 0.0
  %4286 = vmatpush1.msra.mxu0 0.0
  %4287 = vmatprep.subr.mxu0 0.0
  %4288 = vmatpush1.msra.mxu0 0.0
  %4289 = vmatprep.subr.mxu0 0.0
  %4290 = vmatpush1.msra.mxu0 0.0
  %4291 = vmatprep.subr.mxu0 0.0
  %4292 = vmatpush1.msra.mxu0 0.0
  %4293 = vmatprep.subr.mxu0 0.0
  %4294 = vmatpush1.msra.mxu0 0.0
  %4295 = vmatprep.subr.mxu0 0.0
  %4296 = vmatpush1.msra.mxu0 0.0
  %4297 = vmatprep.subr.mxu0 0.0
  %4298 = vmatpush1.msra.mxu0 0.0
  %4299 = vmatprep.subr.mxu0 0.0
  %4300 = vmatpush1.msra.mxu0 0.0
  %4301 = vmatprep.subr.mxu0 0.0
  %4302 = vmatpush1.msra.mxu0 0.0
  %4303 = vmatprep.subr.mxu0 0.0
  %4304 = vmatpush1.msra.mxu0 0.0
  %4305 = vmatprep.subr.mxu0 0.0
  %4306 = vmatpush1.msra.mxu0 0.0
  %4307 = vmatprep.subr.mxu0 0.0
  %4308 = vmatpush1.msra.mxu0 0.0
  %4309 = vmatprep.subr.mxu0 0.0
  %4310 = vmatpush1.msra.mxu0 0.0
  %4311 = vmatprep.subr.mxu0 0.0
  %4312 = vmatpush1.msra.mxu0 0.0
  %4313 = vmatprep.mubr.f32.mxu0 0.0
  %4314 = vmatmul.mubr.f32.gmra.mrb[0].mxu0 %v4247
  %v4315 = vpop.f32.mrb[0].mxu0
  %v4316 = vadd.f32 0.0, %v4315
  %v4317 = vpop.f32.mrb[0].mxu0
  %4318 = vdwg.mxu0
  %v4319 = vadd.f32 %v4237, %v4316
  %4320 = vst.msk [vmem:[%s250] sm:$0x1] %vm1593, 0.0
  %4321 = vst.msk [vmem:[%s250 + $0x9] sm:$0x1] %vm1593, 0.0
  %4322 = vst.msk [vmem:[%s250 + $0x1] sm:$0xff] %vm1528, %v2142
  %v4323 = vld [vmem:[%s250] sm:$0xff]
  %v4324 = vld [vmem:[%s250 + $0x8] sm:$0xff]
  %v4325 = vld [vmem:[%s45] sm:$0xff]
  %v4326 = vld [vmem:[%s45 + $0x8] sm:$0xff]
  %v4327 = vld [vmem:[%s45 + $0x10] sm:$0xff]
  %v4328 = vld [vmem:[%s45 + $0x18] sm:$0xff]
  %v4330 = vsel %vm1528, %v4323, 0
  %4332 = vmatprep.subr.mxu0 0.0
  %4333 = vmatpush1.msra.mxu0 %v4325
  %4334 = vmatprep.subr.mxu0 0.0
  %4335 = vmatpush1.msra.mxu0 %v4326
  %4336 = vmatprep.subr.mxu0 0.0
  %4337 = vmatpush1.msra.mxu0 %v4327
  %4338 = vmatprep.subr.mxu0 0.0
  %4339 = vmatpush1.msra.mxu0 %v4328
  %4340 = vmatprep.subr.mxu0 0.0
  %4341 = vmatpush1.msra.mxu0 0.0
  %4342 = vmatprep.subr.mxu0 0.0
  %4343 = vmatpush1.msra.mxu0 0.0
  %4344 = vmatprep.subr.mxu0 0.0
  %4345 = vmatpush1.msra.mxu0 0.0
  %4346 = vmatprep.subr.mxu0 0.0
  %4347 = vmatpush1.msra.mxu0 0.0
  %4348 = vmatprep.subr.mxu0 0.0
  %4349 = vmatpush1.msra.mxu0 0.0
  %4350 = vmatprep.subr.mxu0 0.0
  %4351 = vmatpush1.msra.mxu0 0.0
  %4352 = vmatprep.subr.mxu0 0.0
  %4353 = vmatpush1.msra.mxu0 0.0
  %4354 = vmatprep.subr.mxu0 0.0
  %4355 = vmatpush1.msra.mxu0 0.0
  %4356 = vmatprep.subr.mxu0 0.0
  %4357 = vmatpush1.msra.mxu0 0.0
  %4358 = vmatprep.subr.mxu0 0.0
  %4359 = vmatpush1.msra.mxu0 0.0
  %4360 = vmatprep.subr.mxu0 0.0
  %4361 = vmatpush1.msra.mxu0 0.0
  %4362 = vmatprep.subr.mxu0 0.0
  %4363 = vmatpush1.msra.mxu0 0.0
  %4364 = vmatprep.subr.mxu0 0.0
  %4365 = vmatpush1.msra.mxu0 0.0
  %4366 = vmatprep.subr.mxu0 0.0
  %4367 = vmatpush1.msra.mxu0 0.0
  %4368 = vmatprep.subr.mxu0 0.0
  %4369 = vmatpush1.msra.mxu0 0.0
  %4370 = vmatprep.subr.mxu0 0.0
  %4371 = vmatpush1.msra.mxu0 0.0
  %4372 = vmatprep.subr.mxu0 0.0
  %4373 = vmatpush1.msra.mxu0 0.0
  %4374 = vmatprep.subr.mxu0 0.0
  %4375 = vmatpush1.msra.mxu0 0.0
  %4376 = vmatprep.subr.mxu0 0.0
  %4377 = vmatpush1.msra.mxu0 0.0
  %4378 = vmatprep.subr.mxu0 0.0
  %4379 = vmatpush1.msra.mxu0 0.0
  %4380 = vmatprep.subr.mxu0 0.0
  %4381 = vmatpush1.msra.mxu0 0.0
  %4382 = vmatprep.subr.mxu0 0.0
  %4383 = vmatpush1.msra.mxu0 0.0
  %4384 = vmatprep.subr.mxu0 0.0
  %4385 = vmatpush1.msra.mxu0 0.0
  %4386 = vmatprep.subr.mxu0 0.0
  %4387 = vmatpush1.msra.mxu0 0.0
  %4388 = vmatprep.subr.mxu0 0.0
  %4389 = vmatpush1.msra.mxu0 0.0
  %4390 = vmatprep.subr.mxu0 0.0
  %4391 = vmatpush1.msra.mxu0 0.0
  %4392 = vmatprep.subr.mxu0 0.0
  %4393 = vmatpush1.msra.mxu0 0.0
  %4394 = vmatprep.subr.mxu0 0.0
  %4395 = vmatpush1.msra.mxu0 0.0
  %4396 = vmatprep.mubr.f32.mxu0 0.0
  %4397 = vmatmul.mubr.f32.gmra.mrb[0].mxu0 %v4330
  %v4398 = vpop.f32.mrb[0].mxu0
  %v4399 = vadd.f32 0.0, %v4398
  %v4400 = vpop.f32.mrb[0].mxu0
  %4401 = vdwg.mxu0
  %v4402 = vadd.f32 %v4319, %v4399
  %v4403 = vld [vmem:[%s3908] sm:$0xff]
  %v4404 = vld [vmem:[%s3908 + $0x8] sm:$0xff]
  %v4405 = vld [vmem:[%s3908 + $0x10] sm:$0xff]
  %v4406 = vld [vmem:[%s3908 + $0x18] sm:$0xff]
  %v4408 = vrot.slane %v4323, 1
  %v4409 = vrot.slane %v4324, 1
  %v4410 = vsel %vm213, %v4408, %v4409
  %v4411 = vsel %vm1528, %v4410, 0
  %4413 = vmatprep.subr.mxu0 0.0
  %4414 = vmatpush1.msra.mxu0 %v4403
  %4415 = vmatprep.subr.mxu0 0.0
  %4416 = vmatpush1.msra.mxu0 %v4404
  %4417 = vmatprep.subr.mxu0 0.0
  %4418 = vmatpush1.msra.mxu0 %v4405
  %4419 = vmatprep.subr.mxu0 0.0
  %4420 = vmatpush1.msra.mxu0 %v4406
  %4421 = vmatprep.subr.mxu0 0.0
  %4422 = vmatpush1.msra.mxu0 0.0
  %4423 = vmatprep.subr.mxu0 0.0
  %4424 = vmatpush1.msra.mxu0 0.0
  %4425 = vmatprep.subr.mxu0 0.0
  %4426 = vmatpush1.msra.mxu0 0.0
  %4427 = vmatprep.subr.mxu0 0.0
  %4428 = vmatpush1.msra.mxu0 0.0
  %4429 = vmatprep.subr.mxu0 0.0
  %4430 = vmatpush1.msra.mxu0 0.0
  %4431 = vmatprep.subr.mxu0 0.0
  %4432 = vmatpush1.msra.mxu0 0.0
  %4433 = vmatprep.subr.mxu0 0.0
  %4434 = vmatpush1.msra.mxu0 0.0
  %4435 = vmatprep.subr.mxu0 0.0
  %4436 = vmatpush1.msra.mxu0 0.0
  %4437 = vmatprep.subr.mxu0 0.0
  %4438 = vmatpush1.msra.mxu0 0.0
  %4439 = vmatprep.subr.mxu0 0.0
  %4440 = vmatpush1.msra.mxu0 0.0
  %4441 = vmatprep.subr.mxu0 0.0
  %4442 = vmatpush1.msra.mxu0 0.0
  %4443 = vmatprep.subr.mxu0 0.0
  %4444 = vmatpush1.msra.mxu0 0.0
  %4445 = vmatprep.subr.mxu0 0.0
  %4446 = vmatpush1.msra.mxu0 0.0
  %4447 = vmatprep.subr.mxu0 0.0
  %4448 = vmatpush1.msra.mxu0 0.0
  %4449 = vmatprep.subr.mxu0 0.0
  %4450 = vmatpush1.msra.mxu0 0.0
  %4451 = vmatprep.subr.mxu0 0.0
  %4452 = vmatpush1.msra.mxu0 0.0
  %4453 = vmatprep.subr.mxu0 0.0
  %4454 = vmatpush1.msra.mxu0 0.0
  %4455 = vmatprep.subr.mxu0 0.0
  %4456 = vmatpush1.msra.mxu0 0.0
  %4457 = vmatprep.subr.mxu0 0.0
  %4458 = vmatpush1.msra.mxu0 0.0
  %4459 = vmatprep.subr.mxu0 0.0
  %4460 = vmatpush1.msra.mxu0 0.0
  %4461 = vmatprep.subr.mxu0 0.0
  %4462 = vmatpush1.msra.mxu0 0.0
  %4463 = vmatprep.subr.mxu0 0.0
  %4464 = vmatpush1.msra.mxu0 0.0
  %4465 = vmatprep.subr.mxu0 0.0
  %4466 = vmatpush1.msra.mxu0 0.0
  %4467 = vmatprep.subr.mxu0 0.0
  %4468 = vmatpush1.msra.mxu0 0.0
  %4469 = vmatprep.subr.mxu0 0.0
  %4470 = vmatpush1.msra.mxu0 0.0
  %4471 = vmatprep.subr.mxu0 0.0
  %4472 = vmatpush1.msra.mxu0 0.0
  %4473 = vmatprep.subr.mxu0 0.0
  %4474 = vmatpush1.msra.mxu0 0.0
  %4475 = vmatprep.subr.mxu0 0.0
  %4476 = vmatpush1.msra.mxu0 0.0
  %4477 = vmatprep.mubr.f32.mxu0 0.0
  %4478 = vmatmul.mubr.f32.gmra.mrb[0].mxu0 %v4411
  %v4479 = vpop.f32.mrb[0].mxu0
  %v4480 = vadd.f32 0.0, %v4479
  %v4481 = vpop.f32.mrb[0].mxu0
  %4482 = vdwg.mxu0
  %v4483 = vadd.f32 %v4402, %v4480
  %v4484 = vld [vmem:[%s3990] sm:$0xff]
  %v4485 = vld [vmem:[%s3990 + $0x8] sm:$0xff]
  %v4486 = vld [vmem:[%s3990 + $0x10] sm:$0xff]
  %v4487 = vld [vmem:[%s3990 + $0x18] sm:$0xff]
  %v4488 = vrot.slane %v4323, 2
  %v4489 = vrot.slane %v4324, 2
  %v4490 = vsel %vm237, %v4488, %v4489
  %v4491 = vsel %vm1528, %v4490, 0
  %4493 = vmatprep.subr.mxu0 0.0
  %4494 = vmatpush1.msra.mxu0 %v4484
  %4495 = vmatprep.subr.mxu0 0.0
  %4496 = vmatpush1.msra.mxu0 %v4485
  %4497 = vmatprep.subr.mxu0 0.0
  %4498 = vmatpush1.msra.mxu0 %v4486
  %4499 = vmatprep.subr.mxu0 0.0
  %4500 = vmatpush1.msra.mxu0 %v4487
  %4501 = vmatprep.subr.mxu0 0.0
  %4502 = vmatpush1.msra.mxu0 0.0
  %4503 = vmatprep.subr.mxu0 0.0
  %4504 = vmatpush1.msra.mxu0 0.0
  %4505 = vmatprep.subr.mxu0 0.0
  %4506 = vmatpush1.msra.mxu0 0.0
  %4507 = vmatprep.subr.mxu0 0.0
  %4508 = vmatpush1.msra.mxu0 0.0
  %4509 = vmatprep.subr.mxu0 0.0
  %4510 = vmatpush1.msra.mxu0 0.0
  %4511 = vmatprep.subr.mxu0 0.0
  %4512 = vmatpush1.msra.mxu0 0.0
  %4513 = vmatprep.subr.mxu0 0.0
  %4514 = vmatpush1.msra.mxu0 0.0
  %4515 = vmatprep.subr.mxu0 0.0
  %4516 = vmatpush1.msra.mxu0 0.0
  %4517 = vmatprep.subr.mxu0 0.0
  %4518 = vmatpush1.msra.mxu0 0.0
  %4519 = vmatprep.subr.mxu0 0.0
  %4520 = vmatpush1.msra.mxu0 0.0
  %4521 = vmatprep.subr.mxu0 0.0
  %4522 = vmatpush1.msra.mxu0 0.0
  %4523 = vmatprep.subr.mxu0 0.0
  %4524 = vmatpush1.msra.mxu0 0.0
  %4525 = vmatprep.subr.mxu0 0.0
  %4526 = vmatpush1.msra.mxu0 0.0
  %4527 = vmatprep.subr.mxu0 0.0
  %4528 = vmatpush1.msra.mxu0 0.0
  %4529 = vmatprep.subr.mxu0 0.0
  %4530 = vmatpush1.msra.mxu0 0.0
  %4531 = vmatprep.subr.mxu0 0.0
  %4532 = vmatpush1.msra.mxu0 0.0
  %4533 = vmatprep.subr.mxu0 0.0
  %4534 = vmatpush1.msra.mxu0 0.0
  %4535 = vmatprep.subr.mxu0 0.0
  %4536 = vmatpush1.msra.mxu0 0.0
  %4537 = vmatprep.subr.mxu0 0.0
  %4538 = vmatpush1.msra.mxu0 0.0
  %4539 = vmatprep.subr.mxu0 0.0
  %4540 = vmatpush1.msra.mxu0 0.0
  %4541 = vmatprep.subr.mxu0 0.0
  %4542 = vmatpush1.msra.mxu0 0.0
  %4543 = vmatprep.subr.mxu0 0.0
  %4544 = vmatpush1.msra.mxu0 0.0
  %4545 = vmatprep.subr.mxu0 0.0
  %4546 = vmatpush1.msra.mxu0 0.0
  %4547 = vmatprep.subr.mxu0 0.0
  %4548 = vmatpush1.msra.mxu0 0.0
  %4549 = vmatprep.subr.mxu0 0.0
  %4550 = vmatpush1.msra.mxu0 0.0
  %4551 = vmatprep.subr.mxu0 0.0
  %4552 = vmatpush1.msra.mxu0 0.0
  %4553 = vmatprep.subr.mxu0 0.0
  %4554 = vmatpush1.msra.mxu0 0.0
  %4555 = vmatprep.subr.mxu0 0.0
  %4556 = vmatpush1.msra.mxu0 0.0
  %4557 = vmatprep.mubr.f32.mxu0 0.0
  %4558 = vmatmul.mubr.f32.gmra.mrb[0].mxu0 %v4491
  %v4559 = vpop.f32.mrb[0].mxu0
  %v4560 = vadd.f32 0.0, %v4559
  %v4561 = vpop.f32.mrb[0].mxu0
  %4562 = vdwg.mxu0
  %v4563 = vadd.f32 %v4483, %v4560
  %v4564 = vsel %vm1528, %v4070, 0.0
  %v4565 = vrot.slane %v4564, 4
  %v4566 = vadd.f32 %v4564, %v4565
  %v4567 = vrot.slane %v4566, 2
  %v4568 = vadd.f32 %v4566, %v4567
  %v4569 = vrot.slane %v4568, 1
  %v4570 = vadd.f32 %v4568, %v4569
  %v4571 = vadd.f32 %v4570, 0.0
  %v4572 = vsel %vm1528, %v4563, 0.0
  %v4573 = vrot.slane %v4572, 4
  %v4574 = vadd.f32 %v4572, %v4573
  %v4575 = vrot.slane %v4574, 2
  %v4576 = vadd.f32 %v4574, %v4575
  %v4577 = vrot.slane %v4576, 1
  %v4578 = vadd.f32 %v4576, %v4577
  %v4579 = vadd.f32 %v4571, %v4578
  %v4580 = vmul.f32 %v4070, %v4070
  %v4581 = vsel %vm1528, %v4580, 0.0
  %v4582 = vrot.slane %v4581, 4
  %v4583 = vadd.f32 %v4581, %v4582
  %v4584 = vrot.slane %v4583, 2
  %v4585 = vadd.f32 %v4583, %v4584
  %v4586 = vrot.slane %v4585, 1
  %v4587 = vadd.f32 %v4585, %v4586
  %v4588 = vadd.f32 %v4587, 0.0
  %v4589 = vmul.f32 %v4563, %v4563
  %v4590 = vsel %vm1528, %v4589, 0.0
  %v4591 = vrot.slane %v4590, 4
  %v4592 = vadd.f32 %v4590, %v4591
  %v4593 = vrot.slane %v4592, 2
  %v4594 = vadd.f32 %v4592, %v4593
  %v4595 = vrot.slane %v4594, 1
  %v4596 = vadd.f32 %v4594, %v4595
  %v4597 = vadd.f32 %v4588, %v4596
  %v4598 = vmul.f32 %v4579, %v1563
  %v4599 = vmul.f32 %v4597, %v1563
  %v4600 = vmul.f32 %v4598, %v4598
  %v4601 = vsub.f32 %v4599, %v4600
  %v4602 = vld [vmem:[%s47] sm:$0x1]
  %v4603 = vadd.f32 %v4601, 1e-05
  %v4604 = vrsqrt.pop %v4603
  %v4605 = vmul.f32 %v4602, %v4604
  %v4606 = vld [vmem:[%s49] sm:$0x1]
  %v4607 = vmul.f32 %v4598, %v4605
  %v4608 = vsub.f32 %v4606, %v4607
  %v4610 = vlaneseq
  %v4611 = vshrl.u32 %v4610, 7
  %v4612 = vsub.s32 0, %v4611
  %v4613 = vrot.slane %v4605, %v4612
  %v4615 = vmul.f32 %v4070, %v4613
  %v4617 = vlaneseq
  %v4618 = vshrl.u32 %v4617, 7
  %v4619 = vsub.s32 0, %v4618
  %v4620 = vrot.slane %v4608, %v4619
  %v4622 = vadd.f32 %v4615, %v4620
  %v4623 = vtanh.pop %v4622
  %v4624 = vmul.f32 %v4563, %v4613
  %v4625 = vadd.f32 %v4624, %v4620
  %v4626 = vtanh.pop %v4625
  %4627 = vst.msk [vmem:[#allocation2] sm:$0x1] %vm1593, 0.0
  %4628 = vst.msk [vmem:[#allocation2 + $0x9] sm:$0x1] %vm1593, 0.0
  %4629 = vst.msk [vmem:[#allocation2 + $0x1] sm:$0xff] %vm1528, %v4623
  %v4630 = vld [vmem:[#allocation2] sm:$0xff]
  %v4631 = vld [vmem:[#allocation2 + $0x8] sm:$0xff]
  %v4632 = vld [vmem:[%s51] sm:$0xff]
  %v4633 = vld [vmem:[%s51 + $0x8] sm:$0xff]
  %v4634 = vld [vmem:[%s51 + $0x10] sm:$0xff]
  %v4635 = vld [vmem:[%s51 + $0x18] sm:$0xff]
  %s4636 = scalar_lea.vmem %s51, 32
  %v4637 = vld [vmem:[%s4636] sm:$0xff]
  %v4638 = vld [vmem:[%s4636 + $0x8] sm:$0xff]
  %v4639 = vld [vmem:[%s4636 + $0x10] sm:$0xff]
  %v4640 = vld [vmem:[%s4636 + $0x18] sm:$0xff]
  %v4643 = vrot.slane %v4630, 1
  %v4644 = vrot.slane %v4631, 1
  %v4645 = vsel %vm213, %v4643, %v4644
  %v4646 = vsel %vm1528, %v4645, 0
  %4648 = vmatprep.subr.mxu0 0.0
  %4649 = vmatpush1.msra.mxu0 %v4637
  %4650 = vmatprep.subr.mxu0 0.0
  %4651 = vmatpush1.msra.mxu0 %v4638
  %4652 = vmatprep.subr.mxu0 0.0
  %4653 = vmatpush1.msra.mxu0 %v4639
  %4654 = vmatprep.subr.mxu0 0.0
  %4655 = vmatpush1.msra.mxu0 %v4640
  %4656 = vmatprep.subr.mxu0 0.0
  %4657 = vmatpush1.msra.mxu0 0.0
  %4658 = vmatprep.subr.mxu0 0.0
  %4659 = vmatpush1.msra.mxu0 0.0
  %4660 = vmatprep.subr.mxu0 0.0
  %4661 = vmatpush1.msra.mxu0 0.0
  %4662 = vmatprep.subr.mxu0 0.0
  %4663 = vmatpush1.msra.mxu0 0.0
  %4664 = vmatprep.subr.mxu0 0.0
  %4665 = vmatpush1.msra.mxu0 0.0
  %4666 = vmatprep.subr.mxu0 0.0
  %4667 = vmatpush1.msra.mxu0 0.0
  %4668 = vmatprep.subr.mxu0 0.0
  %4669 = vmatpush1.msra.mxu0 0.0
  %4670 = vmatprep.subr.mxu0 0.0
  %4671 = vmatpush1.msra.mxu0 0.0
  %4672 = vmatprep.subr.mxu0 0.0
  %4673 = vmatpush1.msra.mxu0 0.0
  %4674 = vmatprep.subr.mxu0 0.0
  %4675 = vmatpush1.msra.mxu0 0.0
  %4676 = vmatprep.subr.mxu0 0.0
  %4677 = vmatpush1.msra.mxu0 0.0
  %4678 = vmatprep.subr.mxu0 0.0
  %4679 = vmatpush1.msra.mxu0 0.0
  %4680 = vmatprep.subr.mxu0 0.0
  %4681 = vmatpush1.msra.mxu0 0.0
  %4682 = vmatprep.subr.mxu0 0.0
  %4683 = vmatpush1.msra.mxu0 0.0
  %4684 = vmatprep.subr.mxu0 0.0
  %4685 = vmatpush1.msra.mxu0 0.0
  %4686 = vmatprep.subr.mxu0 0.0
  %4687 = vmatpush1.msra.mxu0 0.0
  %4688 = vmatprep.subr.mxu0 0.0
  %4689 = vmatpush1.msra.mxu0 0.0
  %4690 = vmatprep.subr.mxu0 0.0
  %4691 = vmatpush1.msra.mxu0 0.0
  %4692 = vmatprep.subr.mxu0 0.0
  %4693 = vmatpush1.msra.mxu0 0.0
  %4694 = vmatprep.subr.mxu0 0.0
  %4695 = vmatpush1.msra.mxu0 0.0
  %4696 = vmatprep.subr.mxu0 0.0
  %4697 = vmatpush1.msra.mxu0 0.0
  %4698 = vmatprep.subr.mxu0 0.0
  %4699 = vmatpush1.msra.mxu0 0.0
  %4700 = vmatprep.subr.mxu0 0.0
  %4701 = vmatpush1.msra.mxu0 0.0
  %4702 = vmatprep.subr.mxu0 0.0
  %4703 = vmatpush1.msra.mxu0 0.0
  %4704 = vmatprep.subr.mxu0 0.0
  %4705 = vmatpush1.msra.mxu0 0.0
  %4706 = vmatprep.subr.mxu0 0.0
  %4707 = vmatpush1.msra.mxu0 0.0
  %4708 = vmatprep.subr.mxu0 0.0
  %4709 = vmatpush1.msra.mxu0 0.0
  %4710 = vmatprep.subr.mxu0 0.0
  %4711 = vmatpush1.msra.mxu0 0.0
  %4712 = vmatprep.mubr.f32.mxu0 0.0
  %4713 = vmatmul.mubr.f32.gmra.mrb[0].mxu0 %v4646
  %v4714 = vpop.f32.mrb[0].mxu0
  %v4715 = vadd.f32 0.0, %v4714
  %v4716 = vpop.f32.mrb[0].mxu0
  %4717 = vdwg.mxu0
  %v4718 = vsel %vm1528, %v4630, 0
  %4720 = vmatprep.subr.mxu0 0.0
  %4721 = vmatpush1.msra.mxu0 %v4632
  %4722 = vmatprep.subr.mxu0 0.0
  %4723 = vmatpush1.msra.mxu0 %v4633
  %4724 = vmatprep.subr.mxu0 0.0
  %4725 = vmatpush1.msra.mxu0 %v4634
  %4726 = vmatprep.subr.mxu0 0.0
  %4727 = vmatpush1.msra.mxu0 %v4635
  %4728 = vmatprep.subr.mxu0 0.0
  %4729 = vmatpush1.msra.mxu0 0.0
  %4730 = vmatprep.subr.mxu0 0.0
  %4731 = vmatpush1.msra.mxu0 0.0
  %4732 = vmatprep.subr.mxu0 0.0
  %4733 = vmatpush1.msra.mxu0 0.0
  %4734 = vmatprep.subr.mxu0 0.0
  %4735 = vmatpush1.msra.mxu0 0.0
  %4736 = vmatprep.subr.mxu0 0.0
  %4737 = vmatpush1.msra.mxu0 0.0
  %4738 = vmatprep.subr.mxu0 0.0
  %4739 = vmatpush1.msra.mxu0 0.0
  %4740 = vmatprep.subr.mxu0 0.0
  %4741 = vmatpush1.msra.mxu0 0.0
  %4742 = vmatprep.subr.mxu0 0.0
  %4743 = vmatpush1.msra.mxu0 0.0
  %4744 = vmatprep.subr.mxu0 0.0
  %4745 = vmatpush1.msra.mxu0 0.0
  %4746 = vmatprep.subr.mxu0 0.0
  %4747 = vmatpush1.msra.mxu0 0.0
  %4748 = vmatprep.subr.mxu0 0.0
  %4749 = vmatpush1.msra.mxu0 0.0
  %4750 = vmatprep.subr.mxu0 0.0
  %4751 = vmatpush1.msra.mxu0 0.0
  %4752 = vmatprep.subr.mxu0 0.0
  %4753 = vmatpush1.msra.mxu0 0.0
  %4754 = vmatprep.subr.mxu0 0.0
  %4755 = vmatpush1.msra.mxu0 0.0
  %4756 = vmatprep.subr.mxu0 0.0
  %4757 = vmatpush1.msra.mxu0 0.0
  %4758 = vmatprep.subr.mxu0 0.0
  %4759 = vmatpush1.msra.mxu0 0.0
  %4760 = vmatprep.subr.mxu0 0.0
  %4761 = vmatpush1.msra.mxu0 0.0
  %4762 = vmatprep.subr.mxu0 0.0
  %4763 = vmatpush1.msra.mxu0 0.0
  %4764 = vmatprep.subr.mxu0 0.0
  %4765 = vmatpush1.msra.mxu0 0.0
  %4766 = vmatprep.subr.mxu0 0.0
  %4767 = vmatpush1.msra.mxu0 0.0
  %4768 = vmatprep.subr.mxu0 0.0
  %4769 = vmatpush1.msra.mxu0 0.0
  %4770 = vmatprep.subr.mxu0 0.0
  %4771 = vmatpush1.msra.mxu0 0.0
  %4772 = vmatprep.subr.mxu0 0.0
  %4773 = vmatpush1.msra.mxu0 0.0
  %4774 = vmatprep.subr.mxu0 0.0
  %4775 = vmatpush1.msra.mxu0 0.0
  %4776 = vmatprep.subr.mxu0 0.0
  %4777 = vmatpush1.msra.mxu0 0.0
  %4778 = vmatprep.subr.mxu0 0.0
  %4779 = vmatpush1.msra.mxu0 0.0
  %4780 = vmatprep.subr.mxu0 0.0
  %4781 = vmatpush1.msra.mxu0 0.0
  %4782 = vmatprep.subr.mxu0 0.0
  %4783 = vmatpush1.msra.mxu0 0.0
  %4784 = vmatprep.mubr.f32.mxu0 0.0
  %4785 = vmatmul.mubr.f32.gmra.mrb[0].mxu0 %v4718
  %v4786 = vpop.f32.mrb[0].mxu0
  %v4787 = vadd.f32 %v4715, %v4786
  %v4788 = vpop.f32.mrb[0].mxu0
  %4789 = vdwg.mxu0
  %s4790 = scalar_lea.vmem %s51, 64
  %v4791 = vld [vmem:[%s4790] sm:$0xff]
  %v4792 = vld [vmem:[%s4790 + $0x8] sm:$0xff]
  %v4793 = vld [vmem:[%s4790 + $0x10] sm:$0xff]
  %v4794 = vld [vmem:[%s4790 + $0x18] sm:$0xff]
  %v4795 = vrot.slane %v4630, 2
  %v4796 = vrot.slane %v4631, 2
  %v4797 = vsel %vm237, %v4795, %v4796
  %v4798 = vsel %vm1528, %v4797, 0
  %4800 = vmatprep.subr.mxu0 0.0
  %4801 = vmatpush1.msra.mxu0 %v4791
  %4802 = vmatprep.subr.mxu0 0.0
  %4803 = vmatpush1.msra.mxu0 %v4792
  %4804 = vmatprep.subr.mxu0 0.0
  %4805 = vmatpush1.msra.mxu0 %v4793
  %4806 = vmatprep.subr.mxu0 0.0
  %4807 = vmatpush1.msra.mxu0 %v4794
  %4808 = vmatprep.subr.mxu0 0.0
  %4809 = vmatpush1.msra.mxu0 0.0
  %4810 = vmatprep.subr.mxu0 0.0
  %4811 = vmatpush1.msra.mxu0 0.0
  %4812 = vmatprep.subr.mxu0 0.0
  %4813 = vmatpush1.msra.mxu0 0.0
  %4814 = vmatprep.subr.mxu0 0.0
  %4815 = vmatpush1.msra.mxu0 0.0
  %4816 = vmatprep.subr.mxu0 0.0
  %4817 = vmatpush1.msra.mxu0 0.0
  %4818 = vmatprep.subr.mxu0 0.0
  %4819 = vmatpush1.msra.mxu0 0.0
  %4820 = vmatprep.subr.mxu0 0.0
  %4821 = vmatpush1.msra.mxu0 0.0
  %4822 = vmatprep.subr.mxu0 0.0
  %4823 = vmatpush1.msra.mxu0 0.0
  %4824 = vmatprep.subr.mxu0 0.0
  %4825 = vmatpush1.msra.mxu0 0.0
  %4826 = vmatprep.subr.mxu0 0.0
  %4827 = vmatpush1.msra.mxu0 0.0
  %4828 = vmatprep.subr.mxu0 0.0
  %4829 = vmatpush1.msra.mxu0 0.0
  %4830 = vmatprep.subr.mxu0 0.0
  %4831 = vmatpush1.msra.mxu0 0.0
  %4832 = vmatprep.subr.mxu0 0.0
  %4833 = vmatpush1.msra.mxu0 0.0
  %4834 = vmatprep.subr.mxu0 0.0
  %4835 = vmatpush1.msra.mxu0 0.0
  %4836 = vmatprep.subr.mxu0 0.0
  %4837 = vmatpush1.msra.mxu0 0.0
  %4838 = vmatprep.subr.mxu0 0.0
  %4839 = vmatpush1.msra.mxu0 0.0
  %4840 = vmatprep.subr.mxu0 0.0
  %4841 = vmatpush1.msra.mxu0 0.0
  %4842 = vmatprep.subr.mxu0 0.0
  %4843 = vmatpush1.msra.mxu0 0.0
  %4844 = vmatprep.subr.mxu0 0.0
  %4845 = vmatpush1.msra.mxu0 0.0
  %4846 = vmatprep.subr.mxu0 0.0
  %4847 = vmatpush1.msra.mxu0 0.0
  %4848 = vmatprep.subr.mxu0 0.0
  %4849 = vmatpush1.msra.mxu0 0.0
  %4850 = vmatprep.subr.mxu0 0.0
  %4851 = vmatpush1.msra.mxu0 0.0
  %4852 = vmatprep.subr.mxu0 0.0
  %4853 = vmatpush1.msra.mxu0 0.0
  %4854 = vmatprep.subr.mxu0 0.0
  %4855 = vmatpush1.msra.mxu0 0.0
  %4856 = vmatprep.subr.mxu0 0.0
  %4857 = vmatpush1.msra.mxu0 0.0
  %4858 = vmatprep.subr.mxu0 0.0
  %4859 = vmatpush1.msra.mxu0 0.0
  %4860 = vmatprep.subr.mxu0 0.0
  %4861 = vmatpush1.msra.mxu0 0.0
  %4862 = vmatprep.subr.mxu0 0.0
  %4863 = vmatpush1.msra.mxu0 0.0
  %4864 = vmatprep.mubr.f32.mxu0 0.0
  %4865 = vmatmul.mubr.f32.gmra.mrb[0].mxu0 %v4798
  %v4866 = vpop.f32.mrb[0].mxu0
  %v4867 = vadd.f32 0.0, %v4866
  %v4868 = vpop.f32.mrb[0].mxu0
  %4869 = vdwg.mxu0
  %v4870 = vadd.f32 %v4787, %v4867
  %4871 = vst.msk [vmem:[%s250] sm:$0x1] %vm1593, 0.0
  %4872 = vst.msk [vmem:[%s250 + $0x9] sm:$0x1] %vm1593, 0.0
  %4873 = vst.msk [vmem:[%s250 + $0x1] sm:$0xff] %vm1528, %v4626
  %v4874 = vld [vmem:[%s250] sm:$0xff]
  %v4875 = vld [vmem:[%s250 + $0x8] sm:$0xff]
  %v4876 = vld [vmem:[%s51] sm:$0xff]
  %v4877 = vld [vmem:[%s51 + $0x8] sm:$0xff]
  %v4878 = vld [vmem:[%s51 + $0x10] sm:$0xff]
  %v4879 = vld [vmem:[%s51 + $0x18] sm:$0xff]
  %v4880 = vld [vmem:[%s4636] sm:$0xff]
  %v4881 = vld [vmem:[%s4636 + $0x8] sm:$0xff]
  %v4882 = vld [vmem:[%s4636 + $0x10] sm:$0xff]
  %v4883 = vld [vmem:[%s4636 + $0x18] sm:$0xff]
  %v4886 = vrot.slane %v4874, 1
  %v4887 = vrot.slane %v4875, 1
  %v4888 = vsel %vm213, %v4886, %v4887
  %v4889 = vsel %vm1528, %v4888, 0
  %4891 = vmatprep.subr.mxu0 0.0
  %4892 = vmatpush1.msra.mxu0 %v4880
  %4893 = vmatprep.subr.mxu0 0.0
  %4894 = vmatpush1.msra.mxu0 %v4881
  %4895 = vmatprep.subr.mxu0 0.0
  %4896 = vmatpush1.msra.mxu0 %v4882
  %4897 = vmatprep.subr.mxu0 0.0
  %4898 = vmatpush1.msra.mxu0 %v4883
  %4899 = vmatprep.subr.mxu0 0.0
  %4900 = vmatpush1.msra.mxu0 0.0
  %4901 = vmatprep.subr.mxu0 0.0
  %4902 = vmatpush1.msra.mxu0 0.0
  %4903 = vmatprep.subr.mxu0 0.0
  %4904 = vmatpush1.msra.mxu0 0.0
  %4905 = vmatprep.subr.mxu0 0.0
  %4906 = vmatpush1.msra.mxu0 0.0
  %4907 = vmatprep.subr.mxu0 0.0
  %4908 = vmatpush1.msra.mxu0 0.0
  %4909 = vmatprep.subr.mxu0 0.0
  %4910 = vmatpush1.msra.mxu0 0.0
  %4911 = vmatprep.subr.mxu0 0.0
  %4912 = vmatpush1.msra.mxu0 0.0
  %4913 = vmatprep.subr.mxu0 0.0
  %4914 = vmatpush1.msra.mxu0 0.0
  %4915 = vmatprep.subr.mxu0 0.0
  %4916 = vmatpush1.msra.mxu0 0.0
  %4917 = vmatprep.subr.mxu0 0.0
  %4918 = vmatpush1.msra.mxu0 0.0
  %4919 = vmatprep.subr.mxu0 0.0
  %4920 = vmatpush1.msra.mxu0 0.0
  %4921 = vmatprep.subr.mxu0 0.0
  %4922 = vmatpush1.msra.mxu0 0.0
  %4923 = vmatprep.subr.mxu0 0.0
  %4924 = vmatpush1.msra.mxu0 0.0
  %4925 = vmatprep.subr.mxu0 0.0
  %4926 = vmatpush1.msra.mxu0 0.0
  %4927 = vmatprep.subr.mxu0 0.0
  %4928 = vmatpush1.msra.mxu0 0.0
  %4929 = vmatprep.subr.mxu0 0.0
  %4930 = vmatpush1.msra.mxu0 0.0
  %4931 = vmatprep.subr.mxu0 0.0
  %4932 = vmatpush1.msra.mxu0 0.0
  %4933 = vmatprep.subr.mxu0 0.0
  %4934 = vmatpush1.msra.mxu0 0.0
  %4935 = vmatprep.subr.mxu0 0.0
  %4936 = vmatpush1.msra.mxu0 0.0
  %4937 = vmatprep.subr.mxu0 0.0
  %4938 = vmatpush1.msra.mxu0 0.0
  %4939 = vmatprep.subr.mxu0 0.0
  %4940 = vmatpush1.msra.mxu0 0.0
  %4941 = vmatprep.subr.mxu0 0.0
  %4942 = vmatpush1.msra.mxu0 0.0
  %4943 = vmatprep.subr.mxu0 0.0
  %4944 = vmatpush1.msra.mxu0 0.0
  %4945 = vmatprep.subr.mxu0 0.0
  %4946 = vmatpush1.msra.mxu0 0.0
  %4947 = vmatprep.subr.mxu0 0.0
  %4948 = vmatpush1.msra.mxu0 0.0
  %4949 = vmatprep.subr.mxu0 0.0
  %4950 = vmatpush1.msra.mxu0 0.0
  %4951 = vmatprep.subr.mxu0 0.0
  %4952 = vmatpush1.msra.mxu0 0.0
  %4953 = vmatprep.subr.mxu0 0.0
  %4954 = vmatpush1.msra.mxu0 0.0
  %4955 = vmatprep.mubr.f32.mxu0 0.0
  %4956 = vmatmul.mubr.f32.gmra.mrb[0].mxu0 %v4889
  %v4957 = vpop.f32.mrb[0].mxu0
  %v4958 = vadd.f32 0.0, %v4957
  %v4959 = vpop.f32.mrb[0].mxu0
  %4960 = vdwg.mxu0
  %v4961 = vsel %vm1528, %v4874, 0
  %4963 = vmatprep.subr.mxu0 0.0
  %4964 = vmatpush1.msra.mxu0 %v4876
  %4965 = vmatprep.subr.mxu0 0.0
  %4966 = vmatpush1.msra.mxu0 %v4877
  %4967 = vmatprep.subr.mxu0 0.0
  %4968 = vmatpush1.msra.mxu0 %v4878
  %4969 = vmatprep.subr.mxu0 0.0
  %4970 = vmatpush1.msra.mxu0 %v4879
  %4971 = vmatprep.subr.mxu0 0.0
  %4972 = vmatpush1.msra.mxu0 0.0
  %4973 = vmatprep.subr.mxu0 0.0
  %4974 = vmatpush1.msra.mxu0 0.0
  %4975 = vmatprep.subr.mxu0 0.0
  %4976 = vmatpush1.msra.mxu0 0.0
  %4977 = vmatprep.subr.mxu0 0.0
  %4978 = vmatpush1.msra.mxu0 0.0
  %4979 = vmatprep.subr.mxu0 0.0
  %4980 = vmatpush1.msra.mxu0 0.0
  %4981 = vmatprep.subr.mxu0 0.0
  %4982 = vmatpush1.msra.mxu0 0.0
  %4983 = vmatprep.subr.mxu0 0.0
  %4984 = vmatpush1.msra.mxu0 0.0
  %4985 = vmatprep.subr.mxu0 0.0
  %4986 = vmatpush1.msra.mxu0 0.0
  %4987 = vmatprep.subr.mxu0 0.0
  %4988 = vmatpush1.msra.mxu0 0.0
  %4989 = vmatprep.subr.mxu0 0.0
  %4990 = vmatpush1.msra.mxu0 0.0
  %4991 = vmatprep.subr.mxu0 0.0
  %4992 = vmatpush1.msra.mxu0 0.0
  %4993 = vmatprep.subr.mxu0 0.0
  %4994 = vmatpush1.msra.mxu0 0.0
  %4995 = vmatprep.subr.mxu0 0.0
  %4996 = vmatpush1.msra.mxu0 0.0
  %4997 = vmatprep.subr.mxu0 0.0
  %4998 = vmatpush1.msra.mxu0 0.0
  %4999 = vmatprep.subr.mxu0 0.0
  %5000 = vmatpush1.msra.mxu0 0.0
  %5001 = vmatprep.subr.mxu0 0.0
  %5002 = vmatpush1.msra.mxu0 0.0
  %5003 = vmatprep.subr.mxu0 0.0
  %5004 = vmatpush1.msra.mxu0 0.0
  %5005 = vmatprep.subr.mxu0 0.0
  %5006 = vmatpush1.msra.mxu0 0.0
  %5007 = vmatprep.subr.mxu0 0.0
  %5008 = vmatpush1.msra.mxu0 0.0
  %5009 = vmatprep.subr.mxu0 0.0
  %5010 = vmatpush1.msra.mxu0 0.0
  %5011 = vmatprep.subr.mxu0 0.0
  %5012 = vmatpush1.msra.mxu0 0.0
  %5013 = vmatprep.subr.mxu0 0.0
  %5014 = vmatpush1.msra.mxu0 0.0
  %5015 = vmatprep.subr.mxu0 0.0
  %5016 = vmatpush1.msra.mxu0 0.0
  %5017 = vmatprep.subr.mxu0 0.0
  %5018 = vmatpush1.msra.mxu0 0.0
  %5019 = vmatprep.subr.mxu0 0.0
  %5020 = vmatpush1.msra.mxu0 0.0
  %5021 = vmatprep.subr.mxu0 0.0
  %5022 = vmatpush1.msra.mxu0 0.0
  %5023 = vmatprep.subr.mxu0 0.0
  %5024 = vmatpush1.msra.mxu0 0.0
  %5025 = vmatprep.subr.mxu0 0.0
  %5026 = vmatpush1.msra.mxu0 0.0
  %5027 = vmatprep.mubr.f32.mxu0 0.0
  %5028 = vmatmul.mubr.f32.gmra.mrb[0].mxu0 %v4961
  %v5029 = vpop.f32.mrb[0].mxu0
  %v5030 = vadd.f32 %v4958, %v5029
  %v5031 = vpop.f32.mrb[0].mxu0
  %5032 = vdwg.mxu0
  %v5033 = vld [vmem:[%s4790] sm:$0xff]
  %v5034 = vld [vmem:[%s4790 + $0x8] sm:$0xff]
  %v5035 = vld [vmem:[%s4790 + $0x10] sm:$0xff]
  %v5036 = vld [vmem:[%s4790 + $0x18] sm:$0xff]
  %v5037 = vrot.slane %v4874, 2
  %v5038 = vrot.slane %v4875, 2
  %v5039 = vsel %vm237, %v5037, %v5038
  %v5040 = vsel %vm1528, %v5039, 0
  %5042 = vmatprep.subr.mxu0 0.0
  %5043 = vmatpush1.msra.mxu0 %v5033
  %5044 = vmatprep.subr.mxu0 0.0
  %5045 = vmatpush1.msra.mxu0 %v5034
  %5046 = vmatprep.subr.mxu0 0.0
  %5047 = vmatpush1.msra.mxu0 %v5035
  %5048 = vmatprep.subr.mxu0 0.0
  %5049 = vmatpush1.msra.mxu0 %v5036
  %5050 = vmatprep.subr.mxu0 0.0
  %5051 = vmatpush1.msra.mxu0 0.0
  %5052 = vmatprep.subr.mxu0 0.0
  %5053 = vmatpush1.msra.mxu0 0.0
  %5054 = vmatprep.subr.mxu0 0.0
  %5055 = vmatpush1.msra.mxu0 0.0
  %5056 = vmatprep.subr.mxu0 0.0
  %5057 = vmatpush1.msra.mxu0 0.0
  %5058 = vmatprep.subr.mxu0 0.0
  %5059 = vmatpush1.msra.mxu0 0.0
  %5060 = vmatprep.subr.mxu0 0.0
  %5061 = vmatpush1.msra.mxu0 0.0
  %5062 = vmatprep.subr.mxu0 0.0
  %5063 = vmatpush1.msra.mxu0 0.0
  %5064 = vmatprep.subr.mxu0 0.0
  %5065 = vmatpush1.msra.mxu0 0.0
  %5066 = vmatprep.subr.mxu0 0.0
  %5067 = vmatpush1.msra.mxu0 0.0
  %5068 = vmatprep.subr.mxu0 0.0
  %5069 = vmatpush1.msra.mxu0 0.0
  %5070 = vmatprep.subr.mxu0 0.0
  %5071 = vmatpush1.msra.mxu0 0.0
  %5072 = vmatprep.subr.mxu0 0.0
  %5073 = vmatpush1.msra.mxu0 0.0
  %5074 = vmatprep.subr.mxu0 0.0
  %5075 = vmatpush1.msra.mxu0 0.0
  %5076 = vmatprep.subr.mxu0 0.0
  %5077 = vmatpush1.msra.mxu0 0.0
  %5078 = vmatprep.subr.mxu0 0.0
  %5079 = vmatpush1.msra.mxu0 0.0
  %5080 = vmatprep.subr.mxu0 0.0
  %5081 = vmatpush1.msra.mxu0 0.0
  %5082 = vmatprep.subr.mxu0 0.0
  %5083 = vmatpush1.msra.mxu0 0.0
  %5084 = vmatprep.subr.mxu0 0.0
  %5085 = vmatpush1.msra.mxu0 0.0
  %5086 = vmatprep.subr.mxu0 0.0
  %5087 = vmatpush1.msra.mxu0 0.0
  %5088 = vmatprep.subr.mxu0 0.0
  %5089 = vmatpush1.msra.mxu0 0.0
  %5090 = vmatprep.subr.mxu0 0.0
  %5091 = vmatpush1.msra.mxu0 0.0
  %5092 = vmatprep.subr.mxu0 0.0
  %5093 = vmatpush1.msra.mxu0 0.0
  %5094 = vmatprep.subr.mxu0 0.0
  %5095 = vmatpush1.msra.mxu0 0.0
  %5096 = vmatprep.subr.mxu0 0.0
  %5097 = vmatpush1.msra.mxu0 0.0
  %5098 = vmatprep.subr.mxu0 0.0
  %5099 = vmatpush1.msra.mxu0 0.0
  %5100 = vmatprep.subr.mxu0 0.0
  %5101 = vmatpush1.msra.mxu0 0.0
  %5102 = vmatprep.subr.mxu0 0.0
  %5103 = vmatpush1.msra.mxu0 0.0
  %5104 = vmatprep.subr.mxu0 0.0
  %5105 = vmatpush1.msra.mxu0 0.0
  %5106 = vmatprep.mubr.f32.mxu0 0.0
  %5107 = vmatmul.mubr.f32.gmra.mrb[0].mxu0 %v5040
  %v5108 = vpop.f32.mrb[0].mxu0
  %v5109 = vadd.f32 0.0, %v5108
  %v5110 = vpop.f32.mrb[0].mxu0
  %5111 = vdwg.mxu0
  %v5112 = vadd.f32 %v5030, %v5109
  %v5113 = vsel %vm1528, %v4870, 0.0
  %v5114 = vrot.slane %v5113, 4
  %v5115 = vadd.f32 %v5113, %v5114
  %v5116 = vrot.slane %v5115, 2
  %v5117 = vadd.f32 %v5115, %v5116
  %v5118 = vrot.slane %v5117, 1
  %v5119 = vadd.f32 %v5117, %v5118
  %v5120 = vadd.f32 %v5119, 0.0
  %v5121 = vsel %vm1528, %v5112, 0.0
  %v5122 = vrot.slane %v5121, 4
  %v5123 = vadd.f32 %v5121, %v5122
  %v5124 = vrot.slane %v5123, 2
  %v5125 = vadd.f32 %v5123, %v5124
  %v5126 = vrot.slane %v5125, 1
  %v5127 = vadd.f32 %v5125, %v5126
  %v5128 = vadd.f32 %v5120, %v5127
  %v5129 = vmul.f32 %v4870, %v4870
  %v5130 = vsel %vm1528, %v5129, 0.0
  %v5131 = vrot.slane %v5130, 4
  %v5132 = vadd.f32 %v5130, %v5131
  %v5133 = vrot.slane %v5132, 2
  %v5134 = vadd.f32 %v5132, %v5133
  %v5135 = vrot.slane %v5134, 1
  %v5136 = vadd.f32 %v5134, %v5135
  %v5137 = vadd.f32 %v5136, 0.0
  %v5138 = vmul.f32 %v5112, %v5112
  %v5139 = vsel %vm1528, %v5138, 0.0
  %v5140 = vrot.slane %v5139, 4
  %v5141 = vadd.f32 %v5139, %v5140
  %v5142 = vrot.slane %v5141, 2
  %v5143 = vadd.f32 %v5141, %v5142
  %v5144 = vrot.slane %v5143, 1
  %v5145 = vadd.f32 %v5143, %v5144
  %v5146 = vadd.f32 %v5137, %v5145
  %v5147 = vmul.f32 %v5128, %v1563
  %v5148 = vmul.f32 %v5146, %v1563
  %v5149 = vmul.f32 %v5147, %v5147
  %v5150 = vsub.f32 %v5148, %v5149
  %v5151 = vld [vmem:[%s53] sm:$0x1]
  %v5152 = vadd.f32 %v5150, 1e-05
  %v5153 = vrsqrt.pop %v5152
  %v5154 = vmul.f32 %v5151, %v5153
  %v5155 = vld [vmem:[%s55] sm:$0x1]
  %v5156 = vmul.f32 %v5147, %v5154
  %v5157 = vsub.f32 %v5155, %v5156
  %v5159 = vlaneseq
  %v5160 = vshrl.u32 %v5159, 7
  %v5161 = vsub.s32 0, %v5160
  %v5162 = vrot.slane %v5154, %v5161
  %v5164 = vmul.f32 %v4870, %v5162
  %v5166 = vlaneseq
  %v5167 = vshrl.u32 %v5166, 7
  %v5168 = vsub.s32 0, %v5167
  %v5169 = vrot.slane %v5157, %v5168
  %v5171 = vadd.f32 %v5164, %v5169
  %v5172 = vtanh.pop %v5171
  %v5173 = vmul.f32 %v5112, %v5162
  %v5174 = vadd.f32 %v5173, %v5169
  %v5175 = vtanh.pop %v5174
  %v5176 = vld [vmem:[%s59] sm:$0x1]
  %v5177 = vld [vmem:[%s57] sm:$0xff]
  %v5178 = vld [vmem:[%s57 + $0x8] sm:$0xff]
  %v5179 = vld [vmem:[%s57 + $0x10] sm:$0xff]
  %v5180 = vld [vmem:[%s57 + $0x18] sm:$0xff]
  %s5181 = scalar_lea.vmem %s57, 32
  %v5182 = vld [vmem:[%s5181] sm:$0xff]
  %v5183 = vld [vmem:[%s5181 + $0x8] sm:$0xff]
  %v5184 = vld [vmem:[%s5181 + $0x10] sm:$0xff]
  %v5185 = vld [vmem:[%s5181 + $0x18] sm:$0xff]
  %v5187 = vlaneseq
  %v5188 = vshrl.u32 %v5187, 7
  %v5189 = vsub.s32 0, %v5188
  %v5190 = vrot.slane %v5176, %v5189
  %v5193 = vsel %vm1528, %v5172, 0
  %5195 = vmatprep.subr.mxu0 0.0
  %5196 = vmatpush1.msra.mxu0 %v5177
  %5197 = vmatprep.subr.mxu0 0.0
  %5198 = vmatpush1.msra.mxu0 %v5178
  %5199 = vmatprep.subr.mxu0 0.0
  %5200 = vmatpush1.msra.mxu0 %v5179
  %5201 = vmatprep.subr.mxu0 0.0
  %5202 = vmatpush1.msra.mxu0 %v5180
  %5203 = vmatprep.subr.mxu0 0.0
  %5204 = vmatpush1.msra.mxu0 0.0
  %5205 = vmatprep.subr.mxu0 0.0
  %5206 = vmatpush1.msra.mxu0 0.0
  %5207 = vmatprep.subr.mxu0 0.0
  %5208 = vmatpush1.msra.mxu0 0.0
  %5209 = vmatprep.subr.mxu0 0.0
  %5210 = vmatpush1.msra.mxu0 0.0
  %5211 = vmatprep.subr.mxu0 0.0
  %5212 = vmatpush1.msra.mxu0 0.0
  %5213 = vmatprep.subr.mxu0 0.0
  %5214 = vmatpush1.msra.mxu0 0.0
  %5215 = vmatprep.subr.mxu0 0.0
  %5216 = vmatpush1.msra.mxu0 0.0
  %5217 = vmatprep.subr.mxu0 0.0
  %5218 = vmatpush1.msra.mxu0 0.0
  %5219 = vmatprep.subr.mxu0 0.0
  %5220 = vmatpush1.msra.mxu0 0.0
  %5221 = vmatprep.subr.mxu0 0.0
  %5222 = vmatpush1.msra.mxu0 0.0
  %5223 = vmatprep.subr.mxu0 0.0
  %5224 = vmatpush1.msra.mxu0 0.0
  %5225 = vmatprep.subr.mxu0 0.0
  %5226 = vmatpush1.msra.mxu0 0.0
  %5227 = vmatprep.subr.mxu0 0.0
  %5228 = vmatpush1.msra.mxu0 0.0
  %5229 = vmatprep.subr.mxu0 0.0
  %5230 = vmatpush1.msra.mxu0 0.0
  %5231 = vmatprep.subr.mxu0 0.0
  %5232 = vmatpush1.msra.mxu0 0.0
  %5233 = vmatprep.subr.mxu0 0.0
  %5234 = vmatpush1.msra.mxu0 0.0
  %5235 = vmatprep.subr.mxu0 0.0
  %5236 = vmatpush1.msra.mxu0 0.0
  %5237 = vmatprep.subr.mxu0 0.0
  %5238 = vmatpush1.msra.mxu0 0.0
  %5239 = vmatprep.subr.mxu0 0.0
  %5240 = vmatpush1.msra.mxu0 0.0
  %5241 = vmatprep.subr.mxu0 0.0
  %5242 = vmatpush1.msra.mxu0 0.0
  %5243 = vmatprep.subr.mxu0 0.0
  %5244 = vmatpush1.msra.mxu0 0.0
  %5245 = vmatprep.subr.mxu0 0.0
  %5246 = vmatpush1.msra.mxu0 0.0
  %5247 = vmatprep.subr.mxu0 0.0
  %5248 = vmatpush1.msra.mxu0 0.0
  %5249 = vmatprep.subr.mxu0 0.0
  %5250 = vmatpush1.msra.mxu0 0.0
  %5251 = vmatprep.subr.mxu0 0.0
  %5252 = vmatpush1.msra.mxu0 0.0
  %5253 = vmatprep.subr.mxu0 0.0
  %5254 = vmatpush1.msra.mxu0 0.0
  %5255 = vmatprep.subr.mxu0 0.0
  %5256 = vmatpush1.msra.mxu0 0.0
  %5257 = vmatprep.subr.mxu0 0.0
  %5258 = vmatpush1.msra.mxu0 0.0
  %5259 = vmatprep.mubr.f32.mxu0 0.0
  %5260 = vmatmul.mubr.f32.gmra.mrb[0].mxu0 %v5193
  %v5261 = vpop.f32.mrb[0].mxu0
  %v5262 = vadd.f32 %v5190, %v5261
  %v5263 = vpop.f32.mrb[0].mxu0
  %5264 = vdwg.mxu0
  %v5266 = vsel %vm1528, %v5175, 0
  %5268 = vmatprep.subr.mxu0 0.0
  %5269 = vmatpush1.msra.mxu0 %v5177
  %5270 = vmatprep.subr.mxu0 0.0
  %5271 = vmatpush1.msra.mxu0 %v5178
  %5272 = vmatprep.subr.mxu0 0.0
  %5273 = vmatpush1.msra.mxu0 %v5179
  %5274 = vmatprep.subr.mxu0 0.0
  %5275 = vmatpush1.msra.mxu0 %v5180
  %5276 = vmatprep.subr.mxu0 0.0
  %5277 = vmatpush1.msra.mxu0 0.0
  %5278 = vmatprep.subr.mxu0 0.0
  %5279 = vmatpush1.msra.mxu0 0.0
  %5280 = vmatprep.subr.mxu0 0.0
  %5281 = vmatpush1.msra.mxu0 0.0
  %5282 = vmatprep.subr.mxu0 0.0
  %5283 = vmatpush1.msra.mxu0 0.0
  %5284 = vmatprep.subr.mxu0 0.0
  %5285 = vmatpush1.msra.mxu0 0.0
  %5286 = vmatprep.subr.mxu0 0.0
  %5287 = vmatpush1.msra.mxu0 0.0
  %5288 = vmatprep.subr.mxu0 0.0
  %5289 = vmatpush1.msra.mxu0 0.0
  %5290 = vmatprep.subr.mxu0 0.0
  %5291 = vmatpush1.msra.mxu0 0.0
  %5292 = vmatprep.subr.mxu0 0.0
  %5293 = vmatpush1.msra.mxu0 0.0
  %5294 = vmatprep.subr.mxu0 0.0
  %5295 = vmatpush1.msra.mxu0 0.0
  %5296 = vmatprep.subr.mxu0 0.0
  %5297 = vmatpush1.msra.mxu0 0.0
  %5298 = vmatprep.subr.mxu0 0.0
  %5299 = vmatpush1.msra.mxu0 0.0
  %5300 = vmatprep.subr.mxu0 0.0
  %5301 = vmatpush1.msra.mxu0 0.0
  %5302 = vmatprep.subr.mxu0 0.0
  %5303 = vmatpush1.msra.mxu0 0.0
  %5304 = vmatprep.subr.mxu0 0.0
  %5305 = vmatpush1.msra.mxu0 0.0
  %5306 = vmatprep.subr.mxu0 0.0
  %5307 = vmatpush1.msra.mxu0 0.0
  %5308 = vmatprep.subr.mxu0 0.0
  %5309 = vmatpush1.msra.mxu0 0.0
  %5310 = vmatprep.subr.mxu0 0.0
  %5311 = vmatpush1.msra.mxu0 0.0
  %5312 = vmatprep.subr.mxu0 0.0
  %5313 = vmatpush1.msra.mxu0 0.0
  %5314 = vmatprep.subr.mxu0 0.0
  %5315 = vmatpush1.msra.mxu0 0.0
  %5316 = vmatprep.subr.mxu0 0.0
  %5317 = vmatpush1.msra.mxu0 0.0
  %5318 = vmatprep.subr.mxu0 0.0
  %5319 = vmatpush1.msra.mxu0 0.0
  %5320 = vmatprep.subr.mxu0 0.0
  %5321 = vmatpush1.msra.mxu0 0.0
  %5322 = vmatprep.subr.mxu0 0.0
  %5323 = vmatpush1.msra.mxu0 0.0
  %5324 = vmatprep.subr.mxu0 0.0
  %5325 = vmatpush1.msra.mxu0 0.0
  %5326 = vmatprep.subr.mxu0 0.0
  %5327 = vmatpush1.msra.mxu0 0.0
  %5328 = vmatprep.subr.mxu0 0.0
  %5329 = vmatpush1.msra.mxu0 0.0
  %5330 = vmatprep.subr.mxu0 0.0
  %5331 = vmatpush1.msra.mxu0 0.0
  %5332 = vmatprep.mubr.f32.mxu0 0.0
  %5333 = vmatmul.mubr.f32.gmra.mrb[0].mxu0 %v5266
  %v5334 = vpop.f32.mrb[0].mxu0
  %v5335 = vadd.f32 %v5190, %v5334
  %v5336 = vpop.f32.mrb[0].mxu0
  %5337 = vdwg.mxu0
  %5338 = vmatprep.subr.mxu0 0.0
  %5339 = vmatpush1.msra.mxu0 %v5182
  %5340 = vmatprep.subr.mxu0 0.0
  %5341 = vmatpush1.msra.mxu0 %v5183
  %5342 = vmatprep.subr.mxu0 0.0
  %5343 = vmatpush1.msra.mxu0 %v5184
  %5344 = vmatprep.subr.mxu0 0.0
  %5345 = vmatpush1.msra.mxu0 %v5185
  %5346 = vmatprep.subr.mxu0 0.0
  %5347 = vmatpush1.msra.mxu0 0.0
  %5348 = vmatprep.subr.mxu0 0.0
  %5349 = vmatpush1.msra.mxu0 0.0
  %5350 = vmatprep.subr.mxu0 0.0
  %5351 = vmatpush1.msra.mxu0 0.0
  %5352 = vmatprep.subr.mxu0 0.0
  %5353 = vmatpush1.msra.mxu0 0.0
  %5354 = vmatprep.subr.mxu0 0.0
  %5355 = vmatpush1.msra.mxu0 0.0
  %5356 = vmatprep.subr.mxu0 0.0
  %5357 = vmatpush1.msra.mxu0 0.0
  %5358 = vmatprep.subr.mxu0 0.0
  %5359 = vmatpush1.msra.mxu0 0.0
  %5360 = vmatprep.subr.mxu0 0.0
  %5361 = vmatpush1.msra.mxu0 0.0
  %5362 = vmatprep.subr.mxu0 0.0
  %5363 = vmatpush1.msra.mxu0 0.0
  %5364 = vmatprep.subr.mxu0 0.0
  %5365 = vmatpush1.msra.mxu0 0.0
  %5366 = vmatprep.subr.mxu0 0.0
  %5367 = vmatpush1.msra.mxu0 0.0
  %5368 = vmatprep.subr.mxu0 0.0
  %5369 = vmatpush1.msra.mxu0 0.0
  %5370 = vmatprep.subr.mxu0 0.0
  %5371 = vmatpush1.msra.mxu0 0.0
  %5372 = vmatprep.subr.mxu0 0.0
  %5373 = vmatpush1.msra.mxu0 0.0
  %5374 = vmatprep.subr.mxu0 0.0
  %5375 = vmatpush1.msra.mxu0 0.0
  %5376 = vmatprep.subr.mxu0 0.0
  %5377 = vmatpush1.msra.mxu0 0.0
  %5378 = vmatprep.subr.mxu0 0.0
  %5379 = vmatpush1.msra.mxu0 0.0
  %5380 = vmatprep.subr.mxu0 0.0
  %5381 = vmatpush1.msra.mxu0 0.0
  %5382 = vmatprep.subr.mxu0 0.0
  %5383 = vmatpush1.msra.mxu0 0.0
  %5384 = vmatprep.subr.mxu0 0.0
  %5385 = vmatpush1.msra.mxu0 0.0
  %5386 = vmatprep.subr.mxu0 0.0
  %5387 = vmatpush1.msra.mxu0 0.0
  %5388 = vmatprep.subr.mxu0 0.0
  %5389 = vmatpush1.msra.mxu0 0.0
  %5390 = vmatprep.subr.mxu0 0.0
  %5391 = vmatpush1.msra.mxu0 0.0
  %5392 = vmatprep.subr.mxu0 0.0
  %5393 = vmatpush1.msra.mxu0 0.0
  %5394 = vmatprep.subr.mxu0 0.0
  %5395 = vmatpush1.msra.mxu0 0.0
  %5396 = vmatprep.subr.mxu0 0.0
  %5397 = vmatpush1.msra.mxu0 0.0
  %5398 = vmatprep.subr.mxu0 0.0
  %5399 = vmatpush1.msra.mxu0 0.0
  %5400 = vmatprep.subr.mxu0 0.0
  %5401 = vmatpush1.msra.mxu0 0.0
  %5402 = vmatprep.mubr.f32.mxu0 0.0
  %5403 = vmatmul.mubr.f32.gmra.mrb[0].mxu0 %v5193
  %v5404 = vpop.f32.mrb[0].mxu0
  %v5405 = vadd.f32 %v5190, %v5404
  %v5406 = vpop.f32.mrb[0].mxu0
  %5407 = vdwg.mxu0
  %5408 = vmatprep.subr.mxu0 0.0
  %5409 = vmatpush1.msra.mxu0 %v5182
  %5410 = vmatprep.subr.mxu0 0.0
  %5411 = vmatpush1.msra.mxu0 %v5183
  %5412 = vmatprep.subr.mxu0 0.0
  %5413 = vmatpush1.msra.mxu0 %v5184
  %5414 = vmatprep.subr.mxu0 0.0
  %5415 = vmatpush1.msra.mxu0 %v5185
  %5416 = vmatprep.subr.mxu0 0.0
  %5417 = vmatpush1.msra.mxu0 0.0
  %5418 = vmatprep.subr.mxu0 0.0
  %5419 = vmatpush1.msra.mxu0 0.0
  %5420 = vmatprep.subr.mxu0 0.0
  %5421 = vmatpush1.msra.mxu0 0.0
  %5422 = vmatprep.subr.mxu0 0.0
  %5423 = vmatpush1.msra.mxu0 0.0
  %5424 = vmatprep.subr.mxu0 0.0
  %5425 = vmatpush1.msra.mxu0 0.0
  %5426 = vmatprep.subr.mxu0 0.0
  %5427 = vmatpush1.msra.mxu0 0.0
  %5428 = vmatprep.subr.mxu0 0.0
  %5429 = vmatpush1.msra.mxu0 0.0
  %5430 = vmatprep.subr.mxu0 0.0
  %5431 = vmatpush1.msra.mxu0 0.0
  %5432 = vmatprep.subr.mxu0 0.0
  %5433 = vmatpush1.msra.mxu0 0.0
  %5434 = vmatprep.subr.mxu0 0.0
  %5435 = vmatpush1.msra.mxu0 0.0
  %5436 = vmatprep.subr.mxu0 0.0
  %5437 = vmatpush1.msra.mxu0 0.0
  %5438 = vmatprep.subr.mxu0 0.0
  %5439 = vmatpush1.msra.mxu0 0.0
  %5440 = vmatprep.subr.mxu0 0.0
  %5441 = vmatpush1.msra.mxu0 0.0
  %5442 = vmatprep.subr.mxu0 0.0
  %5443 = vmatpush1.msra.mxu0 0.0
  %5444 = vmatprep.subr.mxu0 0.0
  %5445 = vmatpush1.msra.mxu0 0.0
  %5446 = vmatprep.subr.mxu0 0.0
  %5447 = vmatpush1.msra.mxu0 0.0
  %5448 = vmatprep.subr.mxu0 0.0
  %5449 = vmatpush1.msra.mxu0 0.0
  %5450 = vmatprep.subr.mxu0 0.0
  %5451 = vmatpush1.msra.mxu0 0.0
  %5452 = vmatprep.subr.mxu0 0.0
  %5453 = vmatpush1.msra.mxu0 0.0
  %5454 = vmatprep.subr.mxu0 0.0
  %5455 = vmatpush1.msra.mxu0 0.0
  %5456 = vmatprep.subr.mxu0 0.0
  %5457 = vmatpush1.msra.mxu0 0.0
  %5458 = vmatprep.subr.mxu0 0.0
  %5459 = vmatpush1.msra.mxu0 0.0
  %5460 = vmatprep.subr.mxu0 0.0
  %5461 = vmatpush1.msra.mxu0 0.0
  %5462 = vmatprep.subr.mxu0 0.0
  %5463 = vmatpush1.msra.mxu0 0.0
  %5464 = vmatprep.subr.mxu0 0.0
  %5465 = vmatpush1.msra.mxu0 0.0
  %5466 = vmatprep.subr.mxu0 0.0
  %5467 = vmatpush1.msra.mxu0 0.0
  %5468 = vmatprep.subr.mxu0 0.0
  %5469 = vmatpush1.msra.mxu0 0.0
  %5470 = vmatprep.subr.mxu0 0.0
  %5471 = vmatpush1.msra.mxu0 0.0
  %5472 = vmatprep.mubr.f32.mxu0 0.0
  %5473 = vmatmul.mubr.f32.gmra.mrb[0].mxu0 %v5266
  %v5474 = vpop.f32.mrb[0].mxu0
  %v5475 = vadd.f32 %v5190, %v5474
  %v5476 = vpop.f32.mrb[0].mxu0
  %5477 = vdwg.mxu0
  %5478 = vst.msk [vmem:[#allocation2] sm:$0x1] %vm409, 0.0
  %5479 = vst.msk [vmem:[#allocation2 + $0x11] sm:$0x1] %vm409, 0.0
  %5480 = vst.msk [vmem:[#allocation2 + $0x1] sm:$0x1] %vm409, %v5262
  %5481 = vst.msk [vmem:[#allocation2 + $0x2] sm:$0x1] %vm409, %v5405
  %vm5482 = vcmask 123905
  %5483 = vst.msk [vmem:[#allocation2 + $0x2] sm:$0x2] %vm5482, %v5262
  %5484 = vst.msk [vmem:[#allocation2 + $0x3] sm:$0x2] %vm5482, %v5405
  %5485 = vst.msk [vmem:[#allocation2 + $0x3] sm:$0x4] %vm1028, %v5262
  %5486 = vst.msk [vmem:[#allocation2 + $0x4] sm:$0x4] %vm1028, %v5405
  %vm5487 = vcmask 125955
  %5488 = vst.msk [vmem:[#allocation2 + $0x4] sm:$0x8] %vm5487, %v5262
  %5489 = vst.msk [vmem:[#allocation2 + $0x5] sm:$0x8] %vm5487, %v5405
  %5490 = vst.msk [vmem:[#allocation2 + $0x5] sm:$0x10] %vm1030, %v5262
  %5491 = vst.msk [vmem:[#allocation2 + $0x6] sm:$0x10] %vm1030, %v5405
  %vm5492 = vcmask 128005
  %5493 = vst.msk [vmem:[#allocation2 + $0x6] sm:$0x20] %vm5492, %v5262
  %5494 = vst.msk [vmem:[#allocation2 + $0x7] sm:$0x20] %vm5492, %v5405
  %5495 = vst.msk [vmem:[#allocation2 + $0x7] sm:$0x40] %vm1032, %v5262
  %5496 = vst.msk [vmem:[#allocation2 + $0x8] sm:$0x40] %vm1032, %v5405
  %vm5497 = vcmask 130055
  %5498 = vst.msk [vmem:[#allocation2 + $0x8] sm:$0x80] %vm5497, %v5262
  %5499 = vst.msk [vmem:[#allocation2 + $0x9] sm:$0x80] %vm5497, %v5405
  %v5500 = vld [vmem:[#allocation2] sm:$0xff]
  %v5501 = vld [vmem:[#allocation2 + $0x8] sm:$0xff]
  %v5502 = vld [vmem:[#allocation2 + $0x10] sm:$0x3]
  %v5503 = vld [vmem:[%s61] sm:$0xff]
  %v5504 = vld [vmem:[%s61 + $0x8] sm:$0xff]
  %s5505 = scalar_lea.vmem %s61, 16
  %v5506 = vld [vmem:[%s5505] sm:$0xff]
  %v5507 = vld [vmem:[%s5505 + $0x8] sm:$0xff]
  %v5511 = vrot.slane %v5500, 1
  %v5512 = vrot.slane %v5501, 1
  %v5513 = vsel %vm213, %v5511, %v5512
  %v5514 = vrot.slane %v5502, 1
  %v5515 = vsel %vm213, %v5512, %v5514
  %v5516 = vsel %vm328, %v5513, 0
  %v5518 = vsel %vm328, %v5515, 0
  %5520 = vmatprep.subr.mxu0 0.0
  %5521 = vmatpush1.msra.mxu0 %v5506
  %5522 = vmatprep.subr.mxu0 0.0
  %5523 = vmatpush1.msra.mxu0 %v5507
  %5524 = vmatprep.subr.mxu0 0.0
  %5525 = vmatpush1.msra.mxu0 0.0
  %5526 = vmatprep.subr.mxu0 0.0
  %5527 = vmatpush1.msra.mxu0 0.0
  %5528 = vmatprep.subr.mxu0 0.0
  %5529 = vmatpush1.msra.mxu0 0.0
  %5530 = vmatprep.subr.mxu0 0.0
  %5531 = vmatpush1.msra.mxu0 0.0
  %5532 = vmatprep.subr.mxu0 0.0
  %5533 = vmatpush1.msra.mxu0 0.0
  %5534 = vmatprep.subr.mxu0 0.0
  %5535 = vmatpush1.msra.mxu0 0.0
  %5536 = vmatprep.subr.mxu0 0.0
  %5537 = vmatpush1.msra.mxu0 0.0
  %5538 = vmatprep.subr.mxu0 0.0
  %5539 = vmatpush1.msra.mxu0 0.0
  %5540 = vmatprep.subr.mxu0 0.0
  %5541 = vmatpush1.msra.mxu0 0.0
  %5542 = vmatprep.subr.mxu0 0.0
  %5543 = vmatpush1.msra.mxu0 0.0
  %5544 = vmatprep.subr.mxu0 0.0
  %5545 = vmatpush1.msra.mxu0 0.0
  %5546 = vmatprep.subr.mxu0 0.0
  %5547 = vmatpush1.msra.mxu0 0.0
  %5548 = vmatprep.subr.mxu0 0.0
  %5549 = vmatpush1.msra.mxu0 0.0
  %5550 = vmatprep.subr.mxu0 0.0
  %5551 = vmatpush1.msra.mxu0 0.0
  %5552 = vmatprep.subr.mxu0 0.0
  %5553 = vmatpush1.msra.mxu0 0.0
  %5554 = vmatprep.subr.mxu0 0.0
  %5555 = vmatpush1.msra.mxu0 0.0
  %5556 = vmatprep.subr.mxu0 0.0
  %5557 = vmatpush1.msra.mxu0 0.0
  %5558 = vmatprep.subr.mxu0 0.0
  %5559 = vmatpush1.msra.mxu0 0.0
  %5560 = vmatprep.subr.mxu0 0.0
  %5561 = vmatpush1.msra.mxu0 0.0
  %5562 = vmatprep.subr.mxu0 0.0
  %5563 = vmatpush1.msra.mxu0 0.0
  %5564 = vmatprep.subr.mxu0 0.0
  %5565 = vmatpush1.msra.mxu0 0.0
  %5566 = vmatprep.subr.mxu0 0.0
  %5567 = vmatpush1.msra.mxu0 0.0
  %5568 = vmatprep.subr.mxu0 0.0
  %5569 = vmatpush1.msra.mxu0 0.0
  %5570 = vmatprep.subr.mxu0 0.0
  %5571 = vmatpush1.msra.mxu0 0.0
  %5572 = vmatprep.subr.mxu0 0.0
  %5573 = vmatpush1.msra.mxu0 0.0
  %5574 = vmatprep.subr.mxu0 0.0
  %5575 = vmatpush1.msra.mxu0 0.0
  %5576 = vmatprep.subr.mxu0 0.0
  %5577 = vmatpush1.msra.mxu0 0.0
  %5578 = vmatprep.subr.mxu0 0.0
  %5579 = vmatpush1.msra.mxu0 0.0
  %5580 = vmatprep.subr.mxu0 0.0
  %5581 = vmatpush1.msra.mxu0 0.0
  %5582 = vmatprep.subr.mxu0 0.0
  %5583 = vmatpush1.msra.mxu0 0.0
  %5584 = vmatprep.mubr.f32.mxu0 0.0
  %5585 = vmatmul.mubr.f32.gmra.mrb[0].mxu0 %v5516
  %v5586 = vpop.f32.mrb[0].mxu0
  %v5587 = vadd.f32 0.0, %v5586
  %v5588 = vpop.f32.mrb[0].mxu0
  %5589 = vmatprep.mubr.f32.mxu0 0.0
  %5590 = vmatmul.mubr.f32.gmra.mrb[0].mxu0 %v5518
  %v5591 = vpop.f32.mrb[0].mxu0
  %v5592 = vadd.f32 0.0, %v5591
  %v5593 = vpop.f32.mrb[0].mxu0
  %5594 = vdwg.mxu0
  %v5595 = vsel %vm328, %v5500, 0
  %v5597 = vsel %vm328, %v5501, 0
  %5599 = vmatprep.subr.mxu0 0.0
  %5600 = vmatpush1.msra.mxu0 %v5503
  %5601 = vmatprep.subr.mxu0 0.0
  %5602 = vmatpush1.msra.mxu0 %v5504
  %5603 = vmatprep.subr.mxu0 0.0
  %5604 = vmatpush1.msra.mxu0 0.0
  %5605 = vmatprep.subr.mxu0 0.0
  %5606 = vmatpush1.msra.mxu0 0.0
  %5607 = vmatprep.subr.mxu0 0.0
  %5608 = vmatpush1.msra.mxu0 0.0
  %5609 = vmatprep.subr.mxu0 0.0
  %5610 = vmatpush1.msra.mxu0 0.0
  %5611 = vmatprep.subr.mxu0 0.0
  %5612 = vmatpush1.msra.mxu0 0.0
  %5613 = vmatprep.subr.mxu0 0.0
  %5614 = vmatpush1.msra.mxu0 0.0
  %5615 = vmatprep.subr.mxu0 0.0
  %5616 = vmatpush1.msra.mxu0 0.0
  %5617 = vmatprep.subr.mxu0 0.0
  %5618 = vmatpush1.msra.mxu0 0.0
  %5619 = vmatprep.subr.mxu0 0.0
  %5620 = vmatpush1.msra.mxu0 0.0
  %5621 = vmatprep.subr.mxu0 0.0
  %5622 = vmatpush1.msra.mxu0 0.0
  %5623 = vmatprep.subr.mxu0 0.0
  %5624 = vmatpush1.msra.mxu0 0.0
  %5625 = vmatprep.subr.mxu0 0.0
  %5626 = vmatpush1.msra.mxu0 0.0
  %5627 = vmatprep.subr.mxu0 0.0
  %5628 = vmatpush1.msra.mxu0 0.0
  %5629 = vmatprep.subr.mxu0 0.0
  %5630 = vmatpush1.msra.mxu0 0.0
  %5631 = vmatprep.subr.mxu0 0.0
  %5632 = vmatpush1.msra.mxu0 0.0
  %5633 = vmatprep.subr.mxu0 0.0
  %5634 = vmatpush1.msra.mxu0 0.0
  %5635 = vmatprep.subr.mxu0 0.0
  %5636 = vmatpush1.msra.mxu0 0.0
  %5637 = vmatprep.subr.mxu0 0.0
  %5638 = vmatpush1.msra.mxu0 0.0
  %5639 = vmatprep.subr.mxu0 0.0
  %5640 = vmatpush1.msra.mxu0 0.0
  %5641 = vmatprep.subr.mxu0 0.0
  %5642 = vmatpush1.msra.mxu0 0.0
  %5643 = vmatprep.subr.mxu0 0.0
  %5644 = vmatpush1.msra.mxu0 0.0
  %5645 = vmatprep.subr.mxu0 0.0
  %5646 = vmatpush1.msra.mxu0 0.0
  %5647 = vmatprep.subr.mxu0 0.0
  %5648 = vmatpush1.msra.mxu0 0.0
  %5649 = vmatprep.subr.mxu0 0.0
  %5650 = vmatpush1.msra.mxu0 0.0
  %5651 = vmatprep.subr.mxu0 0.0
  %5652 = vmatpush1.msra.mxu0 0.0
  %5653 = vmatprep.subr.mxu0 0.0
  %5654 = vmatpush1.msra.mxu0 0.0
  %5655 = vmatprep.subr.mxu0 0.0
  %5656 = vmatpush1.msra.mxu0 0.0
  %5657 = vmatprep.subr.mxu0 0.0
  %5658 = vmatpush1.msra.mxu0 0.0
  %5659 = vmatprep.subr.mxu0 0.0
  %5660 = vmatpush1.msra.mxu0 0.0
  %5661 = vmatprep.subr.mxu0 0.0
  %5662 = vmatpush1.msra.mxu0 0.0
  %5663 = vmatprep.mubr.f32.mxu0 0.0
  %5664 = vmatmul.mubr.f32.gmra.mrb[0].mxu0 %v5595
  %v5665 = vpop.f32.mrb[0].mxu0
  %v5666 = vadd.f32 %v5587, %v5665
  %v5667 = vpop.f32.mrb[0].mxu0
  %5668 = vmatprep.mubr.f32.mxu0 0.0
  %5669 = vmatmul.mubr.f32.gmra.mrb[0].mxu0 %v5597
  %v5670 = vpop.f32.mrb[0].mxu0
  %v5671 = vadd.f32 %v5592, %v5670
  %v5672 = vpop.f32.mrb[0].mxu0
  %5673 = vdwg.mxu0
  %s5674 = scalar_lea.vmem %s61, 32
  %v5675 = vld [vmem:[%s5674] sm:$0xff]
  %v5676 = vld [vmem:[%s5674 + $0x8] sm:$0xff]
  %v5677 = vrot.slane %v5500, 2
  %v5678 = vrot.slane %v5501, 2
  %v5679 = vsel %vm237, %v5677, %v5678
  %v5680 = vrot.slane %v5502, 2
  %v5681 = vsel %vm237, %v5678, %v5680
  %v5682 = vsel %vm328, %v5679, 0
  %v5684 = vsel %vm328, %v5681, 0
  %5686 = vmatprep.subr.mxu0 0.0
  %5687 = vmatpush1.msra.mxu0 %v5675
  %5688 = vmatprep.subr.mxu0 0.0
  %5689 = vmatpush1.msra.mxu0 %v5676
  %5690 = vmatprep.subr.mxu0 0.0
  %5691 = vmatpush1.msra.mxu0 0.0
  %5692 = vmatprep.subr.mxu0 0.0
  %5693 = vmatpush1.msra.mxu0 0.0
  %5694 = vmatprep.subr.mxu0 0.0
  %5695 = vmatpush1.msra.mxu0 0.0
  %5696 = vmatprep.subr.mxu0 0.0
  %5697 = vmatpush1.msra.mxu0 0.0
  %5698 = vmatprep.subr.mxu0 0.0
  %5699 = vmatpush1.msra.mxu0 0.0
  %5700 = vmatprep.subr.mxu0 0.0
  %5701 = vmatpush1.msra.mxu0 0.0
  %5702 = vmatprep.subr.mxu0 0.0
  %5703 = vmatpush1.msra.mxu0 0.0
  %5704 = vmatprep.subr.mxu0 0.0
  %5705 = vmatpush1.msra.mxu0 0.0
  %5706 = vmatprep.subr.mxu0 0.0
  %5707 = vmatpush1.msra.mxu0 0.0
  %5708 = vmatprep.subr.mxu0 0.0
  %5709 = vmatpush1.msra.mxu0 0.0
  %5710 = vmatprep.subr.mxu0 0.0
  %5711 = vmatpush1.msra.mxu0 0.0
  %5712 = vmatprep.subr.mxu0 0.0
  %5713 = vmatpush1.msra.mxu0 0.0
  %5714 = vmatprep.subr.mxu0 0.0
  %5715 = vmatpush1.msra.mxu0 0.0
  %5716 = vmatprep.subr.mxu0 0.0
  %5717 = vmatpush1.msra.mxu0 0.0
  %5718 = vmatprep.subr.mxu0 0.0
  %5719 = vmatpush1.msra.mxu0 0.0
  %5720 = vmatprep.subr.mxu0 0.0
  %5721 = vmatpush1.msra.mxu0 0.0
  %5722 = vmatprep.subr.mxu0 0.0
  %5723 = vmatpush1.msra.mxu0 0.0
  %5724 = vmatprep.subr.mxu0 0.0
  %5725 = vmatpush1.msra.mxu0 0.0
  %5726 = vmatprep.subr.mxu0 0.0
  %5727 = vmatpush1.msra.mxu0 0.0
  %5728 = vmatprep.subr.mxu0 0.0
  %5729 = vmatpush1.msra.mxu0 0.0
  %5730 = vmatprep.subr.mxu0 0.0
  %5731 = vmatpush1.msra.mxu0 0.0
  %5732 = vmatprep.subr.mxu0 0.0
  %5733 = vmatpush1.msra.mxu0 0.0
  %5734 = vmatprep.subr.mxu0 0.0
  %5735 = vmatpush1.msra.mxu0 0.0
  %5736 = vmatprep.subr.mxu0 0.0
  %5737 = vmatpush1.msra.mxu0 0.0
  %5738 = vmatprep.subr.mxu0 0.0
  %5739 = vmatpush1.msra.mxu0 0.0
  %5740 = vmatprep.subr.mxu0 0.0
  %5741 = vmatpush1.msra.mxu0 0.0
  %5742 = vmatprep.subr.mxu0 0.0
  %5743 = vmatpush1.msra.mxu0 0.0
  %5744 = vmatprep.subr.mxu0 0.0
  %5745 = vmatpush1.msra.mxu0 0.0
  %5746 = vmatprep.subr.mxu0 0.0
  %5747 = vmatpush1.msra.mxu0 0.0
  %5748 = vmatprep.subr.mxu0 0.0
  %5749 = vmatpush1.msra.mxu0 0.0
  %5750 = vmatprep.mubr.f32.mxu0 0.0
  %5751 = vmatmul.mubr.f32.gmra.mrb[0].mxu0 %v5682
  %v5752 = vpop.f32.mrb[0].mxu0
  %v5753 = vadd.f32 0.0, %v5752
  %v5754 = vpop.f32.mrb[0].mxu0
  %5755 = vmatprep.mubr.f32.mxu0 0.0
  %5756 = vmatmul.mubr.f32.gmra.mrb[0].mxu0 %v5684
  %v5757 = vpop.f32.mrb[0].mxu0
  %v5758 = vadd.f32 0.0, %v5757
  %v5759 = vpop.f32.mrb[0].mxu0
  %5760 = vdwg.mxu0
  %v5761 = vadd.f32 %v5666, %v5753
  %v5762 = vadd.f32 %v5671, %v5758
  %5763 = vst.msk [vmem:[#allocation2] sm:$0x1] %vm409, 0.0
  %5764 = vst.msk [vmem:[#allocation2 + $0x11] sm:$0x1] %vm409, 0.0
  %5765 = vst.msk [vmem:[#allocation2 + $0x1] sm:$0xff] %vm328, %v1013
  %5766 = vst.msk [vmem:[#allocation2 + $0x9] sm:$0xff] %vm328, %v1014
  %v5767 = vld [vmem:[#allocation2] sm:$0xff]
  %v5768 = vld [vmem:[#allocation2 + $0x8] sm:$0xff]
  %v5769 = vld [vmem:[#allocation2 + $0x10] sm:$0x3]
  %v5770 = vld [vmem:[%s63] sm:$0xff]
  %v5771 = vld [vmem:[%s63 + $0x8] sm:$0xff]
  %v5773 = vsel %vm328, %v5767, 0
  %v5776 = vsel %vm328, %v5768, 0
  %5778 = vmatprep.subr.mxu0 0.0
  %5779 = vmatpush1.msra.mxu0 %v5770
  %5780 = vmatprep.subr.mxu0 0.0
  %5781 = vmatpush1.msra.mxu0 %v5771
  %5782 = vmatprep.subr.mxu0 0.0
  %5783 = vmatpush1.msra.mxu0 0.0
  %5784 = vmatprep.subr.mxu0 0.0
  %5785 = vmatpush1.msra.mxu0 0.0
  %5786 = vmatprep.subr.mxu0 0.0
  %5787 = vmatpush1.msra.mxu0 0.0
  %5788 = vmatprep.subr.mxu0 0.0
  %5789 = vmatpush1.msra.mxu0 0.0
  %5790 = vmatprep.subr.mxu0 0.0
  %5791 = vmatpush1.msra.mxu0 0.0
  %5792 = vmatprep.subr.mxu0 0.0
  %5793 = vmatpush1.msra.mxu0 0.0
  %5794 = vmatprep.subr.mxu0 0.0
  %5795 = vmatpush1.msra.mxu0 0.0
  %5796 = vmatprep.subr.mxu0 0.0
  %5797 = vmatpush1.msra.mxu0 0.0
  %5798 = vmatprep.subr.mxu0 0.0
  %5799 = vmatpush1.msra.mxu0 0.0
  %5800 = vmatprep.subr.mxu0 0.0
  %5801 = vmatpush1.msra.mxu0 0.0
  %5802 = vmatprep.subr.mxu0 0.0
  %5803 = vmatpush1.msra.mxu0 0.0
  %5804 = vmatprep.subr.mxu0 0.0
  %5805 = vmatpush1.msra.mxu0 0.0
  %5806 = vmatprep.subr.mxu0 0.0
  %5807 = vmatpush1.msra.mxu0 0.0
  %5808 = vmatprep.subr.mxu0 0.0
  %5809 = vmatpush1.msra.mxu0 0.0
  %5810 = vmatprep.subr.mxu0 0.0
  %5811 = vmatpush1.msra.mxu0 0.0
  %5812 = vmatprep.subr.mxu0 0.0
  %5813 = vmatpush1.msra.mxu0 0.0
  %5814 = vmatprep.subr.mxu0 0.0
  %5815 = vmatpush1.msra.mxu0 0.0
  %5816 = vmatprep.subr.mxu0 0.0
  %5817 = vmatpush1.msra.mxu0 0.0
  %5818 = vmatprep.subr.mxu0 0.0
  %5819 = vmatpush1.msra.mxu0 0.0
  %5820 = vmatprep.subr.mxu0 0.0
  %5821 = vmatpush1.msra.mxu0 0.0
  %5822 = vmatprep.subr.mxu0 0.0
  %5823 = vmatpush1.msra.mxu0 0.0
  %5824 = vmatprep.subr.mxu0 0.0
  %5825 = vmatpush1.msra.mxu0 0.0
  %5826 = vmatprep.subr.mxu0 0.0
  %5827 = vmatpush1.msra.mxu0 0.0
  %5828 = vmatprep.subr.mxu0 0.0
  %5829 = vmatpush1.msra.mxu0 0.0
  %5830 = vmatprep.subr.mxu0 0.0
  %5831 = vmatpush1.msra.mxu0 0.0
  %5832 = vmatprep.subr.mxu0 0.0
  %5833 = vmatpush1.msra.mxu0 0.0
  %5834 = vmatprep.subr.mxu0 0.0
  %5835 = vmatpush1.msra.mxu0 0.0
  %5836 = vmatprep.subr.mxu0 0.0
  %5837 = vmatpush1.msra.mxu0 0.0
  %5838 = vmatprep.subr.mxu0 0.0
  %5839 = vmatpush1.msra.mxu0 0.0
  %5840 = vmatprep.subr.mxu0 0.0
  %5841 = vmatpush1.msra.mxu0 0.0
  %5842 = vmatprep.mubr.f32.mxu0 0.0
  %5843 = vmatmul.mubr.f32.gmra.mrb[0].mxu0 %v5773
  %v5844 = vpop.f32.mrb[0].mxu0
  %v5845 = vadd.f32 0.0, %v5844
  %v5846 = vpop.f32.mrb[0].mxu0
  %5847 = vmatprep.mubr.f32.mxu0 0.0
  %5848 = vmatmul.mubr.f32.gmra.mrb[0].mxu0 %v5776
  %v5849 = vpop.f32.mrb[0].mxu0
  %v5850 = vadd.f32 0.0, %v5849
  %v5851 = vpop.f32.mrb[0].mxu0
  %5852 = vdwg.mxu0
  %v5853 = vadd.f32 %v5761, %v5845
  %v5854 = vadd.f32 %v5762, %v5850
  %s5855 = scalar_lea.vmem %s63, 16
  %v5856 = vld [vmem:[%s5855] sm:$0xff]
  %v5857 = vld [vmem:[%s5855 + $0x8] sm:$0xff]
  %v5859 = vrot.slane %v5767, 1
  %v5860 = vrot.slane %v5768, 1
  %v5861 = vsel %vm213, %v5859, %v5860
  %v5862 = vrot.slane %v5769, 1
  %v5863 = vsel %vm213, %v5860, %v5862
  %v5864 = vsel %vm328, %v5861, 0
  %v5866 = vsel %vm328, %v5863, 0
  %5868 = vmatprep.subr.mxu0 0.0
  %5869 = vmatpush1.msra.mxu0 %v5856
  %5870 = vmatprep.subr.mxu0 0.0
  %5871 = vmatpush1.msra.mxu0 %v5857
  %5872 = vmatprep.subr.mxu0 0.0
  %5873 = vmatpush1.msra.mxu0 0.0
  %5874 = vmatprep.subr.mxu0 0.0
  %5875 = vmatpush1.msra.mxu0 0.0
  %5876 = vmatprep.subr.mxu0 0.0
  %5877 = vmatpush1.msra.mxu0 0.0
  %5878 = vmatprep.subr.mxu0 0.0
  %5879 = vmatpush1.msra.mxu0 0.0
  %5880 = vmatprep.subr.mxu0 0.0
  %5881 = vmatpush1.msra.mxu0 0.0
  %5882 = vmatprep.subr.mxu0 0.0
  %5883 = vmatpush1.msra.mxu0 0.0
  %5884 = vmatprep.subr.mxu0 0.0
  %5885 = vmatpush1.msra.mxu0 0.0
  %5886 = vmatprep.subr.mxu0 0.0
  %5887 = vmatpush1.msra.mxu0 0.0
  %5888 = vmatprep.subr.mxu0 0.0
  %5889 = vmatpush1.msra.mxu0 0.0
  %5890 = vmatprep.subr.mxu0 0.0
  %5891 = vmatpush1.msra.mxu0 0.0
  %5892 = vmatprep.subr.mxu0 0.0
  %5893 = vmatpush1.msra.mxu0 0.0
  %5894 = vmatprep.subr.mxu0 0.0
  %5895 = vmatpush1.msra.mxu0 0.0
  %5896 = vmatprep.subr.mxu0 0.0
  %5897 = vmatpush1.msra.mxu0 0.0
  %5898 = vmatprep.subr.mxu0 0.0
  %5899 = vmatpush1.msra.mxu0 0.0
  %5900 = vmatprep.subr.mxu0 0.0
  %5901 = vmatpush1.msra.mxu0 0.0
  %5902 = vmatprep.subr.mxu0 0.0
  %5903 = vmatpush1.msra.mxu0 0.0
  %5904 = vmatprep.subr.mxu0 0.0
  %5905 = vmatpush1.msra.mxu0 0.0
  %5906 = vmatprep.subr.mxu0 0.0
  %5907 = vmatpush1.msra.mxu0 0.0
  %5908 = vmatprep.subr.mxu0 0.0
  %5909 = vmatpush1.msra.mxu0 0.0
  %5910 = vmatprep.subr.mxu0 0.0
  %5911 = vmatpush1.msra.mxu0 0.0
  %5912 = vmatprep.subr.mxu0 0.0
  %5913 = vmatpush1.msra.mxu0 0.0
  %5914 = vmatprep.subr.mxu0 0.0
  %5915 = vmatpush1.msra.mxu0 0.0
  %5916 = vmatprep.subr.mxu0 0.0
  %5917 = vmatpush1.msra.mxu0 0.0
  %5918 = vmatprep.subr.mxu0 0.0
  %5919 = vmatpush1.msra.mxu0 0.0
  %5920 = vmatprep.subr.mxu0 0.0
  %5921 = vmatpush1.msra.mxu0 0.0
  %5922 = vmatprep.subr.mxu0 0.0
  %5923 = vmatpush1.msra.mxu0 0.0
  %5924 = vmatprep.subr.mxu0 0.0
  %5925 = vmatpush1.msra.mxu0 0.0
  %5926 = vmatprep.subr.mxu0 0.0
  %5927 = vmatpush1.msra.mxu0 0.0
  %5928 = vmatprep.subr.mxu0 0.0
  %5929 = vmatpush1.msra.mxu0 0.0
  %5930 = vmatprep.subr.mxu0 0.0
  %5931 = vmatpush1.msra.mxu0 0.0
  %5932 = vmatprep.mubr.f32.mxu0 0.0
  %5933 = vmatmul.mubr.f32.gmra.mrb[0].mxu0 %v5864
  %v5934 = vpop.f32.mrb[0].mxu0
  %v5935 = vadd.f32 0.0, %v5934
  %v5936 = vpop.f32.mrb[0].mxu0
  %5937 = vmatprep.mubr.f32.mxu0 0.0
  %5938 = vmatmul.mubr.f32.gmra.mrb[0].mxu0 %v5866
  %v5939 = vpop.f32.mrb[0].mxu0
  %v5940 = vadd.f32 0.0, %v5939
  %v5941 = vpop.f32.mrb[0].mxu0
  %5942 = vdwg.mxu0
  %v5943 = vadd.f32 %v5853, %v5935
  %v5944 = vadd.f32 %v5854, %v5940
  %s5945 = scalar_lea.vmem %s63, 32
  %v5946 = vld [vmem:[%s5945] sm:$0xff]
  %v5947 = vld [vmem:[%s5945 + $0x8] sm:$0xff]
  %v5948 = vrot.slane %v5767, 2
  %v5949 = vrot.slane %v5768, 2
  %v5950 = vsel %vm237, %v5948, %v5949
  %v5951 = vrot.slane %v5769, 2
  %v5952 = vsel %vm237, %v5949, %v5951
  %v5953 = vsel %vm328, %v5950, 0
  %v5955 = vsel %vm328, %v5952, 0
  %5957 = vmatprep.subr.mxu0 0.0
  %5958 = vmatpush1.msra.mxu0 %v5946
  %5959 = vmatprep.subr.mxu0 0.0
  %5960 = vmatpush1.msra.mxu0 %v5947
  %5961 = vmatprep.subr.mxu0 0.0
  %5962 = vmatpush1.msra.mxu0 0.0
  %5963 = vmatprep.subr.mxu0 0.0
  %5964 = vmatpush1.msra.mxu0 0.0
  %5965 = vmatprep.subr.mxu0 0.0
  %5966 = vmatpush1.msra.mxu0 0.0
  %5967 = vmatprep.subr.mxu0 0.0
  %5968 = vmatpush1.msra.mxu0 0.0
  %5969 = vmatprep.subr.mxu0 0.0
  %5970 = vmatpush1.msra.mxu0 0.0
  %5971 = vmatprep.subr.mxu0 0.0
  %5972 = vmatpush1.msra.mxu0 0.0
  %5973 = vmatprep.subr.mxu0 0.0
  %5974 = vmatpush1.msra.mxu0 0.0
  %5975 = vmatprep.subr.mxu0 0.0
  %5976 = vmatpush1.msra.mxu0 0.0
  %5977 = vmatprep.subr.mxu0 0.0
  %5978 = vmatpush1.msra.mxu0 0.0
  %5979 = vmatprep.subr.mxu0 0.0
  %5980 = vmatpush1.msra.mxu0 0.0
  %5981 = vmatprep.subr.mxu0 0.0
  %5982 = vmatpush1.msra.mxu0 0.0
  %5983 = vmatprep.subr.mxu0 0.0
  %5984 = vmatpush1.msra.mxu0 0.0
  %5985 = vmatprep.subr.mxu0 0.0
  %5986 = vmatpush1.msra.mxu0 0.0
  %5987 = vmatprep.subr.mxu0 0.0
  %5988 = vmatpush1.msra.mxu0 0.0
  %5989 = vmatprep.subr.mxu0 0.0
  %5990 = vmatpush1.msra.mxu0 0.0
  %5991 = vmatprep.subr.mxu0 0.0
  %5992 = vmatpush1.msra.mxu0 0.0
  %5993 = vmatprep.subr.mxu0 0.0
  %5994 = vmatpush1.msra.mxu0 0.0
  %5995 = vmatprep.subr.mxu0 0.0
  %5996 = vmatpush1.msra.mxu0 0.0
  %5997 = vmatprep.subr.mxu0 0.0
  %5998 = vmatpush1.msra.mxu0 0.0
  %5999 = vmatprep.subr.mxu0 0.0
  %6000 = vmatpush1.msra.mxu0 0.0
  %6001 = vmatprep.subr.mxu0 0.0
  %6002 = vmatpush1.msra.mxu0 0.0
  %6003 = vmatprep.subr.mxu0 0.0
  %6004 = vmatpush1.msra.mxu0 0.0
  %6005 = vmatprep.subr.mxu0 0.0
  %6006 = vmatpush1.msra.mxu0 0.0
  %6007 = vmatprep.subr.mxu0 0.0
  %6008 = vmatpush1.msra.mxu0 0.0
  %6009 = vmatprep.subr.mxu0 0.0
  %6010 = vmatpush1.msra.mxu0 0.0
  %6011 = vmatprep.subr.mxu0 0.0
  %6012 = vmatpush1.msra.mxu0 0.0
  %6013 = vmatprep.subr.mxu0 0.0
  %6014 = vmatpush1.msra.mxu0 0.0
  %6015 = vmatprep.subr.mxu0 0.0
  %6016 = vmatpush1.msra.mxu0 0.0
  %6017 = vmatprep.subr.mxu0 0.0
  %6018 = vmatpush1.msra.mxu0 0.0
  %6019 = vmatprep.subr.mxu0 0.0
  %6020 = vmatpush1.msra.mxu0 0.0
  %6021 = vmatprep.mubr.f32.mxu0 0.0
  %6022 = vmatmul.mubr.f32.gmra.mrb[0].mxu0 %v5953
  %v6023 = vpop.f32.mrb[0].mxu0
  %v6024 = vadd.f32 0.0, %v6023
  %v6025 = vpop.f32.mrb[0].mxu0
  %6026 = vmatprep.mubr.f32.mxu0 0.0
  %6027 = vmatmul.mubr.f32.gmra.mrb[0].mxu0 %v5955
  %v6028 = vpop.f32.mrb[0].mxu0
  %v6029 = vadd.f32 0.0, %v6028
  %v6030 = vpop.f32.mrb[0].mxu0
  %6031 = vdwg.mxu0
  %v6032 = vadd.f32 %v5943, %v6024
  %v6033 = vadd.f32 %v5944, %v6029
  %6034 = vst.msk [vmem:[%s250] sm:$0x1] %vm409, 0.0
  %6035 = vst.msk [vmem:[%s250 + $0x11] sm:$0x1] %vm409, 0.0
  %6036 = vst.msk [vmem:[%s250 + $0x1] sm:$0x1] %vm409, %v5335
  %6037 = vst.msk [vmem:[%s250 + $0x2] sm:$0x1] %vm409, %v5475
  %6038 = vst.msk [vmem:[%s250 + $0x2] sm:$0x2] %vm5482, %v5335
  %6039 = vst.msk [vmem:[%s250 + $0x3] sm:$0x2] %vm5482, %v5475
  %6040 = vst.msk [vmem:[%s250 + $0x3] sm:$0x4] %vm1028, %v5335
  %6041 = vst.msk [vmem:[%s250 + $0x4] sm:$0x4] %vm1028, %v5475
  %6042 = vst.msk [vmem:[%s250 + $0x4] sm:$0x8] %vm5487, %v5335
  %6043 = vst.msk [vmem:[%s250 + $0x5] sm:$0x8] %vm5487, %v5475
  %6044 = vst.msk [vmem:[%s250 + $0x5] sm:$0x10] %vm1030, %v5335
  %6045 = vst.msk [vmem:[%s250 + $0x6] sm:$0x10] %vm1030, %v5475
  %6046 = vst.msk [vmem:[%s250 + $0x6] sm:$0x20] %vm5492, %v5335
  %6047 = vst.msk [vmem:[%s250 + $0x7] sm:$0x20] %vm5492, %v5475
  %6048 = vst.msk [vmem:[%s250 + $0x7] sm:$0x40] %vm1032, %v5335
  %6049 = vst.msk [vmem:[%s250 + $0x8] sm:$0x40] %vm1032, %v5475
  %6050 = vst.msk [vmem:[%s250 + $0x8] sm:$0x80] %vm5497, %v5335
  %6051 = vst.msk [vmem:[%s250 + $0x9] sm:$0x80] %vm5497, %v5475
  %v6052 = vld [vmem:[%s250] sm:$0xff]
  %v6053 = vld [vmem:[%s250 + $0x8] sm:$0xff]
  %v6054 = vld [vmem:[%s250 + $0x10] sm:$0x3]
  %v6055 = vld [vmem:[%s61] sm:$0xff]
  %v6056 = vld [vmem:[%s61 + $0x8] sm:$0xff]
  %v6057 = vld [vmem:[%s5505] sm:$0xff]
  %v6058 = vld [vmem:[%s5505 + $0x8] sm:$0xff]
  %v6062 = vrot.slane %v6052, 1
  %v6063 = vrot.slane %v6053, 1
  %v6064 = vsel %vm213, %v6062, %v6063
  %v6065 = vrot.slane %v6054, 1
  %v6066 = vsel %vm213, %v6063, %v6065
  %v6067 = vsel %vm328, %v6064, 0
  %v6069 = vsel %vm328, %v6066, 0
  %6071 = vmatprep.subr.mxu0 0.0
  %6072 = vmatpush1.msra.mxu0 %v6057
  %6073 = vmatprep.subr.mxu0 0.0
  %6074 = vmatpush1.msra.mxu0 %v6058
  %6075 = vmatprep.subr.mxu0 0.0
  %6076 = vmatpush1.msra.mxu0 0.0
  %6077 = vmatprep.subr.mxu0 0.0
  %6078 = vmatpush1.msra.mxu0 0.0
  %6079 = vmatprep.subr.mxu0 0.0
  %6080 = vmatpush1.msra.mxu0 0.0
  %6081 = vmatprep.subr.mxu0 0.0
  %6082 = vmatpush1.msra.mxu0 0.0
  %6083 = vmatprep.subr.mxu0 0.0
  %6084 = vmatpush1.msra.mxu0 0.0
  %6085 = vmatprep.subr.mxu0 0.0
  %6086 = vmatpush1.msra.mxu0 0.0
  %6087 = vmatprep.subr.mxu0 0.0
  %6088 = vmatpush1.msra.mxu0 0.0
  %6089 = vmatprep.subr.mxu0 0.0
  %6090 = vmatpush1.msra.mxu0 0.0
  %6091 = vmatprep.subr.mxu0 0.0
  %6092 = vmatpush1.msra.mxu0 0.0
  %6093 = vmatprep.subr.mxu0 0.0
  %6094 = vmatpush1.msra.mxu0 0.0
  %6095 = vmatprep.subr.mxu0 0.0
  %6096 = vmatpush1.msra.mxu0 0.0
  %6097 = vmatprep.subr.mxu0 0.0
  %6098 = vmatpush1.msra.mxu0 0.0
  %6099 = vmatprep.subr.mxu0 0.0
  %6100 = vmatpush1.msra.mxu0 0.0
  %6101 = vmatprep.subr.mxu0 0.0
  %6102 = vmatpush1.msra.mxu0 0.0
  %6103 = vmatprep.subr.mxu0 0.0
  %6104 = vmatpush1.msra.mxu0 0.0
  %6105 = vmatprep.subr.mxu0 0.0
  %6106 = vmatpush1.msra.mxu0 0.0
  %6107 = vmatprep.subr.mxu0 0.0
  %6108 = vmatpush1.msra.mxu0 0.0
  %6109 = vmatprep.subr.mxu0 0.0
  %6110 = vmatpush1.msra.mxu0 0.0
  %6111 = vmatprep.subr.mxu0 0.0
  %6112 = vmatpush1.msra.mxu0 0.0
  %6113 = vmatprep.subr.mxu0 0.0
  %6114 = vmatpush1.msra.mxu0 0.0
  %6115 = vmatprep.subr.mxu0 0.0
  %6116 = vmatpush1.msra.mxu0 0.0
  %6117 = vmatprep.subr.mxu0 0.0
  %6118 = vmatpush1.msra.mxu0 0.0
  %6119 = vmatprep.subr.mxu0 0.0
  %6120 = vmatpush1.msra.mxu0 0.0
  %6121 = vmatprep.subr.mxu0 0.0
  %6122 = vmatpush1.msra.mxu0 0.0
  %6123 = vmatprep.subr.mxu0 0.0
  %6124 = vmatpush1.msra.mxu0 0.0
  %6125 = vmatprep.subr.mxu0 0.0
  %6126 = vmatpush1.msra.mxu0 0.0
  %6127 = vmatprep.subr.mxu0 0.0
  %6128 = vmatpush1.msra.mxu0 0.0
  %6129 = vmatprep.subr.mxu0 0.0
  %6130 = vmatpush1.msra.mxu0 0.0
  %6131 = vmatprep.subr.mxu0 0.0
  %6132 = vmatpush1.msra.mxu0 0.0
  %6133 = vmatprep.subr.mxu0 0.0
  %6134 = vmatpush1.msra.mxu0 0.0
  %6135 = vmatprep.mubr.f32.mxu0 0.0
  %6136 = vmatmul.mubr.f32.gmra.mrb[0].mxu0 %v6067
  %v6137 = vpop.f32.mrb[0].mxu0
  %v6138 = vadd.f32 0.0, %v6137
  %v6139 = vpop.f32.mrb[0].mxu0
  %6140 = vmatprep.mubr.f32.mxu0 0.0
  %6141 = vmatmul.mubr.f32.gmra.mrb[0].mxu0 %v6069
  %v6142 = vpop.f32.mrb[0].mxu0
  %v6143 = vadd.f32 0.0, %v6142
  %v6144 = vpop.f32.mrb[0].mxu0
  %6145 = vdwg.mxu0
  %v6146 = vsel %vm328, %v6052, 0
  %v6148 = vsel %vm328, %v6053, 0
  %6150 = vmatprep.subr.mxu0 0.0
  %6151 = vmatpush1.msra.mxu0 %v6055
  %6152 = vmatprep.subr.mxu0 0.0
  %6153 = vmatpush1.msra.mxu0 %v6056
  %6154 = vmatprep.subr.mxu0 0.0
  %6155 = vmatpush1.msra.mxu0 0.0
  %6156 = vmatprep.subr.mxu0 0.0
  %6157 = vmatpush1.msra.mxu0 0.0
  %6158 = vmatprep.subr.mxu0 0.0
  %6159 = vmatpush1.msra.mxu0 0.0
  %6160 = vmatprep.subr.mxu0 0.0
  %6161 = vmatpush1.msra.mxu0 0.0
  %6162 = vmatprep.subr.mxu0 0.0
  %6163 = vmatpush1.msra.mxu0 0.0
  %6164 = vmatprep.subr.mxu0 0.0
  %6165 = vmatpush1.msra.mxu0 0.0
  %6166 = vmatprep.subr.mxu0 0.0
  %6167 = vmatpush1.msra.mxu0 0.0
  %6168 = vmatprep.subr.mxu0 0.0
  %6169 = vmatpush1.msra.mxu0 0.0
  %6170 = vmatprep.subr.mxu0 0.0
  %6171 = vmatpush1.msra.mxu0 0.0
  %6172 = vmatprep.subr.mxu0 0.0
  %6173 = vmatpush1.msra.mxu0 0.0
  %6174 = vmatprep.subr.mxu0 0.0
  %6175 = vmatpush1.msra.mxu0 0.0
  %6176 = vmatprep.subr.mxu0 0.0
  %6177 = vmatpush1.msra.mxu0 0.0
  %6178 = vmatprep.subr.mxu0 0.0
  %6179 = vmatpush1.msra.mxu0 0.0
  %6180 = vmatprep.subr.mxu0 0.0
  %6181 = vmatpush1.msra.mxu0 0.0
  %6182 = vmatprep.subr.mxu0 0.0
  %6183 = vmatpush1.msra.mxu0 0.0
  %6184 = vmatprep.subr.mxu0 0.0
  %6185 = vmatpush1.msra.mxu0 0.0
  %6186 = vmatprep.subr.mxu0 0.0
  %6187 = vmatpush1.msra.mxu0 0.0
  %6188 = vmatprep.subr.mxu0 0.0
  %6189 = vmatpush1.msra.mxu0 0.0
  %6190 = vmatprep.subr.mxu0 0.0
  %6191 = vmatpush1.msra.mxu0 0.0
  %6192 = vmatprep.subr.mxu0 0.0
  %6193 = vmatpush1.msra.mxu0 0.0
  %6194 = vmatprep.subr.mxu0 0.0
  %6195 = vmatpush1.msra.mxu0 0.0
  %6196 = vmatprep.subr.mxu0 0.0
  %6197 = vmatpush1.msra.mxu0 0.0
  %6198 = vmatprep.subr.mxu0 0.0
  %6199 = vmatpush1.msra.mxu0 0.0
  %6200 = vmatprep.subr.mxu0 0.0
  %6201 = vmatpush1.msra.mxu0 0.0
  %6202 = vmatprep.subr.mxu0 0.0
  %6203 = vmatpush1.msra.mxu0 0.0
  %6204 = vmatprep.subr.mxu0 0.0
  %6205 = vmatpush1.msra.mxu0 0.0
  %6206 = vmatprep.subr.mxu0 0.0
  %6207 = vmatpush1.msra.mxu0 0.0
  %6208 = vmatprep.subr.mxu0 0.0
  %6209 = vmatpush1.msra.mxu0 0.0
  %6210 = vmatprep.subr.mxu0 0.0
  %6211 = vmatpush1.msra.mxu0 0.0
  %6212 = vmatprep.subr.mxu0 0.0
  %6213 = vmatpush1.msra.mxu0 0.0
  %6214 = vmatprep.mubr.f32.mxu0 0.0
  %6215 = vmatmul.mubr.f32.gmra.mrb[0].mxu0 %v6146
  %v6216 = vpop.f32.mrb[0].mxu0
  %v6217 = vadd.f32 %v6138, %v6216
  %v6218 = vpop.f32.mrb[0].mxu0
  %6219 = vmatprep.mubr.f32.mxu0 0.0
  %6220 = vmatmul.mubr.f32.gmra.mrb[0].mxu0 %v6148
  %v6221 = vpop.f32.mrb[0].mxu0
  %v6222 = vadd.f32 %v6143, %v6221
  %v6223 = vpop.f32.mrb[0].mxu0
  %6224 = vdwg.mxu0
  %v6225 = vld [vmem:[%s5674] sm:$0xff]
  %v6226 = vld [vmem:[%s5674 + $0x8] sm:$0xff]
  %v6227 = vrot.slane %v6052, 2
  %v6228 = vrot.slane %v6053, 2
  %v6229 = vsel %vm237, %v6227, %v6228
  %v6230 = vrot.slane %v6054, 2
  %v6231 = vsel %vm237, %v6228, %v6230
  %v6232 = vsel %vm328, %v6229, 0
  %v6234 = vsel %vm328, %v6231, 0
  %6236 = vmatprep.subr.mxu0 0.0
  %6237 = vmatpush1.msra.mxu0 %v6225
  %6238 = vmatprep.subr.mxu0 0.0
  %6239 = vmatpush1.msra.mxu0 %v6226
  %6240 = vmatprep.subr.mxu0 0.0
  %6241 = vmatpush1.msra.mxu0 0.0
  %6242 = vmatprep.subr.mxu0 0.0
  %6243 = vmatpush1.msra.mxu0 0.0
  %6244 = vmatprep.subr.mxu0 0.0
  %6245 = vmatpush1.msra.mxu0 0.0
  %6246 = vmatprep.subr.mxu0 0.0
  %6247 = vmatpush1.msra.mxu0 0.0
  %6248 = vmatprep.subr.mxu0 0.0
  %6249 = vmatpush1.msra.mxu0 0.0
  %6250 = vmatprep.subr.mxu0 0.0
  %6251 = vmatpush1.msra.mxu0 0.0
  %6252 = vmatprep.subr.mxu0 0.0
  %6253 = vmatpush1.msra.mxu0 0.0
  %6254 = vmatprep.subr.mxu0 0.0
  %6255 = vmatpush1.msra.mxu0 0.0
  %6256 = vmatprep.subr.mxu0 0.0
  %6257 = vmatpush1.msra.mxu0 0.0
  %6258 = vmatprep.subr.mxu0 0.0
  %6259 = vmatpush1.msra.mxu0 0.0
  %6260 = vmatprep.subr.mxu0 0.0
  %6261 = vmatpush1.msra.mxu0 0.0
  %6262 = vmatprep.subr.mxu0 0.0
  %6263 = vmatpush1.msra.mxu0 0.0
  %6264 = vmatprep.subr.mxu0 0.0
  %6265 = vmatpush1.msra.mxu0 0.0
  %6266 = vmatprep.subr.mxu0 0.0
  %6267 = vmatpush1.msra.mxu0 0.0
  %6268 = vmatprep.subr.mxu0 0.0
  %6269 = vmatpush1.msra.mxu0 0.0
  %6270 = vmatprep.subr.mxu0 0.0
  %6271 = vmatpush1.msra.mxu0 0.0
  %6272 = vmatprep.subr.mxu0 0.0
  %6273 = vmatpush1.msra.mxu0 0.0
  %6274 = vmatprep.subr.mxu0 0.0
  %6275 = vmatpush1.msra.mxu0 0.0
  %6276 = vmatprep.subr.mxu0 0.0
  %6277 = vmatpush1.msra.mxu0 0.0
  %6278 = vmatprep.subr.mxu0 0.0
  %6279 = vmatpush1.msra.mxu0 0.0
  %6280 = vmatprep.subr.mxu0 0.0
  %6281 = vmatpush1.msra.mxu0 0.0
  %6282 = vmatprep.subr.mxu0 0.0
  %6283 = vmatpush1.msra.mxu0 0.0
  %6284 = vmatprep.subr.mxu0 0.0
  %6285 = vmatpush1.msra.mxu0 0.0
  %6286 = vmatprep.subr.mxu0 0.0
  %6287 = vmatpush1.msra.mxu0 0.0
  %6288 = vmatprep.subr.mxu0 0.0
  %6289 = vmatpush1.msra.mxu0 0.0
  %6290 = vmatprep.subr.mxu0 0.0
  %6291 = vmatpush1.msra.mxu0 0.0
  %6292 = vmatprep.subr.mxu0 0.0
  %6293 = vmatpush1.msra.mxu0 0.0
  %6294 = vmatprep.subr.mxu0 0.0
  %6295 = vmatpush1.msra.mxu0 0.0
  %6296 = vmatprep.subr.mxu0 0.0
  %6297 = vmatpush1.msra.mxu0 0.0
  %6298 = vmatprep.subr.mxu0 0.0
  %6299 = vmatpush1.msra.mxu0 0.0
  %6300 = vmatprep.mubr.f32.mxu0 0.0
  %6301 = vmatmul.mubr.f32.gmra.mrb[0].mxu0 %v6232
  %v6302 = vpop.f32.mrb[0].mxu0
  %v6303 = vadd.f32 0.0, %v6302
  %v6304 = vpop.f32.mrb[0].mxu0
  %6305 = vmatprep.mubr.f32.mxu0 0.0
  %6306 = vmatmul.mubr.f32.gmra.mrb[0].mxu0 %v6234
  %v6307 = vpop.f32.mrb[0].mxu0
  %v6308 = vadd.f32 0.0, %v6307
  %v6309 = vpop.f32.mrb[0].mxu0
  %6310 = vdwg.mxu0
  %v6311 = vadd.f32 %v6217, %v6303
  %v6312 = vadd.f32 %v6222, %v6308
  %6313 = vst.msk [vmem:[%s250] sm:$0x1] %vm409, 0.0
  %6314 = vst.msk [vmem:[%s250 + $0x11] sm:$0x1] %vm409, 0.0
  %6315 = vst.msk [vmem:[%s250 + $0x1] sm:$0xff] %vm328, %v1019
  %6316 = vst.msk [vmem:[%s250 + $0x9] sm:$0xff] %vm328, %v1020
  %v6317 = vld [vmem:[%s250] sm:$0xff]
  %v6318 = vld [vmem:[%s250 + $0x8] sm:$0xff]
  %v6319 = vld [vmem:[%s250 + $0x10] sm:$0x3]
  %v6320 = vld [vmem:[%s63] sm:$0xff]
  %v6321 = vld [vmem:[%s63 + $0x8] sm:$0xff]
  %v6323 = vsel %vm328, %v6317, 0
  %v6326 = vsel %vm328, %v6318, 0
  %6328 = vmatprep.subr.mxu0 0.0
  %6329 = vmatpush1.msra.mxu0 %v6320
  %6330 = vmatprep.subr.mxu0 0.0
  %6331 = vmatpush1.msra.mxu0 %v6321
  %6332 = vmatprep.subr.mxu0 0.0
  %6333 = vmatpush1.msra.mxu0 0.0
  %6334 = vmatprep.subr.mxu0 0.0
  %6335 = vmatpush1.msra.mxu0 0.0
  %6336 = vmatprep.subr.mxu0 0.0
  %6337 = vmatpush1.msra.mxu0 0.0
  %6338 = vmatprep.subr.mxu0 0.0
  %6339 = vmatpush1.msra.mxu0 0.0
  %6340 = vmatprep.subr.mxu0 0.0
  %6341 = vmatpush1.msra.mxu0 0.0
  %6342 = vmatprep.subr.mxu0 0.0
  %6343 = vmatpush1.msra.mxu0 0.0
  %6344 = vmatprep.subr.mxu0 0.0
  %6345 = vmatpush1.msra.mxu0 0.0
  %6346 = vmatprep.subr.mxu0 0.0
  %6347 = vmatpush1.msra.mxu0 0.0
  %6348 = vmatprep.subr.mxu0 0.0
  %6349 = vmatpush1.msra.mxu0 0.0
  %6350 = vmatprep.subr.mxu0 0.0
  %6351 = vmatpush1.msra.mxu0 0.0
  %6352 = vmatprep.subr.mxu0 0.0
  %6353 = vmatpush1.msra.mxu0 0.0
  %6354 = vmatprep.subr.mxu0 0.0
  %6355 = vmatpush1.msra.mxu0 0.0
  %6356 = vmatprep.subr.mxu0 0.0
  %6357 = vmatpush1.msra.mxu0 0.0
  %6358 = vmatprep.subr.mxu0 0.0
  %6359 = vmatpush1.msra.mxu0 0.0
  %6360 = vmatprep.subr.mxu0 0.0
  %6361 = vmatpush1.msra.mxu0 0.0
  %6362 = vmatprep.subr.mxu0 0.0
  %6363 = vmatpush1.msra.mxu0 0.0
  %6364 = vmatprep.subr.mxu0 0.0
  %6365 = vmatpush1.msra.mxu0 0.0
  %6366 = vmatprep.subr.mxu0 0.0
  %6367 = vmatpush1.msra.mxu0 0.0
  %6368 = vmatprep.subr.mxu0 0.0
  %6369 = vmatpush1.msra.mxu0 0.0
  %6370 = vmatprep.subr.mxu0 0.0
  %6371 = vmatpush1.msra.mxu0 0.0
  %6372 = vmatprep.subr.mxu0 0.0
  %6373 = vmatpush1.msra.mxu0 0.0
  %6374 = vmatprep.subr.mxu0 0.0
  %6375 = vmatpush1.msra.mxu0 0.0
  %6376 = vmatprep.subr.mxu0 0.0
  %6377 = vmatpush1.msra.mxu0 0.0
  %6378 = vmatprep.subr.mxu0 0.0
  %6379 = vmatpush1.msra.mxu0 0.0
  %6380 = vmatprep.subr.mxu0 0.0
  %6381 = vmatpush1.msra.mxu0 0.0
  %6382 = vmatprep.subr.mxu0 0.0
  %6383 = vmatpush1.msra.mxu0 0.0
  %6384 = vmatprep.subr.mxu0 0.0
  %6385 = vmatpush1.msra.mxu0 0.0
  %6386 = vmatprep.subr.mxu0 0.0
  %6387 = vmatpush1.msra.mxu0 0.0
  %6388 = vmatprep.subr.mxu0 0.0
  %6389 = vmatpush1.msra.mxu0 0.0
  %6390 = vmatprep.subr.mxu0 0.0
  %6391 = vmatpush1.msra.mxu0 0.0
  %6392 = vmatprep.mubr.f32.mxu0 0.0
  %6393 = vmatmul.mubr.f32.gmra.mrb[0].mxu0 %v6323
  %v6394 = vpop.f32.mrb[0].mxu0
  %v6395 = vadd.f32 0.0, %v6394
  %v6396 = vpop.f32.mrb[0].mxu0
  %6397 = vmatprep.mubr.f32.mxu0 0.0
  %6398 = vmatmul.mubr.f32.gmra.mrb[0].mxu0 %v6326
  %v6399 = vpop.f32.mrb[0].mxu0
  %v6400 = vadd.f32 0.0, %v6399
  %v6401 = vpop.f32.mrb[0].mxu0
  %6402 = vdwg.mxu0
  %v6403 = vadd.f32 %v6311, %v6395
  %v6404 = vadd.f32 %v6312, %v6400
  %v6405 = vld [vmem:[%s5855] sm:$0xff]
  %v6406 = vld [vmem:[%s5855 + $0x8] sm:$0xff]
  %v6408 = vrot.slane %v6317, 1
  %v6409 = vrot.slane %v6318, 1
  %v6410 = vsel %vm213, %v6408, %v6409
  %v6411 = vrot.slane %v6319, 1
  %v6412 = vsel %vm213, %v6409, %v6411
  %v6413 = vsel %vm328, %v6410, 0
  %v6415 = vsel %vm328, %v6412, 0
  %6417 = vmatprep.subr.mxu0 0.0
  %6418 = vmatpush1.msra.mxu0 %v6405
  %6419 = vmatprep.subr.mxu0 0.0
  %6420 = vmatpush1.msra.mxu0 %v6406
  %6421 = vmatprep.subr.mxu0 0.0
  %6422 = vmatpush1.msra.mxu0 0.0
  %6423 = vmatprep.subr.mxu0 0.0
  %6424 = vmatpush1.msra.mxu0 0.0
  %6425 = vmatprep.subr.mxu0 0.0
  %6426 = vmatpush1.msra.mxu0 0.0
  %6427 = vmatprep.subr.mxu0 0.0
  %6428 = vmatpush1.msra.mxu0 0.0
  %6429 = vmatprep.subr.mxu0 0.0
  %6430 = vmatpush1.msra.mxu0 0.0
  %6431 = vmatprep.subr.mxu0 0.0
  %6432 = vmatpush1.msra.mxu0 0.0
  %6433 = vmatprep.subr.mxu0 0.0
  %6434 = vmatpush1.msra.mxu0 0.0
  %6435 = vmatprep.subr.mxu0 0.0
  %6436 = vmatpush1.msra.mxu0 0.0
  %6437 = vmatprep.subr.mxu0 0.0
  %6438 = vmatpush1.msra.mxu0 0.0
  %6439 = vmatprep.subr.mxu0 0.0
  %6440 = vmatpush1.msra.mxu0 0.0
  %6441 = vmatprep.subr.mxu0 0.0
  %6442 = vmatpush1.msra.mxu0 0.0
  %6443 = vmatprep.subr.mxu0 0.0
  %6444 = vmatpush1.msra.mxu0 0.0
  %6445 = vmatprep.subr.mxu0 0.0
  %6446 = vmatpush1.msra.mxu0 0.0
  %6447 = vmatprep.subr.mxu0 0.0
  %6448 = vmatpush1.msra.mxu0 0.0
  %6449 = vmatprep.subr.mxu0 0.0
  %6450 = vmatpush1.msra.mxu0 0.0
  %6451 = vmatprep.subr.mxu0 0.0
  %6452 = vmatpush1.msra.mxu0 0.0
  %6453 = vmatprep.subr.mxu0 0.0
  %6454 = vmatpush1.msra.mxu0 0.0
  %6455 = vmatprep.subr.mxu0 0.0
  %6456 = vmatpush1.msra.mxu0 0.0
  %6457 = vmatprep.subr.mxu0 0.0
  %6458 = vmatpush1.msra.mxu0 0.0
  %6459 = vmatprep.subr.mxu0 0.0
  %6460 = vmatpush1.msra.mxu0 0.0
  %6461 = vmatprep.subr.mxu0 0.0
  %6462 = vmatpush1.msra.mxu0 0.0
  %6463 = vmatprep.subr.mxu0 0.0
  %6464 = vmatpush1.msra.mxu0 0.0
  %6465 = vmatprep.subr.mxu0 0.0
  %6466 = vmatpush1.msra.mxu0 0.0
  %6467 = vmatprep.subr.mxu0 0.0
  %6468 = vmatpush1.msra.mxu0 0.0
  %6469 = vmatprep.subr.mxu0 0.0
  %6470 = vmatpush1.msra.mxu0 0.0
  %6471 = vmatprep.subr.mxu0 0.0
  %6472 = vmatpush1.msra.mxu0 0.0
  %6473 = vmatprep.subr.mxu0 0.0
  %6474 = vmatpush1.msra.mxu0 0.0
  %6475 = vmatprep.subr.mxu0 0.0
  %6476 = vmatpush1.msra.mxu0 0.0
  %6477 = vmatprep.subr.mxu0 0.0
  %6478 = vmatpush1.msra.mxu0 0.0
  %6479 = vmatprep.subr.mxu0 0.0
  %6480 = vmatpush1.msra.mxu0 0.0
  %6481 = vmatprep.mubr.f32.mxu0 0.0
  %6482 = vmatmul.mubr.f32.gmra.mrb[0].mxu0 %v6413
  %v6483 = vpop.f32.mrb[0].mxu0
  %v6484 = vadd.f32 0.0, %v6483
  %v6485 = vpop.f32.mrb[0].mxu0
  %6486 = vmatprep.mubr.f32.mxu0 0.0
  %6487 = vmatmul.mubr.f32.gmra.mrb[0].mxu0 %v6415
  %v6488 = vpop.f32.mrb[0].mxu0
  %v6489 = vadd.f32 0.0, %v6488
  %v6490 = vpop.f32.mrb[0].mxu0
  %6491 = vdwg.mxu0
  %v6492 = vadd.f32 %v6403, %v6484
  %v6493 = vadd.f32 %v6404, %v6489
  %v6494 = vld [vmem:[%s5945] sm:$0xff]
  %v6495 = vld [vmem:[%s5945 + $0x8] sm:$0xff]
  %v6496 = vrot.slane %v6317, 2
  %v6497 = vrot.slane %v6318, 2
  %v6498 = vsel %vm237, %v6496, %v6497
  %v6499 = vrot.slane %v6319, 2
  %v6500 = vsel %vm237, %v6497, %v6499
  %v6501 = vsel %vm328, %v6498, 0
  %v6503 = vsel %vm328, %v6500, 0
  %6505 = vmatprep.subr.mxu0 0.0
  %6506 = vmatpush1.msra.mxu0 %v6494
  %6507 = vmatprep.subr.mxu0 0.0
  %6508 = vmatpush1.msra.mxu0 %v6495
  %6509 = vmatprep.subr.mxu0 0.0
  %6510 = vmatpush1.msra.mxu0 0.0
  %6511 = vmatprep.subr.mxu0 0.0
  %6512 = vmatpush1.msra.mxu0 0.0
  %6513 = vmatprep.subr.mxu0 0.0
  %6514 = vmatpush1.msra.mxu0 0.0
  %6515 = vmatprep.subr.mxu0 0.0
  %6516 = vmatpush1.msra.mxu0 0.0
  %6517 = vmatprep.subr.mxu0 0.0
  %6518 = vmatpush1.msra.mxu0 0.0
  %6519 = vmatprep.subr.mxu0 0.0
  %6520 = vmatpush1.msra.mxu0 0.0
  %6521 = vmatprep.subr.mxu0 0.0
  %6522 = vmatpush1.msra.mxu0 0.0
  %6523 = vmatprep.subr.mxu0 0.0
  %6524 = vmatpush1.msra.mxu0 0.0
  %6525 = vmatprep.subr.mxu0 0.0
  %6526 = vmatpush1.msra.mxu0 0.0
  %6527 = vmatprep.subr.mxu0 0.0
  %6528 = vmatpush1.msra.mxu0 0.0
  %6529 = vmatprep.subr.mxu0 0.0
  %6530 = vmatpush1.msra.mxu0 0.0
  %6531 = vmatprep.subr.mxu0 0.0
  %6532 = vmatpush1.msra.mxu0 0.0
  %6533 = vmatprep.subr.mxu0 0.0
  %6534 = vmatpush1.msra.mxu0 0.0
  %6535 = vmatprep.subr.mxu0 0.0
  %6536 = vmatpush1.msra.mxu0 0.0
  %6537 = vmatprep.subr.mxu0 0.0
  %6538 = vmatpush1.msra.mxu0 0.0
  %6539 = vmatprep.subr.mxu0 0.0
  %6540 = vmatpush1.msra.mxu0 0.0
  %6541 = vmatprep.subr.mxu0 0.0
  %6542 = vmatpush1.msra.mxu0 0.0
  %6543 = vmatprep.subr.mxu0 0.0
  %6544 = vmatpush1.msra.mxu0 0.0
  %6545 = vmatprep.subr.mxu0 0.0
  %6546 = vmatpush1.msra.mxu0 0.0
  %6547 = vmatprep.subr.mxu0 0.0
  %6548 = vmatpush1.msra.mxu0 0.0
  %6549 = vmatprep.subr.mxu0 0.0
  %6550 = vmatpush1.msra.mxu0 0.0
  %6551 = vmatprep.subr.mxu0 0.0
  %6552 = vmatpush1.msra.mxu0 0.0
  %6553 = vmatprep.subr.mxu0 0.0
  %6554 = vmatpush1.msra.mxu0 0.0
  %6555 = vmatprep.subr.mxu0 0.0
  %6556 = vmatpush1.msra.mxu0 0.0
  %6557 = vmatprep.subr.mxu0 0.0
  %6558 = vmatpush1.msra.mxu0 0.0
  %6559 = vmatprep.subr.mxu0 0.0
  %6560 = vmatpush1.msra.mxu0 0.0
  %6561 = vmatprep.subr.mxu0 0.0
  %6562 = vmatpush1.msra.mxu0 0.0
  %6563 = vmatprep.subr.mxu0 0.0
  %6564 = vmatpush1.msra.mxu0 0.0
  %6565 = vmatprep.subr.mxu0 0.0
  %6566 = vmatpush1.msra.mxu0 0.0
  %6567 = vmatprep.subr.mxu0 0.0
  %6568 = vmatpush1.msra.mxu0 0.0
  %6569 = vmatprep.mubr.f32.mxu0 0.0
  %6570 = vmatmul.mubr.f32.gmra.mrb[0].mxu0 %v6501
  %v6571 = vpop.f32.mrb[0].mxu0
  %v6572 = vadd.f32 0.0, %v6571
  %v6573 = vpop.f32.mrb[0].mxu0
  %6574 = vmatprep.mubr.f32.mxu0 0.0
  %6575 = vmatmul.mubr.f32.gmra.mrb[0].mxu0 %v6503
  %v6576 = vpop.f32.mrb[0].mxu0
  %v6577 = vadd.f32 0.0, %v6576
  %v6578 = vpop.f32.mrb[0].mxu0
  %6579 = vdwg.mxu0
  %v6580 = vadd.f32 %v6492, %v6572
  %v6581 = vadd.f32 %v6493, %v6577
  %v6582 = vsel %vm328, %v6032, 0.0
  %v6583 = vsel %vm328, %v6033, 0.0
  %v6584 = vadd.f32 %v6582, %v6583
  %v6585 = vrot.slane %v6584, 4
  %v6586 = vadd.f32 %v6584, %v6585
  %v6587 = vrot.slane %v6586, 2
  %v6588 = vadd.f32 %v6586, %v6587
  %v6589 = vrot.slane %v6588, 1
  %v6590 = vadd.f32 %v6588, %v6589
  %v6591 = vadd.f32 %v6590, 0.0
  %v6592 = vsel %vm328, %v6580, 0.0
  %v6593 = vsel %vm328, %v6581, 0.0
  %v6594 = vadd.f32 %v6592, %v6593
  %v6595 = vrot.slane %v6594, 4
  %v6596 = vadd.f32 %v6594, %v6595
  %v6597 = vrot.slane %v6596, 2
  %v6598 = vadd.f32 %v6596, %v6597
  %v6599 = vrot.slane %v6598, 1
  %v6600 = vadd.f32 %v6598, %v6599
  %v6601 = vadd.f32 %v6591, %v6600
  %v6602 = vmul.f32 %v6032, %v6032
  %v6603 = vmul.f32 %v6033, %v6033
  %v6604 = vsel %vm328, %v6602, 0.0
  %v6605 = vsel %vm328, %v6603, 0.0
  %v6606 = vadd.f32 %v6604, %v6605
  %v6607 = vrot.slane %v6606, 4
  %v6608 = vadd.f32 %v6606, %v6607
  %v6609 = vrot.slane %v6608, 2
  %v6610 = vadd.f32 %v6608, %v6609
  %v6611 = vrot.slane %v6610, 1
  %v6612 = vadd.f32 %v6610, %v6611
  %v6613 = vadd.f32 %v6612, 0.0
  %v6614 = vmul.f32 %v6580, %v6580
  %v6615 = vmul.f32 %v6581, %v6581
  %v6616 = vsel %vm328, %v6614, 0.0
  %v6617 = vsel %vm328, %v6615, 0.0
  %v6618 = vadd.f32 %v6616, %v6617
  %v6619 = vrot.slane %v6618, 4
  %v6620 = vadd.f32 %v6618, %v6619
  %v6621 = vrot.slane %v6620, 2
  %v6622 = vadd.f32 %v6620, %v6621
  %v6623 = vrot.slane %v6622, 1
  %v6624 = vadd.f32 %v6622, %v6623
  %v6625 = vadd.f32 %v6613, %v6624
  %v6626 = vmul.f32 %v6601, %v373
  %v6627 = vmul.f32 %v6625, %v373
  %v6628 = vmul.f32 %v6626, %v6626
  %v6629 = vsub.f32 %v6627, %v6628
  %v6630 = vld [vmem:[%s65] sm:$0x1]
  %v6631 = vadd.f32 %v6629, 1e-05
  %v6632 = vrsqrt.pop %v6631
  %v6633 = vmul.f32 %v6630, %v6632
  %v6634 = vld [vmem:[%s67] sm:$0x1]
  %v6635 = vmul.f32 %v6626, %v6633
  %v6636 = vsub.f32 %v6634, %v6635
  %v6638 = vlaneseq
  %v6639 = vshrl.u32 %v6638, 7
  %v6640 = vsub.s32 0, %v6639
  %v6641 = vrot.slane %v6633, %v6640
  %v6643 = vmul.f32 %v6032, %v6641
  %v6644 = vmul.f32 %v6033, %v6641
  %v6646 = vlaneseq
  %v6647 = vshrl.u32 %v6646, 7
  %v6648 = vsub.s32 0, %v6647
  %v6649 = vrot.slane %v6636, %v6648
  %v6651 = vadd.f32 %v6643, %v6649
  %v6652 = vadd.f32 %v6644, %v6649
  %v6653 = vtanh.pop %v6651
  %v6654 = vtanh.pop %v6652
  %v6655 = vmul.f32 %v6580, %v6641
  %v6656 = vmul.f32 %v6581, %v6641
  %v6657 = vadd.f32 %v6655, %v6649
  %v6658 = vadd.f32 %v6656, %v6649
  %v6659 = vtanh.pop %v6657
  %v6660 = vtanh.pop %v6658
  %6661 = vst.msk [vmem:[#allocation2] sm:$0x1] %vm409, 0.0
  %6662 = vst.msk [vmem:[#allocation2 + $0x11] sm:$0x1] %vm409, 0.0
  %6663 = vst.msk [vmem:[#allocation2 + $0x1] sm:$0xff] %vm328, %v6653
  %6664 = vst.msk [vmem:[#allocation2 + $0x9] sm:$0xff] %vm328, %v6654
  %v6665 = vld [vmem:[#allocation2] sm:$0xff]
  %v6666 = vld [vmem:[#allocation2 + $0x8] sm:$0xff]
  %v6667 = vld [vmem:[#allocation2 + $0x10] sm:$0x3]
  %v6668 = vld [vmem:[%s69] sm:$0xff]
  %v6669 = vld [vmem:[%s69 + $0x8] sm:$0xff]
  %s6670 = scalar_lea.vmem %s69, 16
  %v6671 = vld [vmem:[%s6670] sm:$0xff]
  %v6672 = vld [vmem:[%s6670 + $0x8] sm:$0xff]
  %v6676 = vrot.slane %v6665, 1
  %v6677 = vrot.slane %v6666, 1
  %v6678 = vsel %vm213, %v6676, %v6677
  %v6679 = vrot.slane %v6667, 1
  %v6680 = vsel %vm213, %v6677, %v6679
  %v6681 = vsel %vm328, %v6678, 0
  %v6683 = vsel %vm328, %v6680, 0
  %6685 = vmatprep.subr.mxu0 0.0
  %6686 = vmatpush1.msra.mxu0 %v6671
  %6687 = vmatprep.subr.mxu0 0.0
  %6688 = vmatpush1.msra.mxu0 %v6672
  %6689 = vmatprep.subr.mxu0 0.0
  %6690 = vmatpush1.msra.mxu0 0.0
  %6691 = vmatprep.subr.mxu0 0.0
  %6692 = vmatpush1.msra.mxu0 0.0
  %6693 = vmatprep.subr.mxu0 0.0
  %6694 = vmatpush1.msra.mxu0 0.0
  %6695 = vmatprep.subr.mxu0 0.0
  %6696 = vmatpush1.msra.mxu0 0.0
  %6697 = vmatprep.subr.mxu0 0.0
  %6698 = vmatpush1.msra.mxu0 0.0
  %6699 = vmatprep.subr.mxu0 0.0
  %6700 = vmatpush1.msra.mxu0 0.0
  %6701 = vmatprep.subr.mxu0 0.0
  %6702 = vmatpush1.msra.mxu0 0.0
  %6703 = vmatprep.subr.mxu0 0.0
  %6704 = vmatpush1.msra.mxu0 0.0
  %6705 = vmatprep.subr.mxu0 0.0
  %6706 = vmatpush1.msra.mxu0 0.0
  %6707 = vmatprep.subr.mxu0 0.0
  %6708 = vmatpush1.msra.mxu0 0.0
  %6709 = vmatprep.subr.mxu0 0.0
  %6710 = vmatpush1.msra.mxu0 0.0
  %6711 = vmatprep.subr.mxu0 0.0
  %6712 = vmatpush1.msra.mxu0 0.0
  %6713 = vmatprep.subr.mxu0 0.0
  %6714 = vmatpush1.msra.mxu0 0.0
  %6715 = vmatprep.subr.mxu0 0.0
  %6716 = vmatpush1.msra.mxu0 0.0
  %6717 = vmatprep.subr.mxu0 0.0
  %6718 = vmatpush1.msra.mxu0 0.0
  %6719 = vmatprep.subr.mxu0 0.0
  %6720 = vmatpush1.msra.mxu0 0.0
  %6721 = vmatprep.subr.mxu0 0.0
  %6722 = vmatpush1.msra.mxu0 0.0
  %6723 = vmatprep.subr.mxu0 0.0
  %6724 = vmatpush1.msra.mxu0 0.0
  %6725 = vmatprep.subr.mxu0 0.0
  %6726 = vmatpush1.msra.mxu0 0.0
  %6727 = vmatprep.subr.mxu0 0.0
  %6728 = vmatpush1.msra.mxu0 0.0
  %6729 = vmatprep.subr.mxu0 0.0
  %6730 = vmatpush1.msra.mxu0 0.0
  %6731 = vmatprep.subr.mxu0 0.0
  %6732 = vmatpush1.msra.mxu0 0.0
  %6733 = vmatprep.subr.mxu0 0.0
  %6734 = vmatpush1.msra.mxu0 0.0
  %6735 = vmatprep.subr.mxu0 0.0
  %6736 = vmatpush1.msra.mxu0 0.0
  %6737 = vmatprep.subr.mxu0 0.0
  %6738 = vmatpush1.msra.mxu0 0.0
  %6739 = vmatprep.subr.mxu0 0.0
  %6740 = vmatpush1.msra.mxu0 0.0
  %6741 = vmatprep.subr.mxu0 0.0
  %6742 = vmatpush1.msra.mxu0 0.0
  %6743 = vmatprep.subr.mxu0 0.0
  %6744 = vmatpush1.msra.mxu0 0.0
  %6745 = vmatprep.subr.mxu0 0.0
  %6746 = vmatpush1.msra.mxu0 0.0
  %6747 = vmatprep.subr.mxu0 0.0
  %6748 = vmatpush1.msra.mxu0 0.0
  %6749 = vmatprep.mubr.f32.mxu0 0.0
  %6750 = vmatmul.mubr.f32.gmra.mrb[0].mxu0 %v6681
  %v6751 = vpop.f32.mrb[0].mxu0
  %v6752 = vadd.f32 0.0, %v6751
  %v6753 = vpop.f32.mrb[0].mxu0
  %6754 = vmatprep.mubr.f32.mxu0 0.0
  %6755 = vmatmul.mubr.f32.gmra.mrb[0].mxu0 %v6683
  %v6756 = vpop.f32.mrb[0].mxu0
  %v6757 = vadd.f32 0.0, %v6756
  %v6758 = vpop.f32.mrb[0].mxu0
  %6759 = vdwg.mxu0
  %v6760 = vsel %vm328, %v6665, 0
  %v6762 = vsel %vm328, %v6666, 0
  %6764 = vmatprep.subr.mxu0 0.0
  %6765 = vmatpush1.msra.mxu0 %v6668
  %6766 = vmatprep.subr.mxu0 0.0
  %6767 = vmatpush1.msra.mxu0 %v6669
  %6768 = vmatprep.subr.mxu0 0.0
  %6769 = vmatpush1.msra.mxu0 0.0
  %6770 = vmatprep.subr.mxu0 0.0
  %6771 = vmatpush1.msra.mxu0 0.0
  %6772 = vmatprep.subr.mxu0 0.0
  %6773 = vmatpush1.msra.mxu0 0.0
  %6774 = vmatprep.subr.mxu0 0.0
  %6775 = vmatpush1.msra.mxu0 0.0
  %6776 = vmatprep.subr.mxu0 0.0
  %6777 = vmatpush1.msra.mxu0 0.0
  %6778 = vmatprep.subr.mxu0 0.0
  %6779 = vmatpush1.msra.mxu0 0.0
  %6780 = vmatprep.subr.mxu0 0.0
  %6781 = vmatpush1.msra.mxu0 0.0
  %6782 = vmatprep.subr.mxu0 0.0
  %6783 = vmatpush1.msra.mxu0 0.0
  %6784 = vmatprep.subr.mxu0 0.0
  %6785 = vmatpush1.msra.mxu0 0.0
  %6786 = vmatprep.subr.mxu0 0.0
  %6787 = vmatpush1.msra.mxu0 0.0
  %6788 = vmatprep.subr.mxu0 0.0
  %6789 = vmatpush1.msra.mxu0 0.0
  %6790 = vmatprep.subr.mxu0 0.0
  %6791 = vmatpush1.msra.mxu0 0.0
  %6792 = vmatprep.subr.mxu0 0.0
  %6793 = vmatpush1.msra.mxu0 0.0
  %6794 = vmatprep.subr.mxu0 0.0
  %6795 = vmatpush1.msra.mxu0 0.0
  %6796 = vmatprep.subr.mxu0 0.0
  %6797 = vmatpush1.msra.mxu0 0.0
  %6798 = vmatprep.subr.mxu0 0.0
  %6799 = vmatpush1.msra.mxu0 0.0
  %6800 = vmatprep.subr.mxu0 0.0
  %6801 = vmatpush1.msra.mxu0 0.0
  %6802 = vmatprep.subr.mxu0 0.0
  %6803 = vmatpush1.msra.mxu0 0.0
  %6804 = vmatprep.subr.mxu0 0.0
  %6805 = vmatpush1.msra.mxu0 0.0
  %6806 = vmatprep.subr.mxu0 0.0
  %6807 = vmatpush1.msra.mxu0 0.0
  %6808 = vmatprep.subr.mxu0 0.0
  %6809 = vmatpush1.msra.mxu0 0.0
  %6810 = vmatprep.subr.mxu0 0.0
  %6811 = vmatpush1.msra.mxu0 0.0
  %6812 = vmatprep.subr.mxu0 0.0
  %6813 = vmatpush1.msra.mxu0 0.0
  %6814 = vmatprep.subr.mxu0 0.0
  %6815 = vmatpush1.msra.mxu0 0.0
  %6816 = vmatprep.subr.mxu0 0.0
  %6817 = vmatpush1.msra.mxu0 0.0
  %6818 = vmatprep.subr.mxu0 0.0
  %6819 = vmatpush1.msra.mxu0 0.0
  %6820 = vmatprep.subr.mxu0 0.0
  %6821 = vmatpush1.msra.mxu0 0.0
  %6822 = vmatprep.subr.mxu0 0.0
  %6823 = vmatpush1.msra.mxu0 0.0
  %6824 = vmatprep.subr.mxu0 0.0
  %6825 = vmatpush1.msra.mxu0 0.0
  %6826 = vmatprep.subr.mxu0 0.0
  %6827 = vmatpush1.msra.mxu0 0.0
  %6828 = vmatprep.mubr.f32.mxu0 0.0
  %6829 = vmatmul.mubr.f32.gmra.mrb[0].mxu0 %v6760
  %v6830 = vpop.f32.mrb[0].mxu0
  %v6831 = vadd.f32 %v6752, %v6830
  %v6832 = vpop.f32.mrb[0].mxu0
  %6833 = vmatprep.mubr.f32.mxu0 0.0
  %6834 = vmatmul.mubr.f32.gmra.mrb[0].mxu0 %v6762
  %v6835 = vpop.f32.mrb[0].mxu0
  %v6836 = vadd.f32 %v6757, %v6835
  %v6837 = vpop.f32.mrb[0].mxu0
  %6838 = vdwg.mxu0
  %s6839 = scalar_lea.vmem %s69, 32
  %v6840 = vld [vmem:[%s6839] sm:$0xff]
  %v6841 = vld [vmem:[%s6839 + $0x8] sm:$0xff]
  %v6842 = vrot.slane %v6665, 2
  %v6843 = vrot.slane %v6666, 2
  %v6844 = vsel %vm237, %v6842, %v6843
  %v6845 = vrot.slane %v6667, 2
  %v6846 = vsel %vm237, %v6843, %v6845
  %v6847 = vsel %vm328, %v6844, 0
  %v6849 = vsel %vm328, %v6846, 0
  %6851 = vmatprep.subr.mxu0 0.0
  %6852 = vmatpush1.msra.mxu0 %v6840
  %6853 = vmatprep.subr.mxu0 0.0
  %6854 = vmatpush1.msra.mxu0 %v6841
  %6855 = vmatprep.subr.mxu0 0.0
  %6856 = vmatpush1.msra.mxu0 0.0
  %6857 = vmatprep.subr.mxu0 0.0
  %6858 = vmatpush1.msra.mxu0 0.0
  %6859 = vmatprep.subr.mxu0 0.0
  %6860 = vmatpush1.msra.mxu0 0.0
  %6861 = vmatprep.subr.mxu0 0.0
  %6862 = vmatpush1.msra.mxu0 0.0
  %6863 = vmatprep.subr.mxu0 0.0
  %6864 = vmatpush1.msra.mxu0 0.0
  %6865 = vmatprep.subr.mxu0 0.0
  %6866 = vmatpush1.msra.mxu0 0.0
  %6867 = vmatprep.subr.mxu0 0.0
  %6868 = vmatpush1.msra.mxu0 0.0
  %6869 = vmatprep.subr.mxu0 0.0
  %6870 = vmatpush1.msra.mxu0 0.0
  %6871 = vmatprep.subr.mxu0 0.0
  %6872 = vmatpush1.msra.mxu0 0.0
  %6873 = vmatprep.subr.mxu0 0.0
  %6874 = vmatpush1.msra.mxu0 0.0
  %6875 = vmatprep.subr.mxu0 0.0
  %6876 = vmatpush1.msra.mxu0 0.0
  %6877 = vmatprep.subr.mxu0 0.0
  %6878 = vmatpush1.msra.mxu0 0.0
  %6879 = vmatprep.subr.mxu0 0.0
  %6880 = vmatpush1.msra.mxu0 0.0
  %6881 = vmatprep.subr.mxu0 0.0
  %6882 = vmatpush1.msra.mxu0 0.0
  %6883 = vmatprep.subr.mxu0 0.0
  %6884 = vmatpush1.msra.mxu0 0.0
  %6885 = vmatprep.subr.mxu0 0.0
  %6886 = vmatpush1.msra.mxu0 0.0
  %6887 = vmatprep.subr.mxu0 0.0
  %6888 = vmatpush1.msra.mxu0 0.0
  %6889 = vmatprep.subr.mxu0 0.0
  %6890 = vmatpush1.msra.mxu0 0.0
  %6891 = vmatprep.subr.mxu0 0.0
  %6892 = vmatpush1.msra.mxu0 0.0
  %6893 = vmatprep.subr.mxu0 0.0
  %6894 = vmatpush1.msra.mxu0 0.0
  %6895 = vmatprep.subr.mxu0 0.0
  %6896 = vmatpush1.msra.mxu0 0.0
  %6897 = vmatprep.subr.mxu0 0.0
  %6898 = vmatpush1.msra.mxu0 0.0
  %6899 = vmatprep.subr.mxu0 0.0
  %6900 = vmatpush1.msra.mxu0 0.0
  %6901 = vmatprep.subr.mxu0 0.0
  %6902 = vmatpush1.msra.mxu0 0.0
  %6903 = vmatprep.subr.mxu0 0.0
  %6904 = vmatpush1.msra.mxu0 0.0
  %6905 = vmatprep.subr.mxu0 0.0
  %6906 = vmatpush1.msra.mxu0 0.0
  %6907 = vmatprep.subr.mxu0 0.0
  %6908 = vmatpush1.msra.mxu0 0.0
  %6909 = vmatprep.subr.mxu0 0.0
  %6910 = vmatpush1.msra.mxu0 0.0
  %6911 = vmatprep.subr.mxu0 0.0
  %6912 = vmatpush1.msra.mxu0 0.0
  %6913 = vmatprep.subr.mxu0 0.0
  %6914 = vmatpush1.msra.mxu0 0.0
  %6915 = vmatprep.mubr.f32.mxu0 0.0
  %6916 = vmatmul.mubr.f32.gmra.mrb[0].mxu0 %v6847
  %v6917 = vpop.f32.mrb[0].mxu0
  %v6918 = vadd.f32 0.0, %v6917
  %v6919 = vpop.f32.mrb[0].mxu0
  %6920 = vmatprep.mubr.f32.mxu0 0.0
  %6921 = vmatmul.mubr.f32.gmra.mrb[0].mxu0 %v6849
  %v6922 = vpop.f32.mrb[0].mxu0
  %v6923 = vadd.f32 0.0, %v6922
  %v6924 = vpop.f32.mrb[0].mxu0
  %6925 = vdwg.mxu0
  %v6926 = vadd.f32 %v6831, %v6918
  %v6927 = vadd.f32 %v6836, %v6923
  %6928 = vst.msk [vmem:[%s250] sm:$0x1] %vm409, 0.0
  %6929 = vst.msk [vmem:[%s250 + $0x11] sm:$0x1] %vm409, 0.0
  %6930 = vst.msk [vmem:[%s250 + $0x1] sm:$0xff] %vm328, %v6659
  %6931 = vst.msk [vmem:[%s250 + $0x9] sm:$0xff] %vm328, %v6660
  %v6932 = vld [vmem:[%s250] sm:$0xff]
  %v6933 = vld [vmem:[%s250 + $0x8] sm:$0xff]
  %v6934 = vld [vmem:[%s250 + $0x10] sm:$0x3]
  %v6935 = vld [vmem:[%s69] sm:$0xff]
  %v6936 = vld [vmem:[%s69 + $0x8] sm:$0xff]
  %v6937 = vld [vmem:[%s6670] sm:$0xff]
  %v6938 = vld [vmem:[%s6670 + $0x8] sm:$0xff]
  %v6942 = vrot.slane %v6932, 1
  %v6943 = vrot.slane %v6933, 1
  %v6944 = vsel %vm213, %v6942, %v6943
  %v6945 = vrot.slane %v6934, 1
  %v6946 = vsel %vm213, %v6943, %v6945
  %v6947 = vsel %vm328, %v6944, 0
  %v6949 = vsel %vm328, %v6946, 0
  %6951 = vmatprep.subr.mxu0 0.0
  %6952 = vmatpush1.msra.mxu0 %v6937
  %6953 = vmatprep.subr.mxu0 0.0
  %6954 = vmatpush1.msra.mxu0 %v6938
  %6955 = vmatprep.subr.mxu0 0.0
  %6956 = vmatpush1.msra.mxu0 0.0
  %6957 = vmatprep.subr.mxu0 0.0
  %6958 = vmatpush1.msra.mxu0 0.0
  %6959 = vmatprep.subr.mxu0 0.0
  %6960 = vmatpush1.msra.mxu0 0.0
  %6961 = vmatprep.subr.mxu0 0.0
  %6962 = vmatpush1.msra.mxu0 0.0
  %6963 = vmatprep.subr.mxu0 0.0
  %6964 = vmatpush1.msra.mxu0 0.0
  %6965 = vmatprep.subr.mxu0 0.0
  %6966 = vmatpush1.msra.mxu0 0.0
  %6967 = vmatprep.subr.mxu0 0.0
  %6968 = vmatpush1.msra.mxu0 0.0
  %6969 = vmatprep.subr.mxu0 0.0
  %6970 = vmatpush1.msra.mxu0 0.0
  %6971 = vmatprep.subr.mxu0 0.0
  %6972 = vmatpush1.msra.mxu0 0.0
  %6973 = vmatprep.subr.mxu0 0.0
  %6974 = vmatpush1.msra.mxu0 0.0
  %6975 = vmatprep.subr.mxu0 0.0
  %6976 = vmatpush1.msra.mxu0 0.0
  %6977 = vmatprep.subr.mxu0 0.0
  %6978 = vmatpush1.msra.mxu0 0.0
  %6979 = vmatprep.subr.mxu0 0.0
  %6980 = vmatpush1.msra.mxu0 0.0
  %6981 = vmatprep.subr.mxu0 0.0
  %6982 = vmatpush1.msra.mxu0 0.0
  %6983 = vmatprep.subr.mxu0 0.0
  %6984 = vmatpush1.msra.mxu0 0.0
  %6985 = vmatprep.subr.mxu0 0.0
  %6986 = vmatpush1.msra.mxu0 0.0
  %6987 = vmatprep.subr.mxu0 0.0
  %6988 = vmatpush1.msra.mxu0 0.0
  %6989 = vmatprep.subr.mxu0 0.0
  %6990 = vmatpush1.msra.mxu0 0.0
  %6991 = vmatprep.subr.mxu0 0.0
  %6992 = vmatpush1.msra.mxu0 0.0
  %6993 = vmatprep.subr.mxu0 0.0
  %6994 = vmatpush1.msra.mxu0 0.0
  %6995 = vmatprep.subr.mxu0 0.0
  %6996 = vmatpush1.msra.mxu0 0.0
  %6997 = vmatprep.subr.mxu0 0.0
  %6998 = vmatpush1.msra.mxu0 0.0
  %6999 = vmatprep.subr.mxu0 0.0
  %7000 = vmatpush1.msra.mxu0 0.0
  %7001 = vmatprep.subr.mxu0 0.0
  %7002 = vmatpush1.msra.mxu0 0.0
  %7003 = vmatprep.subr.mxu0 0.0
  %7004 = vmatpush1.msra.mxu0 0.0
  %7005 = vmatprep.subr.mxu0 0.0
  %7006 = vmatpush1.msra.mxu0 0.0
  %7007 = vmatprep.subr.mxu0 0.0
  %7008 = vmatpush1.msra.mxu0 0.0
  %7009 = vmatprep.subr.mxu0 0.0
  %7010 = vmatpush1.msra.mxu0 0.0
  %7011 = vmatprep.subr.mxu0 0.0
  %7012 = vmatpush1.msra.mxu0 0.0
  %7013 = vmatprep.subr.mxu0 0.0
  %7014 = vmatpush1.msra.mxu0 0.0
  %7015 = vmatprep.mubr.f32.mxu0 0.0
  %7016 = vmatmul.mubr.f32.gmra.mrb[0].mxu0 %v6947
  %v7017 = vpop.f32.mrb[0].mxu0
  %v7018 = vadd.f32 0.0, %v7017
  %v7019 = vpop.f32.mrb[0].mxu0
  %7020 = vmatprep.mubr.f32.mxu0 0.0
  %7021 = vmatmul.mubr.f32.gmra.mrb[0].mxu0 %v6949
  %v7022 = vpop.f32.mrb[0].mxu0
  %v7023 = vadd.f32 0.0, %v7022
  %v7024 = vpop.f32.mrb[0].mxu0
  %7025 = vdwg.mxu0
  %v7026 = vsel %vm328, %v6932, 0
  %v7028 = vsel %vm328, %v6933, 0
  %7030 = vmatprep.subr.mxu0 0.0
  %7031 = vmatpush1.msra.mxu0 %v6935
  %7032 = vmatprep.subr.mxu0 0.0
  %7033 = vmatpush1.msra.mxu0 %v6936
  %7034 = vmatprep.subr.mxu0 0.0
  %7035 = vmatpush1.msra.mxu0 0.0
  %7036 = vmatprep.subr.mxu0 0.0
  %7037 = vmatpush1.msra.mxu0 0.0
  %7038 = vmatprep.subr.mxu0 0.0
  %7039 = vmatpush1.msra.mxu0 0.0
  %7040 = vmatprep.subr.mxu0 0.0
  %7041 = vmatpush1.msra.mxu0 0.0
  %7042 = vmatprep.subr.mxu0 0.0
  %7043 = vmatpush1.msra.mxu0 0.0
  %7044 = vmatprep.subr.mxu0 0.0
  %7045 = vmatpush1.msra.mxu0 0.0
  %7046 = vmatprep.subr.mxu0 0.0
  %7047 = vmatpush1.msra.mxu0 0.0
  %7048 = vmatprep.subr.mxu0 0.0
  %7049 = vmatpush1.msra.mxu0 0.0
  %7050 = vmatprep.subr.mxu0 0.0
  %7051 = vmatpush1.msra.mxu0 0.0
  %7052 = vmatprep.subr.mxu0 0.0
  %7053 = vmatpush1.msra.mxu0 0.0
  %7054 = vmatprep.subr.mxu0 0.0
  %7055 = vmatpush1.msra.mxu0 0.0
  %7056 = vmatprep.subr.mxu0 0.0
  %7057 = vmatpush1.msra.mxu0 0.0
  %7058 = vmatprep.subr.mxu0 0.0
  %7059 = vmatpush1.msra.mxu0 0.0
  %7060 = vmatprep.subr.mxu0 0.0
  %7061 = vmatpush1.msra.mxu0 0.0
  %7062 = vmatprep.subr.mxu0 0.0
  %7063 = vmatpush1.msra.mxu0 0.0
  %7064 = vmatprep.subr.mxu0 0.0
  %7065 = vmatpush1.msra.mxu0 0.0
  %7066 = vmatprep.subr.mxu0 0.0
  %7067 = vmatpush1.msra.mxu0 0.0
  %7068 = vmatprep.subr.mxu0 0.0
  %7069 = vmatpush1.msra.mxu0 0.0
  %7070 = vmatprep.subr.mxu0 0.0
  %7071 = vmatpush1.msra.mxu0 0.0
  %7072 = vmatprep.subr.mxu0 0.0
  %7073 = vmatpush1.msra.mxu0 0.0
  %7074 = vmatprep.subr.mxu0 0.0
  %7075 = vmatpush1.msra.mxu0 0.0
  %7076 = vmatprep.subr.mxu0 0.0
  %7077 = vmatpush1.msra.mxu0 0.0
  %7078 = vmatprep.subr.mxu0 0.0
  %7079 = vmatpush1.msra.mxu0 0.0
  %7080 = vmatprep.subr.mxu0 0.0
  %7081 = vmatpush1.msra.mxu0 0.0
  %7082 = vmatprep.subr.mxu0 0.0
  %7083 = vmatpush1.msra.mxu0 0.0
  %7084 = vmatprep.subr.mxu0 0.0
  %7085 = vmatpush1.msra.mxu0 0.0
  %7086 = vmatprep.subr.mxu0 0.0
  %7087 = vmatpush1.msra.mxu0 0.0
  %7088 = vmatprep.subr.mxu0 0.0
  %7089 = vmatpush1.msra.mxu0 0.0
  %7090 = vmatprep.subr.mxu0 0.0
  %7091 = vmatpush1.msra.mxu0 0.0
  %7092 = vmatprep.subr.mxu0 0.0
  %7093 = vmatpush1.msra.mxu0 0.0
  %7094 = vmatprep.mubr.f32.mxu0 0.0
  %7095 = vmatmul.mubr.f32.gmra.mrb[0].mxu0 %v7026
  %v7096 = vpop.f32.mrb[0].mxu0
  %v7097 = vadd.f32 %v7018, %v7096
  %v7098 = vpop.f32.mrb[0].mxu0
  %7099 = vmatprep.mubr.f32.mxu0 0.0
  %7100 = vmatmul.mubr.f32.gmra.mrb[0].mxu0 %v7028
  %v7101 = vpop.f32.mrb[0].mxu0
  %v7102 = vadd.f32 %v7023, %v7101
  %v7103 = vpop.f32.mrb[0].mxu0
  %7104 = vdwg.mxu0
  %v7105 = vld [vmem:[%s6839] sm:$0xff]
  %v7106 = vld [vmem:[%s6839 + $0x8] sm:$0xff]
  %v7107 = vrot.slane %v6932, 2
  %v7108 = vrot.slane %v6933, 2
  %v7109 = vsel %vm237, %v7107, %v7108
  %v7110 = vrot.slane %v6934, 2
  %v7111 = vsel %vm237, %v7108, %v7110
  %v7112 = vsel %vm328, %v7109, 0
  %v7114 = vsel %vm328, %v7111, 0
  %7116 = vmatprep.subr.mxu0 0.0
  %7117 = vmatpush1.msra.mxu0 %v7105
  %7118 = vmatprep.subr.mxu0 0.0
  %7119 = vmatpush1.msra.mxu0 %v7106
  %7120 = vmatprep.subr.mxu0 0.0
  %7121 = vmatpush1.msra.mxu0 0.0
  %7122 = vmatprep.subr.mxu0 0.0
  %7123 = vmatpush1.msra.mxu0 0.0
  %7124 = vmatprep.subr.mxu0 0.0
  %7125 = vmatpush1.msra.mxu0 0.0
  %7126 = vmatprep.subr.mxu0 0.0
  %7127 = vmatpush1.msra.mxu0 0.0
  %7128 = vmatprep.subr.mxu0 0.0
  %7129 = vmatpush1.msra.mxu0 0.0
  %7130 = vmatprep.subr.mxu0 0.0
  %7131 = vmatpush1.msra.mxu0 0.0
  %7132 = vmatprep.subr.mxu0 0.0
  %7133 = vmatpush1.msra.mxu0 0.0
  %7134 = vmatprep.subr.mxu0 0.0
  %7135 = vmatpush1.msra.mxu0 0.0
  %7136 = vmatprep.subr.mxu0 0.0
  %7137 = vmatpush1.msra.mxu0 0.0
  %7138 = vmatprep.subr.mxu0 0.0
  %7139 = vmatpush1.msra.mxu0 0.0
  %7140 = vmatprep.subr.mxu0 0.0
  %7141 = vmatpush1.msra.mxu0 0.0
  %7142 = vmatprep.subr.mxu0 0.0
  %7143 = vmatpush1.msra.mxu0 0.0
  %7144 = vmatprep.subr.mxu0 0.0
  %7145 = vmatpush1.msra.mxu0 0.0
  %7146 = vmatprep.subr.mxu0 0.0
  %7147 = vmatpush1.msra.mxu0 0.0
  %7148 = vmatprep.subr.mxu0 0.0
  %7149 = vmatpush1.msra.mxu0 0.0
  %7150 = vmatprep.subr.mxu0 0.0
  %7151 = vmatpush1.msra.mxu0 0.0
  %7152 = vmatprep.subr.mxu0 0.0
  %7153 = vmatpush1.msra.mxu0 0.0
  %7154 = vmatprep.subr.mxu0 0.0
  %7155 = vmatpush1.msra.mxu0 0.0
  %7156 = vmatprep.subr.mxu0 0.0
  %7157 = vmatpush1.msra.mxu0 0.0
  %7158 = vmatprep.subr.mxu0 0.0
  %7159 = vmatpush1.msra.mxu0 0.0
  %7160 = vmatprep.subr.mxu0 0.0
  %7161 = vmatpush1.msra.mxu0 0.0
  %7162 = vmatprep.subr.mxu0 0.0
  %7163 = vmatpush1.msra.mxu0 0.0
  %7164 = vmatprep.subr.mxu0 0.0
  %7165 = vmatpush1.msra.mxu0 0.0
  %7166 = vmatprep.subr.mxu0 0.0
  %7167 = vmatpush1.msra.mxu0 0.0
  %7168 = vmatprep.subr.mxu0 0.0
  %7169 = vmatpush1.msra.mxu0 0.0
  %7170 = vmatprep.subr.mxu0 0.0
  %7171 = vmatpush1.msra.mxu0 0.0
  %7172 = vmatprep.subr.mxu0 0.0
  %7173 = vmatpush1.msra.mxu0 0.0
  %7174 = vmatprep.subr.mxu0 0.0
  %7175 = vmatpush1.msra.mxu0 0.0
  %7176 = vmatprep.subr.mxu0 0.0
  %7177 = vmatpush1.msra.mxu0 0.0
  %7178 = vmatprep.subr.mxu0 0.0
  %7179 = vmatpush1.msra.mxu0 0.0
  %7180 = vmatprep.mubr.f32.mxu0 0.0
  %7181 = vmatmul.mubr.f32.gmra.mrb[0].mxu0 %v7112
  %v7182 = vpop.f32.mrb[0].mxu0
  %v7183 = vadd.f32 0.0, %v7182
  %v7184 = vpop.f32.mrb[0].mxu0
  %7185 = vmatprep.mubr.f32.mxu0 0.0
  %7186 = vmatmul.mubr.f32.gmra.mrb[0].mxu0 %v7114
  %v7187 = vpop.f32.mrb[0].mxu0
  %v7188 = vadd.f32 0.0, %v7187
  %v7189 = vpop.f32.mrb[0].mxu0
  %7190 = vdwg.mxu0
  %v7191 = vadd.f32 %v7097, %v7183
  %v7192 = vadd.f32 %v7102, %v7188
  %v7193 = vsel %vm328, %v6926, 0.0
  %v7194 = vsel %vm328, %v6927, 0.0
  %v7195 = vadd.f32 %v7193, %v7194
  %v7196 = vrot.slane %v7195, 4
  %v7197 = vadd.f32 %v7195, %v7196
  %v7198 = vrot.slane %v7197, 2
  %v7199 = vadd.f32 %v7197, %v7198
  %v7200 = vrot.slane %v7199, 1
  %v7201 = vadd.f32 %v7199, %v7200
  %v7202 = vadd.f32 %v7201, 0.0
  %v7203 = vsel %vm328, %v7191, 0.0
  %v7204 = vsel %vm328, %v7192, 0.0
  %v7205 = vadd.f32 %v7203, %v7204
  %v7206 = vrot.slane %v7205, 4
  %v7207 = vadd.f32 %v7205, %v7206
  %v7208 = vrot.slane %v7207, 2
  %v7209 = vadd.f32 %v7207, %v7208
  %v7210 = vrot.slane %v7209, 1
  %v7211 = vadd.f32 %v7209, %v7210
  %v7212 = vadd.f32 %v7202, %v7211
  %v7213 = vmul.f32 %v6926, %v6926
  %v7214 = vmul.f32 %v6927, %v6927
  %v7215 = vsel %vm328, %v7213, 0.0
  %v7216 = vsel %vm328, %v7214, 0.0
  %v7217 = vadd.f32 %v7215, %v7216
  %v7218 = vrot.slane %v7217, 4
  %v7219 = vadd.f32 %v7217, %v7218
  %v7220 = vrot.slane %v7219, 2
  %v7221 = vadd.f32 %v7219, %v7220
  %v7222 = vrot.slane %v7221, 1
  %v7223 = vadd.f32 %v7221, %v7222
  %v7224 = vadd.f32 %v7223, 0.0
  %v7225 = vmul.f32 %v7191, %v7191
  %v7226 = vmul.f32 %v7192, %v7192
  %v7227 = vsel %vm328, %v7225, 0.0
  %v7228 = vsel %vm328, %v7226, 0.0
  %v7229 = vadd.f32 %v7227, %v7228
  %v7230 = vrot.slane %v7229, 4
  %v7231 = vadd.f32 %v7229, %v7230
  %v7232 = vrot.slane %v7231, 2
  %v7233 = vadd.f32 %v7231, %v7232
  %v7234 = vrot.slane %v7233, 1
  %v7235 = vadd.f32 %v7233, %v7234
  %v7236 = vadd.f32 %v7224, %v7235
  %v7237 = vmul.f32 %v7212, %v373
  %v7238 = vmul.f32 %v7236, %v373
  %v7239 = vmul.f32 %v7237, %v7237
  %v7240 = vsub.f32 %v7238, %v7239
  %v7241 = vld [vmem:[%s71] sm:$0x1]
  %v7242 = vadd.f32 %v7240, 1e-05
  %v7243 = vrsqrt.pop %v7242
  %v7244 = vmul.f32 %v7241, %v7243
  %v7245 = vld [vmem:[%s73] sm:$0x1]
  %v7246 = vmul.f32 %v7237, %v7244
  %v7247 = vsub.f32 %v7245, %v7246
  %v7249 = vlaneseq
  %v7250 = vshrl.u32 %v7249, 7
  %v7251 = vsub.s32 0, %v7250
  %v7252 = vrot.slane %v7244, %v7251
  %v7254 = vmul.f32 %v6926, %v7252
  %v7255 = vmul.f32 %v6927, %v7252
  %v7257 = vlaneseq
  %v7258 = vshrl.u32 %v7257, 7
  %v7259 = vsub.s32 0, %v7258
  %v7260 = vrot.slane %v7247, %v7259
  %v7262 = vadd.f32 %v7254, %v7260
  %v7263 = vadd.f32 %v7255, %v7260
  %v7264 = vtanh.pop %v7262
  %v7265 = vtanh.pop %v7263
  %v7266 = vmul.f32 %v7191, %v7252
  %v7267 = vmul.f32 %v7192, %v7252
  %v7268 = vadd.f32 %v7266, %v7260
  %v7269 = vadd.f32 %v7267, %v7260
  %v7270 = vtanh.pop %v7268
  %v7271 = vtanh.pop %v7269
  %v7272 = vld [vmem:[%s75] sm:$0xff]
  %v7273 = vld [vmem:[%s75 + $0x8] sm:$0xff]
  %v7274 = vld [vmem:[%s77] sm:$0x1]
  %v7276 = vlaneseq
  %v7277 = vshrl.u32 %v7276, 7
  %v7278 = vsub.s32 0, %v7277
  %v7279 = vrot.slane %v7274, %v7278
  %v7282 = vsel %vm328, %v7264, 0
  %v7285 = vsel %vm328, %v7265, 0
  %7287 = vmatprep.subr.mxu0 0.0
  %7288 = vmatpush1.msra.mxu0 %v7272
  %7289 = vmatprep.subr.mxu0 0.0
  %7290 = vmatpush1.msra.mxu0 %v7273
  %7291 = vmatprep.subr.mxu0 0.0
  %7292 = vmatpush1.msra.mxu0 0.0
  %7293 = vmatprep.subr.mxu0 0.0
  %7294 = vmatpush1.msra.mxu0 0.0
  %7295 = vmatprep.subr.mxu0 0.0
  %7296 = vmatpush1.msra.mxu0 0.0
  %7297 = vmatprep.subr.mxu0 0.0
  %7298 = vmatpush1.msra.mxu0 0.0
  %7299 = vmatprep.subr.mxu0 0.0
  %7300 = vmatpush1.msra.mxu0 0.0
  %7301 = vmatprep.subr.mxu0 0.0
  %7302 = vmatpush1.msra.mxu0 0.0
  %7303 = vmatprep.subr.mxu0 0.0
  %7304 = vmatpush1.msra.mxu0 0.0
  %7305 = vmatprep.subr.mxu0 0.0
  %7306 = vmatpush1.msra.mxu0 0.0
  %7307 = vmatprep.subr.mxu0 0.0
  %7308 = vmatpush1.msra.mxu0 0.0
  %7309 = vmatprep.subr.mxu0 0.0
  %7310 = vmatpush1.msra.mxu0 0.0
  %7311 = vmatprep.subr.mxu0 0.0
  %7312 = vmatpush1.msra.mxu0 0.0
  %7313 = vmatprep.subr.mxu0 0.0
  %7314 = vmatpush1.msra.mxu0 0.0
  %7315 = vmatprep.subr.mxu0 0.0
  %7316 = vmatpush1.msra.mxu0 0.0
  %7317 = vmatprep.subr.mxu0 0.0
  %7318 = vmatpush1.msra.mxu0 0.0
  %7319 = vmatprep.subr.mxu0 0.0
  %7320 = vmatpush1.msra.mxu0 0.0
  %7321 = vmatprep.subr.mxu0 0.0
  %7322 = vmatpush1.msra.mxu0 0.0
  %7323 = vmatprep.subr.mxu0 0.0
  %7324 = vmatpush1.msra.mxu0 0.0
  %7325 = vmatprep.subr.mxu0 0.0
  %7326 = vmatpush1.msra.mxu0 0.0
  %7327 = vmatprep.subr.mxu0 0.0
  %7328 = vmatpush1.msra.mxu0 0.0
  %7329 = vmatprep.subr.mxu0 0.0
  %7330 = vmatpush1.msra.mxu0 0.0
  %7331 = vmatprep.subr.mxu0 0.0
  %7332 = vmatpush1.msra.mxu0 0.0
  %7333 = vmatprep.subr.mxu0 0.0
  %7334 = vmatpush1.msra.mxu0 0.0
  %7335 = vmatprep.subr.mxu0 0.0
  %7336 = vmatpush1.msra.mxu0 0.0
  %7337 = vmatprep.subr.mxu0 0.0
  %7338 = vmatpush1.msra.mxu0 0.0
  %7339 = vmatprep.subr.mxu0 0.0
  %7340 = vmatpush1.msra.mxu0 0.0
  %7341 = vmatprep.subr.mxu0 0.0
  %7342 = vmatpush1.msra.mxu0 0.0
  %7343 = vmatprep.subr.mxu0 0.0
  %7344 = vmatpush1.msra.mxu0 0.0
  %7345 = vmatprep.subr.mxu0 0.0
  %7346 = vmatpush1.msra.mxu0 0.0
  %7347 = vmatprep.subr.mxu0 0.0
  %7348 = vmatpush1.msra.mxu0 0.0
  %7349 = vmatprep.subr.mxu0 0.0
  %7350 = vmatpush1.msra.mxu0 0.0
  %7351 = vmatprep.mubr.f32.mxu0 0.0
  %7352 = vmatmul.mubr.f32.gmra.mrb[0].mxu0 %v7282
  %v7353 = vpop.f32.mrb[0].mxu0
  %v7354 = vadd.f32 %v7279, %v7353
  %v7355 = vpop.f32.mrb[0].mxu0
  %7356 = vmatprep.mubr.f32.mxu0 0.0
  %7357 = vmatmul.mubr.f32.gmra.mrb[0].mxu0 %v7285
  %v7358 = vpop.f32.mrb[0].mxu0
  %v7359 = vadd.f32 %v7279, %v7358
  %v7360 = vpop.f32.mrb[0].mxu0
  %7361 = vdwg.mxu0
  %vm7362 = vcmask 23552
  %7363 = vst.msk [vmem:[%s79] sm:$0xff] %vm7362, %v7354
  %7364 = vst.msk [vmem:[%s79 + $0x8] sm:$0xff] %vm7362, %v7359
  %v7366 = vsel %vm328, %v7270, 0
  %v7369 = vsel %vm328, %v7271, 0
  %7371 = vmatprep.subr.mxu0 0.0
  %7372 = vmatpush1.msra.mxu0 %v7272
  %7373 = vmatprep.subr.mxu0 0.0
  %7374 = vmatpush1.msra.mxu0 %v7273
  %7375 = vmatprep.subr.mxu0 0.0
  %7376 = vmatpush1.msra.mxu0 0.0
  %7377 = vmatprep.subr.mxu0 0.0
  %7378 = vmatpush1.msra.mxu0 0.0
  %7379 = vmatprep.subr.mxu0 0.0
  %7380 = vmatpush1.msra.mxu0 0.0
  %7381 = vmatprep.subr.mxu0 0.0
  %7382 = vmatpush1.msra.mxu0 0.0
  %7383 = vmatprep.subr.mxu0 0.0
  %7384 = vmatpush1.msra.mxu0 0.0
  %7385 = vmatprep.subr.mxu0 0.0
  %7386 = vmatpush1.msra.mxu0 0.0
  %7387 = vmatprep.subr.mxu0 0.0
  %7388 = vmatpush1.msra.mxu0 0.0
  %7389 = vmatprep.subr.mxu0 0.0
  %7390 = vmatpush1.msra.mxu0 0.0
  %7391 = vmatprep.subr.mxu0 0.0
  %7392 = vmatpush1.msra.mxu0 0.0
  %7393 = vmatprep.subr.mxu0 0.0
  %7394 = vmatpush1.msra.mxu0 0.0
  %7395 = vmatprep.subr.mxu0 0.0
  %7396 = vmatpush1.msra.mxu0 0.0
  %7397 = vmatprep.subr.mxu0 0.0
  %7398 = vmatpush1.msra.mxu0 0.0
  %7399 = vmatprep.subr.mxu0 0.0
  %7400 = vmatpush1.msra.mxu0 0.0
  %7401 = vmatprep.subr.mxu0 0.0
  %7402 = vmatpush1.msra.mxu0 0.0
  %7403 = vmatprep.subr.mxu0 0.0
  %7404 = vmatpush1.msra.mxu0 0.0
  %7405 = vmatprep.subr.mxu0 0.0
  %7406 = vmatpush1.msra.mxu0 0.0
  %7407 = vmatprep.subr.mxu0 0.0
  %7408 = vmatpush1.msra.mxu0 0.0
  %7409 = vmatprep.subr.mxu0 0.0
  %7410 = vmatpush1.msra.mxu0 0.0
  %7411 = vmatprep.subr.mxu0 0.0
  %7412 = vmatpush1.msra.mxu0 0.0
  %7413 = vmatprep.subr.mxu0 0.0
  %7414 = vmatpush1.msra.mxu0 0.0
  %7415 = vmatprep.subr.mxu0 0.0
  %7416 = vmatpush1.msra.mxu0 0.0
  %7417 = vmatprep.subr.mxu0 0.0
  %7418 = vmatpush1.msra.mxu0 0.0
  %7419 = vmatprep.subr.mxu0 0.0
  %7420 = vmatpush1.msra.mxu0 0.0
  %7421 = vmatprep.subr.mxu0 0.0
  %7422 = vmatpush1.msra.mxu0 0.0
  %7423 = vmatprep.subr.mxu0 0.0
  %7424 = vmatpush1.msra.mxu0 0.0
  %7425 = vmatprep.subr.mxu0 0.0
  %7426 = vmatpush1.msra.mxu0 0.0
  %7427 = vmatprep.subr.mxu0 0.0
  %7428 = vmatpush1.msra.mxu0 0.0
  %7429 = vmatprep.subr.mxu0 0.0
  %7430 = vmatpush1.msra.mxu0 0.0
  %7431 = vmatprep.subr.mxu0 0.0
  %7432 = vmatpush1.msra.mxu0 0.0
  %7433 = vmatprep.subr.mxu0 0.0
  %7434 = vmatpush1.msra.mxu0 0.0
  %7435 = vmatprep.mubr.f32.mxu0 0.0
  %7436 = vmatmul.mubr.f32.gmra.mrb[0].mxu0 %v7366
  %v7437 = vpop.f32.mrb[0].mxu0
  %v7438 = vadd.f32 %v7279, %v7437
  %v7439 = vpop.f32.mrb[0].mxu0
  %7440 = vmatprep.mubr.f32.mxu0 0.0
  %7441 = vmatmul.mubr.f32.gmra.mrb[0].mxu0 %v7369
  %v7442 = vpop.f32.mrb[0].mxu0
  %v7443 = vadd.f32 %v7279, %v7442
  %v7444 = vpop.f32.mrb[0].mxu0
  %7445 = vdwg.mxu0
  %s7446 = scalar_lea.vmem %s79, 16
  %7447 = vst.msk [vmem:[%s7446] sm:$0xff] %vm7362, %v7438
  %7448 = vst.msk [vmem:[%s7446 + $0x8] sm:$0xff] %vm7362, %v7443
  // Predicated region
  $region158: #{unet1d_forward.1} parent=0 // pred_check
    _
  $region159: #{unet1d_forward.1} parent=0 // pred_check_branch
    %7450 = sbr.rel (0) target = $region161
  $region160: #{unet1d_forward.1} parent=0 // pred_region
    _
  $region161: #{unet1d_forward.1} parent=0 // pred_fallthru
    _
  // Predicated region
  $region162: #{unet1d_forward.1} parent=0 // pred_check
    _
  $region163: #{unet1d_forward.1} parent=0 // pred_check_branch
    %7452 = sbr.rel (0) target = $region165
  $region164: #{unet1d_forward.1} parent=0 // pred_region
    _
  $region165: #{unet1d_forward.1} parent=0 // pred_fallthru
    _

</llo_original>
